<compile_context>
chip_gen: v7x
topology: tpu7x:2x2x1
jax: 0.10.0
libtpu: 0.0.40
codegen_flags: <defaults>
</compile_context>

<pallas_src>
import functools
import math

import jax
import jax.numpy as jnp
from jax.experimental import pallas as pl
from jax.experimental.pallas import tpu as pltpu


def _round_up(x, m):
    return -(-x // m) * m


def _vmem_capacity_bytes():
    try:
        get_info = getattr(pltpu, "get_tpu_info", None)
        if get_info is not None:
            info = get_info()
            for attr in ("vmem_capacity_bytes", "vmem_bytes", "vmem_size_bytes"):
                v = getattr(info, attr, None)
                if v:
                    return int(v)
    except Exception:
        pass
    return 128 * 2 ** 20        # v5e/v6e default; conservative for unknown chips


def _compiler_params(block_bytes):
    cap = _vmem_capacity_bytes()
    limit = max(32 * 2 ** 20, 8 * int(block_bytes))
    limit = int(min(limit, int(0.75 * cap)))     # never claim the whole VMEM (v7x: 64 MiB)
    return pltpu.CompilerParams(
        dimension_semantics=("parallel",),
        vmem_limit_bytes=limit)


# ----------------------------------------------------------------------------
# Kernel 1: single conv (stride-1 over a pre-padded / space-to-depth'ed image).
# Flat-row tap trick: for a padded image flattened to (Hin*Win, Cin), the patch
# feeding output row h*Win+w for tap (ti,tj) sits at the CONSTANT row offset
# ti*Win+tj.  So each tap is one contiguous row-window matmul; no per-tap
# reshape/relayout.  Columns w >= Wo are junk and dropped once in the epilogue.
# ----------------------------------------------------------------------------
def _conv_kernel(x_ref, w_ref, b_ref, o_ref, *, rh, rw, Ho, Wo, Win, relu_out):
    # x_ref: (Rin, Cin) bf16 flat padded image (Rin >= Hin*Win + rw - 1)
    # w_ref: (rh*rw, Cin, Cout) bf16 tap-major packed weights
    # b_ref: (1, Cout) f32
    # o_ref: (Ho, Wo, Cout)
    cout = o_ref.shape[-1]
    acc = jnp.zeros((Ho * Win, cout), jnp.float32)
    for ti in range(rh):                              # static tap loop (fused im2col)
        for tj in range(rw):
            off = ti * Win + tj
            patch = x_ref[pl.ds(off, Ho * Win), :]    # constant-offset row window
            acc = acc + jnp.dot(patch, w_ref[ti * rw + tj],
                                preferred_element_type=jnp.float32)
    acc = acc + b_ref[...]                            # f32 epilogue
    if relu_out:
        acc = jnp.maximum(acc, 0.0)
    out = acc.reshape(Ho, Win, cout)[:, :Wo, :]       # drop junk tail columns ONCE
    o_ref[...] = out.astype(o_ref.dtype)


def conv2d_head(x, layer, *, relu_out, out_f32):
    """x: (N, H, W, Cin) bf16 -> (N, Ho, Wo, Cout) (bf16, or f32 if out_f32)."""
    w, b = layer["w"], layer["b"]
    rh, rw, pad, s2d = layer["rh"], layer["rw"], layer["pad"], layer["s2d"]
    ntap, cin_eff, cout = w.shape

    if pad:
        x = jnp.pad(x, ((0, 0), (pad, pad), (pad, pad), (0, 0)))
    if s2d:
        # stride-2 conv -> stride-1 conv over space-to-depth'ed input
        # (weights repacked to match at parameter-build time).
        N, Hp, Wp, C = x.shape
        assert Hp % 2 == 0 and Wp % 2 == 0, "space-to-depth needs even padded H/W"
        x = x.reshape(N, Hp // 2, 2, Wp // 2, 2, C)
        x = x.transpose(0, 1, 3, 2, 4, 5).reshape(N, Hp // 2, Wp // 2, 4 * C)
    N, Hin, Win, Cin = x.shape
    assert Cin == cin_eff, (Cin, cin_eff)
    Ho, Wo = Hin - rh + 1, Win - rw + 1

    # Flatten spatial dims; add zero tail rows so every tap's constant-offset
    # window stays in bounds (and round rows to a sublane multiple).
    Rin = _round_up(Hin * Win + (rw - 1), 8)
    xf = x.reshape(N, Hin * Win, Cin)
    xf = jnp.pad(xf, ((0, 0), (0, Rin - Hin * Win), (0, 0)))

    out_dtype = jnp.float32 if out_f32 else jnp.bfloat16
    block_bytes = (2 * Rin * Cin * 2                 # bf16 input (double-buffered)
                   + 2 * ntap * Cin * cout * 2       # bf16 weights
                   + 2 * cout * 4
                   + 2 * Ho * Win * cout * 4         # f32 accumulator + epilogue temps
                   + 2 * Ho * Wo * cout * (4 if out_f32 else 2))

    kernel = functools.partial(_conv_kernel, rh=rh, rw=rw, Ho=Ho, Wo=Wo, Win=Win,
                               relu_out=relu_out)
    return pl.pallas_call(
        kernel,
        out_shape=jax.ShapeDtypeStruct((N, Ho, Wo, cout), out_dtype),
        grid=(N,),
        in_specs=[
            pl.BlockSpec((None, Rin, Cin), lambda n: (n, 0, 0)),
            pl.BlockSpec((ntap, Cin, cout), lambda n: (0, 0, 0)),
            pl.BlockSpec((1, cout), lambda n: (0, 0)),
        ],
        out_specs=pl.BlockSpec((None, Ho, Wo, cout), lambda n: (n, 0, 0, 0)),
        compiler_params=_compiler_params(block_bytes),
    )(xf, w, b)


# ----------------------------------------------------------------------------
# Kernel 2: fully fused ResBlock.
#   out = Conv1x1(ReLU(Conv3x3(ReLU(x)) + b1)) + b2 + x   [+ trailing ReLU]
# The 3x3 zero padding is constructed in a VMEM scratch (flat row layout), so
# no padded activation or ResBlock intermediate is ever written to HBM.
# ----------------------------------------------------------------------------
def _resblock_kernel(y_ref, w1_ref, b1_ref, w2_ref, b2_ref, o_ref, pad_ref,
                     *, H, W, relu_final):
    # y_ref : (H, W, C) bf16 unpadded input
    # w1_ref: (9, C, Cres) bf16   b1_ref: (1, Cres) f32
    # w2_ref: (Cres, C) bf16      b2_ref: (1, C) f32
    # o_ref : (H, W, C)
    # pad_ref: VMEM (Rpad, C) bf16 flat padded scratch, Rpad >= (H+2)*(W+2)+2
    C = y_ref.shape[-1]
    cres = w1_ref.shape[-1]
    Win = W + 2

    # Zero-pad ReLU(y) into the scratch (flat row-major (H+2, W+2) layout).
    pad_ref[...] = jnp.zeros_like(pad_ref)
    for h in range(H):                                          # static loop
        row = jnp.maximum(y_ref[h], 0.0).astype(pad_ref.dtype)  # (W, C)
        pad_ref[pl.ds((h + 1) * Win + 1, W), :] = row

    # 3x3 conv via 9 constant-offset tap matmuls at full padded width.
    acc1 = jnp.zeros((H * Win, cres), jnp.float32)
    for ti in range(3):
        for tj in range(3):
            off = ti * Win + tj
            patch = pad_ref[pl.ds(off, H * Win), :]
            acc1 = acc1 + jnp.dot(patch, w1_ref[ti * 3 + tj],
                                  preferred_element_type=jnp.float32)
    h1 = jnp.maximum(acc1 + b1_ref[...], 0.0).astype(jnp.bfloat16)

    # 1x1 conv (junk tail columns carried along, dropped below).
    acc2 = jnp.dot(h1, w2_ref[...], preferred_element_type=jnp.float32)
    acc2 = acc2 + b2_ref[...]

    out = acc2.reshape(H, Win, C)[:, :W, :]          # drop junk columns ONCE
    out = out + y_ref[...].astype(jnp.float32)       # residual add in f32
    if relu_final:                                   # trailing Encoder ReLU
        out = jnp.maximum(out, 0.0)
    o_ref[...] = out.astype(o_ref.dtype)


def resblock_fused(y, rb, *, relu_final, out_f32):
    """y: (N, H, W, C) bf16 -> (N, H, W, C) (bf16, or f32 if out_f32)."""
    N, H, W, C = y.shape
    cres = rb["w1"].shape[-1]
    Win = W + 2
    Rpad = _round_up((H + 2) * Win + 2, 8)
    out_dtype = jnp.float32 if out_f32 else jnp.bfloat16

    block_bytes = (2 * H * W * C * 2
                   + 9 * C * cres * 2 + cres * C * 2 + 4 * (cres + C)
                   + Rpad * C * 2
                   + 2 * H * Win * max(C, cres) * 4
                   + 2 * H * W * C * (4 if out_f32 else 2))

    kernel = functools.partial(_resblock_kernel, H=H, W=W, relu_final=relu_final)
    return pl.pallas_call(
        kernel,
        out_shape=jax.ShapeDtypeStruct((N, H, W, C), out_dtype),
        grid=(N,),
        in_specs=[
            pl.BlockSpec((None, H, W, C), lambda n: (n, 0, 0, 0)),
            pl.BlockSpec((9, C, cres), lambda n: (0, 0, 0)),
            pl.BlockSpec((1, cres), lambda n: (0, 0)),
            pl.BlockSpec((cres, C), lambda n: (0, 0)),
            pl.BlockSpec((1, C), lambda n: (0, 0)),
        ],
        out_specs=pl.BlockSpec((None, H, W, C), lambda n: (n, 0, 0, 0)),
        scratch_shapes=[pltpu.VMEM((Rpad, C), jnp.bfloat16)],
        compiler_params=_compiler_params(block_bytes),
    )(y, rb["w1"], rb["b1"], rb["w2"], rb["b2"])


# ----------------------------------------------------------------------------
# Weight packing (done once at parameter-build time; bf16, tap-major).
# ----------------------------------------------------------------------------
def _prep_head_conv(w_pt, b_pt, stride, pad):
    """Pack a PyTorch-layout Conv2d weight (Cout, Cin, kh, kw) for the kernel."""
    cout, cin, kh, kw = w_pt.shape
    wt = jnp.transpose(w_pt, (2, 3, 1, 0))                  # (kh, kw, Cin, Cout)
    if stride == 2:
        assert kh % 2 == 0 and kw % 2 == 0
        rh, rw = kh // 2, kw // 2
        w_eff = wt.reshape(rh, 2, rw, 2, cin, cout)
        w_eff = w_eff.transpose(0, 2, 1, 3, 4, 5).reshape(rh * rw, 4 * cin, cout)
        s2d = True
    else:
        assert stride == 1
        rh, rw = kh, kw
        w_eff = wt.reshape(kh * kw, cin, cout)
        s2d = False
    return {"w": w_eff.astype(jnp.bfloat16),
            "b": b_pt.reshape(1, cout).astype(jnp.float32),
            "rh": rh, "rw": rw, "pad": pad, "s2d": s2d}


def _prep_resblock(w1, b1, w2, b2):
    cres, c, _, _ = w1.shape
    w1p = jnp.transpose(w1, (2, 3, 1, 0)).reshape(9, c, cres).astype(jnp.bfloat16)
    w2p = jnp.transpose(w2, (2, 3, 1, 0)).reshape(cres, c).astype(jnp.bfloat16)
    return {"w1": w1p, "b1": b1.reshape(1, cres).astype(jnp.float32),
            "w2": w2p, "b2": b2.reshape(1, c).astype(jnp.float32)}


def make_encoder_params(key, in_channel, channel, n_res_block, n_res_channel,
                        stride):
    keys = iter(jax.random.split(key, 64))

    def conv_raw(cout, cin, kh, kw):
        fan = cin * kh * kw
        w = jax.random.normal(next(keys), (cout, cin, kh, kw), jnp.float32)
        w = w * (1.0 / math.sqrt(fan))
        b = jax.random.normal(next(keys), (cout,), jnp.float32) * 0.01
        return w, b

    if stride == 16:
        head_cfg = [(channel // 2, in_channel, 4, 2, 1),
                    (channel // 2, channel // 2, 4, 2, 1),
                    (channel // 2, channel // 2, 4, 2, 1),
                    (channel, channel // 2, 4, 2, 1),
                    (channel, channel, 3, 1, 1)]
    elif stride == 8:
        head_cfg = [(channel // 2, in_channel, 4, 2, 1),
                    (channel // 2, channel // 2, 4, 2, 1),
                    (channel, channel // 2, 4, 2, 1),
                    (channel, channel, 3, 1, 1)]
    elif stride == 4:
        head_cfg = [(channel // 2, in_channel, 4, 2, 1),
                    (channel, channel // 2, 4, 2, 1),
                    (channel, channel, 3, 1, 1)]
    elif stride == 2:
        head_cfg = [(channel // 2, in_channel, 4, 2, 1),
                    (channel, channel // 2, 3, 1, 1)]
    else:
        raise ValueError(f"unsupported stride {stride}")

    head_raw, head = [], []
    for (co, ci, k, s, p) in head_cfg:
        w, b = conv_raw(co, ci, k, k)
        head_raw.append((w, b, s, p))
        head.append(_prep_head_conv(w, b, s, p))

    res_raw, res = [], []
    for _ in range(n_res_block):
        w1, b1 = conv_raw(n_res_channel, channel, 3, 3)
        w2, b2 = conv_raw(channel, n_res_channel, 1, 1)
        res_raw.append((w1, b1, w2, b2))
        res.append(_prep_resblock(w1, b1, w2, b2))

    return {"head": head, "res": res}, {"head": head_raw, "res": res_raw}


# ----------------------------------------------------------------------------
# Encoder.forward (Pallas) and XLA references for validation.
# ----------------------------------------------------------------------------
def encoder_forward(x_nchw, params):
    """Matches Encoder.forward: NCHW f32 -> NCHW f32."""
    y = jnp.transpose(x_nchw, (0, 2, 3, 1)).astype(jnp.bfloat16)   # NHWC bf16

    head, res = params["head"], params["res"]
    n_head, n_res = len(head), len(res)
    for i, layer in enumerate(head):
        is_last_head = i == n_head - 1
        is_final = is_last_head and n_res == 0
        # ReLU after every head conv except the last; trailing Encoder ReLU
        # lands here too when there are no ResBlocks.
        relu_out = (not is_last_head) or (n_res == 0)
        y = conv2d_head(y, layer, relu_out=relu_out, out_f32=is_final)

    for j, rb in enumerate(res):
        is_final = j == n_res - 1
        y = resblock_fused(y, rb, relu_final=is_final, out_f32=is_final)

    return jnp.transpose(y, (0, 3, 1, 2)).astype(jnp.float32)       # NCHW


def encoder_reference_f32(x_nchw, raw):
    """Pure-XLA f32 reference (same math as the PyTorch module)."""
    def conv(y, w, b, s, p):
        out = jax.lax.conv_general_dilated(
            y, w, window_strides=(s, s), padding=[(p, p), (p, p)],
            dimension_numbers=("NCHW", "OIHW", "NCHW"))
        return out + b[None, :, None, None]

    y = x_nchw.astype(jnp.float32)
    head = raw["head"]
    for i, (w, b, s, p) in enumerate(head):
        y = conv(y, w, b, s, p)
        if i < len(head) - 1:
            y = jnp.maximum(y, 0.0)
    for (w1, b1, w2, b2) in raw["res"]:
        h = jnp.maximum(conv(jnp.maximum(y, 0.0), w1, b1, 1, 1), 0.0)
        y = conv(h, w2, b2, 1, 0) + y
    return jnp.maximum(y, 0.0)


def encoder_reference_bf16(x_nchw, raw):
    """XLA reference using the SAME bf16 quantization points as the kernel."""
    f32 = jnp.float32

    def conv(y, w, b, s, p):
        out = jax.lax.conv_general_dilated(
            y.astype(jnp.bfloat16), w.astype(jnp.bfloat16),
            window_strides=(s, s), padding=[(p, p), (p, p)],
            dimension_numbers=("NCHW", "OIHW", "NCHW"),
            preferred_element_type=f32)
        return out + b[None, :, None, None]

    head, res = raw["head"], raw["res"]
    n_head, n_res = len(head), len(res)
    y = x_nchw.astype(jnp.bfloat16)
    for i, (w, b, s, p) in enumerate(head):
        o = conv(y, w, b, s, p)
        is_final = (i == n_head - 1) and n_res == 0
        if (i < n_head - 1) or (n_res == 0):
            o = jnp.maximum(o, 0.0)
        y = o.astype(f32 if is_final else jnp.bfloat16)
    for j, (w1, b1, w2, b2) in enumerate(res):
        is_final = j == n_res - 1
        h = jnp.maximum(conv(jnp.maximum(y, 0), w1, b1, 1, 1), 0.0)
        h = h.astype(jnp.bfloat16)
        o = conv(h, w2, b2, 1, 0) + y.astype(f32)
        if is_final:
            o = jnp.maximum(o, 0.0)
        y = o.astype(f32 if is_final else jnp.bfloat16)
    return y.astype(f32)


if __name__ == "__main__":
    key = jax.random.PRNGKey(0)
    kx, kp4, kp8 = jax.random.split(key, 3)

    B, IN_CH, H, W = 2, 4, 16, 16
    CH, N_RES, RES_CH = 32, 2, 8

    x = jax.random.normal(kx, (B, IN_CH, H, W), jnp.float32)   # NCHW, like PyTorch

    for name, kp, stride in (("stride4", kp4, 4), ("stride8", kp8, 8)):
        params, raw = make_encoder_params(kp, IN_CH, CH, N_RES, RES_CH, stride)
        fwd = jax.jit(functools.partial(encoder_forward, params=params))
        out = jax.block_until_ready(fwd(x))

        exp_hw = H // stride
        assert out.shape == (B, CH, exp_hw, exp_hw), (name, out.shape)
        assert bool(jnp.all(jnp.isfinite(out))), name

        # Tight check against an XLA reference with identical bf16 quantization.
        ref_bf16 = encoder_reference_bf16(x, raw)
        assert bool(jnp.allclose(out, ref_bf16, rtol=3e-2, atol=3e-2)), (
            name, "bf16-matched", float(jnp.max(jnp.abs(out - ref_bf16))))

        # Looser sanity check against the pure-f32 PyTorch-equivalent math.
        ref_f32 = encoder_reference_f32(x, raw)
        assert bool(jnp.allclose(out, ref_f32, rtol=1e-1, atol=1e-1)), (
            name, "f32", float(jnp.max(jnp.abs(out - ref_f32))))

    print("KERNEL_OK")
</pallas_src>

<mosaic_0001>
module attributes {stable_mosaic.version = 11 : i64} {
  func.func @_conv_kernel(%arg0: i32, %arg1: memref<1x88x16xbf16, #tpu.memory_space<vmem>>, %arg2: memref<4x16x16xbf16, #tpu.memory_space<vmem>>, %arg3: memref<1x16xf32, #tpu.memory_space<vmem>>, %arg4: memref<1x8x8x16xbf16, #tpu.memory_space<vmem>>) attributes {dimension_semantics = [#tpu.dimension_semantics<parallel>], iteration_bounds = array<i64: 2>, scalar_prefetch = 0 : i64, scratch_operands = 0 : i64, tpu.core_type = #tpu.core_type<tc>, window_params = [{transform_indices = @transform_0, window_bounds = array<i64: 1, 88, 16>}, {pipeline_mode = #tpu.pipeline_mode<synchronous>, transform_indices = @transform_1, window_bounds = array<i64: 4, 16, 16>}, {pipeline_mode = #tpu.pipeline_mode<synchronous>, transform_indices = @transform_2, window_bounds = array<i64: 1, 16>}, {transform_indices = @transform_3, window_bounds = array<i64: 1, 8, 8, 16>}]} {
    %cst = arith.constant 0.000000e+00 : f32
    %0 = vector.broadcast %cst : f32 to vector<72x16xf32>
    %c0 = arith.constant 0 : index
    %c0_0 = arith.constant 0 : index
    %c0_1 = arith.constant 0 : index
    %1 = vector.load %arg1[%c0, %c0_0, %c0_1] : memref<1x88x16xbf16, #tpu.memory_space<vmem>>, vector<1x72x16xbf16>
    %2 = vector.shape_cast %1 : vector<1x72x16xbf16> to vector<72x16xbf16>
    %c0_2 = arith.constant 0 : index
    %c0_3 = arith.constant 0 : index
    %c0_4 = arith.constant 0 : index
    %3 = vector.load %arg2[%c0_2, %c0_3, %c0_4] : memref<4x16x16xbf16, #tpu.memory_space<vmem>>, vector<1x16x16xbf16>
    %4 = vector.shape_cast %3 : vector<1x16x16xbf16> to vector<16x16xbf16>
    %cst_5 = arith.constant dense<0.000000e+00> : vector<72x16xf32>
    %5 = tpu.matmul %2, %4, %cst_5 {dimension_numbers = #tpu.dot_dimension_numbers<[1], [0], [0], [1], [0, 0, 1, 1], [], []>} : vector<72x16xbf16>, vector<16x16xbf16>, vector<72x16xf32> -> vector<72x16xf32>
    %6 = arith.addf %0, %5 : vector<72x16xf32>
    %c0_6 = arith.constant 0 : index
    %c1 = arith.constant 1 : index
    %c0_7 = arith.constant 0 : index
    %7 = vector.load %arg1[%c0_6, %c1, %c0_7] : memref<1x88x16xbf16, #tpu.memory_space<vmem>>, vector<1x72x16xbf16>
    %8 = vector.shape_cast %7 : vector<1x72x16xbf16> to vector<72x16xbf16>
    %c1_8 = arith.constant 1 : index
    %c0_9 = arith.constant 0 : index
    %c0_10 = arith.constant 0 : index
    %9 = vector.load %arg2[%c1_8, %c0_9, %c0_10] : memref<4x16x16xbf16, #tpu.memory_space<vmem>>, vector<1x16x16xbf16>
    %10 = vector.shape_cast %9 : vector<1x16x16xbf16> to vector<16x16xbf16>
    %cst_11 = arith.constant dense<0.000000e+00> : vector<72x16xf32>
    %11 = tpu.matmul %8, %10, %cst_11 {dimension_numbers = #tpu.dot_dimension_numbers<[1], [0], [0], [1], [0, 0, 1, 1], [], []>} : vector<72x16xbf16>, vector<16x16xbf16>, vector<72x16xf32> -> vector<72x16xf32>
    %12 = arith.addf %6, %11 : vector<72x16xf32>
    %c0_12 = arith.constant 0 : index
    %c9 = arith.constant 9 : index
    %c0_13 = arith.constant 0 : index
    %13 = vector.load %arg1[%c0_12, %c9, %c0_13] : memref<1x88x16xbf16, #tpu.memory_space<vmem>>, vector<1x72x16xbf16>
    %14 = vector.shape_cast %13 : vector<1x72x16xbf16> to vector<72x16xbf16>
    %c2 = arith.constant 2 : index
    %c0_14 = arith.constant 0 : index
    %c0_15 = arith.constant 0 : index
    %15 = vector.load %arg2[%c2, %c0_14, %c0_15] : memref<4x16x16xbf16, #tpu.memory_space<vmem>>, vector<1x16x16xbf16>
    %16 = vector.shape_cast %15 : vector<1x16x16xbf16> to vector<16x16xbf16>
    %cst_16 = arith.constant dense<0.000000e+00> : vector<72x16xf32>
    %17 = tpu.matmul %14, %16, %cst_16 {dimension_numbers = #tpu.dot_dimension_numbers<[1], [0], [0], [1], [0, 0, 1, 1], [], []>} : vector<72x16xbf16>, vector<16x16xbf16>, vector<72x16xf32> -> vector<72x16xf32>
    %18 = arith.addf %12, %17 : vector<72x16xf32>
    %c0_17 = arith.constant 0 : index
    %c10 = arith.constant 10 : index
    %c0_18 = arith.constant 0 : index
    %19 = vector.load %arg1[%c0_17, %c10, %c0_18] : memref<1x88x16xbf16, #tpu.memory_space<vmem>>, vector<1x72x16xbf16>
    %20 = vector.shape_cast %19 : vector<1x72x16xbf16> to vector<72x16xbf16>
    %c3 = arith.constant 3 : index
    %c0_19 = arith.constant 0 : index
    %c0_20 = arith.constant 0 : index
    %21 = vector.load %arg2[%c3, %c0_19, %c0_20] : memref<4x16x16xbf16, #tpu.memory_space<vmem>>, vector<1x16x16xbf16>
    %22 = vector.shape_cast %21 : vector<1x16x16xbf16> to vector<16x16xbf16>
    %cst_21 = arith.constant dense<0.000000e+00> : vector<72x16xf32>
    %23 = tpu.matmul %20, %22, %cst_21 {dimension_numbers = #tpu.dot_dimension_numbers<[1], [0], [0], [1], [0, 0, 1, 1], [], []>} : vector<72x16xbf16>, vector<16x16xbf16>, vector<72x16xf32> -> vector<72x16xf32>
    %24 = arith.addf %18, %23 : vector<72x16xf32>
    %c0_22 = arith.constant 0 : index
    %c0_23 = arith.constant 0 : index
    %25 = vector.load %arg3[%c0_22, %c0_23] : memref<1x16xf32, #tpu.memory_space<vmem>>, vector<1x16xf32>
    %26 = vector.broadcast %25 : vector<1x16xf32> to vector<72x16xf32>
    %27 = arith.addf %24, %26 : vector<72x16xf32>
    %cst_24 = arith.constant 0.000000e+00 : f32
    %28 = vector.broadcast %cst_24 : f32 to vector<72x16xf32>
    %29 = arith.maximumf %27, %28 : vector<72x16xf32>
    %30 = vector.shape_cast %29 : vector<72x16xf32> to vector<8x9x16xf32>
    %31 = vector.extract_strided_slice %30 {offsets = [0, 0, 0], sizes = [8, 8, 16], strides = [1, 1, 1]} : vector<8x9x16xf32> to vector<8x8x16xf32>
    %32 = arith.truncf %31 : vector<8x8x16xf32> to vector<8x8x16xbf16>
    %c0_25 = arith.constant 0 : index
    %c0_26 = arith.constant 0 : index
    %c0_27 = arith.constant 0 : index
    %c0_28 = arith.constant 0 : index
    %33 = vector.load %arg4[%c0_25, %c0_26, %c0_27, %c0_28] : memref<1x8x8x16xbf16, #tpu.memory_space<vmem>>, vector<1x8x8x16xbf16>
    %34 = vector.shape_cast %33 : vector<1x8x8x16xbf16> to vector<8x8x16xbf16>
    %35 = vector.shape_cast %32 : vector<8x8x16xbf16> to vector<1x8x8x16xbf16>
    tpu.vector_store %arg4[%c0_25, %c0_26, %c0_27, %c0_28], %35 {strides = array<i32>} : memref<1x8x8x16xbf16, #tpu.memory_space<vmem>>, vector<1x8x8x16xbf16>,
    return
  }
  func.func @transform_0(%arg0: i32) -> (i32, i32, i32) {
    %c0_i32 = arith.constant 0 : i32
    %c0_i32_0 = arith.constant 0 : i32
    %c0_i32_1 = arith.constant 0 : i32
    return %arg0, %c0_i32, %c0_i32_0 : i32, i32, i32
  }
  func.func @transform_1(%arg0: i32) -> (i32, i32, i32) {
    %c0_i32 = arith.constant 0 : i32
    %c0_i32_0 = arith.constant 0 : i32
    %c0_i32_1 = arith.constant 0 : i32
    %c0_i32_2 = arith.constant 0 : i32
    return %c0_i32, %c0_i32_0, %c0_i32_1 : i32, i32, i32
  }
  func.func @transform_2(%arg0: i32) -> (i32, i32) {
    %c0_i32 = arith.constant 0 : i32
    %c0_i32_0 = arith.constant 0 : i32
    %c0_i32_1 = arith.constant 0 : i32
    return %c0_i32, %c0_i32_0 : i32, i32
  }
  func.func @transform_3(%arg0: i32) -> (i32, i32, i32, i32) {
    %c0_i32 = arith.constant 0 : i32
    %c0_i32_0 = arith.constant 0 : i32
    %c0_i32_1 = arith.constant 0 : i32
    %c0_i32_2 = arith.constant 0 : i32
    return %arg0, %c0_i32, %c0_i32_0, %c0_i32_1 : i32, i32, i32, i32
  }
}

module attributes {stable_mosaic.version = 11 : i64} {
  func.func @_conv_kernel(%arg0: i32, %arg1: memref<1x32x64xbf16, #tpu.memory_space<vmem>>, %arg2: memref<4x64x32xbf16, #tpu.memory_space<vmem>>, %arg3: memref<1x32xf32, #tpu.memory_space<vmem>>, %arg4: memref<1x4x4x32xbf16, #tpu.memory_space<vmem>>) attributes {dimension_semantics = [#tpu.dimension_semantics<parallel>], iteration_bounds = array<i64: 2>, scalar_prefetch = 0 : i64, scratch_operands = 0 : i64, tpu.core_type = #tpu.core_type<tc>, window_params = [{transform_indices = @transform_0, window_bounds = array<i64: 1, 32, 64>}, {pipeline_mode = #tpu.pipeline_mode<synchronous>, transform_indices = @transform_1, window_bounds = array<i64: 4, 64, 32>}, {pipeline_mode = #tpu.pipeline_mode<synchronous>, transform_indices = @transform_2, window_bounds = array<i64: 1, 32>}, {transform_indices = @transform_3, window_bounds = array<i64: 1, 4, 4, 32>}]} {
    %cst = arith.constant 0.000000e+00 : f32
    %0 = vector.broadcast %cst : f32 to vector<20x32xf32>
    %c0 = arith.constant 0 : index
    %c0_0 = arith.constant 0 : index
    %c0_1 = arith.constant 0 : index
    %1 = vector.load %arg1[%c0, %c0_0, %c0_1] : memref<1x32x64xbf16, #tpu.memory_space<vmem>>, vector<1x20x64xbf16>
    %2 = vector.shape_cast %1 : vector<1x20x64xbf16> to vector<20x64xbf16>
    %c0_2 = arith.constant 0 : index
    %c0_3 = arith.constant 0 : index
    %c0_4 = arith.constant 0 : index
    %3 = vector.load %arg2[%c0_2, %c0_3, %c0_4] : memref<4x64x32xbf16, #tpu.memory_space<vmem>>, vector<1x64x32xbf16>
    %4 = vector.shape_cast %3 : vector<1x64x32xbf16> to vector<64x32xbf16>
    %cst_5 = arith.constant dense<0.000000e+00> : vector<20x32xf32>
    %5 = tpu.matmul %2, %4, %cst_5 {dimension_numbers = #tpu.dot_dimension_numbers<[1], [0], [0], [1], [0, 0, 1, 1], [], []>} : vector<20x64xbf16>, vector<64x32xbf16>, vector<20x32xf32> -> vector<20x32xf32>
    %6 = arith.addf %0, %5 : vector<20x32xf32>
    %c0_6 = arith.constant 0 : index
    %c1 = arith.constant 1 : index
    %c0_7 = arith.constant 0 : index
    %7 = vector.load %arg1[%c0_6, %c1, %c0_7] : memref<1x32x64xbf16, #tpu.memory_space<vmem>>, vector<1x20x64xbf16>
    %8 = vector.shape_cast %7 : vector<1x20x64xbf16> to vector<20x64xbf16>
    %c1_8 = arith.constant 1 : index
    %c0_9 = arith.constant 0 : index
    %c0_10 = arith.constant 0 : index
    %9 = vector.load %arg2[%c1_8, %c0_9, %c0_10] : memref<4x64x32xbf16, #tpu.memory_space<vmem>>, vector<1x64x32xbf16>
    %10 = vector.shape_cast %9 : vector<1x64x32xbf16> to vector<64x32xbf16>
    %cst_11 = arith.constant dense<0.000000e+00> : vector<20x32xf32>
    %11 = tpu.matmul %8, %10, %cst_11 {dimension_numbers = #tpu.dot_dimension_numbers<[1], [0], [0], [1], [0, 0, 1, 1], [], []>} : vector<20x64xbf16>, vector<64x32xbf16>, vector<20x32xf32> -> vector<20x32xf32>
    %12 = arith.addf %6, %11 : vector<20x32xf32>
    %c0_12 = arith.constant 0 : index
    %c5 = arith.constant 5 : index
    %c0_13 = arith.constant 0 : index
    %13 = vector.load %arg1[%c0_12, %c5, %c0_13] : memref<1x32x64xbf16, #tpu.memory_space<vmem>>, vector<1x20x64xbf16>
    %14 = vector.shape_cast %13 : vector<1x20x64xbf16> to vector<20x64xbf16>
    %c2 = arith.constant 2 : index
    %c0_14 = arith.constant 0 : index
    %c0_15 = arith.constant 0 : index
    %15 = vector.load %arg2[%c2, %c0_14, %c0_15] : memref<4x64x32xbf16, #tpu.memory_space<vmem>>, vector<1x64x32xbf16>
    %16 = vector.shape_cast %15 : vector<1x64x32xbf16> to vector<64x32xbf16>
    %cst_16 = arith.constant dense<0.000000e+00> : vector<20x32xf32>
    %17 = tpu.matmul %14, %16, %cst_16 {dimension_numbers = #tpu.dot_dimension_numbers<[1], [0], [0], [1], [0, 0, 1, 1], [], []>} : vector<20x64xbf16>, vector<64x32xbf16>, vector<20x32xf32> -> vector<20x32xf32>
    %18 = arith.addf %12, %17 : vector<20x32xf32>
    %c0_17 = arith.constant 0 : index
    %c6 = arith.constant 6 : index
    %c0_18 = arith.constant 0 : index
    %19 = vector.load %arg1[%c0_17, %c6, %c0_18] : memref<1x32x64xbf16, #tpu.memory_space<vmem>>, vector<1x20x64xbf16>
    %20 = vector.shape_cast %19 : vector<1x20x64xbf16> to vector<20x64xbf16>
    %c3 = arith.constant 3 : index
    %c0_19 = arith.constant 0 : index
    %c0_20 = arith.constant 0 : index
    %21 = vector.load %arg2[%c3, %c0_19, %c0_20] : memref<4x64x32xbf16, #tpu.memory_space<vmem>>, vector<1x64x32xbf16>
    %22 = vector.shape_cast %21 : vector<1x64x32xbf16> to vector<64x32xbf16>
    %cst_21 = arith.constant dense<0.000000e+00> : vector<20x32xf32>
    %23 = tpu.matmul %20, %22, %cst_21 {dimension_numbers = #tpu.dot_dimension_numbers<[1], [0], [0], [1], [0, 0, 1, 1], [], []>} : vector<20x64xbf16>, vector<64x32xbf16>, vector<20x32xf32> -> vector<20x32xf32>
    %24 = arith.addf %18, %23 : vector<20x32xf32>
    %c0_22 = arith.constant 0 : index
    %c0_23 = arith.constant 0 : index
    %25 = vector.load %arg3[%c0_22, %c0_23] : memref<1x32xf32, #tpu.memory_space<vmem>>, vector<1x32xf32>
    %26 = vector.broadcast %25 : vector<1x32xf32> to vector<20x32xf32>
    %27 = arith.addf %24, %26 : vector<20x32xf32>
    %cst_24 = arith.constant 0.000000e+00 : f32
    %28 = vector.broadcast %cst_24 : f32 to vector<20x32xf32>
    %29 = arith.maximumf %27, %28 : vector<20x32xf32>
    %30 = vector.shape_cast %29 : vector<20x32xf32> to vector<4x5x32xf32>
    %31 = vector.extract_strided_slice %30 {offsets = [0, 0, 0], sizes = [4, 4, 32], strides = [1, 1, 1]} : vector<4x5x32xf32> to vector<4x4x32xf32>
    %32 = arith.truncf %31 : vector<4x4x32xf32> to vector<4x4x32xbf16>
    %c0_25 = arith.constant 0 : index
    %c0_26 = arith.constant 0 : index
    %c0_27 = arith.constant 0 : index
    %c0_28 = arith.constant 0 : index
    %33 = vector.load %arg4[%c0_25, %c0_26, %c0_27, %c0_28] : memref<1x4x4x32xbf16, #tpu.memory_space<vmem>>, vector<1x4x4x32xbf16>
    %34 = vector.shape_cast %33 : vector<1x4x4x32xbf16> to vector<4x4x32xbf16>
    %35 = vector.shape_cast %32 : vector<4x4x32xbf16> to vector<1x4x4x32xbf16>
    tpu.vector_store %arg4[%c0_25, %c0_26, %c0_27, %c0_28], %35 {strides = array<i32>} : memref<1x4x4x32xbf16, #tpu.memory_space<vmem>>, vector<1x4x4x32xbf16>,
    return
  }
  func.func @transform_0(%arg0: i32) -> (i32, i32, i32) {
    %c0_i32 = arith.constant 0 : i32
    %c0_i32_0 = arith.constant 0 : i32
    %c0_i32_1 = arith.constant 0 : i32
    return %arg0, %c0_i32, %c0_i32_0 : i32, i32, i32
  }
  func.func @transform_1(%arg0: i32) -> (i32, i32, i32) {
    %c0_i32 = arith.constant 0 : i32
    %c0_i32_0 = arith.constant 0 : i32
    %c0_i32_1 = arith.constant 0 : i32
    %c0_i32_2 = arith.constant 0 : i32
    return %c0_i32, %c0_i32_0, %c0_i32_1 : i32, i32, i32
  }
  func.func @transform_2(%arg0: i32) -> (i32, i32) {
    %c0_i32 = arith.constant 0 : i32
    %c0_i32_0 = arith.constant 0 : i32
    %c0_i32_1 = arith.constant 0 : i32
    return %c0_i32, %c0_i32_0 : i32, i32
  }
  func.func @transform_3(%arg0: i32) -> (i32, i32, i32, i32) {
    %c0_i32 = arith.constant 0 : i32
    %c0_i32_0 = arith.constant 0 : i32
    %c0_i32_1 = arith.constant 0 : i32
    %c0_i32_2 = arith.constant 0 : i32
    return %arg0, %c0_i32, %c0_i32_0, %c0_i32_1 : i32, i32, i32, i32
  }
}

module attributes {stable_mosaic.version = 11 : i64} {
  func.func @_conv_kernel(%arg0: i32, %arg1: memref<1x40x32xbf16, #tpu.memory_space<vmem>>, %arg2: memref<9x32x32xbf16, #tpu.memory_space<vmem>>, %arg3: memref<1x32xf32, #tpu.memory_space<vmem>>, %arg4: memref<1x4x4x32xbf16, #tpu.memory_space<vmem>>) attributes {dimension_semantics = [#tpu.dimension_semantics<parallel>], iteration_bounds = array<i64: 2>, scalar_prefetch = 0 : i64, scratch_operands = 0 : i64, tpu.core_type = #tpu.core_type<tc>, window_params = [{transform_indices = @transform_0, window_bounds = array<i64: 1, 40, 32>}, {pipeline_mode = #tpu.pipeline_mode<synchronous>, transform_indices = @transform_1, window_bounds = array<i64: 9, 32, 32>}, {pipeline_mode = #tpu.pipeline_mode<synchronous>, transform_indices = @transform_2, window_bounds = array<i64: 1, 32>}, {transform_indices = @transform_3, window_bounds = array<i64: 1, 4, 4, 32>}]} {
    %cst = arith.constant 0.000000e+00 : f32
    %0 = vector.broadcast %cst : f32 to vector<24x32xf32>
    %c0 = arith.constant 0 : index
    %c0_0 = arith.constant 0 : index
    %c0_1 = arith.constant 0 : index
    %1 = vector.load %arg1[%c0, %c0_0, %c0_1] : memref<1x40x32xbf16, #tpu.memory_space<vmem>>, vector<1x24x32xbf16>
    %2 = vector.shape_cast %1 : vector<1x24x32xbf16> to vector<24x32xbf16>
    %c0_2 = arith.constant 0 : index
    %c0_3 = arith.constant 0 : index
    %c0_4 = arith.constant 0 : index
    %3 = vector.load %arg2[%c0_2, %c0_3, %c0_4] : memref<9x32x32xbf16, #tpu.memory_space<vmem>>, vector<1x32x32xbf16>
    %4 = vector.shape_cast %3 : vector<1x32x32xbf16> to vector<32x32xbf16>
    %cst_5 = arith.constant dense<0.000000e+00> : vector<24x32xf32>
    %5 = tpu.matmul %2, %4, %cst_5 {dimension_numbers = #tpu.dot_dimension_numbers<[1], [0], [0], [1], [0, 0, 1, 1], [], []>} : vector<24x32xbf16>, vector<32x32xbf16>, vector<24x32xf32> -> vector<24x32xf32>
    %6 = arith.addf %0, %5 : vector<24x32xf32>
    %c0_6 = arith.constant 0 : index
    %c1 = arith.constant 1 : index
    %c0_7 = arith.constant 0 : index
    %7 = vector.load %arg1[%c0_6, %c1, %c0_7] : memref<1x40x32xbf16, #tpu.memory_space<vmem>>, vector<1x24x32xbf16>
    %8 = vector.shape_cast %7 : vector<1x24x32xbf16> to vector<24x32xbf16>
    %c1_8 = arith.constant 1 : index
    %c0_9 = arith.constant 0 : index
    %c0_10 = arith.constant 0 : index
    %9 = vector.load %arg2[%c1_8, %c0_9, %c0_10] : memref<9x32x32xbf16, #tpu.memory_space<vmem>>, vector<1x32x32xbf16>
    %10 = vector.shape_cast %9 : vector<1x32x32xbf16> to vector<32x32xbf16>
    %cst_11 = arith.constant dense<0.000000e+00> : vector<24x32xf32>
    %11 = tpu.matmul %8, %10, %cst_11 {dimension_numbers = #tpu.dot_dimension_numbers<[1], [0], [0], [1], [0, 0, 1, 1], [], []>} : vector<24x32xbf16>, vector<32x32xbf16>, vector<24x32xf32> -> vector<24x32xf32>
    %12 = arith.addf %6, %11 : vector<24x32xf32>
    %c0_12 = arith.constant 0 : index
    %c2 = arith.constant 2 : index
    %c0_13 = arith.constant 0 : index
    %13 = vector.load %arg1[%c0_12, %c2, %c0_13] : memref<1x40x32xbf16, #tpu.memory_space<vmem>>, vector<1x24x32xbf16>
    %14 = vector.shape_cast %13 : vector<1x24x32xbf16> to vector<24x32xbf16>
    %c2_14 = arith.constant 2 : index
    %c0_15 = arith.constant 0 : index
    %c0_16 = arith.constant 0 : index
    %15 = vector.load %arg2[%c2_14, %c0_15, %c0_16] : memref<9x32x32xbf16, #tpu.memory_space<vmem>>, vector<1x32x32xbf16>
    %16 = vector.shape_cast %15 : vector<1x32x32xbf16> to vector<32x32xbf16>
    %cst_17 = arith.constant dense<0.000000e+00> : vector<24x32xf32>
    %17 = tpu.matmul %14, %16, %cst_17 {dimension_numbers = #tpu.dot_dimension_numbers<[1], [0], [0], [1], [0, 0, 1, 1], [], []>} : vector<24x32xbf16>, vector<32x32xbf16>, vector<24x32xf32> -> vector<24x32xf32>
    %18 = arith.addf %12, %17 : vector<24x32xf32>
    %c0_18 = arith.constant 0 : index
    %c6 = arith.constant 6 : index
    %c0_19 = arith.constant 0 : index
    %19 = vector.load %arg1[%c0_18, %c6, %c0_19] : memref<1x40x32xbf16, #tpu.memory_space<vmem>>, vector<1x24x32xbf16>
    %20 = vector.shape_cast %19 : vector<1x24x32xbf16> to vector<24x32xbf16>
    %c3 = arith.constant 3 : index
    %c0_20 = arith.constant 0 : index
    %c0_21 = arith.constant 0 : index
    %21 = vector.load %arg2[%c3, %c0_20, %c0_21] : memref<9x32x32xbf16, #tpu.memory_space<vmem>>, vector<1x32x32xbf16>
    %22 = vector.shape_cast %21 : vector<1x32x32xbf16> to vector<32x32xbf16>
    %cst_22 = arith.constant dense<0.000000e+00> : vector<24x32xf32>
    %23 = tpu.matmul %20, %22, %cst_22 {dimension_numbers = #tpu.dot_dimension_numbers<[1], [0], [0], [1], [0, 0, 1, 1], [], []>} : vector<24x32xbf16>, vector<32x32xbf16>, vector<24x32xf32> -> vector<24x32xf32>
    %24 = arith.addf %18, %23 : vector<24x32xf32>
    %c0_23 = arith.constant 0 : index
    %c7 = arith.constant 7 : index
    %c0_24 = arith.constant 0 : index
    %25 = vector.load %arg1[%c0_23, %c7, %c0_24] : memref<1x40x32xbf16, #tpu.memory_space<vmem>>, vector<1x24x32xbf16>
    %26 = vector.shape_cast %25 : vector<1x24x32xbf16> to vector<24x32xbf16>
    %c4 = arith.constant 4 : index
    %c0_25 = arith.constant 0 : index
    %c0_26 = arith.constant 0 : index
    %27 = vector.load %arg2[%c4, %c0_25, %c0_26] : memref<9x32x32xbf16, #tpu.memory_space<vmem>>, vector<1x32x32xbf16>
    %28 = vector.shape_cast %27 : vector<1x32x32xbf16> to vector<32x32xbf16>
    %cst_27 = arith.constant dense<0.000000e+00> : vector<24x32xf32>
    %29 = tpu.matmul %26, %28, %cst_27 {dimension_numbers = #tpu.dot_dimension_numbers<[1], [0], [0], [1], [0, 0, 1, 1], [], []>} : vector<24x32xbf16>, vector<32x32xbf16>, vector<24x32xf32> -> vector<24x32xf32>
    %30 = arith.addf %24, %29 : vector<24x32xf32>
    %c0_28 = arith.constant 0 : index
    %c8 = arith.constant 8 : index
    %c0_29 = arith.constant 0 : index
    %31 = vector.load %arg1[%c0_28, %c8, %c0_29] : memref<1x40x32xbf16, #tpu.memory_space<vmem>>, vector<1x24x32xbf16>
    %32 = vector.shape_cast %31 : vector<1x24x32xbf16> to vector<24x32xbf16>
    %c5 = arith.constant 5 : index
    %c0_30 = arith.constant 0 : index
    %c0_31 = arith.constant 0 : index
    %33 = vector.load %arg2[%c5, %c0_30, %c0_31] : memref<9x32x32xbf16, #tpu.memory_space<vmem>>, vector<1x32x32xbf16>
    %34 = vector.shape_cast %33 : vector<1x32x32xbf16> to vector<32x32xbf16>
    %cst_32 = arith.constant dense<0.000000e+00> : vector<24x32xf32>
    %35 = tpu.matmul %32, %34, %cst_32 {dimension_numbers = #tpu.dot_dimension_numbers<[1], [0], [0], [1], [0, 0, 1, 1], [], []>} : vector<24x32xbf16>, vector<32x32xbf16>, vector<24x32xf32> -> vector<24x32xf32>
    %36 = arith.addf %30, %35 : vector<24x32xf32>
    %c0_33 = arith.constant 0 : index
    %c12 = arith.constant 12 : index
    %c0_34 = arith.constant 0 : index
    %37 = vector.load %arg1[%c0_33, %c12, %c0_34] : memref<1x40x32xbf16, #tpu.memory_space<vmem>>, vector<1x24x32xbf16>
    %38 = vector.shape_cast %37 : vector<1x24x32xbf16> to vector<24x32xbf16>
    %c6_35 = arith.constant 6 : index
    %c0_36 = arith.constant 0 : index
    %c0_37 = arith.constant 0 : index
    %39 = vector.load %arg2[%c6_35, %c0_36, %c0_37] : memref<9x32x32xbf16, #tpu.memory_space<vmem>>, vector<1x32x32xbf16>
    %40 = vector.shape_cast %39 : vector<1x32x32xbf16> to vector<32x32xbf16>
    %cst_38 = arith.constant dense<0.000000e+00> : vector<24x32xf32>
    %41 = tpu.matmul %38, %40, %cst_38 {dimension_numbers = #tpu.dot_dimension_numbers<[1], [0], [0], [1], [0, 0, 1, 1], [], []>} : vector<24x32xbf16>, vector<32x32xbf16>, vector<24x32xf32> -> vector<24x32xf32>
    %42 = arith.addf %36, %41 : vector<24x32xf32>
    %c0_39 = arith.constant 0 : index
    %c13 = arith.constant 13 : index
    %c0_40 = arith.constant 0 : index
    %43 = vector.load %arg1[%c0_39, %c13, %c0_40] : memref<1x40x32xbf16, #tpu.memory_space<vmem>>, vector<1x24x32xbf16>
    %44 = vector.shape_cast %43 : vector<1x24x32xbf16> to vector<24x32xbf16>
    %c7_41 = arith.constant 7 : index
    %c0_42 = arith.constant 0 : index
    %c0_43 = arith.constant 0 : index
    %45 = vector.load %arg2[%c7_41, %c0_42, %c0_43] : memref<9x32x32xbf16, #tpu.memory_space<vmem>>, vector<1x32x32xbf16>
    %46 = vector.shape_cast %45 : vector<1x32x32xbf16> to vector<32x32xbf16>
    %cst_44 = arith.constant dense<0.000000e+00> : vector<24x32xf32>
    %47 = tpu.matmul %44, %46, %cst_44 {dimension_numbers = #tpu.dot_dimension_numbers<[1], [0], [0], [1], [0, 0, 1, 1], [], []>} : vector<24x32xbf16>, vector<32x32xbf16>, vector<24x32xf32> -> vector<24x32xf32>
    %48 = arith.addf %42, %47 : vector<24x32xf32>
    %c0_45 = arith.constant 0 : index
    %c14 = arith.constant 14 : index
    %c0_46 = arith.constant 0 : index
    %49 = vector.load %arg1[%c0_45, %c14, %c0_46] : memref<1x40x32xbf16, #tpu.memory_space<vmem>>, vector<1x24x32xbf16>
    %50 = vector.shape_cast %49 : vector<1x24x32xbf16> to vector<24x32xbf16>
    %c8_47 = arith.constant 8 : index
    %c0_48 = arith.constant 0 : index
    %c0_49 = arith.constant 0 : index
    %51 = vector.load %arg2[%c8_47, %c0_48, %c0_49] : memref<9x32x32xbf16, #tpu.memory_space<vmem>>, vector<1x32x32xbf16>
    %52 = vector.shape_cast %51 : vector<1x32x32xbf16> to vector<32x32xbf16>
    %cst_50 = arith.constant dense<0.000000e+00> : vector<24x32xf32>
    %53 = tpu.matmul %50, %52, %cst_50 {dimension_numbers = #tpu.dot_dimension_numbers<[1], [0], [0], [1], [0, 0, 1, 1], [], []>} : vector<24x32xbf16>, vector<32x32xbf16>, vector<24x32xf32> -> vector<24x32xf32>
    %54 = arith.addf %48, %53 : vector<24x32xf32>
    %c0_51 = arith.constant 0 : index
    %c0_52 = arith.constant 0 : index
    %55 = vector.load %arg3[%c0_51, %c0_52] : memref<1x32xf32, #tpu.memory_space<vmem>>, vector<1x32xf32>
    %56 = vector.broadcast %55 : vector<1x32xf32> to vector<24x32xf32>
    %57 = arith.addf %54, %56 : vector<24x32xf32>
    %58 = vector.shape_cast %57 : vector<24x32xf32> to vector<4x6x32xf32>
    %59 = vector.extract_strided_slice %58 {offsets = [0, 0, 0], sizes = [4, 4, 32], strides = [1, 1, 1]} : vector<4x6x32xf32> to vector<4x4x32xf32>
    %60 = arith.truncf %59 : vector<4x4x32xf32> to vector<4x4x32xbf16>
    %c0_53 = arith.constant 0 : index
    %c0_54 = arith.constant 0 : index
    %c0_55 = arith.constant 0 : index
    %c0_56 = arith.constant 0 : index
    %61 = vector.load %arg4[%c0_53, %c0_54, %c0_55, %c0_56] : memref<1x4x4x32xbf16, #tpu.memory_space<vmem>>, vector<1x4x4x32xbf16>
    %62 = vector.shape_cast %61 : vector<1x4x4x32xbf16> to vector<4x4x32xbf16>
    %63 = vector.shape_cast %60 : vector<4x4x32xbf16> to vector<1x4x4x32xbf16>
    tpu.vector_store %arg4[%c0_53, %c0_54, %c0_55, %c0_56], %63 {strides = array<i32>} : memref<1x4x4x32xbf16, #tpu.memory_space<vmem>>, vector<1x4x4x32xbf16>,
    return
  }
  func.func @transform_0(%arg0: i32) -> (i32, i32, i32) {
    %c0_i32 = arith.constant 0 : i32
    %c0_i32_0 = arith.constant 0 : i32
    %c0_i32_1 = arith.constant 0 : i32
    return %arg0, %c0_i32, %c0_i32_0 : i32, i32, i32
  }
  func.func @transform_1(%arg0: i32) -> (i32, i32, i32) {
    %c0_i32 = arith.constant 0 : i32
    %c0_i32_0 = arith.constant 0 : i32
    %c0_i32_1 = arith.constant 0 : i32
    %c0_i32_2 = arith.constant 0 : i32
    return %c0_i32, %c0_i32_0, %c0_i32_1 : i32, i32, i32
  }
  func.func @transform_2(%arg0: i32) -> (i32, i32) {
    %c0_i32 = arith.constant 0 : i32
    %c0_i32_0 = arith.constant 0 : i32
    %c0_i32_1 = arith.constant 0 : i32
    return %c0_i32, %c0_i32_0 : i32, i32
  }
  func.func @transform_3(%arg0: i32) -> (i32, i32, i32, i32) {
    %c0_i32 = arith.constant 0 : i32
    %c0_i32_0 = arith.constant 0 : i32
    %c0_i32_1 = arith.constant 0 : i32
    %c0_i32_2 = arith.constant 0 : i32
    return %arg0, %c0_i32, %c0_i32_0, %c0_i32_1 : i32, i32, i32, i32
  }
}

module attributes {stable_mosaic.version = 11 : i64} {
  func.func @_resblock_kernel(%arg0: i32, %arg1: memref<1x4x4x32xbf16, #tpu.memory_space<vmem>>, %arg2: memref<9x32x8xbf16, #tpu.memory_space<vmem>>, %arg3: memref<1x8xf32, #tpu.memory_space<vmem>>, %arg4: memref<8x32xbf16, #tpu.memory_space<vmem>>, %arg5: memref<1x32xf32, #tpu.memory_space<vmem>>, %arg6: memref<1x4x4x32xbf16, #tpu.memory_space<vmem>>, %arg7: memref<40x32xbf16, #tpu.memory_space<vmem>>) attributes {dimension_semantics = [#tpu.dimension_semantics<parallel>], iteration_bounds = array<i64: 2>, scalar_prefetch = 0 : i64, scratch_operands = 1 : i64, tpu.core_type = #tpu.core_type<tc>, window_params = [{transform_indices = @transform_0, window_bounds = array<i64: 1, 4, 4, 32>}, {pipeline_mode = #tpu.pipeline_mode<synchronous>, transform_indices = @transform_1, window_bounds = array<i64: 9, 32, 8>}, {pipeline_mode = #tpu.pipeline_mode<synchronous>, transform_indices = @transform_2, window_bounds = array<i64: 1, 8>}, {pipeline_mode = #tpu.pipeline_mode<synchronous>, transform_indices = @transform_3, window_bounds = array<i64: 8, 32>}, {pipeline_mode = #tpu.pipeline_mode<synchronous>, transform_indices = @transform_4, window_bounds = array<i64: 1, 32>}, {transform_indices = @transform_5, window_bounds = array<i64: 1, 4, 4, 32>}]} {
    %cst = arith.constant 0.000000e+00 : bf16
    %0 = vector.broadcast %cst : bf16 to vector<40x32xbf16>
    %c0 = arith.constant 0 : index
    %c0_0 = arith.constant 0 : index
    %1 = vector.load %arg7[%c0, %c0_0] : memref<40x32xbf16, #tpu.memory_space<vmem>>, vector<40x32xbf16>
    tpu.vector_store %arg7[%c0, %c0_0], %0 {strides = array<i32>} : memref<40x32xbf16, #tpu.memory_space<vmem>>, vector<40x32xbf16>,
    %c0_1 = arith.constant 0 : index
    %c0_2 = arith.constant 0 : index
    %c0_3 = arith.constant 0 : index
    %c0_4 = arith.constant 0 : index
    %2 = vector.load %arg1[%c0_1, %c0_2, %c0_3, %c0_4] : memref<1x4x4x32xbf16, #tpu.memory_space<vmem>>, vector<1x1x4x32xbf16>
    %3 = vector.shape_cast %2 : vector<1x1x4x32xbf16> to vector<4x32xbf16>
    %cst_5 = arith.constant 0.000000e+00 : bf16
    %4 = vector.broadcast %cst_5 : bf16 to vector<4x32xbf16>
    %5 = arith.maximumf %3, %4 : vector<4x32xbf16>
    %c7 = arith.constant 7 : index
    %c0_6 = arith.constant 0 : index
    %6 = vector.load %arg7[%c7, %c0_6] : memref<40x32xbf16, #tpu.memory_space<vmem>>, vector<4x32xbf16>
    tpu.vector_store %arg7[%c7, %c0_6], %5 {strides = array<i32>} : memref<40x32xbf16, #tpu.memory_space<vmem>>, vector<4x32xbf16>,
    %c0_7 = arith.constant 0 : index
    %c1 = arith.constant 1 : index
    %c0_8 = arith.constant 0 : index
    %c0_9 = arith.constant 0 : index
    %7 = vector.load %arg1[%c0_7, %c1, %c0_8, %c0_9] : memref<1x4x4x32xbf16, #tpu.memory_space<vmem>>, vector<1x1x4x32xbf16>
    %8 = vector.shape_cast %7 : vector<1x1x4x32xbf16> to vector<4x32xbf16>
    %cst_10 = arith.constant 0.000000e+00 : bf16
    %9 = vector.broadcast %cst_10 : bf16 to vector<4x32xbf16>
    %10 = arith.maximumf %8, %9 : vector<4x32xbf16>
    %c13 = arith.constant 13 : index
    %c0_11 = arith.constant 0 : index
    %11 = vector.load %arg7[%c13, %c0_11] : memref<40x32xbf16, #tpu.memory_space<vmem>>, vector<4x32xbf16>
    tpu.vector_store %arg7[%c13, %c0_11], %10 {strides = array<i32>} : memref<40x32xbf16, #tpu.memory_space<vmem>>, vector<4x32xbf16>,
    %c0_12 = arith.constant 0 : index
    %c2 = arith.constant 2 : index
    %c0_13 = arith.constant 0 : index
    %c0_14 = arith.constant 0 : index
    %12 = vector.load %arg1[%c0_12, %c2, %c0_13, %c0_14] : memref<1x4x4x32xbf16, #tpu.memory_space<vmem>>, vector<1x1x4x32xbf16>
    %13 = vector.shape_cast %12 : vector<1x1x4x32xbf16> to vector<4x32xbf16>
    %cst_15 = arith.constant 0.000000e+00 : bf16
    %14 = vector.broadcast %cst_15 : bf16 to vector<4x32xbf16>
    %15 = arith.maximumf %13, %14 : vector<4x32xbf16>
    %c19 = arith.constant 19 : index
    %c0_16 = arith.constant 0 : index
    %16 = vector.load %arg7[%c19, %c0_16] : memref<40x32xbf16, #tpu.memory_space<vmem>>, vector<4x32xbf16>
    tpu.vector_store %arg7[%c19, %c0_16], %15 {strides = array<i32>} : memref<40x32xbf16, #tpu.memory_space<vmem>>, vector<4x32xbf16>,
    %c0_17 = arith.constant 0 : index
    %c3 = arith.constant 3 : index
    %c0_18 = arith.constant 0 : index
    %c0_19 = arith.constant 0 : index
    %17 = vector.load %arg1[%c0_17, %c3, %c0_18, %c0_19] : memref<1x4x4x32xbf16, #tpu.memory_space<vmem>>, vector<1x1x4x32xbf16>
    %18 = vector.shape_cast %17 : vector<1x1x4x32xbf16> to vector<4x32xbf16>
    %cst_20 = arith.constant 0.000000e+00 : bf16
    %19 = vector.broadcast %cst_20 : bf16 to vector<4x32xbf16>
    %20 = arith.maximumf %18, %19 : vector<4x32xbf16>
    %c25 = arith.constant 25 : index
    %c0_21 = arith.constant 0 : index
    %21 = vector.load %arg7[%c25, %c0_21] : memref<40x32xbf16, #tpu.memory_space<vmem>>, vector<4x32xbf16>
    tpu.vector_store %arg7[%c25, %c0_21], %20 {strides = array<i32>} : memref<40x32xbf16, #tpu.memory_space<vmem>>, vector<4x32xbf16>,
    %cst_22 = arith.constant 0.000000e+00 : f32
    %22 = vector.broadcast %cst_22 : f32 to vector<24x8xf32>
    %c0_23 = arith.constant 0 : index
    %c0_24 = arith.constant 0 : index
    %23 = vector.load %arg7[%c0_23, %c0_24] : memref<40x32xbf16, #tpu.memory_space<vmem>>, vector<24x32xbf16>
    %c0_25 = arith.constant 0 : index
    %c0_26 = arith.constant 0 : index
    %c0_27 = arith.constant 0 : index
    %24 = vector.load %arg2[%c0_25, %c0_26, %c0_27] : memref<9x32x8xbf16, #tpu.memory_space<vmem>>, vector<1x32x8xbf16>
    %25 = vector.shape_cast %24 : vector<1x32x8xbf16> to vector<32x8xbf16>
    %cst_28 = arith.constant dense<0.000000e+00> : vector<24x8xf32>
    %26 = tpu.matmul %23, %25, %cst_28 {dimension_numbers = #tpu.dot_dimension_numbers<[1], [0], [0], [1], [0, 0, 1, 1], [], []>} : vector<24x32xbf16>, vector<32x8xbf16>, vector<24x8xf32> -> vector<24x8xf32>
    %27 = arith.addf %22, %26 : vector<24x8xf32>
    %c1_29 = arith.constant 1 : index
    %c0_30 = arith.constant 0 : index
    %28 = vector.load %arg7[%c1_29, %c0_30] : memref<40x32xbf16, #tpu.memory_space<vmem>>, vector<24x32xbf16>
    %c1_31 = arith.constant 1 : index
    %c0_32 = arith.constant 0 : index
    %c0_33 = arith.constant 0 : index
    %29 = vector.load %arg2[%c1_31, %c0_32, %c0_33] : memref<9x32x8xbf16, #tpu.memory_space<vmem>>, vector<1x32x8xbf16>
    %30 = vector.shape_cast %29 : vector<1x32x8xbf16> to vector<32x8xbf16>
    %cst_34 = arith.constant dense<0.000000e+00> : vector<24x8xf32>
    %31 = tpu.matmul %28, %30, %cst_34 {dimension_numbers = #tpu.dot_dimension_numbers<[1], [0], [0], [1], [0, 0, 1, 1], [], []>} : vector<24x32xbf16>, vector<32x8xbf16>, vector<24x8xf32> -> vector<24x8xf32>
    %32 = arith.addf %27, %31 : vector<24x8xf32>
    %c2_35 = arith.constant 2 : index
    %c0_36 = arith.constant 0 : index
    %33 = vector.load %arg7[%c2_35, %c0_36] : memref<40x32xbf16, #tpu.memory_space<vmem>>, vector<24x32xbf16>
    %c2_37 = arith.constant 2 : index
    %c0_38 = arith.constant 0 : index
    %c0_39 = arith.constant 0 : index
    %34 = vector.load %arg2[%c2_37, %c0_38, %c0_39] : memref<9x32x8xbf16, #tpu.memory_space<vmem>>, vector<1x32x8xbf16>
    %35 = vector.shape_cast %34 : vector<1x32x8xbf16> to vector<32x8xbf16>
    %cst_40 = arith.constant dense<0.000000e+00> : vector<24x8xf32>
    %36 = tpu.matmul %33, %35, %cst_40 {dimension_numbers = #tpu.dot_dimension_numbers<[1], [0], [0], [1], [0, 0, 1, 1], [], []>} : vector<24x32xbf16>, vector<32x8xbf16>, vector<24x8xf32> -> vector<24x8xf32>
    %37 = arith.addf %32, %36 : vector<24x8xf32>
    %c6 = arith.constant 6 : index
    %c0_41 = arith.constant 0 : index
    %38 = vector.load %arg7[%c6, %c0_41] : memref<40x32xbf16, #tpu.memory_space<vmem>>, vector<24x32xbf16>
    %c3_42 = arith.constant 3 : index
    %c0_43 = arith.constant 0 : index
    %c0_44 = arith.constant 0 : index
    %39 = vector.load %arg2[%c3_42, %c0_43, %c0_44] : memref<9x32x8xbf16, #tpu.memory_space<vmem>>, vector<1x32x8xbf16>
    %40 = vector.shape_cast %39 : vector<1x32x8xbf16> to vector<32x8xbf16>
    %cst_45 = arith.constant dense<0.000000e+00> : vector<24x8xf32>
    %41 = tpu.matmul %38, %40, %cst_45 {dimension_numbers = #tpu.dot_dimension_numbers<[1], [0], [0], [1], [0, 0, 1, 1], [], []>} : vector<24x32xbf16>, vector<32x8xbf16>, vector<24x8xf32> -> vector<24x8xf32>
    %42 = arith.addf %37, %41 : vector<24x8xf32>
    %c7_46 = arith.constant 7 : index
    %c0_47 = arith.constant 0 : index
    %43 = vector.load %arg7[%c7_46, %c0_47] : memref<40x32xbf16, #tpu.memory_space<vmem>>, vector<24x32xbf16>
    %c4 = arith.constant 4 : index
    %c0_48 = arith.constant 0 : index
    %c0_49 = arith.constant 0 : index
    %44 = vector.load %arg2[%c4, %c0_48, %c0_49] : memref<9x32x8xbf16, #tpu.memory_space<vmem>>, vector<1x32x8xbf16>
    %45 = vector.shape_cast %44 : vector<1x32x8xbf16> to vector<32x8xbf16>
    %cst_50 = arith.constant dense<0.000000e+00> : vector<24x8xf32>
    %46 = tpu.matmul %43, %45, %cst_50 {dimension_numbers = #tpu.dot_dimension_numbers<[1], [0], [0], [1], [0, 0, 1, 1], [], []>} : vector<24x32xbf16>, vector<32x8xbf16>, vector<24x8xf32> -> vector<24x8xf32>
    %47 = arith.addf %42, %46 : vector<24x8xf32>
    %c8 = arith.constant 8 : index
    %c0_51 = arith.constant 0 : index
    %48 = vector.load %arg7[%c8, %c0_51] : memref<40x32xbf16, #tpu.memory_space<vmem>>, vector<24x32xbf16>
    %c5 = arith.constant 5 : index
    %c0_52 = arith.constant 0 : index
    %c0_53 = arith.constant 0 : index
    %49 = vector.load %arg2[%c5, %c0_52, %c0_53] : memref<9x32x8xbf16, #tpu.memory_space<vmem>>, vector<1x32x8xbf16>
    %50 = vector.shape_cast %49 : vector<1x32x8xbf16> to vector<32x8xbf16>
    %cst_54 = arith.constant dense<0.000000e+00> : vector<24x8xf32>
    %51 = tpu.matmul %48, %50, %cst_54 {dimension_numbers = #tpu.dot_dimension_numbers<[1], [0], [0], [1], [0, 0, 1, 1], [], []>} : vector<24x32xbf16>, vector<32x8xbf16>, vector<24x8xf32> -> vector<24x8xf32>
    %52 = arith.addf %47, %51 : vector<24x8xf32>
    %c12 = arith.constant 12 : index
    %c0_55 = arith.constant 0 : index
    %53 = vector.load %arg7[%c12, %c0_55] : memref<40x32xbf16, #tpu.memory_space<vmem>>, vector<24x32xbf16>
    %c6_56 = arith.constant 6 : index
    %c0_57 = arith.constant 0 : index
    %c0_58 = arith.constant 0 : index
    %54 = vector.load %arg2[%c6_56, %c0_57, %c0_58] : memref<9x32x8xbf16, #tpu.memory_space<vmem>>, vector<1x32x8xbf16>
    %55 = vector.shape_cast %54 : vector<1x32x8xbf16> to vector<32x8xbf16>
    %cst_59 = arith.constant dense<0.000000e+00> : vector<24x8xf32>
    %56 = tpu.matmul %53, %55, %cst_59 {dimension_numbers = #tpu.dot_dimension_numbers<[1], [0], [0], [1], [0, 0, 1, 1], [], []>} : vector<24x32xbf16>, vector<32x8xbf16>, vector<24x8xf32> -> vector<24x8xf32>
    %57 = arith.addf %52, %56 : vector<24x8xf32>
    %c13_60 = arith.constant 13 : index
    %c0_61 = arith.constant 0 : index
    %58 = vector.load %arg7[%c13_60, %c0_61] : memref<40x32xbf16, #tpu.memory_space<vmem>>, vector<24x32xbf16>
    %c7_62 = arith.constant 7 : index
    %c0_63 = arith.constant 0 : index
    %c0_64 = arith.constant 0 : index
    %59 = vector.load %arg2[%c7_62, %c0_63, %c0_64] : memref<9x32x8xbf16, #tpu.memory_space<vmem>>, vector<1x32x8xbf16>
    %60 = vector.shape_cast %59 : vector<1x32x8xbf16> to vector<32x8xbf16>
    %cst_65 = arith.constant dense<0.000000e+00> : vector<24x8xf32>
    %61 = tpu.matmul %58, %60, %cst_65 {dimension_numbers = #tpu.dot_dimension_numbers<[1], [0], [0], [1], [0, 0, 1, 1], [], []>} : vector<24x32xbf16>, vector<32x8xbf16>, vector<24x8xf32> -> vector<24x8xf32>
    %62 = arith.addf %57, %61 : vector<24x8xf32>
    %c14 = arith.constant 14 : index
    %c0_66 = arith.constant 0 : index
    %63 = vector.load %arg7[%c14, %c0_66] : memref<40x32xbf16, #tpu.memory_space<vmem>>, vector<24x32xbf16>
    %c8_67 = arith.constant 8 : index
    %c0_68 = arith.constant 0 : index
    %c0_69 = arith.constant 0 : index
    %64 = vector.load %arg2[%c8_67, %c0_68, %c0_69] : memref<9x32x8xbf16, #tpu.memory_space<vmem>>, vector<1x32x8xbf16>
    %65 = vector.shape_cast %64 : vector<1x32x8xbf16> to vector<32x8xbf16>
    %cst_70 = arith.constant dense<0.000000e+00> : vector<24x8xf32>
    %66 = tpu.matmul %63, %65, %cst_70 {dimension_numbers = #tpu.dot_dimension_numbers<[1], [0], [0], [1], [0, 0, 1, 1], [], []>} : vector<24x32xbf16>, vector<32x8xbf16>, vector<24x8xf32> -> vector<24x8xf32>
    %67 = arith.addf %62, %66 : vector<24x8xf32>
    %c0_71 = arith.constant 0 : index
    %c0_72 = arith.constant 0 : index
    %68 = vector.load %arg3[%c0_71, %c0_72] : memref<1x8xf32, #tpu.memory_space<vmem>>, vector<1x8xf32>
    %69 = vector.broadcast %68 : vector<1x8xf32> to vector<24x8xf32>
    %70 = arith.addf %67, %69 : vector<24x8xf32>
    %cst_73 = arith.constant 0.000000e+00 : f32
    %71 = vector.broadcast %cst_73 : f32 to vector<24x8xf32>
    %72 = arith.maximumf %70, %71 : vector<24x8xf32>
    %73 = arith.truncf %72 : vector<24x8xf32> to vector<24x8xbf16>
    %c0_74 = arith.constant 0 : index
    %c0_75 = arith.constant 0 : index
    %74 = vector.load %arg4[%c0_74, %c0_75] : memref<8x32xbf16, #tpu.memory_space<vmem>>, vector<8x32xbf16>
    %cst_76 = arith.constant dense<0.000000e+00> : vector<24x32xf32>
    %75 = tpu.matmul %73, %74, %cst_76 {dimension_numbers = #tpu.dot_dimension_numbers<[1], [0], [0], [1], [0, 0, 1, 1], [], []>} : vector<24x8xbf16>, vector<8x32xbf16>, vector<24x32xf32> -> vector<24x32xf32>
    %c0_77 = arith.constant 0 : index
    %c0_78 = arith.constant 0 : index
    %76 = vector.load %arg5[%c0_77, %c0_78] : memref<1x32xf32, #tpu.memory_space<vmem>>, vector<1x32xf32>
    %77 = vector.broadcast %76 : vector<1x32xf32> to vector<24x32xf32>
    %78 = arith.addf %75, %77 : vector<24x32xf32>
    %79 = vector.shape_cast %78 : vector<24x32xf32> to vector<4x6x32xf32>
    %80 = vector.extract_strided_slice %79 {offsets = [0, 0, 0], sizes = [4, 4, 32], strides = [1, 1, 1]} : vector<4x6x32xf32> to vector<4x4x32xf32>
    %c0_79 = arith.constant 0 : index
    %c0_80 = arith.constant 0 : index
    %c0_81 = arith.constant 0 : index
    %c0_82 = arith.constant 0 : index
    %81 = vector.load %arg1[%c0_79, %c0_80, %c0_81, %c0_82] : memref<1x4x4x32xbf16, #tpu.memory_space<vmem>>, vector<1x4x4x32xbf16>
    %82 = vector.shape_cast %81 : vector<1x4x4x32xbf16> to vector<4x4x32xbf16>
    %83 = arith.extf %82 : vector<4x4x32xbf16> to vector<4x4x32xf32>
    %84 = arith.addf %80, %83 : vector<4x4x32xf32>
    %85 = arith.truncf %84 : vector<4x4x32xf32> to vector<4x4x32xbf16>
    %c0_83 = arith.constant 0 : index
    %c0_84 = arith.constant 0 : index
    %c0_85 = arith.constant 0 : index
    %c0_86 = arith.constant 0 : index
    %86 = vector.load %arg6[%c0_83, %c0_84, %c0_85, %c0_86] : memref<1x4x4x32xbf16, #tpu.memory_space<vmem>>, vector<1x4x4x32xbf16>
    %87 = vector.shape_cast %86 : vector<1x4x4x32xbf16> to vector<4x4x32xbf16>
    %88 = vector.shape_cast %85 : vector<4x4x32xbf16> to vector<1x4x4x32xbf16>
    tpu.vector_store %arg6[%c0_83, %c0_84, %c0_85, %c0_86], %88 {strides = array<i32>} : memref<1x4x4x32xbf16, #tpu.memory_space<vmem>>, vector<1x4x4x32xbf16>,
    return
  }
  func.func @transform_0(%arg0: i32) -> (i32, i32, i32, i32) {
    %c0_i32 = arith.constant 0 : i32
    %c0_i32_0 = arith.constant 0 : i32
    %c0_i32_1 = arith.constant 0 : i32
    %c0_i32_2 = arith.constant 0 : i32
    return %arg0, %c0_i32, %c0_i32_0, %c0_i32_1 : i32, i32, i32, i32
  }
  func.func @transform_1(%arg0: i32) -> (i32, i32, i32) {
    %c0_i32 = arith.constant 0 : i32
    %c0_i32_0 = arith.constant 0 : i32
    %c0_i32_1 = arith.constant 0 : i32
    %c0_i32_2 = arith.constant 0 : i32
    return %c0_i32, %c0_i32_0, %c0_i32_1 : i32, i32, i32
  }
  func.func @transform_2(%arg0: i32) -> (i32, i32) {
    %c0_i32 = arith.constant 0 : i32
    %c0_i32_0 = arith.constant 0 : i32
    %c0_i32_1 = arith.constant 0 : i32
    return %c0_i32, %c0_i32_0 : i32, i32
  }
  func.func @transform_3(%arg0: i32) -> (i32, i32) {
    %c0_i32 = arith.constant 0 : i32
    %c0_i32_0 = arith.constant 0 : i32
    %c0_i32_1 = arith.constant 0 : i32
    return %c0_i32, %c0_i32_0 : i32, i32
  }
  func.func @transform_4(%arg0: i32) -> (i32, i32) {
    %c0_i32 = arith.constant 0 : i32
    %c0_i32_0 = arith.constant 0 : i32
    %c0_i32_1 = arith.constant 0 : i32
    return %c0_i32, %c0_i32_0 : i32, i32
  }
  func.func @transform_5(%arg0: i32) -> (i32, i32, i32, i32) {
    %c0_i32 = arith.constant 0 : i32
    %c0_i32_0 = arith.constant 0 : i32
    %c0_i32_1 = arith.constant 0 : i32
    %c0_i32_2 = arith.constant 0 : i32
    return %arg0, %c0_i32, %c0_i32_0, %c0_i32_1 : i32, i32, i32, i32
  }
}

module attributes {stable_mosaic.version = 11 : i64} {
  func.func @_resblock_kernel(%arg0: i32, %arg1: memref<1x4x4x32xbf16, #tpu.memory_space<vmem>>, %arg2: memref<9x32x8xbf16, #tpu.memory_space<vmem>>, %arg3: memref<1x8xf32, #tpu.memory_space<vmem>>, %arg4: memref<8x32xbf16, #tpu.memory_space<vmem>>, %arg5: memref<1x32xf32, #tpu.memory_space<vmem>>, %arg6: memref<1x4x4x32xf32, #tpu.memory_space<vmem>>, %arg7: memref<40x32xbf16, #tpu.memory_space<vmem>>) attributes {dimension_semantics = [#tpu.dimension_semantics<parallel>], iteration_bounds = array<i64: 2>, scalar_prefetch = 0 : i64, scratch_operands = 1 : i64, tpu.core_type = #tpu.core_type<tc>, window_params = [{transform_indices = @transform_0, window_bounds = array<i64: 1, 4, 4, 32>}, {pipeline_mode = #tpu.pipeline_mode<synchronous>, transform_indices = @transform_1, window_bounds = array<i64: 9, 32, 8>}, {pipeline_mode = #tpu.pipeline_mode<synchronous>, transform_indices = @transform_2, window_bounds = array<i64: 1, 8>}, {pipeline_mode = #tpu.pipeline_mode<synchronous>, transform_indices = @transform_3, window_bounds = array<i64: 8, 32>}, {pipeline_mode = #tpu.pipeline_mode<synchronous>, transform_indices = @transform_4, window_bounds = array<i64: 1, 32>}, {transform_indices = @transform_5, window_bounds = array<i64: 1, 4, 4, 32>}]} {
    %cst = arith.constant 0.000000e+00 : bf16
    %0 = vector.broadcast %cst : bf16 to vector<40x32xbf16>
    %c0 = arith.constant 0 : index
    %c0_0 = arith.constant 0 : index
    %1 = vector.load %arg7[%c0, %c0_0] : memref<40x32xbf16, #tpu.memory_space<vmem>>, vector<40x32xbf16>
    tpu.vector_store %arg7[%c0, %c0_0], %0 {strides = array<i32>} : memref<40x32xbf16, #tpu.memory_space<vmem>>, vector<40x32xbf16>,
    %c0_1 = arith.constant 0 : index
    %c0_2 = arith.constant 0 : index
    %c0_3 = arith.constant 0 : index
    %c0_4 = arith.constant 0 : index
    %2 = vector.load %arg1[%c0_1, %c0_2, %c0_3, %c0_4] : memref<1x4x4x32xbf16, #tpu.memory_space<vmem>>, vector<1x1x4x32xbf16>
    %3 = vector.shape_cast %2 : vector<1x1x4x32xbf16> to vector<4x32xbf16>
    %cst_5 = arith.constant 0.000000e+00 : bf16
    %4 = vector.broadcast %cst_5 : bf16 to vector<4x32xbf16>
    %5 = arith.maximumf %3, %4 : vector<4x32xbf16>
    %c7 = arith.constant 7 : index
    %c0_6 = arith.constant 0 : index
    %6 = vector.load %arg7[%c7, %c0_6] : memref<40x32xbf16, #tpu.memory_space<vmem>>, vector<4x32xbf16>
    tpu.vector_store %arg7[%c7, %c0_6], %5 {strides = array<i32>} : memref<40x32xbf16, #tpu.memory_space<vmem>>, vector<4x32xbf16>,
    %c0_7 = arith.constant 0 : index
    %c1 = arith.constant 1 : index
    %c0_8 = arith.constant 0 : index
    %c0_9 = arith.constant 0 : index
    %7 = vector.load %arg1[%c0_7, %c1, %c0_8, %c0_9] : memref<1x4x4x32xbf16, #tpu.memory_space<vmem>>, vector<1x1x4x32xbf16>
    %8 = vector.shape_cast %7 : vector<1x1x4x32xbf16> to vector<4x32xbf16>
    %cst_10 = arith.constant 0.000000e+00 : bf16
    %9 = vector.broadcast %cst_10 : bf16 to vector<4x32xbf16>
    %10 = arith.maximumf %8, %9 : vector<4x32xbf16>
    %c13 = arith.constant 13 : index
    %c0_11 = arith.constant 0 : index
    %11 = vector.load %arg7[%c13, %c0_11] : memref<40x32xbf16, #tpu.memory_space<vmem>>, vector<4x32xbf16>
    tpu.vector_store %arg7[%c13, %c0_11], %10 {strides = array<i32>} : memref<40x32xbf16, #tpu.memory_space<vmem>>, vector<4x32xbf16>,
    %c0_12 = arith.constant 0 : index
    %c2 = arith.constant 2 : index
    %c0_13 = arith.constant 0 : index
    %c0_14 = arith.constant 0 : index
    %12 = vector.load %arg1[%c0_12, %c2, %c0_13, %c0_14] : memref<1x4x4x32xbf16, #tpu.memory_space<vmem>>, vector<1x1x4x32xbf16>
    %13 = vector.shape_cast %12 : vector<1x1x4x32xbf16> to vector<4x32xbf16>
    %cst_15 = arith.constant 0.000000e+00 : bf16
    %14 = vector.broadcast %cst_15 : bf16 to vector<4x32xbf16>
    %15 = arith.maximumf %13, %14 : vector<4x32xbf16>
    %c19 = arith.constant 19 : index
    %c0_16 = arith.constant 0 : index
    %16 = vector.load %arg7[%c19, %c0_16] : memref<40x32xbf16, #tpu.memory_space<vmem>>, vector<4x32xbf16>
    tpu.vector_store %arg7[%c19, %c0_16], %15 {strides = array<i32>} : memref<40x32xbf16, #tpu.memory_space<vmem>>, vector<4x32xbf16>,
    %c0_17 = arith.constant 0 : index
    %c3 = arith.constant 3 : index
    %c0_18 = arith.constant 0 : index
    %c0_19 = arith.constant 0 : index
    %17 = vector.load %arg1[%c0_17, %c3, %c0_18, %c0_19] : memref<1x4x4x32xbf16, #tpu.memory_space<vmem>>, vector<1x1x4x32xbf16>
    %18 = vector.shape_cast %17 : vector<1x1x4x32xbf16> to vector<4x32xbf16>
    %cst_20 = arith.constant 0.000000e+00 : bf16
    %19 = vector.broadcast %cst_20 : bf16 to vector<4x32xbf16>
    %20 = arith.maximumf %18, %19 : vector<4x32xbf16>
    %c25 = arith.constant 25 : index
    %c0_21 = arith.constant 0 : index
    %21 = vector.load %arg7[%c25, %c0_21] : memref<40x32xbf16, #tpu.memory_space<vmem>>, vector<4x32xbf16>
    tpu.vector_store %arg7[%c25, %c0_21], %20 {strides = array<i32>} : memref<40x32xbf16, #tpu.memory_space<vmem>>, vector<4x32xbf16>,
    %cst_22 = arith.constant 0.000000e+00 : f32
    %22 = vector.broadcast %cst_22 : f32 to vector<24x8xf32>
    %c0_23 = arith.constant 0 : index
    %c0_24 = arith.constant 0 : index
    %23 = vector.load %arg7[%c0_23, %c0_24] : memref<40x32xbf16, #tpu.memory_space<vmem>>, vector<24x32xbf16>
    %c0_25 = arith.constant 0 : index
    %c0_26 = arith.constant 0 : index
    %c0_27 = arith.constant 0 : index
    %24 = vector.load %arg2[%c0_25, %c0_26, %c0_27] : memref<9x32x8xbf16, #tpu.memory_space<vmem>>, vector<1x32x8xbf16>
    %25 = vector.shape_cast %24 : vector<1x32x8xbf16> to vector<32x8xbf16>
    %cst_28 = arith.constant dense<0.000000e+00> : vector<24x8xf32>
    %26 = tpu.matmul %23, %25, %cst_28 {dimension_numbers = #tpu.dot_dimension_numbers<[1], [0], [0], [1], [0, 0, 1, 1], [], []>} : vector<24x32xbf16>, vector<32x8xbf16>, vector<24x8xf32> -> vector<24x8xf32>
    %27 = arith.addf %22, %26 : vector<24x8xf32>
    %c1_29 = arith.constant 1 : index
    %c0_30 = arith.constant 0 : index
    %28 = vector.load %arg7[%c1_29, %c0_30] : memref<40x32xbf16, #tpu.memory_space<vmem>>, vector<24x32xbf16>
    %c1_31 = arith.constant 1 : index
    %c0_32 = arith.constant 0 : index
    %c0_33 = arith.constant 0 : index
    %29 = vector.load %arg2[%c1_31, %c0_32, %c0_33] : memref<9x32x8xbf16, #tpu.memory_space<vmem>>, vector<1x32x8xbf16>
    %30 = vector.shape_cast %29 : vector<1x32x8xbf16> to vector<32x8xbf16>
    %cst_34 = arith.constant dense<0.000000e+00> : vector<24x8xf32>
    %31 = tpu.matmul %28, %30, %cst_34 {dimension_numbers = #tpu.dot_dimension_numbers<[1], [0], [0], [1], [0, 0, 1, 1], [], []>} : vector<24x32xbf16>, vector<32x8xbf16>, vector<24x8xf32> -> vector<24x8xf32>
    %32 = arith.addf %27, %31 : vector<24x8xf32>
    %c2_35 = arith.constant 2 : index
    %c0_36 = arith.constant 0 : index
    %33 = vector.load %arg7[%c2_35, %c0_36] : memref<40x32xbf16, #tpu.memory_space<vmem>>, vector<24x32xbf16>
    %c2_37 = arith.constant 2 : index
    %c0_38 = arith.constant 0 : index
    %c0_39 = arith.constant 0 : index
    %34 = vector.load %arg2[%c2_37, %c0_38, %c0_39] : memref<9x32x8xbf16, #tpu.memory_space<vmem>>, vector<1x32x8xbf16>
    %35 = vector.shape_cast %34 : vector<1x32x8xbf16> to vector<32x8xbf16>
    %cst_40 = arith.constant dense<0.000000e+00> : vector<24x8xf32>
    %36 = tpu.matmul %33, %35, %cst_40 {dimension_numbers = #tpu.dot_dimension_numbers<[1], [0], [0], [1], [0, 0, 1, 1], [], []>} : vector<24x32xbf16>, vector<32x8xbf16>, vector<24x8xf32> -> vector<24x8xf32>
    %37 = arith.addf %32, %36 : vector<24x8xf32>
    %c6 = arith.constant 6 : index
    %c0_41 = arith.constant 0 : index
    %38 = vector.load %arg7[%c6, %c0_41] : memref<40x32xbf16, #tpu.memory_space<vmem>>, vector<24x32xbf16>
    %c3_42 = arith.constant 3 : index
    %c0_43 = arith.constant 0 : index
    %c0_44 = arith.constant 0 : index
    %39 = vector.load %arg2[%c3_42, %c0_43, %c0_44] : memref<9x32x8xbf16, #tpu.memory_space<vmem>>, vector<1x32x8xbf16>
    %40 = vector.shape_cast %39 : vector<1x32x8xbf16> to vector<32x8xbf16>
    %cst_45 = arith.constant dense<0.000000e+00> : vector<24x8xf32>
    %41 = tpu.matmul %38, %40, %cst_45 {dimension_numbers = #tpu.dot_dimension_numbers<[1], [0], [0], [1], [0, 0, 1, 1], [], []>} : vector<24x32xbf16>, vector<32x8xbf16>, vector<24x8xf32> -> vector<24x8xf32>
    %42 = arith.addf %37, %41 : vector<24x8xf32>
    %c7_46 = arith.constant 7 : index
    %c0_47 = arith.constant 0 : index
    %43 = vector.load %arg7[%c7_46, %c0_47] : memref<40x32xbf16, #tpu.memory_space<vmem>>, vector<24x32xbf16>
    %c4 = arith.constant 4 : index
    %c0_48 = arith.constant 0 : index
    %c0_49 = arith.constant 0 : index
    %44 = vector.load %arg2[%c4, %c0_48, %c0_49] : memref<9x32x8xbf16, #tpu.memory_space<vmem>>, vector<1x32x8xbf16>
    %45 = vector.shape_cast %44 : vector<1x32x8xbf16> to vector<32x8xbf16>
    %cst_50 = arith.constant dense<0.000000e+00> : vector<24x8xf32>
    %46 = tpu.matmul %43, %45, %cst_50 {dimension_numbers = #tpu.dot_dimension_numbers<[1], [0], [0], [1], [0, 0, 1, 1], [], []>} : vector<24x32xbf16>, vector<32x8xbf16>, vector<24x8xf32> -> vector<24x8xf32>
    %47 = arith.addf %42, %46 : vector<24x8xf32>
    %c8 = arith.constant 8 : index
    %c0_51 = arith.constant 0 : index
    %48 = vector.load %arg7[%c8, %c0_51] : memref<40x32xbf16, #tpu.memory_space<vmem>>, vector<24x32xbf16>
    %c5 = arith.constant 5 : index
    %c0_52 = arith.constant 0 : index
    %c0_53 = arith.constant 0 : index
    %49 = vector.load %arg2[%c5, %c0_52, %c0_53] : memref<9x32x8xbf16, #tpu.memory_space<vmem>>, vector<1x32x8xbf16>
    %50 = vector.shape_cast %49 : vector<1x32x8xbf16> to vector<32x8xbf16>
    %cst_54 = arith.constant dense<0.000000e+00> : vector<24x8xf32>
    %51 = tpu.matmul %48, %50, %cst_54 {dimension_numbers = #tpu.dot_dimension_numbers<[1], [0], [0], [1], [0, 0, 1, 1], [], []>} : vector<24x32xbf16>, vector<32x8xbf16>, vector<24x8xf32> -> vector<24x8xf32>
    %52 = arith.addf %47, %51 : vector<24x8xf32>
    %c12 = arith.constant 12 : index
    %c0_55 = arith.constant 0 : index
    %53 = vector.load %arg7[%c12, %c0_55] : memref<40x32xbf16, #tpu.memory_space<vmem>>, vector<24x32xbf16>
    %c6_56 = arith.constant 6 : index
    %c0_57 = arith.constant 0 : index
    %c0_58 = arith.constant 0 : index
    %54 = vector.load %arg2[%c6_56, %c0_57, %c0_58] : memref<9x32x8xbf16, #tpu.memory_space<vmem>>, vector<1x32x8xbf16>
    %55 = vector.shape_cast %54 : vector<1x32x8xbf16> to vector<32x8xbf16>
    %cst_59 = arith.constant dense<0.000000e+00> : vector<24x8xf32>
    %56 = tpu.matmul %53, %55, %cst_59 {dimension_numbers = #tpu.dot_dimension_numbers<[1], [0], [0], [1], [0, 0, 1, 1], [], []>} : vector<24x32xbf16>, vector<32x8xbf16>, vector<24x8xf32> -> vector<24x8xf32>
    %57 = arith.addf %52, %56 : vector<24x8xf32>
    %c13_60 = arith.constant 13 : index
    %c0_61 = arith.constant 0 : index
    %58 = vector.load %arg7[%c13_60, %c0_61] : memref<40x32xbf16, #tpu.memory_space<vmem>>, vector<24x32xbf16>
    %c7_62 = arith.constant 7 : index
    %c0_63 = arith.constant 0 : index
    %c0_64 = arith.constant 0 : index
    %59 = vector.load %arg2[%c7_62, %c0_63, %c0_64] : memref<9x32x8xbf16, #tpu.memory_space<vmem>>, vector<1x32x8xbf16>
    %60 = vector.shape_cast %59 : vector<1x32x8xbf16> to vector<32x8xbf16>
    %cst_65 = arith.constant dense<0.000000e+00> : vector<24x8xf32>
    %61 = tpu.matmul %58, %60, %cst_65 {dimension_numbers = #tpu.dot_dimension_numbers<[1], [0], [0], [1], [0, 0, 1, 1], [], []>} : vector<24x32xbf16>, vector<32x8xbf16>, vector<24x8xf32> -> vector<24x8xf32>
    %62 = arith.addf %57, %61 : vector<24x8xf32>
    %c14 = arith.constant 14 : index
    %c0_66 = arith.constant 0 : index
    %63 = vector.load %arg7[%c14, %c0_66] : memref<40x32xbf16, #tpu.memory_space<vmem>>, vector<24x32xbf16>
    %c8_67 = arith.constant 8 : index
    %c0_68 = arith.constant 0 : index
    %c0_69 = arith.constant 0 : index
    %64 = vector.load %arg2[%c8_67, %c0_68, %c0_69] : memref<9x32x8xbf16, #tpu.memory_space<vmem>>, vector<1x32x8xbf16>
    %65 = vector.shape_cast %64 : vector<1x32x8xbf16> to vector<32x8xbf16>
    %cst_70 = arith.constant dense<0.000000e+00> : vector<24x8xf32>
    %66 = tpu.matmul %63, %65, %cst_70 {dimension_numbers = #tpu.dot_dimension_numbers<[1], [0], [0], [1], [0, 0, 1, 1], [], []>} : vector<24x32xbf16>, vector<32x8xbf16>, vector<24x8xf32> -> vector<24x8xf32>
    %67 = arith.addf %62, %66 : vector<24x8xf32>
    %c0_71 = arith.constant 0 : index
    %c0_72 = arith.constant 0 : index
    %68 = vector.load %arg3[%c0_71, %c0_72] : memref<1x8xf32, #tpu.memory_space<vmem>>, vector<1x8xf32>
    %69 = vector.broadcast %68 : vector<1x8xf32> to vector<24x8xf32>
    %70 = arith.addf %67, %69 : vector<24x8xf32>
    %cst_73 = arith.constant 0.000000e+00 : f32
    %71 = vector.broadcast %cst_73 : f32 to vector<24x8xf32>
    %72 = arith.maximumf %70, %71 : vector<24x8xf32>
    %73 = arith.truncf %72 : vector<24x8xf32> to vector<24x8xbf16>
    %c0_74 = arith.constant 0 : index
    %c0_75 = arith.constant 0 : index
    %74 = vector.load %arg4[%c0_74, %c0_75] : memref<8x32xbf16, #tpu.memory_space<vmem>>, vector<8x32xbf16>
    %cst_76 = arith.constant dense<0.000000e+00> : vector<24x32xf32>
    %75 = tpu.matmul %73, %74, %cst_76 {dimension_numbers = #tpu.dot_dimension_numbers<[1], [0], [0], [1], [0, 0, 1, 1], [], []>} : vector<24x8xbf16>, vector<8x32xbf16>, vector<24x32xf32> -> vector<24x32xf32>
    %c0_77 = arith.constant 0 : index
    %c0_78 = arith.constant 0 : index
    %76 = vector.load %arg5[%c0_77, %c0_78] : memref<1x32xf32, #tpu.memory_space<vmem>>, vector<1x32xf32>
    %77 = vector.broadcast %76 : vector<1x32xf32> to vector<24x32xf32>
    %78 = arith.addf %75, %77 : vector<24x32xf32>
    %79 = vector.shape_cast %78 : vector<24x32xf32> to vector<4x6x32xf32>
    %80 = vector.extract_strided_slice %79 {offsets = [0, 0, 0], sizes = [4, 4, 32], strides = [1, 1, 1]} : vector<4x6x32xf32> to vector<4x4x32xf32>
    %c0_79 = arith.constant 0 : index
    %c0_80 = arith.constant 0 : index
    %c0_81 = arith.constant 0 : index
    %c0_82 = arith.constant 0 : index
    %81 = vector.load %arg1[%c0_79, %c0_80, %c0_81, %c0_82] : memref<1x4x4x32xbf16, #tpu.memory_space<vmem>>, vector<1x4x4x32xbf16>
    %82 = vector.shape_cast %81 : vector<1x4x4x32xbf16> to vector<4x4x32xbf16>
    %83 = arith.extf %82 : vector<4x4x32xbf16> to vector<4x4x32xf32>
    %84 = arith.addf %80, %83 : vector<4x4x32xf32>
    %cst_83 = arith.constant 0.000000e+00 : f32
    %85 = vector.broadcast %cst_83 : f32 to vector<4x4x32xf32>
    %86 = arith.maximumf %84, %85 : vector<4x4x32xf32>
    %c0_84 = arith.constant 0 : index
    %c0_85 = arith.constant 0 : index
    %c0_86 = arith.constant 0 : index
    %c0_87 = arith.constant 0 : index
    %87 = vector.load %arg6[%c0_84, %c0_85, %c0_86, %c0_87] : memref<1x4x4x32xf32, #tpu.memory_space<vmem>>, vector<1x4x4x32xf32>
    %88 = vector.shape_cast %87 : vector<1x4x4x32xf32> to vector<4x4x32xf32>
    %89 = vector.shape_cast %86 : vector<4x4x32xf32> to vector<1x4x4x32xf32>
    tpu.vector_store %arg6[%c0_84, %c0_85, %c0_86, %c0_87], %89 {strides = array<i32>} : memref<1x4x4x32xf32, #tpu.memory_space<vmem>>, vector<1x4x4x32xf32>,
    return
  }
  func.func @transform_0(%arg0: i32) -> (i32, i32, i32, i32) {
    %c0_i32 = arith.constant 0 : i32
    %c0_i32_0 = arith.constant 0 : i32
    %c0_i32_1 = arith.constant 0 : i32
    %c0_i32_2 = arith.constant 0 : i32
    return %arg0, %c0_i32, %c0_i32_0, %c0_i32_1 : i32, i32, i32, i32
  }
  func.func @transform_1(%arg0: i32) -> (i32, i32, i32) {
    %c0_i32 = arith.constant 0 : i32
    %c0_i32_0 = arith.constant 0 : i32
    %c0_i32_1 = arith.constant 0 : i32
    %c0_i32_2 = arith.constant 0 : i32
    return %c0_i32, %c0_i32_0, %c0_i32_1 : i32, i32, i32
  }
  func.func @transform_2(%arg0: i32) -> (i32, i32) {
    %c0_i32 = arith.constant 0 : i32
    %c0_i32_0 = arith.constant 0 : i32
    %c0_i32_1 = arith.constant 0 : i32
    return %c0_i32, %c0_i32_0 : i32, i32
  }
  func.func @transform_3(%arg0: i32) -> (i32, i32) {
    %c0_i32 = arith.constant 0 : i32
    %c0_i32_0 = arith.constant 0 : i32
    %c0_i32_1 = arith.constant 0 : i32
    return %c0_i32, %c0_i32_0 : i32, i32
  }
  func.func @transform_4(%arg0: i32) -> (i32, i32) {
    %c0_i32 = arith.constant 0 : i32
    %c0_i32_0 = arith.constant 0 : i32
    %c0_i32_1 = arith.constant 0 : i32
    return %c0_i32, %c0_i32_0 : i32, i32
  }
  func.func @transform_5(%arg0: i32) -> (i32, i32, i32, i32) {
    %c0_i32 = arith.constant 0 : i32
    %c0_i32_0 = arith.constant 0 : i32
    %c0_i32_1 = arith.constant 0 : i32
    %c0_i32_2 = arith.constant 0 : i32
    return %arg0, %c0_i32, %c0_i32_0, %c0_i32_1 : i32, i32, i32, i32
  }
}

</mosaic_0001>

<llo_original>
// kernel: encoder_forward.5
$region0: #{encoder_forward.5}
  #allocation0 [shape = 'u32[]', space=smem, size = 0x4, offset = 0x4, fixed_abs, tag = 'smem constant byte address 0x4 - core index']
  #allocation1 [shape = 'u32[144,128]{1,0:T(1,128)}', space=vmem, size = 0x12000, scoped, tag = 'internal scratch']
  %s0 = inlined_call_operand.vmem [shape: bf16[2,88,16], index: 0, kind: input, shape index: {}]
  %s1 = inlined_call_operand.vmem [shape: bf16[4,16,16], index: 1, kind: input, shape index: {}]
  %s2 = inlined_call_operand.vmem [shape: f32[1,16], index: 2, kind: input, shape index: {}]
  %s3 = inlined_call_operand.vmem [shape: bf16[2,8,8,16], index: 3, kind: output, shape index: {}]
  %s4 = sld [smem:[#allocation0]]
  $region45: #{encoder_forward.5} parent=0
    _
  %s6 = ssub.s32 1, %s4
  %s7 = scalar_select 0, %s6, %s4
  loop: start=0, step=1, limit=4
  $region2: #{encoder_forward.5} parent=0 // loop_pre_header
    _
  $region3: #{encoder_forward.5} parent=0 // loop_header
    %s9 = sphi 0, %s13
    %p10 = scmp.ge.s32.totalorder %s9, 4
    %s19 = sphi 0, %s21
    %s22 = sphi 0, %s19
    %s23 = sphi 0, %s22
    %s39 = sphi 0, %s23
    %s43 = sphi 0, %s43
    %s45 = sphi 0, %s43
    %s46 = sphi 0, %s45
    %s60 = sphi 0, %s46
    %s64 = sphi 0, %s64
    %s66 = sphi 0, %s64
    %s67 = sphi 0, %s66
    %s81 = sphi 0, %s67
    %s87 = sphi 0, %s89
    %s90 = sphi 0, %s87
    %s91 = sphi 0, %s90
    %s107 = sphi 0, %s91
  $region4: #{encoder_forward.5} parent=0 // loop_header_branch
    %12 = sbr.rel (%p10) target = $region8
  $region5: #{encoder_forward.5} parent=0 // loop_body
    %s14 = ssub.s32 %s9, 1
    %s15 = ssub.s32 %s9, 2
    %s16 = sadd.s32 %s9, 1
    %s17 = ssub.s32 %s9, %s16
    %p18 = scmp.eq.s32.totalorder %s17, 0
    %s20 = sadd.s32 %s19, 1
    %s21 = scalar_select %p18, %s19, %s20
    %p24 = pneg %p18
    %p25 = scmp.eq.s32.totalorder %s9, 1
    %p26 = por %p24, %p25
    %p27 = scmp.ne.s32.totalorder %s19, %s22
    %p28 = scmp.eq.s32.totalorder %s9, 0
    %p29 = por %p27, %p28
    %p30 = scmp.ne.s32.totalorder %s19, %s22
    %p31 = scmp.eq.s32.totalorder %s14, 1
    %p32 = por %p30, %p31
    %p33 = scmp.ne.s32.totalorder %s22, %s23
    %p34 = scmp.eq.s32.totalorder %s14, 0
    %p35 = por %p33, %p34
    %p36 = scmp.ne.s32.totalorder %s22, %s23
    %p37 = scmp.eq.s32.totalorder %s15, 1
    %p38 = por %p36, %p37
    %p40 = scmp.ne.s32.totalorder %s23, %s39
    %p41 = scmp.eq.s32.totalorder %s15, 0
    %p42 = por %p40, %p41
    %s44 = sadd.s32 %s43, 1
    %p47 = scmp.eq.s32.totalorder %s9, 1
    %p48 = scmp.ne.s32.totalorder %s43, %s45
    %p49 = scmp.eq.s32.totalorder %s9, 0
    %p50 = por %p48, %p49
    %p51 = scmp.ne.s32.totalorder %s43, %s45
    %p52 = scmp.eq.s32.totalorder %s14, 1
    %p53 = por %p51, %p52
    %p54 = scmp.ne.s32.totalorder %s45, %s46
    %p55 = scmp.eq.s32.totalorder %s14, 0
    %p56 = por %p54, %p55
    %p57 = scmp.ne.s32.totalorder %s45, %s46
    %p58 = scmp.eq.s32.totalorder %s15, 1
    %p59 = por %p57, %p58
    %p61 = scmp.ne.s32.totalorder %s46, %s60
    %p62 = scmp.eq.s32.totalorder %s15, 0
    %p63 = por %p61, %p62
    %s65 = sadd.s32 %s64, 1
    %p68 = scmp.eq.s32.totalorder %s9, 1
    %p69 = scmp.ne.s32.totalorder %s64, %s66
    %p70 = scmp.eq.s32.totalorder %s9, 0
    %p71 = por %p69, %p70
    %p72 = scmp.ne.s32.totalorder %s64, %s66
    %p73 = scmp.eq.s32.totalorder %s14, 1
    %p74 = por %p72, %p73
    %p75 = scmp.ne.s32.totalorder %s66, %s67
    %p76 = scmp.eq.s32.totalorder %s14, 0
    %p77 = por %p75, %p76
    %p78 = scmp.ne.s32.totalorder %s66, %s67
    %p79 = scmp.eq.s32.totalorder %s15, 1
    %p80 = por %p78, %p79
    %p82 = scmp.ne.s32.totalorder %s67, %s81
    %p83 = scmp.eq.s32.totalorder %s15, 0
    %p84 = por %p82, %p83
    %s85 = ssub.s32 %s9, %s16
    %p86 = scmp.eq.s32.totalorder %s85, 0
    %s88 = sadd.s32 %s87, 1
    %s89 = scalar_select %p86, %s87, %s88
    %p92 = pneg %p86
    %p93 = scmp.eq.s32.totalorder %s9, 1
    %p94 = por %p92, %p93
    %p95 = scmp.ne.s32.totalorder %s87, %s90
    %p96 = scmp.eq.s32.totalorder %s9, 0
    %p97 = por %p95, %p96
    %p98 = scmp.ne.s32.totalorder %s87, %s90
    %p99 = scmp.eq.s32.totalorder %s14, 1
    %p100 = por %p98, %p99
    %p101 = scmp.ne.s32.totalorder %s90, %s91
    %p102 = scmp.eq.s32.totalorder %s14, 0
    %p103 = por %p101, %p102
    %p104 = scmp.ne.s32.totalorder %s90, %s91
    %p105 = scmp.eq.s32.totalorder %s15, 1
    %p106 = por %p104, %p105
    %p108 = scmp.ne.s32.totalorder %s91, %s107
    %p109 = scmp.eq.s32.totalorder %s15, 0
    %p110 = por %p108, %p109
    %p111 = scmp.le.s32.totalorder 1, %s9
    %p112 = scmp.lt.s32.totalorder %s9, 3
    %p113 = pnand %p111, %p112
    %p114 = pneg %p113
    // Predicated region
    $region9: #{encoder_forward.5} parent=5 // pred_check
      _
    $region10: #{encoder_forward.5} parent=5 // pred_check_branch
      %116 = sbr.rel (%p113) target = $region12
    $region11: #{encoder_forward.5} parent=5 // pred_region
      %s117 = ssub.s32 %s9, 1
      // Predicated region
      $region13: #{encoder_forward.5} parent=11 // pred_check
        %p118 = pneg %p56
      $region14: #{encoder_forward.5} parent=11 // pred_check_branch
        %120 = sbr.rel (%p118) target = $region16
      $region15: #{encoder_forward.5} parent=11 // pred_region
        _
      $region16: #{encoder_forward.5} parent=11 // pred_fallthru
        _
      // Predicated region
      $region17: #{encoder_forward.5} parent=11 // pred_check
        %p121 = pneg %p77
      $region18: #{encoder_forward.5} parent=11 // pred_check_branch
        %123 = sbr.rel (%p121) target = $region20
      $region19: #{encoder_forward.5} parent=11 // pred_region
        _
      $region20: #{encoder_forward.5} parent=11 // pred_fallthru
        _
    $region12: #{encoder_forward.5} parent=5 // pred_fallthru
      _
    %p124 = scmp.lt.s32.totalorder %s9, 2
    // Predicated region
    $region21: #{encoder_forward.5} parent=5 // pred_check
      %p125 = pneg %p124
    $region22: #{encoder_forward.5} parent=5 // pred_check_branch
      %127 = sbr.rel (%p125) target = $region24
    $region23: #{encoder_forward.5} parent=5 // pred_region
      // Predicated region
      $region25: #{encoder_forward.5} parent=23 // pred_check
        %p128 = pneg %p29
      $region26: #{encoder_forward.5} parent=23 // pred_check_branch
        %130 = sbr.rel (%p128) target = $region28
      $region27: #{encoder_forward.5} parent=23 // pred_region
        %p131 = scmp.lt.s32.totalorder %s9, 1
        %s132 = scalar_select %p131, %s9, 1
        %s133 = smul.addr %s132, 11
        %s134 = smul.addr %s133, 4
        %s135 = scalar_lea.vmem %s0, %s134
      $region28: #{encoder_forward.5} parent=23 // pred_fallthru
        _
    $region24: #{encoder_forward.5} parent=5 // pred_fallthru
      _
    %p136 = scmp.le.s32.totalorder 1, %s9
    %p137 = scmp.lt.s32.totalorder %s9, 3
    %p138 = pnand %p136, %p137
    %p139 = pneg %p138
    // Predicated region
    $region29: #{encoder_forward.5} parent=5 // pred_check
      _
    $region30: #{encoder_forward.5} parent=5 // pred_check_branch
      %141 = sbr.rel (%p138) target = $region32
    $region31: #{encoder_forward.5} parent=5 // pred_region
      %s142 = ssub.s32 %s9, 1
      %p143 = scmp.lt.s32.totalorder %s14, 1
      %s144 = scalar_select %p143, %s14, 1
      %s145 = smul.addr %s144, 11
      %s146 = smul.addr %s145, 4
      %s147 = scalar_lea.vmem %s0, %s146
      %p148 = pneg %p35
      %p149 = pneg %p32
      %p150 = pneg %p56
      %p151 = pneg %p53
      %p152 = pneg %p77
      %p153 = pneg %p74
      %p154 = pneg %p103
      %p155 = pneg %p100
      %p156 = scmp.lt.s32.totalorder %s14, 1
      %s157 = scalar_select %p156, %s14, 1
      %s158 = smul.addr %s157, 8
      %s159 = smul.addr %s158, 4
      %s160 = scalar_lea.vmem %s3, %s159
      %p161 = scmp.lt.s32.totalorder %s14, 1
      %s162 = scalar_select %p161, %s14, 1
      %s163 = smul.addr %s162, 11
      %s164 = smul.addr %s163, 4
      %s165 = scalar_lea.vmem %s0, %s164
      %p166 = scmp.lt.s32.totalorder %s14, 1
      %s167 = scalar_select %p166, %s14, 1
      %s168 = smul.addr %s167, 8
      %s169 = smul.addr %s168, 4
      %s170 = scalar_lea.vmem %s3, %s169
      %v172 = vld [vmem:[%s165] sm:$0xf]
      %v173 = vld [vmem:[%s165 + $0x4] sm:$0xf]
      %v174 = vld [vmem:[%s165 + $0x8] sm:$0xf]
      %v175 = vld [vmem:[%s165 + $0xc] sm:$0xf]
      %v176 = vld [vmem:[%s165 + $0x10] sm:$0xf]
      %v177 = vld [vmem:[%s165 + $0x14] sm:$0xf]
      %v178 = vld [vmem:[%s165 + $0x18] sm:$0xf]
      %v179 = vld [vmem:[%s165 + $0x1c] sm:$0xf]
      %v180 = vld [vmem:[%s165 + $0x20] sm:$0xf]
      %v181 = vld [vmem:[%s1] sm:$0xf]
      %v182 = vld [vmem:[%s1 + $0x4] sm:$0xf]
      %v183 = vld [vmem:[%s165 + $0x24] sm:$0x1]
      %s184 = scalar_lea.vmem %s1, 8
      %v185 = vld [vmem:[%s184] sm:$0xf]
      %v186 = vld [vmem:[%s184 + $0x4] sm:$0xf]
      %v197 = vunpack.c.l.b16 %v172
      %v198 = vunpack.c.l.b16 %v173
      %v199 = vunpack.c.l.b16 %v174
      %v200 = vunpack.c.l.b16 %v175
      %v201 = vunpack.c.l.b16 %v176
      %v202 = vunpack.c.l.b16 %v177
      %v203 = vunpack.c.l.b16 %v178
      %v204 = vunpack.c.l.b16 %v179
      %v205 = vunpack.c.l.b16 %v180
      %v206 = vunpack.c.l.b16 %v183
      %v207 = vpack.c.b16 %v198, %v197
      %v208 = vpack.c.b16 %v200, %v199
      %v209 = vpack.c.b16 %v202, %v201
      %v210 = vpack.c.b16 %v204, %v203
      %v211 = vpack.c.b16 %v206, %v205
      %vm212 = vsmask.f32 7424
      %v214 = vshrl.u32 %v207, 16
      %v216 = vshll.u32 %v207, 16
      %v218 = vrot.slane %v216, 1
      %v219 = vor.u32 %v214, %v218
      %v221 = vshll.u32 %v208, 16
      %v223 = vrot.slane %v221, 1
      %v224 = vsel %vm212, %v219, %v223
      %v225 = vshrl.u32 %v208, 16
      %v227 = vor.u32 %v225, %v223
      %v229 = vshll.u32 %v209, 16
      %v231 = vrot.slane %v229, 1
      %v232 = vsel %vm212, %v227, %v231
      %v233 = vshrl.u32 %v209, 16
      %v235 = vor.u32 %v233, %v231
      %v237 = vshll.u32 %v210, 16
      %v239 = vrot.slane %v237, 1
      %v240 = vsel %vm212, %v235, %v239
      %v241 = vshrl.u32 %v210, 16
      %v243 = vor.u32 %v241, %v239
      %v245 = vshll.u32 %v211, 16
      %v247 = vrot.slane %v245, 1
      %v248 = vsel %vm212, %v243, %v247
      %v249 = vshrl.u32 %v211, 16
      %v251 = vor.u32 %v249, %v247
      %v254 = vunpack.c.l.b16 %v185
      %v255 = vunpack.c.l.b16 %v186
      %v256 = vpack.c.b16 %v255, %v254
      %vm258 = vcmask 130048
      %v260 = vsel %vm258, %v224, 0
      %v263 = vsel %vm258, %v232, 0
      %v266 = vsel %vm258, %v240, 0
      %v269 = vsel %vm258, %v248, 0
      %v272 = vsel %vm258, %v251, 0
      %274 = vmatprep.subr.bf16.mxu0 0
      %275 = vmatpush1.bf16.msra.mxu0 %v256
      %276 = vmatprep.subr.bf16.mxu0 0
      %277 = vmatpush1.bf16.msra.mxu0 0
      %278 = vmatprep.subr.bf16.mxu0 0
      %279 = vmatpush1.bf16.msra.mxu0 0
      %280 = vmatprep.subr.bf16.mxu0 0
      %281 = vmatpush1.bf16.msra.mxu0 0
      %282 = vmatprep.subr.bf16.mxu0 0
      %283 = vmatpush1.bf16.msra.mxu0 0
      %284 = vmatprep.subr.bf16.mxu0 0
      %285 = vmatpush1.bf16.msra.mxu0 0
      %286 = vmatprep.subr.bf16.mxu0 0
      %287 = vmatpush1.bf16.msra.mxu0 0
      %288 = vmatprep.subr.bf16.mxu0 0
      %289 = vmatpush1.bf16.msra.mxu0 0
      %290 = vmatprep.subr.bf16.mxu0 0
      %291 = vmatpush1.bf16.msra.mxu0 0
      %292 = vmatprep.subr.bf16.mxu0 0
      %293 = vmatpush1.bf16.msra.mxu0 0
      %294 = vmatprep.subr.bf16.mxu0 0
      %295 = vmatpush1.bf16.msra.mxu0 0
      %296 = vmatprep.subr.bf16.mxu0 0
      %297 = vmatpush1.bf16.msra.mxu0 0
      %298 = vmatprep.subr.bf16.mxu0 0
      %299 = vmatpush1.bf16.msra.mxu0 0
      %300 = vmatprep.subr.bf16.mxu0 0
      %301 = vmatpush1.bf16.msra.mxu0 0
      %302 = vmatprep.subr.bf16.mxu0 0
      %303 = vmatpush1.bf16.msra.mxu0 0
      %304 = vmatprep.subr.bf16.mxu0 0
      %305 = vmatpush1.bf16.msra.mxu0 0
      %306 = vmatprep.mubr.bf16.mxu0 0
      %307 = vmatmul.mubr.bf16.gmra.mrb[0].mxu0 %v260
      %v308 = vpop.f32.mrb[0].mxu0
      %v309 = vadd.f32 0.0, %v308
      %v310 = vpop.f32.mrb[0].mxu0
      %v311 = vpop.f32.mrb[0].mxu0
      %v312 = vadd.f32 0.0, %v311
      %v313 = vpop.f32.mrb[0].mxu0
      %314 = vmatprep.mubr.bf16.mxu0 0
      %315 = vmatmul.mubr.bf16.gmra.mrb[0].mxu0 %v263
      %v316 = vpop.f32.mrb[0].mxu0
      %v317 = vadd.f32 0.0, %v316
      %v318 = vpop.f32.mrb[0].mxu0
      %v319 = vpop.f32.mrb[0].mxu0
      %v320 = vadd.f32 0.0, %v319
      %v321 = vpop.f32.mrb[0].mxu0
      %322 = vmatprep.mubr.bf16.mxu0 0
      %323 = vmatmul.mubr.bf16.gmra.mrb[0].mxu0 %v266
      %v324 = vpop.f32.mrb[0].mxu0
      %v325 = vadd.f32 0.0, %v324
      %v326 = vpop.f32.mrb[0].mxu0
      %v327 = vpop.f32.mrb[0].mxu0
      %v328 = vadd.f32 0.0, %v327
      %v329 = vpop.f32.mrb[0].mxu0
      %330 = vmatprep.mubr.bf16.mxu0 0
      %331 = vmatmul.mubr.bf16.gmra.mrb[0].mxu0 %v269
      %v332 = vpop.f32.mrb[0].mxu0
      %v333 = vadd.f32 0.0, %v332
      %v334 = vpop.f32.mrb[0].mxu0
      %v335 = vpop.f32.mrb[0].mxu0
      %v336 = vadd.f32 0.0, %v335
      %v337 = vpop.f32.mrb[0].mxu0
      %338 = vmatprep.mubr.bf16.mxu0 0
      %339 = vmatmul.mubr.bf16.gmra.mrb[0].mxu0 %v272
      %v340 = vpop.f32.mrb[0].mxu0
      %v341 = vadd.f32 0.0, %v340
      %v342 = vpop.f32.mrb[0].mxu0
      %v343 = vpop.f32.mrb[0].mxu0
      %v344 = vpop.f32.mrb[0].mxu0
      %345 = vdwg.mxu0
      %v346 = vpack.c.b16 %v205, %v205
      %v349 = vunpack.c.l.b16 %v181
      %v350 = vunpack.c.l.b16 %v182
      %v351 = vpack.c.b16 %v350, %v349
      %v353 = vsel %vm258, %v207, 0
      %v355 = vsel %vm258, %v208, 0
      %v357 = vsel %vm258, %v209, 0
      %v359 = vsel %vm258, %v210, 0
      %v362 = vsel %vm258, %v346, 0
      %364 = vmatprep.subr.bf16.mxu0 0
      %365 = vmatpush1.bf16.msra.mxu0 %v351
      %366 = vmatprep.subr.bf16.mxu0 0
      %367 = vmatpush1.bf16.msra.mxu0 0
      %368 = vmatprep.subr.bf16.mxu0 0
      %369 = vmatpush1.bf16.msra.mxu0 0
      %370 = vmatprep.subr.bf16.mxu0 0
      %371 = vmatpush1.bf16.msra.mxu0 0
      %372 = vmatprep.subr.bf16.mxu0 0
      %373 = vmatpush1.bf16.msra.mxu0 0
      %374 = vmatprep.subr.bf16.mxu0 0
      %375 = vmatpush1.bf16.msra.mxu0 0
      %376 = vmatprep.subr.bf16.mxu0 0
      %377 = vmatpush1.bf16.msra.mxu0 0
      %378 = vmatprep.subr.bf16.mxu0 0
      %379 = vmatpush1.bf16.msra.mxu0 0
      %380 = vmatprep.subr.bf16.mxu0 0
      %381 = vmatpush1.bf16.msra.mxu0 0
      %382 = vmatprep.subr.bf16.mxu0 0
      %383 = vmatpush1.bf16.msra.mxu0 0
      %384 = vmatprep.subr.bf16.mxu0 0
      %385 = vmatpush1.bf16.msra.mxu0 0
      %386 = vmatprep.subr.bf16.mxu0 0
      %387 = vmatpush1.bf16.msra.mxu0 0
      %388 = vmatprep.subr.bf16.mxu0 0
      %389 = vmatpush1.bf16.msra.mxu0 0
      %390 = vmatprep.subr.bf16.mxu0 0
      %391 = vmatpush1.bf16.msra.mxu0 0
      %392 = vmatprep.subr.bf16.mxu0 0
      %393 = vmatpush1.bf16.msra.mxu0 0
      %394 = vmatprep.subr.bf16.mxu0 0
      %395 = vmatpush1.bf16.msra.mxu0 0
      %396 = vmatprep.mubr.bf16.mxu0 0
      %397 = vmatmul.mubr.bf16.gmra.mrb[0].mxu0 %v353
      %v398 = vpop.f32.mrb[0].mxu0
      %v399 = vadd.f32 %v309, %v398
      %v400 = vpop.f32.mrb[0].mxu0
      %v401 = vpop.f32.mrb[0].mxu0
      %v402 = vadd.f32 %v312, %v401
      %v403 = vpop.f32.mrb[0].mxu0
      %404 = vmatprep.mubr.bf16.mxu0 0
      %405 = vmatmul.mubr.bf16.gmra.mrb[0].mxu0 %v355
      %v406 = vpop.f32.mrb[0].mxu0
      %v407 = vadd.f32 %v317, %v406
      %v408 = vpop.f32.mrb[0].mxu0
      %v409 = vpop.f32.mrb[0].mxu0
      %v410 = vadd.f32 %v320, %v409
      %v411 = vpop.f32.mrb[0].mxu0
      %412 = vmatprep.mubr.bf16.mxu0 0
      %413 = vmatmul.mubr.bf16.gmra.mrb[0].mxu0 %v357
      %v414 = vpop.f32.mrb[0].mxu0
      %v415 = vadd.f32 %v325, %v414
      %v416 = vpop.f32.mrb[0].mxu0
      %v417 = vpop.f32.mrb[0].mxu0
      %v418 = vadd.f32 %v328, %v417
      %v419 = vpop.f32.mrb[0].mxu0
      %420 = vmatprep.mubr.bf16.mxu0 0
      %421 = vmatmul.mubr.bf16.gmra.mrb[0].mxu0 %v359
      %v422 = vpop.f32.mrb[0].mxu0
      %v423 = vadd.f32 %v333, %v422
      %v424 = vpop.f32.mrb[0].mxu0
      %v425 = vpop.f32.mrb[0].mxu0
      %v426 = vadd.f32 %v336, %v425
      %v427 = vpop.f32.mrb[0].mxu0
      %428 = vmatprep.mubr.bf16.mxu0 0
      %429 = vmatmul.mubr.bf16.gmra.mrb[0].mxu0 %v362
      %v430 = vpop.f32.mrb[0].mxu0
      %v431 = vadd.f32 %v341, %v430
      %v432 = vpop.f32.mrb[0].mxu0
      %v433 = vpop.f32.mrb[0].mxu0
      %v434 = vpop.f32.mrb[0].mxu0
      %435 = vdwg.mxu0
      %v436 = vld [vmem:[%s165 + $0x4] sm:$0xf]
      %v437 = vld [vmem:[%s165 + $0x8] sm:$0xf]
      %v438 = vld [vmem:[%s165 + $0xc] sm:$0xf]
      %v439 = vld [vmem:[%s165 + $0x10] sm:$0xf]
      %v440 = vld [vmem:[%s165 + $0x14] sm:$0xf]
      %v441 = vld [vmem:[%s165 + $0x18] sm:$0xf]
      %v442 = vld [vmem:[%s165 + $0x1c] sm:$0xf]
      %v443 = vld [vmem:[%s165 + $0x20] sm:$0xf]
      %v444 = vld [vmem:[%s165 + $0x24] sm:$0xf]
      %v445 = vld [vmem:[%s165 + $0x28] sm:$0x1]
      %s446 = scalar_lea.vmem %s1, 16
      %v447 = vld [vmem:[%s446] sm:$0xf]
      %v448 = vld [vmem:[%s446 + $0x4] sm:$0xf]
      %v459 = vunpack.c.l.b16 %v436
      %v460 = vunpack.c.l.b16 %v437
      %v461 = vunpack.c.l.b16 %v438
      %v462 = vunpack.c.l.b16 %v439
      %v463 = vunpack.c.l.b16 %v440
      %v464 = vunpack.c.l.b16 %v441
      %v465 = vunpack.c.l.b16 %v442
      %v466 = vunpack.c.l.b16 %v443
      %v467 = vunpack.c.l.b16 %v444
      %v468 = vunpack.c.l.b16 %v445
      %v469 = vpack.c.b16 %v460, %v459
      %v470 = vpack.c.b16 %v462, %v461
      %v471 = vpack.c.b16 %v464, %v463
      %v472 = vpack.c.b16 %v466, %v465
      %v473 = vpack.c.b16 %v468, %v467
      %v475 = vshrl.u32 %v469, 16
      %v477 = vshll.u32 %v469, 16
      %v479 = vrot.slane %v477, 1
      %v480 = vor.u32 %v475, %v479
      %v482 = vshll.u32 %v470, 16
      %v484 = vrot.slane %v482, 1
      %v485 = vsel %vm212, %v480, %v484
      %v486 = vshrl.u32 %v470, 16
      %v488 = vor.u32 %v486, %v484
      %v490 = vshll.u32 %v471, 16
      %v492 = vrot.slane %v490, 1
      %v493 = vsel %vm212, %v488, %v492
      %v494 = vshrl.u32 %v471, 16
      %v496 = vor.u32 %v494, %v492
      %v498 = vshll.u32 %v472, 16
      %v500 = vrot.slane %v498, 1
      %v501 = vsel %vm212, %v496, %v500
      %v502 = vshrl.u32 %v472, 16
      %v504 = vor.u32 %v502, %v500
      %v506 = vshll.u32 %v473, 16
      %v508 = vrot.slane %v506, 1
      %v509 = vsel %vm212, %v504, %v508
      %v510 = vshrl.u32 %v473, 16
      %v512 = vor.u32 %v510, %v508
      %v515 = vunpack.c.l.b16 %v447
      %v516 = vunpack.c.l.b16 %v448
      %v517 = vpack.c.b16 %v516, %v515
      %v520 = vsel %vm258, %v485, 0
      %v523 = vsel %vm258, %v493, 0
      %v526 = vsel %vm258, %v501, 0
      %v529 = vsel %vm258, %v509, 0
      %v532 = vsel %vm258, %v512, 0
      %534 = vmatprep.subr.bf16.mxu0 0
      %535 = vmatpush1.bf16.msra.mxu0 %v517
      %536 = vmatprep.subr.bf16.mxu0 0
      %537 = vmatpush1.bf16.msra.mxu0 0
      %538 = vmatprep.subr.bf16.mxu0 0
      %539 = vmatpush1.bf16.msra.mxu0 0
      %540 = vmatprep.subr.bf16.mxu0 0
      %541 = vmatpush1.bf16.msra.mxu0 0
      %542 = vmatprep.subr.bf16.mxu0 0
      %543 = vmatpush1.bf16.msra.mxu0 0
      %544 = vmatprep.subr.bf16.mxu0 0
      %545 = vmatpush1.bf16.msra.mxu0 0
      %546 = vmatprep.subr.bf16.mxu0 0
      %547 = vmatpush1.bf16.msra.mxu0 0
      %548 = vmatprep.subr.bf16.mxu0 0
      %549 = vmatpush1.bf16.msra.mxu0 0
      %550 = vmatprep.subr.bf16.mxu0 0
      %551 = vmatpush1.bf16.msra.mxu0 0
      %552 = vmatprep.subr.bf16.mxu0 0
      %553 = vmatpush1.bf16.msra.mxu0 0
      %554 = vmatprep.subr.bf16.mxu0 0
      %555 = vmatpush1.bf16.msra.mxu0 0
      %556 = vmatprep.subr.bf16.mxu0 0
      %557 = vmatpush1.bf16.msra.mxu0 0
      %558 = vmatprep.subr.bf16.mxu0 0
      %559 = vmatpush1.bf16.msra.mxu0 0
      %560 = vmatprep.subr.bf16.mxu0 0
      %561 = vmatpush1.bf16.msra.mxu0 0
      %562 = vmatprep.subr.bf16.mxu0 0
      %563 = vmatpush1.bf16.msra.mxu0 0
      %564 = vmatprep.subr.bf16.mxu0 0
      %565 = vmatpush1.bf16.msra.mxu0 0
      %566 = vmatprep.mubr.bf16.mxu0 0
      %567 = vmatmul.mubr.bf16.gmra.mrb[0].mxu0 %v520
      %v568 = vpop.f32.mrb[0].mxu0
      %v569 = vadd.f32 0.0, %v568
      %v570 = vpop.f32.mrb[0].mxu0
      %v571 = vpop.f32.mrb[0].mxu0
      %v572 = vadd.f32 0.0, %v571
      %v573 = vpop.f32.mrb[0].mxu0
      %574 = vmatprep.mubr.bf16.mxu0 0
      %575 = vmatmul.mubr.bf16.gmra.mrb[0].mxu0 %v523
      %v576 = vpop.f32.mrb[0].mxu0
      %v577 = vadd.f32 0.0, %v576
      %v578 = vpop.f32.mrb[0].mxu0
      %v579 = vpop.f32.mrb[0].mxu0
      %v580 = vadd.f32 0.0, %v579
      %v581 = vpop.f32.mrb[0].mxu0
      %582 = vmatprep.mubr.bf16.mxu0 0
      %583 = vmatmul.mubr.bf16.gmra.mrb[0].mxu0 %v526
      %v584 = vpop.f32.mrb[0].mxu0
      %v585 = vadd.f32 0.0, %v584
      %v586 = vpop.f32.mrb[0].mxu0
      %v587 = vpop.f32.mrb[0].mxu0
      %v588 = vadd.f32 0.0, %v587
      %v589 = vpop.f32.mrb[0].mxu0
      %590 = vmatprep.mubr.bf16.mxu0 0
      %591 = vmatmul.mubr.bf16.gmra.mrb[0].mxu0 %v529
      %v592 = vpop.f32.mrb[0].mxu0
      %v593 = vadd.f32 0.0, %v592
      %v594 = vpop.f32.mrb[0].mxu0
      %v595 = vpop.f32.mrb[0].mxu0
      %v596 = vadd.f32 0.0, %v595
      %v597 = vpop.f32.mrb[0].mxu0
      %598 = vmatprep.mubr.bf16.mxu0 0
      %599 = vmatmul.mubr.bf16.gmra.mrb[0].mxu0 %v532
      %v600 = vpop.f32.mrb[0].mxu0
      %v601 = vadd.f32 0.0, %v600
      %v602 = vpop.f32.mrb[0].mxu0
      %v603 = vpop.f32.mrb[0].mxu0
      %v604 = vpop.f32.mrb[0].mxu0
      %605 = vdwg.mxu0
      %v606 = vadd.f32 %v399, %v569
      %v607 = vadd.f32 %v402, %v572
      %v608 = vadd.f32 %v407, %v577
      %v609 = vadd.f32 %v410, %v580
      %v610 = vadd.f32 %v415, %v585
      %v611 = vadd.f32 %v418, %v588
      %v612 = vadd.f32 %v423, %v593
      %v613 = vadd.f32 %v426, %v596
      %v614 = vadd.f32 %v431, %v601
      %v615 = vld [vmem:[%s165 + $0x4] sm:$0xe]
      %s616 = scalar_lea.vmem %s1, 24
      %v617 = vld [vmem:[%s616] sm:$0xf]
      %v618 = vld [vmem:[%s616 + $0x4] sm:$0xf]
      %v620 = vunpack.c.l.b16 %v615
      %v621 = vpack.c.b16 %v460, %v620
      %vm622 = vcmask 1046528
      %v623 = vrot.slane %v621, 1
      %v624 = vrot.slane %v470, 1
      %v625 = vsel %vm622, %v623, %v624
      %v626 = vrot.slane %v471, 1
      %v627 = vsel %vm622, %v624, %v626
      %v628 = vrot.slane %v472, 1
      %v629 = vsel %vm622, %v626, %v628
      %v630 = vrot.slane %v473, 1
      %v631 = vsel %vm622, %v628, %v630
      %v634 = vunpack.c.l.b16 %v617
      %v635 = vunpack.c.l.b16 %v618
      %v636 = vpack.c.b16 %v635, %v634
      %v639 = vsel %vm258, %v625, 0
      %v642 = vsel %vm258, %v627, 0
      %v645 = vsel %vm258, %v629, 0
      %v648 = vsel %vm258, %v631, 0
      %v651 = vsel %vm258, %v630, 0
      %653 = vmatprep.subr.bf16.mxu0 0
      %654 = vmatpush1.bf16.msra.mxu0 %v636
      %655 = vmatprep.subr.bf16.mxu0 0
      %656 = vmatpush1.bf16.msra.mxu0 0
      %657 = vmatprep.subr.bf16.mxu0 0
      %658 = vmatpush1.bf16.msra.mxu0 0
      %659 = vmatprep.subr.bf16.mxu0 0
      %660 = vmatpush1.bf16.msra.mxu0 0
      %661 = vmatprep.subr.bf16.mxu0 0
      %662 = vmatpush1.bf16.msra.mxu0 0
      %663 = vmatprep.subr.bf16.mxu0 0
      %664 = vmatpush1.bf16.msra.mxu0 0
      %665 = vmatprep.subr.bf16.mxu0 0
      %666 = vmatpush1.bf16.msra.mxu0 0
      %667 = vmatprep.subr.bf16.mxu0 0
      %668 = vmatpush1.bf16.msra.mxu0 0
      %669 = vmatprep.subr.bf16.mxu0 0
      %670 = vmatpush1.bf16.msra.mxu0 0
      %671 = vmatprep.subr.bf16.mxu0 0
      %672 = vmatpush1.bf16.msra.mxu0 0
      %673 = vmatprep.subr.bf16.mxu0 0
      %674 = vmatpush1.bf16.msra.mxu0 0
      %675 = vmatprep.subr.bf16.mxu0 0
      %676 = vmatpush1.bf16.msra.mxu0 0
      %677 = vmatprep.subr.bf16.mxu0 0
      %678 = vmatpush1.bf16.msra.mxu0 0
      %679 = vmatprep.subr.bf16.mxu0 0
      %680 = vmatpush1.bf16.msra.mxu0 0
      %681 = vmatprep.subr.bf16.mxu0 0
      %682 = vmatpush1.bf16.msra.mxu0 0
      %683 = vmatprep.subr.bf16.mxu0 0
      %684 = vmatpush1.bf16.msra.mxu0 0
      %685 = vmatprep.mubr.bf16.mxu0 0
      %686 = vmatmul.mubr.bf16.gmra.mrb[0].mxu0 %v639
      %v687 = vpop.f32.mrb[0].mxu0
      %v688 = vadd.f32 0.0, %v687
      %v689 = vpop.f32.mrb[0].mxu0
      %v690 = vpop.f32.mrb[0].mxu0
      %v691 = vadd.f32 0.0, %v690
      %v692 = vpop.f32.mrb[0].mxu0
      %693 = vmatprep.mubr.bf16.mxu0 0
      %694 = vmatmul.mubr.bf16.gmra.mrb[0].mxu0 %v642
      %v695 = vpop.f32.mrb[0].mxu0
      %v696 = vadd.f32 0.0, %v695
      %v697 = vpop.f32.mrb[0].mxu0
      %v698 = vpop.f32.mrb[0].mxu0
      %v699 = vadd.f32 0.0, %v698
      %v700 = vpop.f32.mrb[0].mxu0
      %701 = vmatprep.mubr.bf16.mxu0 0
      %702 = vmatmul.mubr.bf16.gmra.mrb[0].mxu0 %v645
      %v703 = vpop.f32.mrb[0].mxu0
      %v704 = vadd.f32 0.0, %v703
      %v705 = vpop.f32.mrb[0].mxu0
      %v706 = vpop.f32.mrb[0].mxu0
      %v707 = vadd.f32 0.0, %v706
      %v708 = vpop.f32.mrb[0].mxu0
      %709 = vmatprep.mubr.bf16.mxu0 0
      %710 = vmatmul.mubr.bf16.gmra.mrb[0].mxu0 %v648
      %v711 = vpop.f32.mrb[0].mxu0
      %v712 = vadd.f32 0.0, %v711
      %v713 = vpop.f32.mrb[0].mxu0
      %v714 = vpop.f32.mrb[0].mxu0
      %v715 = vadd.f32 0.0, %v714
      %v716 = vpop.f32.mrb[0].mxu0
      %717 = vmatprep.mubr.bf16.mxu0 0
      %718 = vmatmul.mubr.bf16.gmra.mrb[0].mxu0 %v651
      %v719 = vpop.f32.mrb[0].mxu0
      %v720 = vadd.f32 0.0, %v719
      %v721 = vpop.f32.mrb[0].mxu0
      %v722 = vpop.f32.mrb[0].mxu0
      %v723 = vpop.f32.mrb[0].mxu0
      %724 = vdwg.mxu0
      %v725 = vadd.f32 %v606, %v688
      %v726 = vadd.f32 %v607, %v691
      %v727 = vadd.f32 %v608, %v696
      %v728 = vadd.f32 %v609, %v699
      %v729 = vadd.f32 %v610, %v704
      %v730 = vadd.f32 %v611, %v707
      %v731 = vadd.f32 %v612, %v712
      %v732 = vadd.f32 %v613, %v715
      %v733 = vadd.f32 %v614, %v720
      %v734 = vld [vmem:[%s2] sm:$0x1]
      %v736 = vlaneseq
      %v737 = vshrl.u32 %v736, 7
      %v738 = vsub.s32 0, %v737
      %v739 = vrot.slane %v734, %v738
      %v741 = vadd.f32 %v725, %v739
      %v742 = vadd.f32 %v726, %v739
      %v743 = vadd.f32 %v727, %v739
      %v744 = vadd.f32 %v728, %v739
      %v745 = vadd.f32 %v729, %v739
      %v746 = vadd.f32 %v730, %v739
      %v747 = vadd.f32 %v731, %v739
      %v748 = vadd.f32 %v732, %v739
      %v749 = vadd.f32 %v733, %v739
      %v750 = vmax.f32 %v741, 0.0
      %v751 = vmax.f32 %v742, 0.0
      %v752 = vmax.f32 %v743, 0.0
      %v753 = vmax.f32 %v744, 0.0
      %v754 = vmax.f32 %v745, 0.0
      %v755 = vmax.f32 %v746, 0.0
      %v756 = vmax.f32 %v747, 0.0
      %v757 = vmax.f32 %v748, 0.0
      %v758 = vmax.f32 %v749, 0.0
      %v768 = vcombine.high %v750, %v750
      %v770 = vunpack.c.l.s4 1966171168
      %v771 = vunpack.c.0.s8 %v770
      %v772 = vlaneseq
      %v773 = vshrl.u32 %v772, 7
      %v774 = vsub.s32 %v771, %v773
      %v775 = vrot.slane %v750, %v774
      %v777 = vunpack.c.l.s4 1966171168
      %v778 = vunpack.c.0.s8 %v777
      %v779 = vlaneseq
      %v780 = vshrl.u32 %v779, 7
      %v781 = vsub.s32 %v778, %v780
      %v782 = vrot.slane %v768, %v781
      %v783 = vcombine.high %v775, %v775
      %v784 = vcombine.high %v782, %v782
      %v786 = vunpack.c.l.s4 1966171168
      %v787 = vunpack.c.0.s8 %v786
      %v788 = vlaneseq
      %v789 = vshrl.u32 %v788, 7
      %v790 = vsub.s32 %v787, %v789
      %v791 = vrot.slane %v775, %v790
      %v793 = vunpack.c.l.s4 1966171168
      %v794 = vunpack.c.0.s8 %v793
      %v795 = vlaneseq
      %v796 = vshrl.u32 %v795, 7
      %v797 = vsub.s32 %v794, %v796
      %v798 = vrot.slane %v782, %v797
      %v800 = vunpack.c.l.s4 1966171168
      %v801 = vunpack.c.0.s8 %v800
      %v802 = vlaneseq
      %v803 = vshrl.u32 %v802, 7
      %v804 = vsub.s32 %v801, %v803
      %v805 = vrot.slane %v783, %v804
      %v807 = vunpack.c.l.s4 1966171168
      %v808 = vunpack.c.0.s8 %v807
      %v809 = vlaneseq
      %v810 = vshrl.u32 %v809, 7
      %v811 = vsub.s32 %v808, %v810
      %v812 = vrot.slane %v784, %v811
      %v813 = vcombine.high %v791, %v791
      %v814 = vcombine.high %v798, %v798
      %v815 = vcombine.high %v805, %v805
      %v816 = vcombine.high %v812, %v812
      %v817 = vcombine.high %v751, %v751
      %v819 = vunpack.c.l.s4 1966171168
      %v820 = vunpack.c.0.s8 %v819
      %v821 = vlaneseq
      %v822 = vshrl.u32 %v821, 7
      %v823 = vsub.s32 %v820, %v822
      %v824 = vrot.slane %v751, %v823
      %v826 = vunpack.c.l.s4 1966171168
      %v827 = vunpack.c.0.s8 %v826
      %v828 = vlaneseq
      %v829 = vshrl.u32 %v828, 7
      %v830 = vsub.s32 %v827, %v829
      %v831 = vrot.slane %v817, %v830
      %v832 = vcombine.high %v824, %v824
      %v833 = vcombine.high %v831, %v831
      %v835 = vunpack.c.l.s4 1966171168
      %v836 = vunpack.c.0.s8 %v835
      %v837 = vlaneseq
      %v838 = vshrl.u32 %v837, 7
      %v839 = vsub.s32 %v836, %v838
      %v840 = vrot.slane %v824, %v839
      %v842 = vunpack.c.l.s4 1966171168
      %v843 = vunpack.c.0.s8 %v842
      %v844 = vlaneseq
      %v845 = vshrl.u32 %v844, 7
      %v846 = vsub.s32 %v843, %v845
      %v847 = vrot.slane %v831, %v846
      %v849 = vunpack.c.l.s4 1966171168
      %v850 = vunpack.c.0.s8 %v849
      %v851 = vlaneseq
      %v852 = vshrl.u32 %v851, 7
      %v853 = vsub.s32 %v850, %v852
      %v854 = vrot.slane %v832, %v853
      %v856 = vunpack.c.l.s4 1966171168
      %v857 = vunpack.c.0.s8 %v856
      %v858 = vlaneseq
      %v859 = vshrl.u32 %v858, 7
      %v860 = vsub.s32 %v857, %v859
      %v861 = vrot.slane %v833, %v860
      %v862 = vcombine.high %v840, %v840
      %v863 = vcombine.high %v847, %v847
      %v864 = vcombine.high %v854, %v854
      %v865 = vcombine.high %v861, %v861
      %v866 = vcombine.high %v752, %v752
      %v868 = vunpack.c.l.s4 1966171168
      %v869 = vunpack.c.0.s8 %v868
      %v870 = vlaneseq
      %v871 = vshrl.u32 %v870, 7
      %v872 = vsub.s32 %v869, %v871
      %v873 = vrot.slane %v752, %v872
      %v875 = vunpack.c.l.s4 1966171168
      %v876 = vunpack.c.0.s8 %v875
      %v877 = vlaneseq
      %v878 = vshrl.u32 %v877, 7
      %v879 = vsub.s32 %v876, %v878
      %v880 = vrot.slane %v866, %v879
      %v881 = vcombine.high %v873, %v873
      %v882 = vcombine.high %v880, %v880
      %v884 = vunpack.c.l.s4 1966171168
      %v885 = vunpack.c.0.s8 %v884
      %v886 = vlaneseq
      %v887 = vshrl.u32 %v886, 7
      %v888 = vsub.s32 %v885, %v887
      %v889 = vrot.slane %v873, %v888
      %v891 = vunpack.c.l.s4 1966171168
      %v892 = vunpack.c.0.s8 %v891
      %v893 = vlaneseq
      %v894 = vshrl.u32 %v893, 7
      %v895 = vsub.s32 %v892, %v894
      %v896 = vrot.slane %v880, %v895
      %v898 = vunpack.c.l.s4 1966171168
      %v899 = vunpack.c.0.s8 %v898
      %v900 = vlaneseq
      %v901 = vshrl.u32 %v900, 7
      %v902 = vsub.s32 %v899, %v901
      %v903 = vrot.slane %v881, %v902
      %v905 = vunpack.c.l.s4 1966171168
      %v906 = vunpack.c.0.s8 %v905
      %v907 = vlaneseq
      %v908 = vshrl.u32 %v907, 7
      %v909 = vsub.s32 %v906, %v908
      %v910 = vrot.slane %v882, %v909
      %v911 = vcombine.high %v889, %v889
      %v912 = vcombine.high %v896, %v896
      %v913 = vcombine.high %v903, %v903
      %v914 = vcombine.high %v910, %v910
      %v915 = vcombine.high %v753, %v753
      %v917 = vunpack.c.l.s4 1966171168
      %v918 = vunpack.c.0.s8 %v917
      %v919 = vlaneseq
      %v920 = vshrl.u32 %v919, 7
      %v921 = vsub.s32 %v918, %v920
      %v922 = vrot.slane %v753, %v921
      %v924 = vunpack.c.l.s4 1966171168
      %v925 = vunpack.c.0.s8 %v924
      %v926 = vlaneseq
      %v927 = vshrl.u32 %v926, 7
      %v928 = vsub.s32 %v925, %v927
      %v929 = vrot.slane %v915, %v928
      %v930 = vcombine.high %v922, %v922
      %v931 = vcombine.high %v929, %v929
      %v933 = vunpack.c.l.s4 1966171168
      %v934 = vunpack.c.0.s8 %v933
      %v935 = vlaneseq
      %v936 = vshrl.u32 %v935, 7
      %v937 = vsub.s32 %v934, %v936
      %v938 = vrot.slane %v922, %v937
      %v940 = vunpack.c.l.s4 1966171168
      %v941 = vunpack.c.0.s8 %v940
      %v942 = vlaneseq
      %v943 = vshrl.u32 %v942, 7
      %v944 = vsub.s32 %v941, %v943
      %v945 = vrot.slane %v929, %v944
      %v947 = vunpack.c.l.s4 1966171168
      %v948 = vunpack.c.0.s8 %v947
      %v949 = vlaneseq
      %v950 = vshrl.u32 %v949, 7
      %v951 = vsub.s32 %v948, %v950
      %v952 = vrot.slane %v930, %v951
      %v954 = vunpack.c.l.s4 1966171168
      %v955 = vunpack.c.0.s8 %v954
      %v956 = vlaneseq
      %v957 = vshrl.u32 %v956, 7
      %v958 = vsub.s32 %v955, %v957
      %v959 = vrot.slane %v931, %v958
      %v960 = vcombine.high %v945, %v945
      %v961 = vcombine.high %v952, %v952
      %v962 = vcombine.high %v959, %v959
      %v963 = vcombine.high %v754, %v754
      %v965 = vunpack.c.l.s4 1966171168
      %v966 = vunpack.c.0.s8 %v965
      %v967 = vlaneseq
      %v968 = vshrl.u32 %v967, 7
      %v969 = vsub.s32 %v966, %v968
      %v970 = vrot.slane %v754, %v969
      %v972 = vunpack.c.l.s4 1966171168
      %v973 = vunpack.c.0.s8 %v972
      %v974 = vlaneseq
      %v975 = vshrl.u32 %v974, 7
      %v976 = vsub.s32 %v973, %v975
      %v977 = vrot.slane %v963, %v976
      %v978 = vcombine.high %v970, %v970
      %v979 = vcombine.high %v977, %v977
      %v981 = vunpack.c.l.s4 1966171168
      %v982 = vunpack.c.0.s8 %v981
      %v983 = vlaneseq
      %v984 = vshrl.u32 %v983, 7
      %v985 = vsub.s32 %v982, %v984
      %v986 = vrot.slane %v970, %v985
      %v988 = vunpack.c.l.s4 1966171168
      %v989 = vunpack.c.0.s8 %v988
      %v990 = vlaneseq
      %v991 = vshrl.u32 %v990, 7
      %v992 = vsub.s32 %v989, %v991
      %v993 = vrot.slane %v977, %v992
      %v995 = vunpack.c.l.s4 1966171168
      %v996 = vunpack.c.0.s8 %v995
      %v997 = vlaneseq
      %v998 = vshrl.u32 %v997, 7
      %v999 = vsub.s32 %v996, %v998
      %v1000 = vrot.slane %v978, %v999
      %v1002 = vunpack.c.l.s4 1966171168
      %v1003 = vunpack.c.0.s8 %v1002
      %v1004 = vlaneseq
      %v1005 = vshrl.u32 %v1004, 7
      %v1006 = vsub.s32 %v1003, %v1005
      %v1007 = vrot.slane %v979, %v1006
      %v1008 = vcombine.high %v986, %v986
      %v1009 = vcombine.high %v993, %v993
      %v1010 = vcombine.high %v1007, %v1007
      %v1011 = vcombine.high %v755, %v755
      %v1013 = vunpack.c.l.s4 1966171168
      %v1014 = vunpack.c.0.s8 %v1013
      %v1015 = vlaneseq
      %v1016 = vshrl.u32 %v1015, 7
      %v1017 = vsub.s32 %v1014, %v1016
      %v1018 = vrot.slane %v755, %v1017
      %v1020 = vunpack.c.l.s4 1966171168
      %v1021 = vunpack.c.0.s8 %v1020
      %v1022 = vlaneseq
      %v1023 = vshrl.u32 %v1022, 7
      %v1024 = vsub.s32 %v1021, %v1023
      %v1025 = vrot.slane %v1011, %v1024
      %v1026 = vcombine.high %v1018, %v1018
      %v1027 = vcombine.high %v1025, %v1025
      %v1029 = vunpack.c.l.s4 1966171168
      %v1030 = vunpack.c.0.s8 %v1029
      %v1031 = vlaneseq
      %v1032 = vshrl.u32 %v1031, 7
      %v1033 = vsub.s32 %v1030, %v1032
      %v1034 = vrot.slane %v1018, %v1033
      %v1036 = vunpack.c.l.s4 1966171168
      %v1037 = vunpack.c.0.s8 %v1036
      %v1038 = vlaneseq
      %v1039 = vshrl.u32 %v1038, 7
      %v1040 = vsub.s32 %v1037, %v1039
      %v1041 = vrot.slane %v1025, %v1040
      %v1043 = vunpack.c.l.s4 1966171168
      %v1044 = vunpack.c.0.s8 %v1043
      %v1045 = vlaneseq
      %v1046 = vshrl.u32 %v1045, 7
      %v1047 = vsub.s32 %v1044, %v1046
      %v1048 = vrot.slane %v1026, %v1047
      %v1050 = vunpack.c.l.s4 1966171168
      %v1051 = vunpack.c.0.s8 %v1050
      %v1052 = vlaneseq
      %v1053 = vshrl.u32 %v1052, 7
      %v1054 = vsub.s32 %v1051, %v1053
      %v1055 = vrot.slane %v1027, %v1054
      %v1056 = vcombine.high %v1034, %v1034
      %v1057 = vcombine.high %v1041, %v1041
      %v1058 = vcombine.high %v1048, %v1048
      %v1059 = vcombine.high %v1055, %v1055
      %v1060 = vcombine.high %v756, %v756
      %v1062 = vunpack.c.l.s4 1966171168
      %v1063 = vunpack.c.0.s8 %v1062
      %v1064 = vlaneseq
      %v1065 = vshrl.u32 %v1064, 7
      %v1066 = vsub.s32 %v1063, %v1065
      %v1067 = vrot.slane %v756, %v1066
      %v1069 = vunpack.c.l.s4 1966171168
      %v1070 = vunpack.c.0.s8 %v1069
      %v1071 = vlaneseq
      %v1072 = vshrl.u32 %v1071, 7
      %v1073 = vsub.s32 %v1070, %v1072
      %v1074 = vrot.slane %v1060, %v1073
      %v1075 = vcombine.high %v1067, %v1067
      %v1076 = vcombine.high %v1074, %v1074
      %v1078 = vunpack.c.l.s4 1966171168
      %v1079 = vunpack.c.0.s8 %v1078
      %v1080 = vlaneseq
      %v1081 = vshrl.u32 %v1080, 7
      %v1082 = vsub.s32 %v1079, %v1081
      %v1083 = vrot.slane %v1067, %v1082
      %v1085 = vunpack.c.l.s4 1966171168
      %v1086 = vunpack.c.0.s8 %v1085
      %v1087 = vlaneseq
      %v1088 = vshrl.u32 %v1087, 7
      %v1089 = vsub.s32 %v1086, %v1088
      %v1090 = vrot.slane %v1074, %v1089
      %v1092 = vunpack.c.l.s4 1966171168
      %v1093 = vunpack.c.0.s8 %v1092
      %v1094 = vlaneseq
      %v1095 = vshrl.u32 %v1094, 7
      %v1096 = vsub.s32 %v1093, %v1095
      %v1097 = vrot.slane %v1075, %v1096
      %v1099 = vunpack.c.l.s4 1966171168
      %v1100 = vunpack.c.0.s8 %v1099
      %v1101 = vlaneseq
      %v1102 = vshrl.u32 %v1101, 7
      %v1103 = vsub.s32 %v1100, %v1102
      %v1104 = vrot.slane %v1076, %v1103
      %v1105 = vcombine.high %v1083, %v1083
      %v1106 = vcombine.high %v1090, %v1090
      %v1107 = vcombine.high %v1097, %v1097
      %v1108 = vcombine.high %v1104, %v1104
      %v1109 = vcombine.high %v757, %v757
      %v1111 = vunpack.c.l.s4 1966171168
      %v1112 = vunpack.c.0.s8 %v1111
      %v1113 = vlaneseq
      %v1114 = vshrl.u32 %v1113, 7
      %v1115 = vsub.s32 %v1112, %v1114
      %v1116 = vrot.slane %v757, %v1115
      %v1118 = vunpack.c.l.s4 1966171168
      %v1119 = vunpack.c.0.s8 %v1118
      %v1120 = vlaneseq
      %v1121 = vshrl.u32 %v1120, 7
      %v1122 = vsub.s32 %v1119, %v1121
      %v1123 = vrot.slane %v1109, %v1122
      %v1124 = vcombine.high %v1116, %v1116
      %v1125 = vcombine.high %v1123, %v1123
      %v1127 = vunpack.c.l.s4 1966171168
      %v1128 = vunpack.c.0.s8 %v1127
      %v1129 = vlaneseq
      %v1130 = vshrl.u32 %v1129, 7
      %v1131 = vsub.s32 %v1128, %v1130
      %v1132 = vrot.slane %v1116, %v1131
      %v1134 = vunpack.c.l.s4 1966171168
      %v1135 = vunpack.c.0.s8 %v1134
      %v1136 = vlaneseq
      %v1137 = vshrl.u32 %v1136, 7
      %v1138 = vsub.s32 %v1135, %v1137
      %v1139 = vrot.slane %v1123, %v1138
      %v1141 = vunpack.c.l.s4 1966171168
      %v1142 = vunpack.c.0.s8 %v1141
      %v1143 = vlaneseq
      %v1144 = vshrl.u32 %v1143, 7
      %v1145 = vsub.s32 %v1142, %v1144
      %v1146 = vrot.slane %v1124, %v1145
      %v1148 = vunpack.c.l.s4 1966171168
      %v1149 = vunpack.c.0.s8 %v1148
      %v1150 = vlaneseq
      %v1151 = vshrl.u32 %v1150, 7
      %v1152 = vsub.s32 %v1149, %v1151
      %v1153 = vrot.slane %v1125, %v1152
      %v1154 = vcombine.high %v1132, %v1132
      %v1155 = vcombine.high %v1146, %v1146
      %v1156 = vcombine.high %v1153, %v1153
      %v1157 = vcombine.high %v758, %v758
      %v1159 = vunpack.c.l.s4 1966171168
      %v1160 = vunpack.c.0.s8 %v1159
      %v1161 = vlaneseq
      %v1162 = vshrl.u32 %v1161, 7
      %v1163 = vsub.s32 %v1160, %v1162
      %v1164 = vrot.slane %v758, %v1163
      %v1166 = vunpack.c.l.s4 1966171168
      %v1167 = vunpack.c.0.s8 %v1166
      %v1168 = vlaneseq
      %v1169 = vshrl.u32 %v1168, 7
      %v1170 = vsub.s32 %v1167, %v1169
      %v1171 = vrot.slane %v1157, %v1170
      %v1172 = vcombine.high %v1164, %v1164
      %v1173 = vcombine.high %v1171, %v1171
      %v1175 = vunpack.c.l.s4 1966171168
      %v1176 = vunpack.c.0.s8 %v1175
      %v1177 = vlaneseq
      %v1178 = vshrl.u32 %v1177, 7
      %v1179 = vsub.s32 %v1176, %v1178
      %v1180 = vrot.slane %v1164, %v1179
      %v1182 = vunpack.c.l.s4 1966171168
      %v1183 = vunpack.c.0.s8 %v1182
      %v1184 = vlaneseq
      %v1185 = vshrl.u32 %v1184, 7
      %v1186 = vsub.s32 %v1183, %v1185
      %v1187 = vrot.slane %v1171, %v1186
      %v1189 = vunpack.c.l.s4 1966171168
      %v1190 = vunpack.c.0.s8 %v1189
      %v1191 = vlaneseq
      %v1192 = vshrl.u32 %v1191, 7
      %v1193 = vsub.s32 %v1190, %v1192
      %v1194 = vrot.slane %v1172, %v1193
      %v1196 = vunpack.c.l.s4 1966171168
      %v1197 = vunpack.c.0.s8 %v1196
      %v1198 = vlaneseq
      %v1199 = vshrl.u32 %v1198, 7
      %v1200 = vsub.s32 %v1197, %v1199
      %v1201 = vrot.slane %v1173, %v1200
      %v1202 = vcombine.high %v1180, %v1180
      %v1203 = vcombine.high %v1187, %v1187
      %v1204 = vcombine.high %v1194, %v1194
      %v1205 = vcombine.low %v791, %v805
      %v1206 = vcombine.low %v813, %v815
      %v1207 = vcombine.low %v798, %v812
      %v1208 = vcombine.low %v814, %v816
      %v1210 = vunpack.c.l.s4 1966171168
      %v1211 = vunpack.c.0.s8 %v1210
      %v1212 = vlaneseq
      %v1213 = vshrl.u32 %v1212, 7
      %v1214 = vsub.s32 %v1211, %v1213
      %v1215 = vrot.slane %v1205, %v1214
      %v1217 = vunpack.c.l.s4 1966171168
      %v1218 = vunpack.c.0.s8 %v1217
      %v1219 = vlaneseq
      %v1220 = vshrl.u32 %v1219, 7
      %v1221 = vsub.s32 %v1218, %v1220
      %v1222 = vrot.slane %v1206, %v1221
      %v1224 = vunpack.c.l.s4 1966171168
      %v1225 = vunpack.c.0.s8 %v1224
      %v1226 = vlaneseq
      %v1227 = vshrl.u32 %v1226, 7
      %v1228 = vsub.s32 %v1225, %v1227
      %v1229 = vrot.slane %v1207, %v1228
      %v1231 = vunpack.c.l.s4 1966171168
      %v1232 = vunpack.c.0.s8 %v1231
      %v1233 = vlaneseq
      %v1234 = vshrl.u32 %v1233, 7
      %v1235 = vsub.s32 %v1232, %v1234
      %v1236 = vrot.slane %v1208, %v1235
      %v1237 = vcombine.low %v1215, %v1222
      %v1238 = vcombine.low %v1229, %v1236
      %v1240 = vunpack.c.l.s4 1966171168
      %v1241 = vunpack.c.0.s8 %v1240
      %v1242 = vlaneseq
      %v1243 = vshrl.u32 %v1242, 7
      %v1244 = vsub.s32 %v1241, %v1243
      %v1245 = vrot.slane %v1237, %v1244
      %v1247 = vunpack.c.l.s4 1966171168
      %v1248 = vunpack.c.0.s8 %v1247
      %v1249 = vlaneseq
      %v1250 = vshrl.u32 %v1249, 7
      %v1251 = vsub.s32 %v1248, %v1250
      %v1252 = vrot.slane %v1238, %v1251
      %v1253 = vcombine.low %v1245, %v1252
      %v1254 = vcombine.low %v854, %v862
      %v1255 = vcombine.low %v864, %v847
      %v1256 = vcombine.low %v861, %v863
      %v1257 = vcombine.low %v865, %v889
      %v1259 = vunpack.c.l.s4 1966171168
      %v1260 = vunpack.c.0.s8 %v1259
      %v1261 = vlaneseq
      %v1262 = vshrl.u32 %v1261, 7
      %v1263 = vsub.s32 %v1260, %v1262
      %v1264 = vrot.slane %v1254, %v1263
      %v1266 = vunpack.c.l.s4 1966171168
      %v1267 = vunpack.c.0.s8 %v1266
      %v1268 = vlaneseq
      %v1269 = vshrl.u32 %v1268, 7
      %v1270 = vsub.s32 %v1267, %v1269
      %v1271 = vrot.slane %v1255, %v1270
      %v1273 = vunpack.c.l.s4 1966171168
      %v1274 = vunpack.c.0.s8 %v1273
      %v1275 = vlaneseq
      %v1276 = vshrl.u32 %v1275, 7
      %v1277 = vsub.s32 %v1274, %v1276
      %v1278 = vrot.slane %v1256, %v1277
      %v1280 = vunpack.c.l.s4 1966171168
      %v1281 = vunpack.c.0.s8 %v1280
      %v1282 = vlaneseq
      %v1283 = vshrl.u32 %v1282, 7
      %v1284 = vsub.s32 %v1281, %v1283
      %v1285 = vrot.slane %v1257, %v1284
      %v1286 = vcombine.low %v1264, %v1271
      %v1287 = vcombine.low %v1278, %v1285
      %v1289 = vunpack.c.l.s4 1966171168
      %v1290 = vunpack.c.0.s8 %v1289
      %v1291 = vlaneseq
      %v1292 = vshrl.u32 %v1291, 7
      %v1293 = vsub.s32 %v1290, %v1292
      %v1294 = vrot.slane %v1286, %v1293
      %v1296 = vunpack.c.l.s4 1966171168
      %v1297 = vunpack.c.0.s8 %v1296
      %v1298 = vlaneseq
      %v1299 = vshrl.u32 %v1298, 7
      %v1300 = vsub.s32 %v1297, %v1299
      %v1301 = vrot.slane %v1287, %v1300
      %v1302 = vcombine.low %v1294, %v1301
      %v1303 = vcombine.low %v911, %v913
      %v1304 = vcombine.low %v896, %v910
      %v1305 = vcombine.low %v912, %v914
      %v1306 = vcombine.low %v938, %v952
      %v1308 = vunpack.c.l.s4 1966171168
      %v1309 = vunpack.c.0.s8 %v1308
      %v1310 = vlaneseq
      %v1311 = vshrl.u32 %v1310, 7
      %v1312 = vsub.s32 %v1309, %v1311
      %v1313 = vrot.slane %v1303, %v1312
      %v1315 = vunpack.c.l.s4 1966171168
      %v1316 = vunpack.c.0.s8 %v1315
      %v1317 = vlaneseq
      %v1318 = vshrl.u32 %v1317, 7
      %v1319 = vsub.s32 %v1316, %v1318
      %v1320 = vrot.slane %v1304, %v1319
      %v1322 = vunpack.c.l.s4 1966171168
      %v1323 = vunpack.c.0.s8 %v1322
      %v1324 = vlaneseq
      %v1325 = vshrl.u32 %v1324, 7
      %v1326 = vsub.s32 %v1323, %v1325
      %v1327 = vrot.slane %v1305, %v1326
      %v1329 = vunpack.c.l.s4 1966171168
      %v1330 = vunpack.c.0.s8 %v1329
      %v1331 = vlaneseq
      %v1332 = vshrl.u32 %v1331, 7
      %v1333 = vsub.s32 %v1330, %v1332
      %v1334 = vrot.slane %v1306, %v1333
      %v1335 = vcombine.low %v1313, %v1320
      %v1336 = vcombine.low %v1327, %v1334
      %v1338 = vunpack.c.l.s4 1966171168
      %v1339 = vunpack.c.0.s8 %v1338
      %v1340 = vlaneseq
      %v1341 = vshrl.u32 %v1340, 7
      %v1342 = vsub.s32 %v1339, %v1341
      %v1343 = vrot.slane %v1335, %v1342
      %v1345 = vunpack.c.l.s4 1966171168
      %v1346 = vunpack.c.0.s8 %v1345
      %v1347 = vlaneseq
      %v1348 = vshrl.u32 %v1347, 7
      %v1349 = vsub.s32 %v1346, %v1348
      %v1350 = vrot.slane %v1336, %v1349
      %v1351 = vcombine.low %v1343, %v1350
      %v1352 = vcombine.low %v961, %v945
      %v1353 = vcombine.low %v959, %v960
      %v1354 = vcombine.low %v962, %v986
      %v1355 = vcombine.low %v1000, %v1008
      %v1357 = vunpack.c.l.s4 1966171168
      %v1358 = vunpack.c.0.s8 %v1357
      %v1359 = vlaneseq
      %v1360 = vshrl.u32 %v1359, 7
      %v1361 = vsub.s32 %v1358, %v1360
      %v1362 = vrot.slane %v1352, %v1361
      %v1364 = vunpack.c.l.s4 1966171168
      %v1365 = vunpack.c.0.s8 %v1364
      %v1366 = vlaneseq
      %v1367 = vshrl.u32 %v1366, 7
      %v1368 = vsub.s32 %v1365, %v1367
      %v1369 = vrot.slane %v1353, %v1368
      %v1371 = vunpack.c.l.s4 1966171168
      %v1372 = vunpack.c.0.s8 %v1371
      %v1373 = vlaneseq
      %v1374 = vshrl.u32 %v1373, 7
      %v1375 = vsub.s32 %v1372, %v1374
      %v1376 = vrot.slane %v1354, %v1375
      %v1378 = vunpack.c.l.s4 1966171168
      %v1379 = vunpack.c.0.s8 %v1378
      %v1380 = vlaneseq
      %v1381 = vshrl.u32 %v1380, 7
      %v1382 = vsub.s32 %v1379, %v1381
      %v1383 = vrot.slane %v1355, %v1382
      %v1384 = vcombine.low %v1362, %v1369
      %v1385 = vcombine.low %v1376, %v1383
      %v1387 = vunpack.c.l.s4 1966171168
      %v1388 = vunpack.c.0.s8 %v1387
      %v1389 = vlaneseq
      %v1390 = vshrl.u32 %v1389, 7
      %v1391 = vsub.s32 %v1388, %v1390
      %v1392 = vrot.slane %v1384, %v1391
      %v1394 = vunpack.c.l.s4 1966171168
      %v1395 = vunpack.c.0.s8 %v1394
      %v1396 = vlaneseq
      %v1397 = vshrl.u32 %v1396, 7
      %v1398 = vsub.s32 %v1395, %v1397
      %v1399 = vrot.slane %v1385, %v1398
      %v1400 = vcombine.low %v1392, %v1399
      %v1401 = vcombine.low %v993, %v1007
      %v1402 = vcombine.low %v1009, %v1010
      %v1403 = vcombine.low %v1034, %v1048
      %v1404 = vcombine.low %v1056, %v1058
      %v1406 = vunpack.c.l.s4 1966171168
      %v1407 = vunpack.c.0.s8 %v1406
      %v1408 = vlaneseq
      %v1409 = vshrl.u32 %v1408, 7
      %v1410 = vsub.s32 %v1407, %v1409
      %v1411 = vrot.slane %v1401, %v1410
      %v1413 = vunpack.c.l.s4 1966171168
      %v1414 = vunpack.c.0.s8 %v1413
      %v1415 = vlaneseq
      %v1416 = vshrl.u32 %v1415, 7
      %v1417 = vsub.s32 %v1414, %v1416
      %v1418 = vrot.slane %v1402, %v1417
      %v1420 = vunpack.c.l.s4 1966171168
      %v1421 = vunpack.c.0.s8 %v1420
      %v1422 = vlaneseq
      %v1423 = vshrl.u32 %v1422, 7
      %v1424 = vsub.s32 %v1421, %v1423
      %v1425 = vrot.slane %v1403, %v1424
      %v1427 = vunpack.c.l.s4 1966171168
      %v1428 = vunpack.c.0.s8 %v1427
      %v1429 = vlaneseq
      %v1430 = vshrl.u32 %v1429, 7
      %v1431 = vsub.s32 %v1428, %v1430
      %v1432 = vrot.slane %v1404, %v1431
      %v1433 = vcombine.low %v1411, %v1418
      %v1434 = vcombine.low %v1425, %v1432
      %v1436 = vunpack.c.l.s4 1966171168
      %v1437 = vunpack.c.0.s8 %v1436
      %v1438 = vlaneseq
      %v1439 = vshrl.u32 %v1438, 7
      %v1440 = vsub.s32 %v1437, %v1439
      %v1441 = vrot.slane %v1433, %v1440
      %v1443 = vunpack.c.l.s4 1966171168
      %v1444 = vunpack.c.0.s8 %v1443
      %v1445 = vlaneseq
      %v1446 = vshrl.u32 %v1445, 7
      %v1447 = vsub.s32 %v1444, %v1446
      %v1448 = vrot.slane %v1434, %v1447
      %v1449 = vcombine.low %v1441, %v1448
      %v1450 = vcombine.low %v1055, %v1057
      %v1451 = vcombine.low %v1059, %v1083
      %v1452 = vcombine.low %v1097, %v1105
      %v1453 = vcombine.low %v1107, %v1090
      %v1455 = vunpack.c.l.s4 1966171168
      %v1456 = vunpack.c.0.s8 %v1455
      %v1457 = vlaneseq
      %v1458 = vshrl.u32 %v1457, 7
      %v1459 = vsub.s32 %v1456, %v1458
      %v1460 = vrot.slane %v1450, %v1459
      %v1462 = vunpack.c.l.s4 1966171168
      %v1463 = vunpack.c.0.s8 %v1462
      %v1464 = vlaneseq
      %v1465 = vshrl.u32 %v1464, 7
      %v1466 = vsub.s32 %v1463, %v1465
      %v1467 = vrot.slane %v1451, %v1466
      %v1469 = vunpack.c.l.s4 1966171168
      %v1470 = vunpack.c.0.s8 %v1469
      %v1471 = vlaneseq
      %v1472 = vshrl.u32 %v1471, 7
      %v1473 = vsub.s32 %v1470, %v1472
      %v1474 = vrot.slane %v1452, %v1473
      %v1476 = vunpack.c.l.s4 1966171168
      %v1477 = vunpack.c.0.s8 %v1476
      %v1478 = vlaneseq
      %v1479 = vshrl.u32 %v1478, 7
      %v1480 = vsub.s32 %v1477, %v1479
      %v1481 = vrot.slane %v1453, %v1480
      %v1482 = vcombine.low %v1460, %v1467
      %v1483 = vcombine.low %v1474, %v1481
      %v1485 = vunpack.c.l.s4 1966171168
      %v1486 = vunpack.c.0.s8 %v1485
      %v1487 = vlaneseq
      %v1488 = vshrl.u32 %v1487, 7
      %v1489 = vsub.s32 %v1486, %v1488
      %v1490 = vrot.slane %v1482, %v1489
      %v1492 = vunpack.c.l.s4 1966171168
      %v1493 = vunpack.c.0.s8 %v1492
      %v1494 = vlaneseq
      %v1495 = vshrl.u32 %v1494, 7
      %v1496 = vsub.s32 %v1493, %v1495
      %v1497 = vrot.slane %v1483, %v1496
      %v1498 = vcombine.low %v1490, %v1497
      %v1499 = vcombine.low %v1106, %v1108
      %v1500 = vcombine.low %v1132, %v1146
      %v1501 = vcombine.low %v1154, %v1155
      %v1502 = vcombine.low %v1139, %v1153
      %v1504 = vunpack.c.l.s4 1966171168
      %v1505 = vunpack.c.0.s8 %v1504
      %v1506 = vlaneseq
      %v1507 = vshrl.u32 %v1506, 7
      %v1508 = vsub.s32 %v1505, %v1507
      %v1509 = vrot.slane %v1499, %v1508
      %v1511 = vunpack.c.l.s4 1966171168
      %v1512 = vunpack.c.0.s8 %v1511
      %v1513 = vlaneseq
      %v1514 = vshrl.u32 %v1513, 7
      %v1515 = vsub.s32 %v1512, %v1514
      %v1516 = vrot.slane %v1500, %v1515
      %v1518 = vunpack.c.l.s4 1966171168
      %v1519 = vunpack.c.0.s8 %v1518
      %v1520 = vlaneseq
      %v1521 = vshrl.u32 %v1520, 7
      %v1522 = vsub.s32 %v1519, %v1521
      %v1523 = vrot.slane %v1501, %v1522
      %v1525 = vunpack.c.l.s4 1966171168
      %v1526 = vunpack.c.0.s8 %v1525
      %v1527 = vlaneseq
      %v1528 = vshrl.u32 %v1527, 7
      %v1529 = vsub.s32 %v1526, %v1528
      %v1530 = vrot.slane %v1502, %v1529
      %v1531 = vcombine.low %v1509, %v1516
      %v1532 = vcombine.low %v1523, %v1530
      %v1534 = vunpack.c.l.s4 1966171168
      %v1535 = vunpack.c.0.s8 %v1534
      %v1536 = vlaneseq
      %v1537 = vshrl.u32 %v1536, 7
      %v1538 = vsub.s32 %v1535, %v1537
      %v1539 = vrot.slane %v1531, %v1538
      %v1541 = vunpack.c.l.s4 1966171168
      %v1542 = vunpack.c.0.s8 %v1541
      %v1543 = vlaneseq
      %v1544 = vshrl.u32 %v1543, 7
      %v1545 = vsub.s32 %v1542, %v1544
      %v1546 = vrot.slane %v1532, %v1545
      %v1547 = vcombine.low %v1539, %v1546
      %v1548 = vcombine.low %v1156, %v1180
      %v1549 = vcombine.low %v1194, %v1202
      %v1550 = vcombine.low %v1204, %v1187
      %v1551 = vcombine.low %v1201, %v1203
      %v1553 = vunpack.c.l.s4 1966171168
      %v1554 = vunpack.c.0.s8 %v1553
      %v1555 = vlaneseq
      %v1556 = vshrl.u32 %v1555, 7
      %v1557 = vsub.s32 %v1554, %v1556
      %v1558 = vrot.slane %v1548, %v1557
      %v1560 = vunpack.c.l.s4 1966171168
      %v1561 = vunpack.c.0.s8 %v1560
      %v1562 = vlaneseq
      %v1563 = vshrl.u32 %v1562, 7
      %v1564 = vsub.s32 %v1561, %v1563
      %v1565 = vrot.slane %v1549, %v1564
      %v1567 = vunpack.c.l.s4 1966171168
      %v1568 = vunpack.c.0.s8 %v1567
      %v1569 = vlaneseq
      %v1570 = vshrl.u32 %v1569, 7
      %v1571 = vsub.s32 %v1568, %v1570
      %v1572 = vrot.slane %v1550, %v1571
      %v1574 = vunpack.c.l.s4 1966171168
      %v1575 = vunpack.c.0.s8 %v1574
      %v1576 = vlaneseq
      %v1577 = vshrl.u32 %v1576, 7
      %v1578 = vsub.s32 %v1575, %v1577
      %v1579 = vrot.slane %v1551, %v1578
      %v1580 = vcombine.low %v1558, %v1565
      %v1581 = vcombine.low %v1572, %v1579
      %v1583 = vunpack.c.l.s4 1966171168
      %v1584 = vunpack.c.0.s8 %v1583
      %v1585 = vlaneseq
      %v1586 = vshrl.u32 %v1585, 7
      %v1587 = vsub.s32 %v1584, %v1586
      %v1588 = vrot.slane %v1580, %v1587
      %v1590 = vunpack.c.l.s4 1966171168
      %v1591 = vunpack.c.0.s8 %v1590
      %v1592 = vlaneseq
      %v1593 = vshrl.u32 %v1592, 7
      %v1594 = vsub.s32 %v1591, %v1593
      %v1595 = vrot.slane %v1581, %v1594
      %v1596 = vcombine.low %v1588, %v1595
      %v1605 = vpack.c.bf16 %v1253, %v1253
      %v1606 = vpack.c.bf16 %v1302, %v1302
      %v1607 = vpack.c.bf16 %v1351, %v1351
      %v1608 = vpack.c.bf16 %v1400, %v1400
      %v1609 = vpack.c.bf16 %v1449, %v1449
      %v1610 = vpack.c.bf16 %v1498, %v1498
      %v1611 = vpack.c.bf16 %v1547, %v1547
      %v1612 = vpack.c.bf16 %v1596, %v1596
      %vm1613 = vcmask 125952
      %1614 = vst.msk [vmem:[%s170] sm:$0xf] %vm1613, %v1605
      %1615 = vst.msk [vmem:[%s170 + $0x4] sm:$0xf] %vm1613, %v1606
      %1616 = vst.msk [vmem:[%s170 + $0x8] sm:$0xf] %vm1613, %v1607
      %1617 = vst.msk [vmem:[%s170 + $0xc] sm:$0xf] %vm1613, %v1608
      %1618 = vst.msk [vmem:[%s170 + $0x10] sm:$0xf] %vm1613, %v1609
      %1619 = vst.msk [vmem:[%s170 + $0x14] sm:$0xf] %vm1613, %v1610
      %1620 = vst.msk [vmem:[%s170 + $0x18] sm:$0xf] %vm1613, %v1611
      %1621 = vst.msk [vmem:[%s170 + $0x1c] sm:$0xf] %vm1613, %v1612
      %p1622 = scmp.lt.s32.totalorder %s14, 1
      %s1623 = scalar_select %p1622, %s14, 1
      %s1624 = smul.addr %s1623, 8
      %s1625 = smul.addr %s1624, 4
      %s1626 = scalar_lea.vmem %s3, %s1625
      // Predicated region
      $region33: #{encoder_forward.5} parent=31 // pred_check
        %p1627 = pneg %p100
      $region34: #{encoder_forward.5} parent=31 // pred_check_branch
        %1629 = sbr.rel (%p1627) target = $region36
      $region35: #{encoder_forward.5} parent=31 // pred_region
        _
      $region36: #{encoder_forward.5} parent=31 // pred_fallthru
        _
    $region32: #{encoder_forward.5} parent=5 // pred_fallthru
      _
    %p1630 = scmp.le.s32.totalorder 2, %s9
    // Predicated region
    $region37: #{encoder_forward.5} parent=5 // pred_check
      %p1631 = pneg %p1630
    $region38: #{encoder_forward.5} parent=5 // pred_check_branch
      %1633 = sbr.rel (%p1631) target = $region40
    $region39: #{encoder_forward.5} parent=5 // pred_region
      %s1634 = ssub.s32 %s9, 2
      // Predicated region
      $region41: #{encoder_forward.5} parent=39 // pred_check
        %p1635 = pneg %p106
      $region42: #{encoder_forward.5} parent=39 // pred_check_branch
        %1637 = sbr.rel (%p1635) target = $region44
      $region43: #{encoder_forward.5} parent=39 // pred_region
        %p1638 = scmp.lt.s32.totalorder %s15, 1
        %s1639 = scalar_select %p1638, %s15, 1
        %s1640 = smul.addr %s1639, 8
        %s1641 = smul.addr %s1640, 4
        %s1642 = scalar_lea.vmem %s3, %s1641
      $region44: #{encoder_forward.5} parent=39 // pred_fallthru
        _
    $region40: #{encoder_forward.5} parent=5 // pred_fallthru
      _
  $region6: #{encoder_forward.5} parent=0 // loop_footer
    %s13 = sadd.s32 1, %s9
  $region7: #{encoder_forward.5} parent=0 // loop_footer_branch
    %8 = sbr.rel target = $region3
  $region8: #{encoder_forward.5} parent=0 // loop_exit
    _

// kernel: encoder_forward.6
$region0: #{encoder_forward.6}
  #allocation0 [shape = 'u32[]', space=smem, size = 0x4, offset = 0x4, fixed_abs, tag = 'smem constant byte address 0x4 - core index']
  #allocation1 [shape = 'u32[144,128]{1,0:T(1,128)}', space=vmem, size = 0x12000, scoped, tag = 'internal scratch']
  %s0 = inlined_call_operand.vmem [shape: bf16[2,32,64], index: 0, kind: input, shape index: {}]
  %s1 = inlined_call_operand.vmem [shape: bf16[4,64,32], index: 1, kind: input, shape index: {}]
  %s2 = inlined_call_operand.vmem [shape: f32[1,32], index: 2, kind: input, shape index: {}]
  %s3 = inlined_call_operand.vmem [shape: bf16[2,4,4,32], index: 3, kind: output, shape index: {}]
  %s4 = sld [smem:[#allocation0]]
  $region45: #{encoder_forward.6} parent=0
    _
  %s6 = ssub.s32 1, %s4
  %s7 = scalar_select 0, %s6, %s4
  loop: start=0, step=1, limit=4
  $region2: #{encoder_forward.6} parent=0 // loop_pre_header
    _
  $region3: #{encoder_forward.6} parent=0 // loop_header
    %s9 = sphi 0, %s13
    %p10 = scmp.ge.s32.totalorder %s9, 4
    %s19 = sphi 0, %s21
    %s22 = sphi 0, %s19
    %s23 = sphi 0, %s22
    %s39 = sphi 0, %s23
    %s43 = sphi 0, %s43
    %s45 = sphi 0, %s43
    %s46 = sphi 0, %s45
    %s60 = sphi 0, %s46
    %s64 = sphi 0, %s64
    %s66 = sphi 0, %s64
    %s67 = sphi 0, %s66
    %s81 = sphi 0, %s67
    %s87 = sphi 0, %s89
    %s90 = sphi 0, %s87
    %s91 = sphi 0, %s90
    %s107 = sphi 0, %s91
  $region4: #{encoder_forward.6} parent=0 // loop_header_branch
    %12 = sbr.rel (%p10) target = $region8
  $region5: #{encoder_forward.6} parent=0 // loop_body
    %s14 = ssub.s32 %s9, 1
    %s15 = ssub.s32 %s9, 2
    %s16 = sadd.s32 %s9, 1
    %s17 = ssub.s32 %s9, %s16
    %p18 = scmp.eq.s32.totalorder %s17, 0
    %s20 = sadd.s32 %s19, 1
    %s21 = scalar_select %p18, %s19, %s20
    %p24 = pneg %p18
    %p25 = scmp.eq.s32.totalorder %s9, 1
    %p26 = por %p24, %p25
    %p27 = scmp.ne.s32.totalorder %s19, %s22
    %p28 = scmp.eq.s32.totalorder %s9, 0
    %p29 = por %p27, %p28
    %p30 = scmp.ne.s32.totalorder %s19, %s22
    %p31 = scmp.eq.s32.totalorder %s14, 1
    %p32 = por %p30, %p31
    %p33 = scmp.ne.s32.totalorder %s22, %s23
    %p34 = scmp.eq.s32.totalorder %s14, 0
    %p35 = por %p33, %p34
    %p36 = scmp.ne.s32.totalorder %s22, %s23
    %p37 = scmp.eq.s32.totalorder %s15, 1
    %p38 = por %p36, %p37
    %p40 = scmp.ne.s32.totalorder %s23, %s39
    %p41 = scmp.eq.s32.totalorder %s15, 0
    %p42 = por %p40, %p41
    %s44 = sadd.s32 %s43, 1
    %p47 = scmp.eq.s32.totalorder %s9, 1
    %p48 = scmp.ne.s32.totalorder %s43, %s45
    %p49 = scmp.eq.s32.totalorder %s9, 0
    %p50 = por %p48, %p49
    %p51 = scmp.ne.s32.totalorder %s43, %s45
    %p52 = scmp.eq.s32.totalorder %s14, 1
    %p53 = por %p51, %p52
    %p54 = scmp.ne.s32.totalorder %s45, %s46
    %p55 = scmp.eq.s32.totalorder %s14, 0
    %p56 = por %p54, %p55
    %p57 = scmp.ne.s32.totalorder %s45, %s46
    %p58 = scmp.eq.s32.totalorder %s15, 1
    %p59 = por %p57, %p58
    %p61 = scmp.ne.s32.totalorder %s46, %s60
    %p62 = scmp.eq.s32.totalorder %s15, 0
    %p63 = por %p61, %p62
    %s65 = sadd.s32 %s64, 1
    %p68 = scmp.eq.s32.totalorder %s9, 1
    %p69 = scmp.ne.s32.totalorder %s64, %s66
    %p70 = scmp.eq.s32.totalorder %s9, 0
    %p71 = por %p69, %p70
    %p72 = scmp.ne.s32.totalorder %s64, %s66
    %p73 = scmp.eq.s32.totalorder %s14, 1
    %p74 = por %p72, %p73
    %p75 = scmp.ne.s32.totalorder %s66, %s67
    %p76 = scmp.eq.s32.totalorder %s14, 0
    %p77 = por %p75, %p76
    %p78 = scmp.ne.s32.totalorder %s66, %s67
    %p79 = scmp.eq.s32.totalorder %s15, 1
    %p80 = por %p78, %p79
    %p82 = scmp.ne.s32.totalorder %s67, %s81
    %p83 = scmp.eq.s32.totalorder %s15, 0
    %p84 = por %p82, %p83
    %s85 = ssub.s32 %s9, %s16
    %p86 = scmp.eq.s32.totalorder %s85, 0
    %s88 = sadd.s32 %s87, 1
    %s89 = scalar_select %p86, %s87, %s88
    %p92 = pneg %p86
    %p93 = scmp.eq.s32.totalorder %s9, 1
    %p94 = por %p92, %p93
    %p95 = scmp.ne.s32.totalorder %s87, %s90
    %p96 = scmp.eq.s32.totalorder %s9, 0
    %p97 = por %p95, %p96
    %p98 = scmp.ne.s32.totalorder %s87, %s90
    %p99 = scmp.eq.s32.totalorder %s14, 1
    %p100 = por %p98, %p99
    %p101 = scmp.ne.s32.totalorder %s90, %s91
    %p102 = scmp.eq.s32.totalorder %s14, 0
    %p103 = por %p101, %p102
    %p104 = scmp.ne.s32.totalorder %s90, %s91
    %p105 = scmp.eq.s32.totalorder %s15, 1
    %p106 = por %p104, %p105
    %p108 = scmp.ne.s32.totalorder %s91, %s107
    %p109 = scmp.eq.s32.totalorder %s15, 0
    %p110 = por %p108, %p109
    %p111 = scmp.le.s32.totalorder 1, %s9
    %p112 = scmp.lt.s32.totalorder %s9, 3
    %p113 = pnand %p111, %p112
    %p114 = pneg %p113
    // Predicated region
    $region9: #{encoder_forward.6} parent=5 // pred_check
      _
    $region10: #{encoder_forward.6} parent=5 // pred_check_branch
      %116 = sbr.rel (%p113) target = $region12
    $region11: #{encoder_forward.6} parent=5 // pred_region
      %s117 = ssub.s32 %s9, 1
      // Predicated region
      $region13: #{encoder_forward.6} parent=11 // pred_check
        %p118 = pneg %p56
      $region14: #{encoder_forward.6} parent=11 // pred_check_branch
        %120 = sbr.rel (%p118) target = $region16
      $region15: #{encoder_forward.6} parent=11 // pred_region
        _
      $region16: #{encoder_forward.6} parent=11 // pred_fallthru
        _
      // Predicated region
      $region17: #{encoder_forward.6} parent=11 // pred_check
        %p121 = pneg %p77
      $region18: #{encoder_forward.6} parent=11 // pred_check_branch
        %123 = sbr.rel (%p121) target = $region20
      $region19: #{encoder_forward.6} parent=11 // pred_region
        _
      $region20: #{encoder_forward.6} parent=11 // pred_fallthru
        _
    $region12: #{encoder_forward.6} parent=5 // pred_fallthru
      _
    %p124 = scmp.lt.s32.totalorder %s9, 2
    // Predicated region
    $region21: #{encoder_forward.6} parent=5 // pred_check
      %p125 = pneg %p124
    $region22: #{encoder_forward.6} parent=5 // pred_check_branch
      %127 = sbr.rel (%p125) target = $region24
    $region23: #{encoder_forward.6} parent=5 // pred_region
      // Predicated region
      $region25: #{encoder_forward.6} parent=23 // pred_check
        %p128 = pneg %p29
      $region26: #{encoder_forward.6} parent=23 // pred_check_branch
        %130 = sbr.rel (%p128) target = $region28
      $region27: #{encoder_forward.6} parent=23 // pred_region
        %p131 = scmp.lt.s32.totalorder %s9, 1
        %s132 = scalar_select %p131, %s9, 1
        %s133 = smul.addr %s132, 4
        %s134 = smul.addr %s133, 4
        %s135 = scalar_lea.vmem %s0, %s134
      $region28: #{encoder_forward.6} parent=23 // pred_fallthru
        _
    $region24: #{encoder_forward.6} parent=5 // pred_fallthru
      _
    %p136 = scmp.le.s32.totalorder 1, %s9
    %p137 = scmp.lt.s32.totalorder %s9, 3
    %p138 = pnand %p136, %p137
    %p139 = pneg %p138
    // Predicated region
    $region29: #{encoder_forward.6} parent=5 // pred_check
      _
    $region30: #{encoder_forward.6} parent=5 // pred_check_branch
      %141 = sbr.rel (%p138) target = $region32
    $region31: #{encoder_forward.6} parent=5 // pred_region
      %s142 = ssub.s32 %s9, 1
      %p143 = scmp.lt.s32.totalorder %s14, 1
      %s144 = scalar_select %p143, %s14, 1
      %s145 = smul.addr %s144, 4
      %s146 = smul.addr %s145, 4
      %s147 = scalar_lea.vmem %s0, %s146
      %p148 = pneg %p35
      %p149 = pneg %p32
      %p150 = pneg %p56
      %p151 = pneg %p53
      %p152 = pneg %p77
      %p153 = pneg %p74
      %p154 = pneg %p103
      %p155 = pneg %p100
      %p156 = scmp.lt.s32.totalorder %s14, 1
      %s157 = scalar_select %p156, %s14, 1
      %s158 = smul.addr %s157, 4
      %s159 = smul.addr %s158, 2
      %s160 = scalar_lea.vmem %s3, %s159
      %p161 = scmp.lt.s32.totalorder %s14, 1
      %s162 = scalar_select %p161, %s14, 1
      %s163 = smul.addr %s162, 4
      %s164 = smul.addr %s163, 4
      %s165 = scalar_lea.vmem %s0, %s164
      %p166 = scmp.lt.s32.totalorder %s14, 1
      %s167 = scalar_select %p166, %s14, 1
      %s168 = smul.addr %s167, 4
      %s169 = smul.addr %s168, 2
      %s170 = scalar_lea.vmem %s3, %s169
      %v172 = vld [vmem:[%s165] sm:$0xf]
      %v173 = vld [vmem:[%s165 + $0x4] sm:$0xf]
      %v174 = vld [vmem:[%s165 + $0x8] sm:$0x3]
      %v175 = vld [vmem:[%s1] sm:$0xf]
      %v176 = vld [vmem:[%s1 + $0x4] sm:$0xf]
      %v177 = vld [vmem:[%s1 + $0x8] sm:$0xf]
      %v178 = vld [vmem:[%s1 + $0xc] sm:$0xf]
      %v179 = vld [vmem:[%s1 + $0x10] sm:$0xf]
      %v180 = vld [vmem:[%s1 + $0x14] sm:$0xf]
      %v181 = vld [vmem:[%s1 + $0x18] sm:$0xf]
      %v182 = vld [vmem:[%s1 + $0x1c] sm:$0xf]
      %v183 = vld [vmem:[%s165 + $0x8] sm:$0x7]
      %s184 = scalar_lea.vmem %s1, 32
      %v185 = vld [vmem:[%s184] sm:$0xf]
      %v186 = vld [vmem:[%s184 + $0x4] sm:$0xf]
      %v187 = vld [vmem:[%s184 + $0x8] sm:$0xf]
      %v188 = vld [vmem:[%s184 + $0xc] sm:$0xf]
      %v189 = vld [vmem:[%s184 + $0x10] sm:$0xf]
      %v190 = vld [vmem:[%s184 + $0x14] sm:$0xf]
      %v191 = vld [vmem:[%s184 + $0x18] sm:$0xf]
      %v192 = vld [vmem:[%s184 + $0x1c] sm:$0xf]
      %v196 = vunpack.c.l.b16 %v172
      %v197 = vunpack.c.l.b16 %v173
      %v198 = vunpack.c.l.b16 %v183
      %v199 = vpack.c.b16 %v197, %v196
      %v200 = vpack.c.b16 %v198, %v198
      %vm201 = vsmask.f32 7424
      %v203 = vshrl.u32 %v199, 16
      %v205 = vshll.u32 %v199, 16
      %v207 = vrot.slane %v205, 1
      %v208 = vor.u32 %v203, %v207
      %v210 = vshll.u32 %v200, 16
      %v212 = vrot.slane %v210, 1
      %v213 = vsel %vm201, %v208, %v212
      %v214 = vshrl.u32 %v200, 16
      %v216 = vor.u32 %v214, %v212
      %v225 = vunpack.c.l.b16 %v185
      %v226 = vunpack.c.l.b16 %v186
      %v227 = vunpack.c.l.b16 %v187
      %v228 = vunpack.c.l.b16 %v188
      %v229 = vunpack.c.l.b16 %v189
      %v230 = vunpack.c.l.b16 %v190
      %v231 = vunpack.c.l.b16 %v191
      %v232 = vunpack.c.l.b16 %v192
      %v233 = vpack.c.b16 %v226, %v225
      %v234 = vpack.c.b16 %v228, %v227
      %v235 = vpack.c.b16 %v230, %v229
      %v236 = vpack.c.b16 %v232, %v231
      %vm241 = vcmask 523264
      %v243 = vsel %vm241, %v213, 0
      %v246 = vsel %vm241, %v216, 0
      %248 = vmatprep.subr.bf16.mxu0 0
      %249 = vmatpush1.bf16.msra.mxu0 %v233
      %250 = vmatprep.subr.bf16.mxu0 0
      %251 = vmatpush1.bf16.msra.mxu0 %v234
      %252 = vmatprep.subr.bf16.mxu0 0
      %253 = vmatpush1.bf16.msra.mxu0 %v235
      %254 = vmatprep.subr.bf16.mxu0 0
      %255 = vmatpush1.bf16.msra.mxu0 %v236
      %256 = vmatprep.subr.bf16.mxu0 0
      %257 = vmatpush1.bf16.msra.mxu0 0
      %258 = vmatprep.subr.bf16.mxu0 0
      %259 = vmatpush1.bf16.msra.mxu0 0
      %260 = vmatprep.subr.bf16.mxu0 0
      %261 = vmatpush1.bf16.msra.mxu0 0
      %262 = vmatprep.subr.bf16.mxu0 0
      %263 = vmatpush1.bf16.msra.mxu0 0
      %264 = vmatprep.subr.bf16.mxu0 0
      %265 = vmatpush1.bf16.msra.mxu0 0
      %266 = vmatprep.subr.bf16.mxu0 0
      %267 = vmatpush1.bf16.msra.mxu0 0
      %268 = vmatprep.subr.bf16.mxu0 0
      %269 = vmatpush1.bf16.msra.mxu0 0
      %270 = vmatprep.subr.bf16.mxu0 0
      %271 = vmatpush1.bf16.msra.mxu0 0
      %272 = vmatprep.subr.bf16.mxu0 0
      %273 = vmatpush1.bf16.msra.mxu0 0
      %274 = vmatprep.subr.bf16.mxu0 0
      %275 = vmatpush1.bf16.msra.mxu0 0
      %276 = vmatprep.subr.bf16.mxu0 0
      %277 = vmatpush1.bf16.msra.mxu0 0
      %278 = vmatprep.subr.bf16.mxu0 0
      %279 = vmatpush1.bf16.msra.mxu0 0
      %280 = vmatprep.mubr.bf16.mxu0 0
      %281 = vmatmul.mubr.bf16.gmra.mrb[0].mxu0 %v243
      %v282 = vpop.f32.mrb[0].mxu0
      %v283 = vadd.f32 0.0, %v282
      %v284 = vpop.f32.mrb[0].mxu0
      %v285 = vpop.f32.mrb[0].mxu0
      %v286 = vadd.f32 0.0, %v285
      %v287 = vpop.f32.mrb[0].mxu0
      %288 = vmatprep.mubr.bf16.mxu0 0
      %289 = vmatmul.mubr.bf16.gmra.mrb[0].mxu0 %v246
      %v290 = vpop.f32.mrb[0].mxu0
      %v291 = vadd.f32 0.0, %v290
      %v292 = vpop.f32.mrb[0].mxu0
      %v293 = vpop.f32.mrb[0].mxu0
      %v294 = vpop.f32.mrb[0].mxu0
      %295 = vdwg.mxu0
      %v297 = vunpack.c.l.b16 %v174
      %v298 = vpack.c.b16 %v297, %v297
      %v307 = vunpack.c.l.b16 %v175
      %v308 = vunpack.c.l.b16 %v176
      %v309 = vunpack.c.l.b16 %v177
      %v310 = vunpack.c.l.b16 %v178
      %v311 = vunpack.c.l.b16 %v179
      %v312 = vunpack.c.l.b16 %v180
      %v313 = vunpack.c.l.b16 %v181
      %v314 = vunpack.c.l.b16 %v182
      %v315 = vpack.c.b16 %v308, %v307
      %v316 = vpack.c.b16 %v310, %v309
      %v317 = vpack.c.b16 %v312, %v311
      %v318 = vpack.c.b16 %v314, %v313
      %v323 = vsel %vm241, %v199, 0
      %v326 = vsel %vm241, %v298, 0
      %328 = vmatprep.subr.bf16.mxu0 0
      %329 = vmatpush1.bf16.msra.mxu0 %v315
      %330 = vmatprep.subr.bf16.mxu0 0
      %331 = vmatpush1.bf16.msra.mxu0 %v316
      %332 = vmatprep.subr.bf16.mxu0 0
      %333 = vmatpush1.bf16.msra.mxu0 %v317
      %334 = vmatprep.subr.bf16.mxu0 0
      %335 = vmatpush1.bf16.msra.mxu0 %v318
      %336 = vmatprep.subr.bf16.mxu0 0
      %337 = vmatpush1.bf16.msra.mxu0 0
      %338 = vmatprep.subr.bf16.mxu0 0
      %339 = vmatpush1.bf16.msra.mxu0 0
      %340 = vmatprep.subr.bf16.mxu0 0
      %341 = vmatpush1.bf16.msra.mxu0 0
      %342 = vmatprep.subr.bf16.mxu0 0
      %343 = vmatpush1.bf16.msra.mxu0 0
      %344 = vmatprep.subr.bf16.mxu0 0
      %345 = vmatpush1.bf16.msra.mxu0 0
      %346 = vmatprep.subr.bf16.mxu0 0
      %347 = vmatpush1.bf16.msra.mxu0 0
      %348 = vmatprep.subr.bf16.mxu0 0
      %349 = vmatpush1.bf16.msra.mxu0 0
      %350 = vmatprep.subr.bf16.mxu0 0
      %351 = vmatpush1.bf16.msra.mxu0 0
      %352 = vmatprep.subr.bf16.mxu0 0
      %353 = vmatpush1.bf16.msra.mxu0 0
      %354 = vmatprep.subr.bf16.mxu0 0
      %355 = vmatpush1.bf16.msra.mxu0 0
      %356 = vmatprep.subr.bf16.mxu0 0
      %357 = vmatpush1.bf16.msra.mxu0 0
      %358 = vmatprep.subr.bf16.mxu0 0
      %359 = vmatpush1.bf16.msra.mxu0 0
      %360 = vmatprep.mubr.bf16.mxu0 0
      %361 = vmatmul.mubr.bf16.gmra.mrb[0].mxu0 %v323
      %v362 = vpop.f32.mrb[0].mxu0
      %v363 = vadd.f32 %v283, %v362
      %v364 = vpop.f32.mrb[0].mxu0
      %v365 = vpop.f32.mrb[0].mxu0
      %v366 = vadd.f32 %v286, %v365
      %v367 = vpop.f32.mrb[0].mxu0
      %368 = vmatprep.mubr.bf16.mxu0 0
      %369 = vmatmul.mubr.bf16.gmra.mrb[0].mxu0 %v326
      %v370 = vpop.f32.mrb[0].mxu0
      %v371 = vadd.f32 %v291, %v370
      %v372 = vpop.f32.mrb[0].mxu0
      %v373 = vpop.f32.mrb[0].mxu0
      %v374 = vpop.f32.mrb[0].mxu0
      %375 = vdwg.mxu0
      %v376 = vld [vmem:[%s165] sm:$0xc]
      %v377 = vld [vmem:[%s165 + $0x4] sm:$0xf]
      %v378 = vld [vmem:[%s165 + $0x8] sm:$0xf]
      %v379 = vld [vmem:[%s165 + $0xc] sm:$0x1]
      %s380 = scalar_lea.vmem %s1, 64
      %v381 = vld [vmem:[%s380] sm:$0xf]
      %v382 = vld [vmem:[%s380 + $0x4] sm:$0xf]
      %v383 = vld [vmem:[%s380 + $0x8] sm:$0xf]
      %v384 = vld [vmem:[%s380 + $0xc] sm:$0xf]
      %v385 = vld [vmem:[%s380 + $0x10] sm:$0xf]
      %v386 = vld [vmem:[%s380 + $0x14] sm:$0xf]
      %v387 = vld [vmem:[%s380 + $0x18] sm:$0xf]
      %v388 = vld [vmem:[%s380 + $0x1c] sm:$0xf]
      %v393 = vunpack.c.l.b16 %v376
      %v394 = vunpack.c.l.b16 %v377
      %v395 = vunpack.c.l.b16 %v378
      %v396 = vunpack.c.l.b16 %v379
      %v397 = vpack.c.b16 %v394, %v393
      %v398 = vpack.c.b16 %v396, %v395
      %vm399 = vsmask.f32 5376
      %v401 = vshrl.u32 %v397, 16
      %v403 = vrot.slane %v401, 2
      %v404 = vshll.u32 %v397, 16
      %v406 = vrot.slane %v404, 3
      %v407 = vor.u32 %v403, %v406
      %v409 = vshrl.u32 %v398, 16
      %v411 = vrot.slane %v409, 2
      %v412 = vshll.u32 %v398, 16
      %v414 = vrot.slane %v412, 3
      %v415 = vor.u32 %v411, %v414
      %v416 = vsel %vm399, %v407, %v415
      %v425 = vunpack.c.l.b16 %v381
      %v426 = vunpack.c.l.b16 %v382
      %v427 = vunpack.c.l.b16 %v383
      %v428 = vunpack.c.l.b16 %v384
      %v429 = vunpack.c.l.b16 %v385
      %v430 = vunpack.c.l.b16 %v386
      %v431 = vunpack.c.l.b16 %v387
      %v432 = vunpack.c.l.b16 %v388
      %v433 = vpack.c.b16 %v426, %v425
      %v434 = vpack.c.b16 %v428, %v427
      %v435 = vpack.c.b16 %v430, %v429
      %v436 = vpack.c.b16 %v432, %v431
      %v442 = vsel %vm241, %v416, 0
      %v445 = vsel %vm241, %v415, 0
      %447 = vmatprep.subr.bf16.mxu0 0
      %448 = vmatpush1.bf16.msra.mxu0 %v433
      %449 = vmatprep.subr.bf16.mxu0 0
      %450 = vmatpush1.bf16.msra.mxu0 %v434
      %451 = vmatprep.subr.bf16.mxu0 0
      %452 = vmatpush1.bf16.msra.mxu0 %v435
      %453 = vmatprep.subr.bf16.mxu0 0
      %454 = vmatpush1.bf16.msra.mxu0 %v436
      %455 = vmatprep.subr.bf16.mxu0 0
      %456 = vmatpush1.bf16.msra.mxu0 0
      %457 = vmatprep.subr.bf16.mxu0 0
      %458 = vmatpush1.bf16.msra.mxu0 0
      %459 = vmatprep.subr.bf16.mxu0 0
      %460 = vmatpush1.bf16.msra.mxu0 0
      %461 = vmatprep.subr.bf16.mxu0 0
      %462 = vmatpush1.bf16.msra.mxu0 0
      %463 = vmatprep.subr.bf16.mxu0 0
      %464 = vmatpush1.bf16.msra.mxu0 0
      %465 = vmatprep.subr.bf16.mxu0 0
      %466 = vmatpush1.bf16.msra.mxu0 0
      %467 = vmatprep.subr.bf16.mxu0 0
      %468 = vmatpush1.bf16.msra.mxu0 0
      %469 = vmatprep.subr.bf16.mxu0 0
      %470 = vmatpush1.bf16.msra.mxu0 0
      %471 = vmatprep.subr.bf16.mxu0 0
      %472 = vmatpush1.bf16.msra.mxu0 0
      %473 = vmatprep.subr.bf16.mxu0 0
      %474 = vmatpush1.bf16.msra.mxu0 0
      %475 = vmatprep.subr.bf16.mxu0 0
      %476 = vmatpush1.bf16.msra.mxu0 0
      %477 = vmatprep.subr.bf16.mxu0 0
      %478 = vmatpush1.bf16.msra.mxu0 0
      %479 = vmatprep.mubr.bf16.mxu0 0
      %480 = vmatmul.mubr.bf16.gmra.mrb[0].mxu0 %v442
      %v481 = vpop.f32.mrb[0].mxu0
      %v482 = vadd.f32 0.0, %v481
      %v483 = vpop.f32.mrb[0].mxu0
      %v484 = vpop.f32.mrb[0].mxu0
      %v485 = vadd.f32 0.0, %v484
      %v486 = vpop.f32.mrb[0].mxu0
      %487 = vmatprep.mubr.bf16.mxu0 0
      %488 = vmatmul.mubr.bf16.gmra.mrb[0].mxu0 %v445
      %v489 = vpop.f32.mrb[0].mxu0
      %v490 = vadd.f32 0.0, %v489
      %v491 = vpop.f32.mrb[0].mxu0
      %v492 = vpop.f32.mrb[0].mxu0
      %v493 = vpop.f32.mrb[0].mxu0
      %494 = vdwg.mxu0
      %v495 = vadd.f32 %v363, %v482
      %v496 = vadd.f32 %v366, %v485
      %v497 = vadd.f32 %v371, %v490
      %v498 = vld [vmem:[%s165] sm:$0x8]
      %s499 = scalar_lea.vmem %s1, 96
      %v500 = vld [vmem:[%s499] sm:$0xf]
      %v501 = vld [vmem:[%s499 + $0x4] sm:$0xf]
      %v502 = vld [vmem:[%s499 + $0x8] sm:$0xf]
      %v503 = vld [vmem:[%s499 + $0xc] sm:$0xf]
      %v504 = vld [vmem:[%s499 + $0x10] sm:$0xf]
      %v505 = vld [vmem:[%s499 + $0x14] sm:$0xf]
      %v506 = vld [vmem:[%s499 + $0x18] sm:$0xf]
      %v507 = vld [vmem:[%s499 + $0x1c] sm:$0xf]
      %v509 = vunpack.c.l.b16 %v498
      %v510 = vpack.c.b16 %v394, %v509
      %vm511 = vcmask 1044480
      %v512 = vrot.slane %v510, 3
      %v513 = vrot.slane %v398, 3
      %v514 = vsel %vm511, %v512, %v513
      %v523 = vunpack.c.l.b16 %v500
      %v524 = vunpack.c.l.b16 %v501
      %v525 = vunpack.c.l.b16 %v502
      %v526 = vunpack.c.l.b16 %v503
      %v527 = vunpack.c.l.b16 %v504
      %v528 = vunpack.c.l.b16 %v505
      %v529 = vunpack.c.l.b16 %v506
      %v530 = vunpack.c.l.b16 %v507
      %v531 = vpack.c.b16 %v524, %v523
      %v532 = vpack.c.b16 %v526, %v525
      %v533 = vpack.c.b16 %v528, %v527
      %v534 = vpack.c.b16 %v530, %v529
      %v540 = vsel %vm241, %v514, 0
      %v543 = vsel %vm241, %v513, 0
      %545 = vmatprep.subr.bf16.mxu0 0
      %546 = vmatpush1.bf16.msra.mxu0 %v531
      %547 = vmatprep.subr.bf16.mxu0 0
      %548 = vmatpush1.bf16.msra.mxu0 %v532
      %549 = vmatprep.subr.bf16.mxu0 0
      %550 = vmatpush1.bf16.msra.mxu0 %v533
      %551 = vmatprep.subr.bf16.mxu0 0
      %552 = vmatpush1.bf16.msra.mxu0 %v534
      %553 = vmatprep.subr.bf16.mxu0 0
      %554 = vmatpush1.bf16.msra.mxu0 0
      %555 = vmatprep.subr.bf16.mxu0 0
      %556 = vmatpush1.bf16.msra.mxu0 0
      %557 = vmatprep.subr.bf16.mxu0 0
      %558 = vmatpush1.bf16.msra.mxu0 0
      %559 = vmatprep.subr.bf16.mxu0 0
      %560 = vmatpush1.bf16.msra.mxu0 0
      %561 = vmatprep.subr.bf16.mxu0 0
      %562 = vmatpush1.bf16.msra.mxu0 0
      %563 = vmatprep.subr.bf16.mxu0 0
      %564 = vmatpush1.bf16.msra.mxu0 0
      %565 = vmatprep.subr.bf16.mxu0 0
      %566 = vmatpush1.bf16.msra.mxu0 0
      %567 = vmatprep.subr.bf16.mxu0 0
      %568 = vmatpush1.bf16.msra.mxu0 0
      %569 = vmatprep.subr.bf16.mxu0 0
      %570 = vmatpush1.bf16.msra.mxu0 0
      %571 = vmatprep.subr.bf16.mxu0 0
      %572 = vmatpush1.bf16.msra.mxu0 0
      %573 = vmatprep.subr.bf16.mxu0 0
      %574 = vmatpush1.bf16.msra.mxu0 0
      %575 = vmatprep.subr.bf16.mxu0 0
      %576 = vmatpush1.bf16.msra.mxu0 0
      %577 = vmatprep.mubr.bf16.mxu0 0
      %578 = vmatmul.mubr.bf16.gmra.mrb[0].mxu0 %v540
      %v579 = vpop.f32.mrb[0].mxu0
      %v580 = vadd.f32 0.0, %v579
      %v581 = vpop.f32.mrb[0].mxu0
      %v582 = vpop.f32.mrb[0].mxu0
      %v583 = vadd.f32 0.0, %v582
      %v584 = vpop.f32.mrb[0].mxu0
      %585 = vmatprep.mubr.bf16.mxu0 0
      %586 = vmatmul.mubr.bf16.gmra.mrb[0].mxu0 %v543
      %v587 = vpop.f32.mrb[0].mxu0
      %v588 = vadd.f32 0.0, %v587
      %v589 = vpop.f32.mrb[0].mxu0
      %v590 = vpop.f32.mrb[0].mxu0
      %v591 = vpop.f32.mrb[0].mxu0
      %592 = vdwg.mxu0
      %v593 = vadd.f32 %v495, %v580
      %v594 = vadd.f32 %v496, %v583
      %v595 = vadd.f32 %v497, %v588
      %v596 = vld [vmem:[%s2] sm:$0x1]
      %v598 = vlaneseq
      %v599 = vshrl.u32 %v598, 7
      %v600 = vsub.s32 0, %v599
      %v601 = vrot.slane %v596, %v600
      %v603 = vadd.f32 %v593, %v601
      %v604 = vadd.f32 %v594, %v601
      %v605 = vadd.f32 %v595, %v601
      %v606 = vmax.f32 %v603, 0.0
      %v607 = vmax.f32 %v604, 0.0
      %v608 = vmax.f32 %v605, 0.0
      %v612 = vcombine.high %v606, %v606
      %v614 = vunpack.c.l.s4 1966171168
      %v615 = vunpack.c.0.s8 %v614
      %v616 = vlaneseq
      %v617 = vshrl.u32 %v616, 7
      %v618 = vsub.s32 %v615, %v617
      %v619 = vrot.slane %v606, %v618
      %v621 = vunpack.c.l.s4 1966171168
      %v622 = vunpack.c.0.s8 %v621
      %v623 = vlaneseq
      %v624 = vshrl.u32 %v623, 7
      %v625 = vsub.s32 %v622, %v624
      %v626 = vrot.slane %v612, %v625
      %v627 = vcombine.high %v619, %v619
      %v628 = vcombine.high %v626, %v626
      %v630 = vunpack.c.l.s4 1966171168
      %v631 = vunpack.c.0.s8 %v630
      %v632 = vlaneseq
      %v633 = vshrl.u32 %v632, 7
      %v634 = vsub.s32 %v631, %v633
      %v635 = vrot.slane %v619, %v634
      %v637 = vunpack.c.l.s4 1966171168
      %v638 = vunpack.c.0.s8 %v637
      %v639 = vlaneseq
      %v640 = vshrl.u32 %v639, 7
      %v641 = vsub.s32 %v638, %v640
      %v642 = vrot.slane %v626, %v641
      %v644 = vunpack.c.l.s4 1966171168
      %v645 = vunpack.c.0.s8 %v644
      %v646 = vlaneseq
      %v647 = vshrl.u32 %v646, 7
      %v648 = vsub.s32 %v645, %v647
      %v649 = vrot.slane %v627, %v648
      %v651 = vunpack.c.l.s4 1966171168
      %v652 = vunpack.c.0.s8 %v651
      %v653 = vlaneseq
      %v654 = vshrl.u32 %v653, 7
      %v655 = vsub.s32 %v652, %v654
      %v656 = vrot.slane %v628, %v655
      %v657 = vcombine.high %v635, %v635
      %v658 = vcombine.high %v642, %v642
      %v659 = vcombine.high %v649, %v649
      %v660 = vcombine.high %v656, %v656
      %v661 = vcombine.high %v607, %v607
      %v663 = vunpack.c.l.s4 1966171168
      %v664 = vunpack.c.0.s8 %v663
      %v665 = vlaneseq
      %v666 = vshrl.u32 %v665, 7
      %v667 = vsub.s32 %v664, %v666
      %v668 = vrot.slane %v607, %v667
      %v670 = vunpack.c.l.s4 1966171168
      %v671 = vunpack.c.0.s8 %v670
      %v672 = vlaneseq
      %v673 = vshrl.u32 %v672, 7
      %v674 = vsub.s32 %v671, %v673
      %v675 = vrot.slane %v661, %v674
      %v676 = vcombine.high %v668, %v668
      %v677 = vcombine.high %v675, %v675
      %v679 = vunpack.c.l.s4 1966171168
      %v680 = vunpack.c.0.s8 %v679
      %v681 = vlaneseq
      %v682 = vshrl.u32 %v681, 7
      %v683 = vsub.s32 %v680, %v682
      %v684 = vrot.slane %v668, %v683
      %v686 = vunpack.c.l.s4 1966171168
      %v687 = vunpack.c.0.s8 %v686
      %v688 = vlaneseq
      %v689 = vshrl.u32 %v688, 7
      %v690 = vsub.s32 %v687, %v689
      %v691 = vrot.slane %v675, %v690
      %v693 = vunpack.c.l.s4 1966171168
      %v694 = vunpack.c.0.s8 %v693
      %v695 = vlaneseq
      %v696 = vshrl.u32 %v695, 7
      %v697 = vsub.s32 %v694, %v696
      %v698 = vrot.slane %v676, %v697
      %v700 = vunpack.c.l.s4 1966171168
      %v701 = vunpack.c.0.s8 %v700
      %v702 = vlaneseq
      %v703 = vshrl.u32 %v702, 7
      %v704 = vsub.s32 %v701, %v703
      %v705 = vrot.slane %v677, %v704
      %v706 = vcombine.high %v684, %v684
      %v707 = vcombine.high %v698, %v698
      %v708 = vcombine.high %v705, %v705
      %v710 = vunpack.c.l.s4 1966171168
      %v711 = vunpack.c.0.s8 %v710
      %v712 = vlaneseq
      %v713 = vshrl.u32 %v712, 7
      %v714 = vsub.s32 %v711, %v713
      %v715 = vrot.slane %v608, %v714
      %v716 = vcombine.high %v715, %v715
      %v718 = vunpack.c.l.s4 1966171168
      %v719 = vunpack.c.0.s8 %v718
      %v720 = vlaneseq
      %v721 = vshrl.u32 %v720, 7
      %v722 = vsub.s32 %v719, %v721
      %v723 = vrot.slane %v715, %v722
      %v725 = vunpack.c.l.s4 1966171168
      %v726 = vunpack.c.0.s8 %v725
      %v727 = vlaneseq
      %v728 = vshrl.u32 %v727, 7
      %v729 = vsub.s32 %v726, %v728
      %v730 = vrot.slane %v716, %v729
      %v731 = vcombine.high %v723, %v723
      %v732 = vcombine.low %v635, %v649
      %v733 = vcombine.low %v657, %v659
      %v735 = vunpack.c.l.s4 1966171168
      %v736 = vunpack.c.0.s8 %v735
      %v737 = vlaneseq
      %v738 = vshrl.u32 %v737, 7
      %v739 = vsub.s32 %v736, %v738
      %v740 = vrot.slane %v732, %v739
      %v742 = vunpack.c.l.s4 1966171168
      %v743 = vunpack.c.0.s8 %v742
      %v744 = vlaneseq
      %v745 = vshrl.u32 %v744, 7
      %v746 = vsub.s32 %v743, %v745
      %v747 = vrot.slane %v733, %v746
      %v748 = vcombine.low %v740, %v747
      %v750 = vunpack.c.l.s4 1966171168
      %v751 = vunpack.c.0.s8 %v750
      %v752 = vlaneseq
      %v753 = vshrl.u32 %v752, 7
      %v754 = vsub.s32 %v751, %v753
      %v755 = vrot.slane %v748, %v754
      %v756 = vcombine.low %v656, %v658
      %v757 = vcombine.low %v660, %v684
      %v759 = vunpack.c.l.s4 1966171168
      %v760 = vunpack.c.0.s8 %v759
      %v761 = vlaneseq
      %v762 = vshrl.u32 %v761, 7
      %v763 = vsub.s32 %v760, %v762
      %v764 = vrot.slane %v756, %v763
      %v766 = vunpack.c.l.s4 1966171168
      %v767 = vunpack.c.0.s8 %v766
      %v768 = vlaneseq
      %v769 = vshrl.u32 %v768, 7
      %v770 = vsub.s32 %v767, %v769
      %v771 = vrot.slane %v757, %v770
      %v772 = vcombine.low %v764, %v771
      %v774 = vunpack.c.l.s4 1966171168
      %v775 = vunpack.c.0.s8 %v774
      %v776 = vlaneseq
      %v777 = vshrl.u32 %v776, 7
      %v778 = vsub.s32 %v775, %v777
      %v779 = vrot.slane %v772, %v778
      %v780 = vcombine.low %v706, %v707
      %v781 = vcombine.low %v691, %v705
      %v783 = vunpack.c.l.s4 1966171168
      %v784 = vunpack.c.0.s8 %v783
      %v785 = vlaneseq
      %v786 = vshrl.u32 %v785, 7
      %v787 = vsub.s32 %v784, %v786
      %v788 = vrot.slane %v780, %v787
      %v790 = vunpack.c.l.s4 1966171168
      %v791 = vunpack.c.0.s8 %v790
      %v792 = vlaneseq
      %v793 = vshrl.u32 %v792, 7
      %v794 = vsub.s32 %v791, %v793
      %v795 = vrot.slane %v781, %v794
      %v796 = vcombine.low %v788, %v795
      %v798 = vunpack.c.l.s4 1966171168
      %v799 = vunpack.c.0.s8 %v798
      %v800 = vlaneseq
      %v801 = vshrl.u32 %v800, 7
      %v802 = vsub.s32 %v799, %v801
      %v803 = vrot.slane %v796, %v802
      %v804 = vcombine.low %v708, %v723
      %v805 = vcombine.low %v730, %v731
      %v807 = vunpack.c.l.s4 1966171168
      %v808 = vunpack.c.0.s8 %v807
      %v809 = vlaneseq
      %v810 = vshrl.u32 %v809, 7
      %v811 = vsub.s32 %v808, %v810
      %v812 = vrot.slane %v804, %v811
      %v814 = vunpack.c.l.s4 1966171168
      %v815 = vunpack.c.0.s8 %v814
      %v816 = vlaneseq
      %v817 = vshrl.u32 %v816, 7
      %v818 = vsub.s32 %v815, %v817
      %v819 = vrot.slane %v805, %v818
      %v820 = vcombine.low %v812, %v819
      %v822 = vunpack.c.l.s4 1966171168
      %v823 = vunpack.c.0.s8 %v822
      %v824 = vlaneseq
      %v825 = vshrl.u32 %v824, 7
      %v826 = vsub.s32 %v823, %v825
      %v827 = vrot.slane %v820, %v826
      %v832 = vpack.c.bf16 %v755, %v755
      %v833 = vpack.c.bf16 %v779, %v779
      %v834 = vpack.c.bf16 %v803, %v803
      %v835 = vpack.c.bf16 %v827, %v827
      %vm836 = vcmask 254976
      %837 = vst.msk [vmem:[%s170] sm:$0x3] %vm836, %v832
      %838 = vst.msk [vmem:[%s170 + $0x2] sm:$0x3] %vm836, %v833
      %839 = vst.msk [vmem:[%s170 + $0x4] sm:$0x3] %vm836, %v834
      %840 = vst.msk [vmem:[%s170 + $0x6] sm:$0x3] %vm836, %v835
      %p841 = scmp.lt.s32.totalorder %s14, 1
      %s842 = scalar_select %p841, %s14, 1
      %s843 = smul.addr %s842, 4
      %s844 = smul.addr %s843, 2
      %s845 = scalar_lea.vmem %s3, %s844
      // Predicated region
      $region33: #{encoder_forward.6} parent=31 // pred_check
        %p846 = pneg %p100
      $region34: #{encoder_forward.6} parent=31 // pred_check_branch
        %848 = sbr.rel (%p846) target = $region36
      $region35: #{encoder_forward.6} parent=31 // pred_region
        _
      $region36: #{encoder_forward.6} parent=31 // pred_fallthru
        _
    $region32: #{encoder_forward.6} parent=5 // pred_fallthru
      _
    %p849 = scmp.le.s32.totalorder 2, %s9
    // Predicated region
    $region37: #{encoder_forward.6} parent=5 // pred_check
      %p850 = pneg %p849
    $region38: #{encoder_forward.6} parent=5 // pred_check_branch
      %852 = sbr.rel (%p850) target = $region40
    $region39: #{encoder_forward.6} parent=5 // pred_region
      %s853 = ssub.s32 %s9, 2
      // Predicated region
      $region41: #{encoder_forward.6} parent=39 // pred_check
        %p854 = pneg %p106
      $region42: #{encoder_forward.6} parent=39 // pred_check_branch
        %856 = sbr.rel (%p854) target = $region44
      $region43: #{encoder_forward.6} parent=39 // pred_region
        %p857 = scmp.lt.s32.totalorder %s15, 1
        %s858 = scalar_select %p857, %s15, 1
        %s859 = smul.addr %s858, 4
        %s860 = smul.addr %s859, 2
        %s861 = scalar_lea.vmem %s3, %s860
      $region44: #{encoder_forward.6} parent=39 // pred_fallthru
        _
    $region40: #{encoder_forward.6} parent=5 // pred_fallthru
      _
  $region6: #{encoder_forward.6} parent=0 // loop_footer
    %s13 = sadd.s32 1, %s9
  $region7: #{encoder_forward.6} parent=0 // loop_footer_branch
    %8 = sbr.rel target = $region3
  $region8: #{encoder_forward.6} parent=0 // loop_exit
    _

// kernel: encoder_forward.7
$region0: #{encoder_forward.7}
  #allocation0 [shape = 'u32[]', space=smem, size = 0x4, offset = 0x4, fixed_abs, tag = 'smem constant byte address 0x4 - core index']
  #allocation1 [shape = 'u32[144,128]{1,0:T(1,128)}', space=vmem, size = 0x12000, scoped, tag = 'internal scratch']
  %s0 = inlined_call_operand.vmem [shape: bf16[2,40,32], index: 0, kind: input, shape index: {}]
  %s1 = inlined_call_operand.vmem [shape: bf16[9,32,32], index: 1, kind: input, shape index: {}]
  %s2 = inlined_call_operand.vmem [shape: f32[1,32], index: 2, kind: input, shape index: {}]
  %s3 = inlined_call_operand.vmem [shape: bf16[2,4,4,32], index: 3, kind: output, shape index: {}]
  %s4 = sld [smem:[#allocation0]]
  $region45: #{encoder_forward.7} parent=0
    _
  %s6 = ssub.s32 1, %s4
  %s7 = scalar_select 0, %s6, %s4
  loop: start=0, step=1, limit=4
  $region2: #{encoder_forward.7} parent=0 // loop_pre_header
    _
  $region3: #{encoder_forward.7} parent=0 // loop_header
    %s9 = sphi 0, %s13
    %p10 = scmp.ge.s32.totalorder %s9, 4
    %s19 = sphi 0, %s21
    %s22 = sphi 0, %s19
    %s23 = sphi 0, %s22
    %s39 = sphi 0, %s23
    %s43 = sphi 0, %s43
    %s45 = sphi 0, %s43
    %s46 = sphi 0, %s45
    %s60 = sphi 0, %s46
    %s64 = sphi 0, %s64
    %s66 = sphi 0, %s64
    %s67 = sphi 0, %s66
    %s81 = sphi 0, %s67
    %s87 = sphi 0, %s89
    %s90 = sphi 0, %s87
    %s91 = sphi 0, %s90
    %s107 = sphi 0, %s91
  $region4: #{encoder_forward.7} parent=0 // loop_header_branch
    %12 = sbr.rel (%p10) target = $region8
  $region5: #{encoder_forward.7} parent=0 // loop_body
    %s14 = ssub.s32 %s9, 1
    %s15 = ssub.s32 %s9, 2
    %s16 = sadd.s32 %s9, 1
    %s17 = ssub.s32 %s9, %s16
    %p18 = scmp.eq.s32.totalorder %s17, 0
    %s20 = sadd.s32 %s19, 1
    %s21 = scalar_select %p18, %s19, %s20
    %p24 = pneg %p18
    %p25 = scmp.eq.s32.totalorder %s9, 1
    %p26 = por %p24, %p25
    %p27 = scmp.ne.s32.totalorder %s19, %s22
    %p28 = scmp.eq.s32.totalorder %s9, 0
    %p29 = por %p27, %p28
    %p30 = scmp.ne.s32.totalorder %s19, %s22
    %p31 = scmp.eq.s32.totalorder %s14, 1
    %p32 = por %p30, %p31
    %p33 = scmp.ne.s32.totalorder %s22, %s23
    %p34 = scmp.eq.s32.totalorder %s14, 0
    %p35 = por %p33, %p34
    %p36 = scmp.ne.s32.totalorder %s22, %s23
    %p37 = scmp.eq.s32.totalorder %s15, 1
    %p38 = por %p36, %p37
    %p40 = scmp.ne.s32.totalorder %s23, %s39
    %p41 = scmp.eq.s32.totalorder %s15, 0
    %p42 = por %p40, %p41
    %s44 = sadd.s32 %s43, 1
    %p47 = scmp.eq.s32.totalorder %s9, 1
    %p48 = scmp.ne.s32.totalorder %s43, %s45
    %p49 = scmp.eq.s32.totalorder %s9, 0
    %p50 = por %p48, %p49
    %p51 = scmp.ne.s32.totalorder %s43, %s45
    %p52 = scmp.eq.s32.totalorder %s14, 1
    %p53 = por %p51, %p52
    %p54 = scmp.ne.s32.totalorder %s45, %s46
    %p55 = scmp.eq.s32.totalorder %s14, 0
    %p56 = por %p54, %p55
    %p57 = scmp.ne.s32.totalorder %s45, %s46
    %p58 = scmp.eq.s32.totalorder %s15, 1
    %p59 = por %p57, %p58
    %p61 = scmp.ne.s32.totalorder %s46, %s60
    %p62 = scmp.eq.s32.totalorder %s15, 0
    %p63 = por %p61, %p62
    %s65 = sadd.s32 %s64, 1
    %p68 = scmp.eq.s32.totalorder %s9, 1
    %p69 = scmp.ne.s32.totalorder %s64, %s66
    %p70 = scmp.eq.s32.totalorder %s9, 0
    %p71 = por %p69, %p70
    %p72 = scmp.ne.s32.totalorder %s64, %s66
    %p73 = scmp.eq.s32.totalorder %s14, 1
    %p74 = por %p72, %p73
    %p75 = scmp.ne.s32.totalorder %s66, %s67
    %p76 = scmp.eq.s32.totalorder %s14, 0
    %p77 = por %p75, %p76
    %p78 = scmp.ne.s32.totalorder %s66, %s67
    %p79 = scmp.eq.s32.totalorder %s15, 1
    %p80 = por %p78, %p79
    %p82 = scmp.ne.s32.totalorder %s67, %s81
    %p83 = scmp.eq.s32.totalorder %s15, 0
    %p84 = por %p82, %p83
    %s85 = ssub.s32 %s9, %s16
    %p86 = scmp.eq.s32.totalorder %s85, 0
    %s88 = sadd.s32 %s87, 1
    %s89 = scalar_select %p86, %s87, %s88
    %p92 = pneg %p86
    %p93 = scmp.eq.s32.totalorder %s9, 1
    %p94 = por %p92, %p93
    %p95 = scmp.ne.s32.totalorder %s87, %s90
    %p96 = scmp.eq.s32.totalorder %s9, 0
    %p97 = por %p95, %p96
    %p98 = scmp.ne.s32.totalorder %s87, %s90
    %p99 = scmp.eq.s32.totalorder %s14, 1
    %p100 = por %p98, %p99
    %p101 = scmp.ne.s32.totalorder %s90, %s91
    %p102 = scmp.eq.s32.totalorder %s14, 0
    %p103 = por %p101, %p102
    %p104 = scmp.ne.s32.totalorder %s90, %s91
    %p105 = scmp.eq.s32.totalorder %s15, 1
    %p106 = por %p104, %p105
    %p108 = scmp.ne.s32.totalorder %s91, %s107
    %p109 = scmp.eq.s32.totalorder %s15, 0
    %p110 = por %p108, %p109
    %p111 = scmp.le.s32.totalorder 1, %s9
    %p112 = scmp.lt.s32.totalorder %s9, 3
    %p113 = pnand %p111, %p112
    %p114 = pneg %p113
    // Predicated region
    $region9: #{encoder_forward.7} parent=5 // pred_check
      _
    $region10: #{encoder_forward.7} parent=5 // pred_check_branch
      %116 = sbr.rel (%p113) target = $region12
    $region11: #{encoder_forward.7} parent=5 // pred_region
      %s117 = ssub.s32 %s9, 1
      // Predicated region
      $region13: #{encoder_forward.7} parent=11 // pred_check
        %p118 = pneg %p56
      $region14: #{encoder_forward.7} parent=11 // pred_check_branch
        %120 = sbr.rel (%p118) target = $region16
      $region15: #{encoder_forward.7} parent=11 // pred_region
        _
      $region16: #{encoder_forward.7} parent=11 // pred_fallthru
        _
      // Predicated region
      $region17: #{encoder_forward.7} parent=11 // pred_check
        %p121 = pneg %p77
      $region18: #{encoder_forward.7} parent=11 // pred_check_branch
        %123 = sbr.rel (%p121) target = $region20
      $region19: #{encoder_forward.7} parent=11 // pred_region
        _
      $region20: #{encoder_forward.7} parent=11 // pred_fallthru
        _
    $region12: #{encoder_forward.7} parent=5 // pred_fallthru
      _
    %p124 = scmp.lt.s32.totalorder %s9, 2
    // Predicated region
    $region21: #{encoder_forward.7} parent=5 // pred_check
      %p125 = pneg %p124
    $region22: #{encoder_forward.7} parent=5 // pred_check_branch
      %127 = sbr.rel (%p125) target = $region24
    $region23: #{encoder_forward.7} parent=5 // pred_region
      // Predicated region
      $region25: #{encoder_forward.7} parent=23 // pred_check
        %p128 = pneg %p29
      $region26: #{encoder_forward.7} parent=23 // pred_check_branch
        %130 = sbr.rel (%p128) target = $region28
      $region27: #{encoder_forward.7} parent=23 // pred_region
        %p131 = scmp.lt.s32.totalorder %s9, 1
        %s132 = scalar_select %p131, %s9, 1
        %s133 = smul.addr %s132, 5
        %s134 = smul.addr %s133, 4
        %s135 = scalar_lea.vmem %s0, %s134
      $region28: #{encoder_forward.7} parent=23 // pred_fallthru
        _
    $region24: #{encoder_forward.7} parent=5 // pred_fallthru
      _
    %p136 = scmp.le.s32.totalorder 1, %s9
    %p137 = scmp.lt.s32.totalorder %s9, 3
    %p138 = pnand %p136, %p137
    %p139 = pneg %p138
    // Predicated region
    $region29: #{encoder_forward.7} parent=5 // pred_check
      _
    $region30: #{encoder_forward.7} parent=5 // pred_check_branch
      %141 = sbr.rel (%p138) target = $region32
    $region31: #{encoder_forward.7} parent=5 // pred_region
      %s142 = ssub.s32 %s9, 1
      %p143 = scmp.lt.s32.totalorder %s14, 1
      %s144 = scalar_select %p143, %s14, 1
      %s145 = smul.addr %s144, 5
      %s146 = smul.addr %s145, 4
      %s147 = scalar_lea.vmem %s0, %s146
      %p148 = pneg %p35
      %p149 = pneg %p32
      %p150 = pneg %p56
      %p151 = pneg %p53
      %p152 = pneg %p77
      %p153 = pneg %p74
      %p154 = pneg %p103
      %p155 = pneg %p100
      %p156 = scmp.lt.s32.totalorder %s14, 1
      %s157 = scalar_select %p156, %s14, 1
      %s158 = smul.addr %s157, 4
      %s159 = smul.addr %s158, 2
      %s160 = scalar_lea.vmem %s3, %s159
      %p161 = scmp.lt.s32.totalorder %s14, 1
      %s162 = scalar_select %p161, %s14, 1
      %s163 = smul.addr %s162, 5
      %s164 = smul.addr %s163, 4
      %s165 = scalar_lea.vmem %s0, %s164
      %p166 = scmp.lt.s32.totalorder %s14, 1
      %s167 = scalar_select %p166, %s14, 1
      %s168 = smul.addr %s167, 4
      %s169 = smul.addr %s168, 2
      %s170 = scalar_lea.vmem %s3, %s169
      %v172 = vld [vmem:[%s165] sm:$0xf]
      %v173 = vld [vmem:[%s165 + $0x4] sm:$0xf]
      %v174 = vld [vmem:[%s165 + $0x8] sm:$0xf]
      %v175 = vld [vmem:[%s1] sm:$0xf]
      %v176 = vld [vmem:[%s1 + $0x4] sm:$0xf]
      %v177 = vld [vmem:[%s1 + $0x8] sm:$0xf]
      %v178 = vld [vmem:[%s1 + $0xc] sm:$0xf]
      %v179 = vld [vmem:[%s165 + $0xc] sm:$0x1]
      %s180 = scalar_lea.vmem %s1, 16
      %v181 = vld [vmem:[%s180] sm:$0xf]
      %v182 = vld [vmem:[%s180 + $0x4] sm:$0xf]
      %v183 = vld [vmem:[%s180 + $0x8] sm:$0xf]
      %v184 = vld [vmem:[%s180 + $0xc] sm:$0xf]
      %v189 = vunpack.c.l.b16 %v172
      %v190 = vunpack.c.l.b16 %v173
      %v191 = vunpack.c.l.b16 %v174
      %v192 = vunpack.c.l.b16 %v179
      %v193 = vpack.c.b16 %v190, %v189
      %v194 = vpack.c.b16 %v192, %v191
      %vm195 = vsmask.f32 7424
      %v197 = vshrl.u32 %v193, 16
      %v199 = vshll.u32 %v193, 16
      %v201 = vrot.slane %v199, 1
      %v202 = vor.u32 %v197, %v201
      %v204 = vshll.u32 %v194, 16
      %v206 = vrot.slane %v204, 1
      %v207 = vsel %vm195, %v202, %v206
      %v208 = vshrl.u32 %v194, 16
      %v210 = vor.u32 %v208, %v206
      %v215 = vunpack.c.l.b16 %v181
      %v216 = vunpack.c.l.b16 %v182
      %v217 = vunpack.c.l.b16 %v183
      %v218 = vunpack.c.l.b16 %v184
      %v219 = vpack.c.b16 %v216, %v215
      %v220 = vpack.c.b16 %v218, %v217
      %vm223 = vcmask 261120
      %v225 = vsel %vm223, %v207, 0
      %v228 = vsel %vm223, %v210, 0
      %230 = vmatprep.subr.bf16.mxu0 0
      %231 = vmatpush1.bf16.msra.mxu0 %v219
      %232 = vmatprep.subr.bf16.mxu0 0
      %233 = vmatpush1.bf16.msra.mxu0 %v220
      %234 = vmatprep.subr.bf16.mxu0 0
      %235 = vmatpush1.bf16.msra.mxu0 0
      %236 = vmatprep.subr.bf16.mxu0 0
      %237 = vmatpush1.bf16.msra.mxu0 0
      %238 = vmatprep.subr.bf16.mxu0 0
      %239 = vmatpush1.bf16.msra.mxu0 0
      %240 = vmatprep.subr.bf16.mxu0 0
      %241 = vmatpush1.bf16.msra.mxu0 0
      %242 = vmatprep.subr.bf16.mxu0 0
      %243 = vmatpush1.bf16.msra.mxu0 0
      %244 = vmatprep.subr.bf16.mxu0 0
      %245 = vmatpush1.bf16.msra.mxu0 0
      %246 = vmatprep.subr.bf16.mxu0 0
      %247 = vmatpush1.bf16.msra.mxu0 0
      %248 = vmatprep.subr.bf16.mxu0 0
      %249 = vmatpush1.bf16.msra.mxu0 0
      %250 = vmatprep.subr.bf16.mxu0 0
      %251 = vmatpush1.bf16.msra.mxu0 0
      %252 = vmatprep.subr.bf16.mxu0 0
      %253 = vmatpush1.bf16.msra.mxu0 0
      %254 = vmatprep.subr.bf16.mxu0 0
      %255 = vmatpush1.bf16.msra.mxu0 0
      %256 = vmatprep.subr.bf16.mxu0 0
      %257 = vmatpush1.bf16.msra.mxu0 0
      %258 = vmatprep.subr.bf16.mxu0 0
      %259 = vmatpush1.bf16.msra.mxu0 0
      %260 = vmatprep.subr.bf16.mxu0 0
      %261 = vmatpush1.bf16.msra.mxu0 0
      %262 = vmatprep.mubr.bf16.mxu0 0
      %263 = vmatmul.mubr.bf16.gmra.mrb[0].mxu0 %v225
      %v264 = vpop.f32.mrb[0].mxu0
      %v265 = vadd.f32 0.0, %v264
      %v266 = vpop.f32.mrb[0].mxu0
      %v267 = vpop.f32.mrb[0].mxu0
      %v268 = vadd.f32 0.0, %v267
      %v269 = vpop.f32.mrb[0].mxu0
      %270 = vmatprep.mubr.bf16.mxu0 0
      %271 = vmatmul.mubr.bf16.gmra.mrb[0].mxu0 %v228
      %v272 = vpop.f32.mrb[0].mxu0
      %v273 = vadd.f32 0.0, %v272
      %v274 = vpop.f32.mrb[0].mxu0
      %v275 = vpop.f32.mrb[0].mxu0
      %v276 = vpop.f32.mrb[0].mxu0
      %277 = vdwg.mxu0
      %v278 = vpack.c.b16 %v191, %v191
      %v283 = vunpack.c.l.b16 %v175
      %v284 = vunpack.c.l.b16 %v176
      %v285 = vunpack.c.l.b16 %v177
      %v286 = vunpack.c.l.b16 %v178
      %v287 = vpack.c.b16 %v284, %v283
      %v288 = vpack.c.b16 %v286, %v285
      %v291 = vsel %vm223, %v193, 0
      %v294 = vsel %vm223, %v278, 0
      %296 = vmatprep.subr.bf16.mxu0 0
      %297 = vmatpush1.bf16.msra.mxu0 %v287
      %298 = vmatprep.subr.bf16.mxu0 0
      %299 = vmatpush1.bf16.msra.mxu0 %v288
      %300 = vmatprep.subr.bf16.mxu0 0
      %301 = vmatpush1.bf16.msra.mxu0 0
      %302 = vmatprep.subr.bf16.mxu0 0
      %303 = vmatpush1.bf16.msra.mxu0 0
      %304 = vmatprep.subr.bf16.mxu0 0
      %305 = vmatpush1.bf16.msra.mxu0 0
      %306 = vmatprep.subr.bf16.mxu0 0
      %307 = vmatpush1.bf16.msra.mxu0 0
      %308 = vmatprep.subr.bf16.mxu0 0
      %309 = vmatpush1.bf16.msra.mxu0 0
      %310 = vmatprep.subr.bf16.mxu0 0
      %311 = vmatpush1.bf16.msra.mxu0 0
      %312 = vmatprep.subr.bf16.mxu0 0
      %313 = vmatpush1.bf16.msra.mxu0 0
      %314 = vmatprep.subr.bf16.mxu0 0
      %315 = vmatpush1.bf16.msra.mxu0 0
      %316 = vmatprep.subr.bf16.mxu0 0
      %317 = vmatpush1.bf16.msra.mxu0 0
      %318 = vmatprep.subr.bf16.mxu0 0
      %319 = vmatpush1.bf16.msra.mxu0 0
      %320 = vmatprep.subr.bf16.mxu0 0
      %321 = vmatpush1.bf16.msra.mxu0 0
      %322 = vmatprep.subr.bf16.mxu0 0
      %323 = vmatpush1.bf16.msra.mxu0 0
      %324 = vmatprep.subr.bf16.mxu0 0
      %325 = vmatpush1.bf16.msra.mxu0 0
      %326 = vmatprep.subr.bf16.mxu0 0
      %327 = vmatpush1.bf16.msra.mxu0 0
      %328 = vmatprep.mubr.bf16.mxu0 0
      %329 = vmatmul.mubr.bf16.gmra.mrb[0].mxu0 %v291
      %v330 = vpop.f32.mrb[0].mxu0
      %v331 = vadd.f32 %v265, %v330
      %v332 = vpop.f32.mrb[0].mxu0
      %v333 = vpop.f32.mrb[0].mxu0
      %v334 = vadd.f32 %v268, %v333
      %v335 = vpop.f32.mrb[0].mxu0
      %336 = vmatprep.mubr.bf16.mxu0 0
      %337 = vmatmul.mubr.bf16.gmra.mrb[0].mxu0 %v294
      %v338 = vpop.f32.mrb[0].mxu0
      %v339 = vadd.f32 %v273, %v338
      %v340 = vpop.f32.mrb[0].mxu0
      %v341 = vpop.f32.mrb[0].mxu0
      %v342 = vpop.f32.mrb[0].mxu0
      %343 = vdwg.mxu0
      %v344 = vld [vmem:[%s165] sm:$0xe]
      %s345 = scalar_lea.vmem %s1, 32
      %v346 = vld [vmem:[%s345] sm:$0xf]
      %v347 = vld [vmem:[%s345 + $0x4] sm:$0xf]
      %v348 = vld [vmem:[%s345 + $0x8] sm:$0xf]
      %v349 = vld [vmem:[%s345 + $0xc] sm:$0xf]
      %v351 = vunpack.c.l.b16 %v344
      %v352 = vpack.c.b16 %v190, %v351
      %vm353 = vcmask 1046528
      %v354 = vrot.slane %v352, 1
      %v355 = vrot.slane %v194, 1
      %v356 = vsel %vm353, %v354, %v355
      %v361 = vunpack.c.l.b16 %v346
      %v362 = vunpack.c.l.b16 %v347
      %v363 = vunpack.c.l.b16 %v348
      %v364 = vunpack.c.l.b16 %v349
      %v365 = vpack.c.b16 %v362, %v361
      %v366 = vpack.c.b16 %v364, %v363
      %v370 = vsel %vm223, %v356, 0
      %v373 = vsel %vm223, %v355, 0
      %375 = vmatprep.subr.bf16.mxu0 0
      %376 = vmatpush1.bf16.msra.mxu0 %v365
      %377 = vmatprep.subr.bf16.mxu0 0
      %378 = vmatpush1.bf16.msra.mxu0 %v366
      %379 = vmatprep.subr.bf16.mxu0 0
      %380 = vmatpush1.bf16.msra.mxu0 0
      %381 = vmatprep.subr.bf16.mxu0 0
      %382 = vmatpush1.bf16.msra.mxu0 0
      %383 = vmatprep.subr.bf16.mxu0 0
      %384 = vmatpush1.bf16.msra.mxu0 0
      %385 = vmatprep.subr.bf16.mxu0 0
      %386 = vmatpush1.bf16.msra.mxu0 0
      %387 = vmatprep.subr.bf16.mxu0 0
      %388 = vmatpush1.bf16.msra.mxu0 0
      %389 = vmatprep.subr.bf16.mxu0 0
      %390 = vmatpush1.bf16.msra.mxu0 0
      %391 = vmatprep.subr.bf16.mxu0 0
      %392 = vmatpush1.bf16.msra.mxu0 0
      %393 = vmatprep.subr.bf16.mxu0 0
      %394 = vmatpush1.bf16.msra.mxu0 0
      %395 = vmatprep.subr.bf16.mxu0 0
      %396 = vmatpush1.bf16.msra.mxu0 0
      %397 = vmatprep.subr.bf16.mxu0 0
      %398 = vmatpush1.bf16.msra.mxu0 0
      %399 = vmatprep.subr.bf16.mxu0 0
      %400 = vmatpush1.bf16.msra.mxu0 0
      %401 = vmatprep.subr.bf16.mxu0 0
      %402 = vmatpush1.bf16.msra.mxu0 0
      %403 = vmatprep.subr.bf16.mxu0 0
      %404 = vmatpush1.bf16.msra.mxu0 0
      %405 = vmatprep.subr.bf16.mxu0 0
      %406 = vmatpush1.bf16.msra.mxu0 0
      %407 = vmatprep.mubr.bf16.mxu0 0
      %408 = vmatmul.mubr.bf16.gmra.mrb[0].mxu0 %v370
      %v409 = vpop.f32.mrb[0].mxu0
      %v410 = vadd.f32 0.0, %v409
      %v411 = vpop.f32.mrb[0].mxu0
      %v412 = vpop.f32.mrb[0].mxu0
      %v413 = vadd.f32 0.0, %v412
      %v414 = vpop.f32.mrb[0].mxu0
      %415 = vmatprep.mubr.bf16.mxu0 0
      %416 = vmatmul.mubr.bf16.gmra.mrb[0].mxu0 %v373
      %v417 = vpop.f32.mrb[0].mxu0
      %v418 = vadd.f32 0.0, %v417
      %v419 = vpop.f32.mrb[0].mxu0
      %v420 = vpop.f32.mrb[0].mxu0
      %v421 = vpop.f32.mrb[0].mxu0
      %422 = vdwg.mxu0
      %v423 = vadd.f32 %v331, %v410
      %v424 = vadd.f32 %v334, %v413
      %v425 = vadd.f32 %v339, %v418
      %v426 = vld [vmem:[%s165] sm:$0x8]
      %v427 = vld [vmem:[%s165 + $0xc] sm:$0x7]
      %s428 = scalar_lea.vmem %s1, 48
      %v429 = vld [vmem:[%s428] sm:$0xf]
      %v430 = vld [vmem:[%s428 + $0x4] sm:$0xf]
      %v431 = vld [vmem:[%s428 + $0x8] sm:$0xf]
      %v432 = vld [vmem:[%s428 + $0xc] sm:$0xf]
      %v435 = vunpack.c.l.b16 %v426
      %v436 = vunpack.c.l.b16 %v427
      %v437 = vpack.c.b16 %v190, %v435
      %v438 = vpack.c.b16 %v436, %v191
      %vm439 = vcmask 1044480
      %v440 = vrot.slane %v437, 3
      %v441 = vrot.slane %v438, 3
      %v442 = vsel %vm439, %v440, %v441
      %v447 = vunpack.c.l.b16 %v429
      %v448 = vunpack.c.l.b16 %v430
      %v449 = vunpack.c.l.b16 %v431
      %v450 = vunpack.c.l.b16 %v432
      %v451 = vpack.c.b16 %v448, %v447
      %v452 = vpack.c.b16 %v450, %v449
      %v456 = vsel %vm223, %v442, 0
      %v459 = vsel %vm223, %v441, 0
      %461 = vmatprep.subr.bf16.mxu0 0
      %462 = vmatpush1.bf16.msra.mxu0 %v451
      %463 = vmatprep.subr.bf16.mxu0 0
      %464 = vmatpush1.bf16.msra.mxu0 %v452
      %465 = vmatprep.subr.bf16.mxu0 0
      %466 = vmatpush1.bf16.msra.mxu0 0
      %467 = vmatprep.subr.bf16.mxu0 0
      %468 = vmatpush1.bf16.msra.mxu0 0
      %469 = vmatprep.subr.bf16.mxu0 0
      %470 = vmatpush1.bf16.msra.mxu0 0
      %471 = vmatprep.subr.bf16.mxu0 0
      %472 = vmatpush1.bf16.msra.mxu0 0
      %473 = vmatprep.subr.bf16.mxu0 0
      %474 = vmatpush1.bf16.msra.mxu0 0
      %475 = vmatprep.subr.bf16.mxu0 0
      %476 = vmatpush1.bf16.msra.mxu0 0
      %477 = vmatprep.subr.bf16.mxu0 0
      %478 = vmatpush1.bf16.msra.mxu0 0
      %479 = vmatprep.subr.bf16.mxu0 0
      %480 = vmatpush1.bf16.msra.mxu0 0
      %481 = vmatprep.subr.bf16.mxu0 0
      %482 = vmatpush1.bf16.msra.mxu0 0
      %483 = vmatprep.subr.bf16.mxu0 0
      %484 = vmatpush1.bf16.msra.mxu0 0
      %485 = vmatprep.subr.bf16.mxu0 0
      %486 = vmatpush1.bf16.msra.mxu0 0
      %487 = vmatprep.subr.bf16.mxu0 0
      %488 = vmatpush1.bf16.msra.mxu0 0
      %489 = vmatprep.subr.bf16.mxu0 0
      %490 = vmatpush1.bf16.msra.mxu0 0
      %491 = vmatprep.subr.bf16.mxu0 0
      %492 = vmatpush1.bf16.msra.mxu0 0
      %493 = vmatprep.mubr.bf16.mxu0 0
      %494 = vmatmul.mubr.bf16.gmra.mrb[0].mxu0 %v456
      %v495 = vpop.f32.mrb[0].mxu0
      %v496 = vadd.f32 0.0, %v495
      %v497 = vpop.f32.mrb[0].mxu0
      %v498 = vpop.f32.mrb[0].mxu0
      %v499 = vadd.f32 0.0, %v498
      %v500 = vpop.f32.mrb[0].mxu0
      %501 = vmatprep.mubr.bf16.mxu0 0
      %502 = vmatmul.mubr.bf16.gmra.mrb[0].mxu0 %v459
      %v503 = vpop.f32.mrb[0].mxu0
      %v504 = vadd.f32 0.0, %v503
      %v505 = vpop.f32.mrb[0].mxu0
      %v506 = vpop.f32.mrb[0].mxu0
      %v507 = vpop.f32.mrb[0].mxu0
      %508 = vdwg.mxu0
      %v509 = vadd.f32 %v423, %v496
      %v510 = vadd.f32 %v424, %v499
      %v511 = vadd.f32 %v425, %v504
      %v512 = vld [vmem:[%s165 + $0xc] sm:$0xf]
      %s513 = scalar_lea.vmem %s1, 64
      %v514 = vld [vmem:[%s513] sm:$0xf]
      %v515 = vld [vmem:[%s513 + $0x4] sm:$0xf]
      %v516 = vld [vmem:[%s513 + $0x8] sm:$0xf]
      %v517 = vld [vmem:[%s513 + $0xc] sm:$0xf]
      %v519 = vunpack.c.l.b16 %v512
      %v520 = vpack.c.b16 %v519, %v191
      %vm521 = vsmask.f32 4352
      %v523 = vshrl.u32 %v437, 16
      %v525 = vrot.slane %v523, 3
      %v526 = vshll.u32 %v437, 16
      %v528 = vrot.slane %v526, 4
      %v529 = vor.u32 %v525, %v528
      %v531 = vshrl.u32 %v520, 16
      %v533 = vrot.slane %v531, 3
      %v534 = vshll.u32 %v520, 16
      %v536 = vrot.slane %v534, 4
      %v537 = vor.u32 %v533, %v536
      %v538 = vsel %vm521, %v529, %v537
      %v543 = vunpack.c.l.b16 %v514
      %v544 = vunpack.c.l.b16 %v515
      %v545 = vunpack.c.l.b16 %v516
      %v546 = vunpack.c.l.b16 %v517
      %v547 = vpack.c.b16 %v544, %v543
      %v548 = vpack.c.b16 %v546, %v545
      %v552 = vsel %vm223, %v538, 0
      %v555 = vsel %vm223, %v537, 0
      %557 = vmatprep.subr.bf16.mxu0 0
      %558 = vmatpush1.bf16.msra.mxu0 %v547
      %559 = vmatprep.subr.bf16.mxu0 0
      %560 = vmatpush1.bf16.msra.mxu0 %v548
      %561 = vmatprep.subr.bf16.mxu0 0
      %562 = vmatpush1.bf16.msra.mxu0 0
      %563 = vmatprep.subr.bf16.mxu0 0
      %564 = vmatpush1.bf16.msra.mxu0 0
      %565 = vmatprep.subr.bf16.mxu0 0
      %566 = vmatpush1.bf16.msra.mxu0 0
      %567 = vmatprep.subr.bf16.mxu0 0
      %568 = vmatpush1.bf16.msra.mxu0 0
      %569 = vmatprep.subr.bf16.mxu0 0
      %570 = vmatpush1.bf16.msra.mxu0 0
      %571 = vmatprep.subr.bf16.mxu0 0
      %572 = vmatpush1.bf16.msra.mxu0 0
      %573 = vmatprep.subr.bf16.mxu0 0
      %574 = vmatpush1.bf16.msra.mxu0 0
      %575 = vmatprep.subr.bf16.mxu0 0
      %576 = vmatpush1.bf16.msra.mxu0 0
      %577 = vmatprep.subr.bf16.mxu0 0
      %578 = vmatpush1.bf16.msra.mxu0 0
      %579 = vmatprep.subr.bf16.mxu0 0
      %580 = vmatpush1.bf16.msra.mxu0 0
      %581 = vmatprep.subr.bf16.mxu0 0
      %582 = vmatpush1.bf16.msra.mxu0 0
      %583 = vmatprep.subr.bf16.mxu0 0
      %584 = vmatpush1.bf16.msra.mxu0 0
      %585 = vmatprep.subr.bf16.mxu0 0
      %586 = vmatpush1.bf16.msra.mxu0 0
      %587 = vmatprep.subr.bf16.mxu0 0
      %588 = vmatpush1.bf16.msra.mxu0 0
      %589 = vmatprep.mubr.bf16.mxu0 0
      %590 = vmatmul.mubr.bf16.gmra.mrb[0].mxu0 %v552
      %v591 = vpop.f32.mrb[0].mxu0
      %v592 = vadd.f32 0.0, %v591
      %v593 = vpop.f32.mrb[0].mxu0
      %v594 = vpop.f32.mrb[0].mxu0
      %v595 = vadd.f32 0.0, %v594
      %v596 = vpop.f32.mrb[0].mxu0
      %597 = vmatprep.mubr.bf16.mxu0 0
      %598 = vmatmul.mubr.bf16.gmra.mrb[0].mxu0 %v555
      %v599 = vpop.f32.mrb[0].mxu0
      %v600 = vadd.f32 0.0, %v599
      %v601 = vpop.f32.mrb[0].mxu0
      %v602 = vpop.f32.mrb[0].mxu0
      %v603 = vpop.f32.mrb[0].mxu0
      %604 = vdwg.mxu0
      %v605 = vadd.f32 %v509, %v592
      %v606 = vadd.f32 %v510, %v595
      %v607 = vadd.f32 %v511, %v600
      %s608 = scalar_lea.vmem %s1, 80
      %v609 = vld [vmem:[%s608] sm:$0xf]
      %v610 = vld [vmem:[%s608 + $0x4] sm:$0xf]
      %v611 = vld [vmem:[%s608 + $0x8] sm:$0xf]
      %v612 = vld [vmem:[%s608 + $0xc] sm:$0xf]
      %v613 = vpack.c.b16 %v191, %v190
      %v614 = vpack.c.b16 %v519, %v519
      %v619 = vunpack.c.l.b16 %v609
      %v620 = vunpack.c.l.b16 %v610
      %v621 = vunpack.c.l.b16 %v611
      %v622 = vunpack.c.l.b16 %v612
      %v623 = vpack.c.b16 %v620, %v619
      %v624 = vpack.c.b16 %v622, %v621
      %v628 = vsel %vm223, %v613, 0
      %v631 = vsel %vm223, %v614, 0
      %633 = vmatprep.subr.bf16.mxu0 0
      %634 = vmatpush1.bf16.msra.mxu0 %v623
      %635 = vmatprep.subr.bf16.mxu0 0
      %636 = vmatpush1.bf16.msra.mxu0 %v624
      %637 = vmatprep.subr.bf16.mxu0 0
      %638 = vmatpush1.bf16.msra.mxu0 0
      %639 = vmatprep.subr.bf16.mxu0 0
      %640 = vmatpush1.bf16.msra.mxu0 0
      %641 = vmatprep.subr.bf16.mxu0 0
      %642 = vmatpush1.bf16.msra.mxu0 0
      %643 = vmatprep.subr.bf16.mxu0 0
      %644 = vmatpush1.bf16.msra.mxu0 0
      %645 = vmatprep.subr.bf16.mxu0 0
      %646 = vmatpush1.bf16.msra.mxu0 0
      %647 = vmatprep.subr.bf16.mxu0 0
      %648 = vmatpush1.bf16.msra.mxu0 0
      %649 = vmatprep.subr.bf16.mxu0 0
      %650 = vmatpush1.bf16.msra.mxu0 0
      %651 = vmatprep.subr.bf16.mxu0 0
      %652 = vmatpush1.bf16.msra.mxu0 0
      %653 = vmatprep.subr.bf16.mxu0 0
      %654 = vmatpush1.bf16.msra.mxu0 0
      %655 = vmatprep.subr.bf16.mxu0 0
      %656 = vmatpush1.bf16.msra.mxu0 0
      %657 = vmatprep.subr.bf16.mxu0 0
      %658 = vmatpush1.bf16.msra.mxu0 0
      %659 = vmatprep.subr.bf16.mxu0 0
      %660 = vmatpush1.bf16.msra.mxu0 0
      %661 = vmatprep.subr.bf16.mxu0 0
      %662 = vmatpush1.bf16.msra.mxu0 0
      %663 = vmatprep.subr.bf16.mxu0 0
      %664 = vmatpush1.bf16.msra.mxu0 0
      %665 = vmatprep.mubr.bf16.mxu0 0
      %666 = vmatmul.mubr.bf16.gmra.mrb[0].mxu0 %v628
      %v667 = vpop.f32.mrb[0].mxu0
      %v668 = vadd.f32 0.0, %v667
      %v669 = vpop.f32.mrb[0].mxu0
      %v670 = vpop.f32.mrb[0].mxu0
      %v671 = vadd.f32 0.0, %v670
      %v672 = vpop.f32.mrb[0].mxu0
      %673 = vmatprep.mubr.bf16.mxu0 0
      %674 = vmatmul.mubr.bf16.gmra.mrb[0].mxu0 %v631
      %v675 = vpop.f32.mrb[0].mxu0
      %v676 = vadd.f32 0.0, %v675
      %v677 = vpop.f32.mrb[0].mxu0
      %v678 = vpop.f32.mrb[0].mxu0
      %v679 = vpop.f32.mrb[0].mxu0
      %680 = vdwg.mxu0
      %v681 = vadd.f32 %v605, %v668
      %v682 = vadd.f32 %v606, %v671
      %v683 = vadd.f32 %v607, %v676
      %v684 = vld [vmem:[%s165 + $0x4] sm:$0xc]
      %v685 = vld [vmem:[%s165 + $0x8] sm:$0xf]
      %v686 = vld [vmem:[%s165 + $0xc] sm:$0xf]
      %v687 = vld [vmem:[%s165 + $0x10] sm:$0x3]
      %s688 = scalar_lea.vmem %s1, 96
      %v689 = vld [vmem:[%s688] sm:$0xf]
      %v690 = vld [vmem:[%s688 + $0x4] sm:$0xf]
      %v691 = vld [vmem:[%s688 + $0x8] sm:$0xf]
      %v692 = vld [vmem:[%s688 + $0xc] sm:$0xf]
      %v697 = vunpack.c.l.b16 %v684
      %v698 = vunpack.c.l.b16 %v685
      %v699 = vunpack.c.l.b16 %v686
      %v700 = vunpack.c.l.b16 %v687
      %v701 = vpack.c.b16 %v698, %v697
      %v702 = vpack.c.b16 %v700, %v699
      %vm703 = vcmask 1045504
      %v704 = vrot.slane %v701, 2
      %v705 = vrot.slane %v702, 2
      %v706 = vsel %vm703, %v704, %v705
      %v711 = vunpack.c.l.b16 %v689
      %v712 = vunpack.c.l.b16 %v690
      %v713 = vunpack.c.l.b16 %v691
      %v714 = vunpack.c.l.b16 %v692
      %v715 = vpack.c.b16 %v712, %v711
      %v716 = vpack.c.b16 %v714, %v713
      %v720 = vsel %vm223, %v706, 0
      %v723 = vsel %vm223, %v705, 0
      %725 = vmatprep.subr.bf16.mxu0 0
      %726 = vmatpush1.bf16.msra.mxu0 %v715
      %727 = vmatprep.subr.bf16.mxu0 0
      %728 = vmatpush1.bf16.msra.mxu0 %v716
      %729 = vmatprep.subr.bf16.mxu0 0
      %730 = vmatpush1.bf16.msra.mxu0 0
      %731 = vmatprep.subr.bf16.mxu0 0
      %732 = vmatpush1.bf16.msra.mxu0 0
      %733 = vmatprep.subr.bf16.mxu0 0
      %734 = vmatpush1.bf16.msra.mxu0 0
      %735 = vmatprep.subr.bf16.mxu0 0
      %736 = vmatpush1.bf16.msra.mxu0 0
      %737 = vmatprep.subr.bf16.mxu0 0
      %738 = vmatpush1.bf16.msra.mxu0 0
      %739 = vmatprep.subr.bf16.mxu0 0
      %740 = vmatpush1.bf16.msra.mxu0 0
      %741 = vmatprep.subr.bf16.mxu0 0
      %742 = vmatpush1.bf16.msra.mxu0 0
      %743 = vmatprep.subr.bf16.mxu0 0
      %744 = vmatpush1.bf16.msra.mxu0 0
      %745 = vmatprep.subr.bf16.mxu0 0
      %746 = vmatpush1.bf16.msra.mxu0 0
      %747 = vmatprep.subr.bf16.mxu0 0
      %748 = vmatpush1.bf16.msra.mxu0 0
      %749 = vmatprep.subr.bf16.mxu0 0
      %750 = vmatpush1.bf16.msra.mxu0 0
      %751 = vmatprep.subr.bf16.mxu0 0
      %752 = vmatpush1.bf16.msra.mxu0 0
      %753 = vmatprep.subr.bf16.mxu0 0
      %754 = vmatpush1.bf16.msra.mxu0 0
      %755 = vmatprep.subr.bf16.mxu0 0
      %756 = vmatpush1.bf16.msra.mxu0 0
      %757 = vmatprep.mubr.bf16.mxu0 0
      %758 = vmatmul.mubr.bf16.gmra.mrb[0].mxu0 %v720
      %v759 = vpop.f32.mrb[0].mxu0
      %v760 = vadd.f32 0.0, %v759
      %v761 = vpop.f32.mrb[0].mxu0
      %v762 = vpop.f32.mrb[0].mxu0
      %v763 = vadd.f32 0.0, %v762
      %v764 = vpop.f32.mrb[0].mxu0
      %765 = vmatprep.mubr.bf16.mxu0 0
      %766 = vmatmul.mubr.bf16.gmra.mrb[0].mxu0 %v723
      %v767 = vpop.f32.mrb[0].mxu0
      %v768 = vadd.f32 0.0, %v767
      %v769 = vpop.f32.mrb[0].mxu0
      %v770 = vpop.f32.mrb[0].mxu0
      %v771 = vpop.f32.mrb[0].mxu0
      %772 = vdwg.mxu0
      %v773 = vadd.f32 %v681, %v760
      %v774 = vadd.f32 %v682, %v763
      %v775 = vadd.f32 %v683, %v768
      %v776 = vld [vmem:[%s165 + $0x10] sm:$0x7]
      %s777 = scalar_lea.vmem %s1, 112
      %v778 = vld [vmem:[%s777] sm:$0xf]
      %v779 = vld [vmem:[%s777 + $0x4] sm:$0xf]
      %v780 = vld [vmem:[%s777 + $0x8] sm:$0xf]
      %v781 = vld [vmem:[%s777 + $0xc] sm:$0xf]
      %v783 = vunpack.c.l.b16 %v776
      %v784 = vpack.c.b16 %v783, %v699
      %vm785 = vsmask.f32 5376
      %v787 = vshrl.u32 %v701, 16
      %v789 = vrot.slane %v787, 2
      %v790 = vshll.u32 %v701, 16
      %v792 = vrot.slane %v790, 3
      %v793 = vor.u32 %v789, %v792
      %v795 = vshrl.u32 %v784, 16
      %v797 = vrot.slane %v795, 2
      %v798 = vshll.u32 %v784, 16
      %v800 = vrot.slane %v798, 3
      %v801 = vor.u32 %v797, %v800
      %v802 = vsel %vm785, %v793, %v801
      %v807 = vunpack.c.l.b16 %v778
      %v808 = vunpack.c.l.b16 %v779
      %v809 = vunpack.c.l.b16 %v780
      %v810 = vunpack.c.l.b16 %v781
      %v811 = vpack.c.b16 %v808, %v807
      %v812 = vpack.c.b16 %v810, %v809
      %v816 = vsel %vm223, %v802, 0
      %v819 = vsel %vm223, %v801, 0
      %821 = vmatprep.subr.bf16.mxu0 0
      %822 = vmatpush1.bf16.msra.mxu0 %v811
      %823 = vmatprep.subr.bf16.mxu0 0
      %824 = vmatpush1.bf16.msra.mxu0 %v812
      %825 = vmatprep.subr.bf16.mxu0 0
      %826 = vmatpush1.bf16.msra.mxu0 0
      %827 = vmatprep.subr.bf16.mxu0 0
      %828 = vmatpush1.bf16.msra.mxu0 0
      %829 = vmatprep.subr.bf16.mxu0 0
      %830 = vmatpush1.bf16.msra.mxu0 0
      %831 = vmatprep.subr.bf16.mxu0 0
      %832 = vmatpush1.bf16.msra.mxu0 0
      %833 = vmatprep.subr.bf16.mxu0 0
      %834 = vmatpush1.bf16.msra.mxu0 0
      %835 = vmatprep.subr.bf16.mxu0 0
      %836 = vmatpush1.bf16.msra.mxu0 0
      %837 = vmatprep.subr.bf16.mxu0 0
      %838 = vmatpush1.bf16.msra.mxu0 0
      %839 = vmatprep.subr.bf16.mxu0 0
      %840 = vmatpush1.bf16.msra.mxu0 0
      %841 = vmatprep.subr.bf16.mxu0 0
      %842 = vmatpush1.bf16.msra.mxu0 0
      %843 = vmatprep.subr.bf16.mxu0 0
      %844 = vmatpush1.bf16.msra.mxu0 0
      %845 = vmatprep.subr.bf16.mxu0 0
      %846 = vmatpush1.bf16.msra.mxu0 0
      %847 = vmatprep.subr.bf16.mxu0 0
      %848 = vmatpush1.bf16.msra.mxu0 0
      %849 = vmatprep.subr.bf16.mxu0 0
      %850 = vmatpush1.bf16.msra.mxu0 0
      %851 = vmatprep.subr.bf16.mxu0 0
      %852 = vmatpush1.bf16.msra.mxu0 0
      %853 = vmatprep.mubr.bf16.mxu0 0
      %854 = vmatmul.mubr.bf16.gmra.mrb[0].mxu0 %v816
      %v855 = vpop.f32.mrb[0].mxu0
      %v856 = vadd.f32 0.0, %v855
      %v857 = vpop.f32.mrb[0].mxu0
      %v858 = vpop.f32.mrb[0].mxu0
      %v859 = vadd.f32 0.0, %v858
      %v860 = vpop.f32.mrb[0].mxu0
      %861 = vmatprep.mubr.bf16.mxu0 0
      %862 = vmatmul.mubr.bf16.gmra.mrb[0].mxu0 %v819
      %v863 = vpop.f32.mrb[0].mxu0
      %v864 = vadd.f32 0.0, %v863
      %v865 = vpop.f32.mrb[0].mxu0
      %v866 = vpop.f32.mrb[0].mxu0
      %v867 = vpop.f32.mrb[0].mxu0
      %868 = vdwg.mxu0
      %v869 = vadd.f32 %v773, %v856
      %v870 = vadd.f32 %v774, %v859
      %v871 = vadd.f32 %v775, %v864
      %v872 = vld [vmem:[%s165 + $0x4] sm:$0x8]
      %s873 = scalar_lea.vmem %s1, 128
      %v874 = vld [vmem:[%s873] sm:$0xf]
      %v875 = vld [vmem:[%s873 + $0x4] sm:$0xf]
      %v876 = vld [vmem:[%s873 + $0x8] sm:$0xf]
      %v877 = vld [vmem:[%s873 + $0xc] sm:$0xf]
      %v879 = vunpack.c.l.b16 %v872
      %v880 = vpack.c.b16 %v698, %v879
      %v881 = vrot.slane %v880, 3
      %v882 = vrot.slane %v784, 3
      %v883 = vsel %vm439, %v881, %v882
      %v888 = vunpack.c.l.b16 %v874
      %v889 = vunpack.c.l.b16 %v875
      %v890 = vunpack.c.l.b16 %v876
      %v891 = vunpack.c.l.b16 %v877
      %v892 = vpack.c.b16 %v889, %v888
      %v893 = vpack.c.b16 %v891, %v890
      %v897 = vsel %vm223, %v883, 0
      %v900 = vsel %vm223, %v882, 0
      %902 = vmatprep.subr.bf16.mxu0 0
      %903 = vmatpush1.bf16.msra.mxu0 %v892
      %904 = vmatprep.subr.bf16.mxu0 0
      %905 = vmatpush1.bf16.msra.mxu0 %v893
      %906 = vmatprep.subr.bf16.mxu0 0
      %907 = vmatpush1.bf16.msra.mxu0 0
      %908 = vmatprep.subr.bf16.mxu0 0
      %909 = vmatpush1.bf16.msra.mxu0 0
      %910 = vmatprep.subr.bf16.mxu0 0
      %911 = vmatpush1.bf16.msra.mxu0 0
      %912 = vmatprep.subr.bf16.mxu0 0
      %913 = vmatpush1.bf16.msra.mxu0 0
      %914 = vmatprep.subr.bf16.mxu0 0
      %915 = vmatpush1.bf16.msra.mxu0 0
      %916 = vmatprep.subr.bf16.mxu0 0
      %917 = vmatpush1.bf16.msra.mxu0 0
      %918 = vmatprep.subr.bf16.mxu0 0
      %919 = vmatpush1.bf16.msra.mxu0 0
      %920 = vmatprep.subr.bf16.mxu0 0
      %921 = vmatpush1.bf16.msra.mxu0 0
      %922 = vmatprep.subr.bf16.mxu0 0
      %923 = vmatpush1.bf16.msra.mxu0 0
      %924 = vmatprep.subr.bf16.mxu0 0
      %925 = vmatpush1.bf16.msra.mxu0 0
      %926 = vmatprep.subr.bf16.mxu0 0
      %927 = vmatpush1.bf16.msra.mxu0 0
      %928 = vmatprep.subr.bf16.mxu0 0
      %929 = vmatpush1.bf16.msra.mxu0 0
      %930 = vmatprep.subr.bf16.mxu0 0
      %931 = vmatpush1.bf16.msra.mxu0 0
      %932 = vmatprep.subr.bf16.mxu0 0
      %933 = vmatpush1.bf16.msra.mxu0 0
      %934 = vmatprep.mubr.bf16.mxu0 0
      %935 = vmatmul.mubr.bf16.gmra.mrb[0].mxu0 %v897
      %v936 = vpop.f32.mrb[0].mxu0
      %v937 = vadd.f32 0.0, %v936
      %v938 = vpop.f32.mrb[0].mxu0
      %v939 = vpop.f32.mrb[0].mxu0
      %v940 = vadd.f32 0.0, %v939
      %v941 = vpop.f32.mrb[0].mxu0
      %942 = vmatprep.mubr.bf16.mxu0 0
      %943 = vmatmul.mubr.bf16.gmra.mrb[0].mxu0 %v900
      %v944 = vpop.f32.mrb[0].mxu0
      %v945 = vadd.f32 0.0, %v944
      %v946 = vpop.f32.mrb[0].mxu0
      %v947 = vpop.f32.mrb[0].mxu0
      %v948 = vpop.f32.mrb[0].mxu0
      %949 = vdwg.mxu0
      %v950 = vadd.f32 %v869, %v937
      %v951 = vadd.f32 %v870, %v940
      %v952 = vadd.f32 %v871, %v945
      %v953 = vld [vmem:[%s2] sm:$0x1]
      %v955 = vlaneseq
      %v956 = vshrl.u32 %v955, 7
      %v957 = vsub.s32 0, %v956
      %v958 = vrot.slane %v953, %v957
      %v960 = vadd.f32 %v950, %v958
      %v961 = vadd.f32 %v951, %v958
      %v962 = vadd.f32 %v952, %v958
      %v966 = vcombine.high %v960, %v960
      %v968 = vunpack.c.l.s4 1983009808
      %v969 = vunpack.c.0.s8 %v968
      %v970 = vlaneseq
      %v971 = vshrl.u32 %v970, 7
      %v972 = vsub.s32 %v969, %v971
      %v973 = vrot.slane %v960, %v972
      %v975 = vunpack.c.l.s4 1983009808
      %v976 = vunpack.c.0.s8 %v975
      %v977 = vlaneseq
      %v978 = vshrl.u32 %v977, 7
      %v979 = vsub.s32 %v976, %v978
      %v980 = vrot.slane %v966, %v979
      %v981 = vcombine.high %v973, %v973
      %v982 = vcombine.high %v980, %v980
      %v983 = vcombine.high %v961, %v961
      %v985 = vunpack.c.l.s4 1983009808
      %v986 = vunpack.c.0.s8 %v985
      %v987 = vlaneseq
      %v988 = vshrl.u32 %v987, 7
      %v989 = vsub.s32 %v986, %v988
      %v990 = vrot.slane %v961, %v989
      %v992 = vunpack.c.l.s4 1983009808
      %v993 = vunpack.c.0.s8 %v992
      %v994 = vlaneseq
      %v995 = vshrl.u32 %v994, 7
      %v996 = vsub.s32 %v993, %v995
      %v997 = vrot.slane %v983, %v996
      %v998 = vcombine.high %v997, %v997
      %v999 = vcombine.high %v962, %v962
      %v1001 = vunpack.c.l.s4 1983009808
      %v1002 = vunpack.c.0.s8 %v1001
      %v1003 = vlaneseq
      %v1004 = vshrl.u32 %v1003, 7
      %v1005 = vsub.s32 %v1002, %v1004
      %v1006 = vrot.slane %v962, %v1005
      %v1008 = vunpack.c.l.s4 1983009808
      %v1009 = vunpack.c.0.s8 %v1008
      %v1010 = vlaneseq
      %v1011 = vshrl.u32 %v1010, 7
      %v1012 = vsub.s32 %v1009, %v1011
      %v1013 = vrot.slane %v999, %v1012
      %v1014 = vcombine.high %v1006, %v1006
      %v1015 = vcombine.low %v973, %v981
      %v1017 = vunpack.c.l.s4 1983009808
      %v1018 = vunpack.c.0.s8 %v1017
      %v1019 = vlaneseq
      %v1020 = vshrl.u32 %v1019, 7
      %v1021 = vsub.s32 %v1018, %v1020
      %v1022 = vrot.slane %v1015, %v1021
      %v1023 = vcombine.low %v982, %v990
      %v1025 = vunpack.c.l.s4 1983009808
      %v1026 = vunpack.c.0.s8 %v1025
      %v1027 = vlaneseq
      %v1028 = vshrl.u32 %v1027, 7
      %v1029 = vsub.s32 %v1026, %v1028
      %v1030 = vrot.slane %v1023, %v1029
      %v1031 = vcombine.low %v997, %v998
      %v1033 = vunpack.c.l.s4 1983009808
      %v1034 = vunpack.c.0.s8 %v1033
      %v1035 = vlaneseq
      %v1036 = vshrl.u32 %v1035, 7
      %v1037 = vsub.s32 %v1034, %v1036
      %v1038 = vrot.slane %v1031, %v1037
      %v1039 = vcombine.low %v1014, %v1013
      %v1041 = vunpack.c.l.s4 1983009808
      %v1042 = vunpack.c.0.s8 %v1041
      %v1043 = vlaneseq
      %v1044 = vshrl.u32 %v1043, 7
      %v1045 = vsub.s32 %v1042, %v1044
      %v1046 = vrot.slane %v1039, %v1045
      %v1051 = vpack.c.bf16 %v1022, %v1022
      %v1052 = vpack.c.bf16 %v1030, %v1030
      %v1053 = vpack.c.bf16 %v1038, %v1038
      %v1054 = vpack.c.bf16 %v1046, %v1046
      %vm1055 = vcmask 254976
      %1056 = vst.msk [vmem:[%s170] sm:$0x3] %vm1055, %v1051
      %1057 = vst.msk [vmem:[%s170 + $0x2] sm:$0x3] %vm1055, %v1052
      %1058 = vst.msk [vmem:[%s170 + $0x4] sm:$0x3] %vm1055, %v1053
      %1059 = vst.msk [vmem:[%s170 + $0x6] sm:$0x3] %vm1055, %v1054
      %p1060 = scmp.lt.s32.totalorder %s14, 1
      %s1061 = scalar_select %p1060, %s14, 1
      %s1062 = smul.addr %s1061, 4
      %s1063 = smul.addr %s1062, 2
      %s1064 = scalar_lea.vmem %s3, %s1063
      // Predicated region
      $region33: #{encoder_forward.7} parent=31 // pred_check
        %p1065 = pneg %p100
      $region34: #{encoder_forward.7} parent=31 // pred_check_branch
        %1067 = sbr.rel (%p1065) target = $region36
      $region35: #{encoder_forward.7} parent=31 // pred_region
        _
      $region36: #{encoder_forward.7} parent=31 // pred_fallthru
        _
    $region32: #{encoder_forward.7} parent=5 // pred_fallthru
      _
    %p1068 = scmp.le.s32.totalorder 2, %s9
    // Predicated region
    $region37: #{encoder_forward.7} parent=5 // pred_check
      %p1069 = pneg %p1068
    $region38: #{encoder_forward.7} parent=5 // pred_check_branch
      %1071 = sbr.rel (%p1069) target = $region40
    $region39: #{encoder_forward.7} parent=5 // pred_region
      %s1072 = ssub.s32 %s9, 2
      // Predicated region
      $region41: #{encoder_forward.7} parent=39 // pred_check
        %p1073 = pneg %p106
      $region42: #{encoder_forward.7} parent=39 // pred_check_branch
        %1075 = sbr.rel (%p1073) target = $region44
      $region43: #{encoder_forward.7} parent=39 // pred_region
        %p1076 = scmp.lt.s32.totalorder %s15, 1
        %s1077 = scalar_select %p1076, %s15, 1
        %s1078 = smul.addr %s1077, 4
        %s1079 = smul.addr %s1078, 2
        %s1080 = scalar_lea.vmem %s3, %s1079
      $region44: #{encoder_forward.7} parent=39 // pred_fallthru
        _
    $region40: #{encoder_forward.7} parent=5 // pred_fallthru
      _
  $region6: #{encoder_forward.7} parent=0 // loop_footer
    %s13 = sadd.s32 1, %s9
  $region7: #{encoder_forward.7} parent=0 // loop_footer_branch
    %8 = sbr.rel target = $region3
  $region8: #{encoder_forward.7} parent=0 // loop_exit
    _

// kernel: encoder_forward.8
$region0: #{encoder_forward.8}
  #allocation0 [shape = 'u32[]', space=smem, size = 0x4, offset = 0x4, fixed_abs, tag = 'smem constant byte address 0x4 - core index']
  #allocation1 [shape = 'u32[144,128]{1,0:T(1,128)}', space=vmem, size = 0x12000, scoped, tag = 'internal scratch']
  #allocation2 [shape = 'bf16[40,32]{1,0:T(8,128)(2,1)}', space=vmem, size = 0x2800, scoped, tag = 'scratch operand']
  %s0 = inlined_call_operand.vmem [shape: bf16[2,4,4,32], index: 0, kind: input, shape index: {}]
  %s1 = inlined_call_operand.vmem [shape: bf16[9,32,8], index: 1, kind: input, shape index: {}]
  %s2 = inlined_call_operand.vmem [shape: f32[1,8], index: 2, kind: input, shape index: {}]
  %s3 = inlined_call_operand.vmem [shape: bf16[8,32], index: 3, kind: input, shape index: {}]
  %s4 = inlined_call_operand.vmem [shape: f32[1,32], index: 4, kind: input, shape index: {}]
  %s5 = inlined_call_operand.vmem [shape: bf16[2,4,4,32], index: 5, kind: output, shape index: {}]
  %s6 = sld [smem:[#allocation0]]
  $region53: #{encoder_forward.8} parent=0
    _
  %s8 = ssub.s32 1, %s6
  %s9 = scalar_select 0, %s8, %s6
  loop: start=0, step=1, limit=4
  $region2: #{encoder_forward.8} parent=0 // loop_pre_header
    _
  $region3: #{encoder_forward.8} parent=0 // loop_header
    %s11 = sphi 0, %s15
    %p12 = scmp.ge.s32.totalorder %s11, 4
    %s21 = sphi 0, %s23
    %s24 = sphi 0, %s21
    %s25 = sphi 0, %s24
    %s41 = sphi 0, %s25
    %s45 = sphi 0, %s45
    %s47 = sphi 0, %s45
    %s48 = sphi 0, %s47
    %s62 = sphi 0, %s48
    %s66 = sphi 0, %s66
    %s68 = sphi 0, %s66
    %s69 = sphi 0, %s68
    %s83 = sphi 0, %s69
    %s87 = sphi 0, %s87
    %s89 = sphi 0, %s87
    %s90 = sphi 0, %s89
    %s104 = sphi 0, %s90
    %s108 = sphi 0, %s108
    %s110 = sphi 0, %s108
    %s111 = sphi 0, %s110
    %s125 = sphi 0, %s111
    %s131 = sphi 0, %s133
    %s134 = sphi 0, %s131
    %s135 = sphi 0, %s134
    %s151 = sphi 0, %s135
  $region4: #{encoder_forward.8} parent=0 // loop_header_branch
    %14 = sbr.rel (%p12) target = $region8
  $region5: #{encoder_forward.8} parent=0 // loop_body
    %s16 = ssub.s32 %s11, 1
    %s17 = ssub.s32 %s11, 2
    %s18 = sadd.s32 %s11, 1
    %s19 = ssub.s32 %s11, %s18
    %p20 = scmp.eq.s32.totalorder %s19, 0
    %s22 = sadd.s32 %s21, 1
    %s23 = scalar_select %p20, %s21, %s22
    %p26 = pneg %p20
    %p27 = scmp.eq.s32.totalorder %s11, 1
    %p28 = por %p26, %p27
    %p29 = scmp.ne.s32.totalorder %s21, %s24
    %p30 = scmp.eq.s32.totalorder %s11, 0
    %p31 = por %p29, %p30
    %p32 = scmp.ne.s32.totalorder %s21, %s24
    %p33 = scmp.eq.s32.totalorder %s16, 1
    %p34 = por %p32, %p33
    %p35 = scmp.ne.s32.totalorder %s24, %s25
    %p36 = scmp.eq.s32.totalorder %s16, 0
    %p37 = por %p35, %p36
    %p38 = scmp.ne.s32.totalorder %s24, %s25
    %p39 = scmp.eq.s32.totalorder %s17, 1
    %p40 = por %p38, %p39
    %p42 = scmp.ne.s32.totalorder %s25, %s41
    %p43 = scmp.eq.s32.totalorder %s17, 0
    %p44 = por %p42, %p43
    %s46 = sadd.s32 %s45, 1
    %p49 = scmp.eq.s32.totalorder %s11, 1
    %p50 = scmp.ne.s32.totalorder %s45, %s47
    %p51 = scmp.eq.s32.totalorder %s11, 0
    %p52 = por %p50, %p51
    %p53 = scmp.ne.s32.totalorder %s45, %s47
    %p54 = scmp.eq.s32.totalorder %s16, 1
    %p55 = por %p53, %p54
    %p56 = scmp.ne.s32.totalorder %s47, %s48
    %p57 = scmp.eq.s32.totalorder %s16, 0
    %p58 = por %p56, %p57
    %p59 = scmp.ne.s32.totalorder %s47, %s48
    %p60 = scmp.eq.s32.totalorder %s17, 1
    %p61 = por %p59, %p60
    %p63 = scmp.ne.s32.totalorder %s48, %s62
    %p64 = scmp.eq.s32.totalorder %s17, 0
    %p65 = por %p63, %p64
    %s67 = sadd.s32 %s66, 1
    %p70 = scmp.eq.s32.totalorder %s11, 1
    %p71 = scmp.ne.s32.totalorder %s66, %s68
    %p72 = scmp.eq.s32.totalorder %s11, 0
    %p73 = por %p71, %p72
    %p74 = scmp.ne.s32.totalorder %s66, %s68
    %p75 = scmp.eq.s32.totalorder %s16, 1
    %p76 = por %p74, %p75
    %p77 = scmp.ne.s32.totalorder %s68, %s69
    %p78 = scmp.eq.s32.totalorder %s16, 0
    %p79 = por %p77, %p78
    %p80 = scmp.ne.s32.totalorder %s68, %s69
    %p81 = scmp.eq.s32.totalorder %s17, 1
    %p82 = por %p80, %p81
    %p84 = scmp.ne.s32.totalorder %s69, %s83
    %p85 = scmp.eq.s32.totalorder %s17, 0
    %p86 = por %p84, %p85
    %s88 = sadd.s32 %s87, 1
    %p91 = scmp.eq.s32.totalorder %s11, 1
    %p92 = scmp.ne.s32.totalorder %s87, %s89
    %p93 = scmp.eq.s32.totalorder %s11, 0
    %p94 = por %p92, %p93
    %p95 = scmp.ne.s32.totalorder %s87, %s89
    %p96 = scmp.eq.s32.totalorder %s16, 1
    %p97 = por %p95, %p96
    %p98 = scmp.ne.s32.totalorder %s89, %s90
    %p99 = scmp.eq.s32.totalorder %s16, 0
    %p100 = por %p98, %p99
    %p101 = scmp.ne.s32.totalorder %s89, %s90
    %p102 = scmp.eq.s32.totalorder %s17, 1
    %p103 = por %p101, %p102
    %p105 = scmp.ne.s32.totalorder %s90, %s104
    %p106 = scmp.eq.s32.totalorder %s17, 0
    %p107 = por %p105, %p106
    %s109 = sadd.s32 %s108, 1
    %p112 = scmp.eq.s32.totalorder %s11, 1
    %p113 = scmp.ne.s32.totalorder %s108, %s110
    %p114 = scmp.eq.s32.totalorder %s11, 0
    %p115 = por %p113, %p114
    %p116 = scmp.ne.s32.totalorder %s108, %s110
    %p117 = scmp.eq.s32.totalorder %s16, 1
    %p118 = por %p116, %p117
    %p119 = scmp.ne.s32.totalorder %s110, %s111
    %p120 = scmp.eq.s32.totalorder %s16, 0
    %p121 = por %p119, %p120
    %p122 = scmp.ne.s32.totalorder %s110, %s111
    %p123 = scmp.eq.s32.totalorder %s17, 1
    %p124 = por %p122, %p123
    %p126 = scmp.ne.s32.totalorder %s111, %s125
    %p127 = scmp.eq.s32.totalorder %s17, 0
    %p128 = por %p126, %p127
    %s129 = ssub.s32 %s11, %s18
    %p130 = scmp.eq.s32.totalorder %s129, 0
    %s132 = sadd.s32 %s131, 1
    %s133 = scalar_select %p130, %s131, %s132
    %p136 = pneg %p130
    %p137 = scmp.eq.s32.totalorder %s11, 1
    %p138 = por %p136, %p137
    %p139 = scmp.ne.s32.totalorder %s131, %s134
    %p140 = scmp.eq.s32.totalorder %s11, 0
    %p141 = por %p139, %p140
    %p142 = scmp.ne.s32.totalorder %s131, %s134
    %p143 = scmp.eq.s32.totalorder %s16, 1
    %p144 = por %p142, %p143
    %p145 = scmp.ne.s32.totalorder %s134, %s135
    %p146 = scmp.eq.s32.totalorder %s16, 0
    %p147 = por %p145, %p146
    %p148 = scmp.ne.s32.totalorder %s134, %s135
    %p149 = scmp.eq.s32.totalorder %s17, 1
    %p150 = por %p148, %p149
    %p152 = scmp.ne.s32.totalorder %s135, %s151
    %p153 = scmp.eq.s32.totalorder %s17, 0
    %p154 = por %p152, %p153
    %p155 = scmp.le.s32.totalorder 1, %s11
    %p156 = scmp.lt.s32.totalorder %s11, 3
    %p157 = pnand %p155, %p156
    %p158 = pneg %p157
    // Predicated region
    $region9: #{encoder_forward.8} parent=5 // pred_check
      _
    $region10: #{encoder_forward.8} parent=5 // pred_check_branch
      %160 = sbr.rel (%p157) target = $region12
    $region11: #{encoder_forward.8} parent=5 // pred_region
      %s161 = ssub.s32 %s11, 1
      // Predicated region
      $region13: #{encoder_forward.8} parent=11 // pred_check
        %p162 = pneg %p58
      $region14: #{encoder_forward.8} parent=11 // pred_check_branch
        %164 = sbr.rel (%p162) target = $region16
      $region15: #{encoder_forward.8} parent=11 // pred_region
        _
      $region16: #{encoder_forward.8} parent=11 // pred_fallthru
        _
      // Predicated region
      $region17: #{encoder_forward.8} parent=11 // pred_check
        %p165 = pneg %p79
      $region18: #{encoder_forward.8} parent=11 // pred_check_branch
        %167 = sbr.rel (%p165) target = $region20
      $region19: #{encoder_forward.8} parent=11 // pred_region
        _
      $region20: #{encoder_forward.8} parent=11 // pred_fallthru
        _
      // Predicated region
      $region21: #{encoder_forward.8} parent=11 // pred_check
        %p168 = pneg %p100
      $region22: #{encoder_forward.8} parent=11 // pred_check_branch
        %170 = sbr.rel (%p168) target = $region24
      $region23: #{encoder_forward.8} parent=11 // pred_region
        _
      $region24: #{encoder_forward.8} parent=11 // pred_fallthru
        _
      // Predicated region
      $region25: #{encoder_forward.8} parent=11 // pred_check
        %p171 = pneg %p121
      $region26: #{encoder_forward.8} parent=11 // pred_check_branch
        %173 = sbr.rel (%p171) target = $region28
      $region27: #{encoder_forward.8} parent=11 // pred_region
        _
      $region28: #{encoder_forward.8} parent=11 // pred_fallthru
        _
    $region12: #{encoder_forward.8} parent=5 // pred_fallthru
      _
    %p174 = scmp.lt.s32.totalorder %s11, 2
    // Predicated region
    $region29: #{encoder_forward.8} parent=5 // pred_check
      %p175 = pneg %p174
    $region30: #{encoder_forward.8} parent=5 // pred_check_branch
      %177 = sbr.rel (%p175) target = $region32
    $region31: #{encoder_forward.8} parent=5 // pred_region
      // Predicated region
      $region33: #{encoder_forward.8} parent=31 // pred_check
        %p178 = pneg %p31
      $region34: #{encoder_forward.8} parent=31 // pred_check_branch
        %180 = sbr.rel (%p178) target = $region36
      $region35: #{encoder_forward.8} parent=31 // pred_region
        %p181 = scmp.lt.s32.totalorder %s11, 1
        %s182 = scalar_select %p181, %s11, 1
        %s183 = smul.addr %s182, 4
        %s184 = smul.addr %s183, 2
        %s185 = scalar_lea.vmem %s0, %s184
      $region36: #{encoder_forward.8} parent=31 // pred_fallthru
        _
    $region32: #{encoder_forward.8} parent=5 // pred_fallthru
      _
    %p186 = scmp.le.s32.totalorder 1, %s11
    %p187 = scmp.lt.s32.totalorder %s11, 3
    %p188 = pnand %p186, %p187
    %p189 = pneg %p188
    // Predicated region
    $region37: #{encoder_forward.8} parent=5 // pred_check
      _
    $region38: #{encoder_forward.8} parent=5 // pred_check_branch
      %191 = sbr.rel (%p188) target = $region40
    $region39: #{encoder_forward.8} parent=5 // pred_region
      %s192 = ssub.s32 %s11, 1
      %p193 = scmp.lt.s32.totalorder %s16, 1
      %s194 = scalar_select %p193, %s16, 1
      %s195 = smul.addr %s194, 4
      %s196 = smul.addr %s195, 2
      %s197 = scalar_lea.vmem %s0, %s196
      %p198 = pneg %p37
      %p199 = pneg %p34
      %p200 = pneg %p58
      %p201 = pneg %p55
      %p202 = pneg %p79
      %p203 = pneg %p76
      %p204 = pneg %p100
      %p205 = pneg %p97
      %p206 = pneg %p121
      %p207 = pneg %p118
      %p208 = pneg %p147
      %p209 = pneg %p144
      %p210 = scmp.lt.s32.totalorder %s16, 1
      %s211 = scalar_select %p210, %s16, 1
      %s212 = smul.addr %s211, 4
      %s213 = smul.addr %s212, 2
      %s214 = scalar_lea.vmem %s5, %s213
      %p215 = scmp.lt.s32.totalorder %s16, 1
      %s216 = scalar_select %p215, %s16, 1
      %s217 = smul.addr %s216, 4
      %s218 = smul.addr %s217, 2
      %s219 = scalar_lea.vmem %s0, %s218
      %p220 = scmp.lt.s32.totalorder %s16, 1
      %s221 = scalar_select %p220, %s16, 1
      %s222 = smul.addr %s221, 4
      %s223 = smul.addr %s222, 2
      %s224 = scalar_lea.vmem %s5, %s223
      %vm226 = vcmask 257024
      %227 = vst.msk [vmem:[#allocation2] sm:$0xf] %vm226, 0
      %228 = vst.msk [vmem:[#allocation2 + $0x4] sm:$0xf] %vm226, 0
      %229 = vst.msk [vmem:[#allocation2 + $0x8] sm:$0xf] %vm226, 0
      %230 = vst.msk [vmem:[#allocation2 + $0xc] sm:$0xf] %vm226, 0
      %231 = vst.msk [vmem:[#allocation2 + $0x10] sm:$0xf] %vm226, 0
      %v232 = vld [vmem:[%s219] sm:$0x3]
      %v233 = vmax.bf16 %v232, 0
      %v236 = vunpack.c.l.s4 1983009808
      %v237 = vunpack.c.0.s8 %v236
      %v238 = vlaneseq
      %v239 = vshrl.u32 %v238, 7
      %v240 = vsub.s32 %v237, %v239
      %v241 = vrot.slane %v233, %v240
      %v243 = vshll.u32 %v241, 16
      %v245 = vrot.slane %v243, 5
      %v246 = vshrl.u32 %v241, 16
      %v248 = vrot.slane %v246, 4
      %v249 = vor.u32 %v248, %v245
      %v250 = vrot.slane %v249, 4
      %vm253 = vcmask 257027
      %vm254 = vsmask.f32 7950
      %vm255 = vmand %vm253, %vm254
      %v256 = vld [vmem:[#allocation2] sm:$0x8]
      %v257 = vsel %vm255, %v245, %v256
      %258 = vst [vmem:[#allocation2] sm:$0x8] %v257
      %vm259 = vcmask 254976
      %vm260 = vsmask.f32 1280
      %vm261 = vmand %vm259, %vm260
      %v262 = vld [vmem:[#allocation2 + $0x4] sm:$0x3]
      %v263 = vsel %vm261, %v250, %v262
      %264 = vst [vmem:[#allocation2 + $0x4] sm:$0x3] %v263
      %s265 = scalar_lea.vmem %s219, 2
      %v266 = vld [vmem:[%s265] sm:$0x3]
      %v267 = vmax.bf16 %v266, 0
      %v270 = vunpack.c.l.s4 1983009808
      %v271 = vunpack.c.0.s8 %v270
      %v272 = vlaneseq
      %v273 = vshrl.u32 %v272, 7
      %v274 = vsub.s32 %v271, %v273
      %v275 = vrot.slane %v267, %v274
      %v277 = vshrl.u32 %v275, 16
      %v279 = vrot.slane %v277, 5
      %v280 = vshll.u32 %v275, 16
      %v282 = vrot.slane %v280, 6
      %v283 = vor.u32 %v279, %v282
      %v284 = vrot.slane %v279, 4
      %vm287 = vcmask 257026
      %vm288 = vsmask.f32 7946
      %vm289 = vmand %vm287, %vm288
      %v290 = vld [vmem:[#allocation2 + $0x4] sm:$0xc]
      %v291 = vsel %vm289, %v283, %v290
      %292 = vst [vmem:[#allocation2 + $0x4] sm:$0xc] %v291
      %vm293 = vcmask 253952
      %vm294 = vsmask.f32 256
      %vm295 = vmand %vm293, %vm294
      %v296 = vld [vmem:[#allocation2 + $0x8] sm:$0x1]
      %v297 = vsel %vm295, %v284, %v296
      %298 = vst [vmem:[#allocation2 + $0x8] sm:$0x1] %v297
      %s299 = scalar_lea.vmem %s219, 4
      %v300 = vld [vmem:[%s299] sm:$0x3]
      %v301 = vmax.bf16 %v300, 0
      %v304 = vunpack.c.l.s4 1983009808
      %v305 = vunpack.c.0.s8 %v304
      %v306 = vlaneseq
      %v307 = vshrl.u32 %v306, 7
      %v308 = vsub.s32 %v305, %v307
      %v309 = vrot.slane %v301, %v308
      %v311 = vshrl.u32 %v309, 16
      %v313 = vrot.slane %v311, 6
      %v314 = vshll.u32 %v309, 16
      %v316 = vrot.slane %v314, 7
      %v317 = vor.u32 %v313, %v316
      %vm319 = vcmask 257025
      %vm320 = vsmask.f32 3334
      %vm321 = vmand %vm319, %vm320
      %v322 = vld [vmem:[#allocation2 + $0x8] sm:$0xe]
      %v323 = vsel %vm321, %v317, %v322
      %324 = vst [vmem:[#allocation2 + $0x8] sm:$0xe] %v323
      %s325 = scalar_lea.vmem %s219, 6
      %v326 = vld [vmem:[%s325] sm:$0x3]
      %v327 = vmax.bf16 %v326, 0
      %v330 = vunpack.c.l.s4 1983009808
      %v331 = vunpack.c.0.s8 %v330
      %v332 = vlaneseq
      %v333 = vshrl.u32 %v332, 7
      %v334 = vsub.s32 %v331, %v333
      %v335 = vrot.slane %v327, %v334
      %v337 = vshrl.u32 %v335, 16
      %v339 = vrot.slane %v337, 7
      %v340 = vshll.u32 %v335, 16
      %v342 = vor.u32 %v339, %v340
      %vm344 = vcmask 256000
      %vm345 = vsmask.f32 2306
      %vm346 = vmand %vm344, %vm345
      %v347 = vld [vmem:[#allocation2 + $0xc] sm:$0x7]
      %v348 = vsel %vm346, %v342, %v347
      %349 = vst [vmem:[#allocation2 + $0xc] sm:$0x7] %v348
      %v350 = vld [vmem:[#allocation2] sm:$0xf]
      %v351 = vld [vmem:[#allocation2 + $0x4] sm:$0xf]
      %v352 = vld [vmem:[#allocation2 + $0x8] sm:$0xf]
      %v353 = vld [vmem:[%s1] sm:$0xf]
      %v354 = vld [vmem:[%s1 + $0x4] sm:$0xf]
      %v355 = vld [vmem:[%s1 + $0x8] sm:$0xf]
      %v356 = vld [vmem:[%s1 + $0xc] sm:$0xf]
      %v357 = vld [vmem:[#allocation2 + $0xc] sm:$0x1]
      %s358 = scalar_lea.vmem %s1, 16
      %v359 = vld [vmem:[%s358] sm:$0xf]
      %v360 = vld [vmem:[%s358 + $0x4] sm:$0xf]
      %v361 = vld [vmem:[%s358 + $0x8] sm:$0xf]
      %v362 = vld [vmem:[%s358 + $0xc] sm:$0xf]
      %v367 = vunpack.c.l.b16 %v350
      %v368 = vunpack.c.l.b16 %v351
      %v369 = vunpack.c.l.b16 %v352
      %v370 = vunpack.c.l.b16 %v357
      %v371 = vpack.c.b16 %v368, %v367
      %v372 = vpack.c.b16 %v370, %v369
      %vm373 = vsmask.f32 7424
      %v375 = vshrl.u32 %v371, 16
      %v377 = vshll.u32 %v371, 16
      %v379 = vrot.slane %v377, 1
      %v380 = vor.u32 %v375, %v379
      %v382 = vshll.u32 %v372, 16
      %v384 = vrot.slane %v382, 1
      %v385 = vsel %vm373, %v380, %v384
      %v386 = vshrl.u32 %v372, 16
      %v388 = vor.u32 %v386, %v384
      %v393 = vunpack.c.l.b16 %v359
      %v394 = vunpack.c.l.b16 %v360
      %v395 = vunpack.c.l.b16 %v361
      %v396 = vunpack.c.l.b16 %v362
      %v397 = vpack.c.b16 %v394, %v393
      %v398 = vpack.c.b16 %v396, %v395
      %vm401 = vcmask 261120
      %v403 = vsel %vm401, %v385, 0
      %v406 = vsel %vm401, %v388, 0
      %408 = vmatprep.subr.bf16.mxu0 0
      %409 = vmatpush1.bf16.msra.mxu0 %v397
      %410 = vmatprep.subr.bf16.mxu0 0
      %411 = vmatpush1.bf16.msra.mxu0 %v398
      %412 = vmatprep.subr.bf16.mxu0 0
      %413 = vmatpush1.bf16.msra.mxu0 0
      %414 = vmatprep.subr.bf16.mxu0 0
      %415 = vmatpush1.bf16.msra.mxu0 0
      %416 = vmatprep.subr.bf16.mxu0 0
      %417 = vmatpush1.bf16.msra.mxu0 0
      %418 = vmatprep.subr.bf16.mxu0 0
      %419 = vmatpush1.bf16.msra.mxu0 0
      %420 = vmatprep.subr.bf16.mxu0 0
      %421 = vmatpush1.bf16.msra.mxu0 0
      %422 = vmatprep.subr.bf16.mxu0 0
      %423 = vmatpush1.bf16.msra.mxu0 0
      %424 = vmatprep.subr.bf16.mxu0 0
      %425 = vmatpush1.bf16.msra.mxu0 0
      %426 = vmatprep.subr.bf16.mxu0 0
      %427 = vmatpush1.bf16.msra.mxu0 0
      %428 = vmatprep.subr.bf16.mxu0 0
      %429 = vmatpush1.bf16.msra.mxu0 0
      %430 = vmatprep.subr.bf16.mxu0 0
      %431 = vmatpush1.bf16.msra.mxu0 0
      %432 = vmatprep.subr.bf16.mxu0 0
      %433 = vmatpush1.bf16.msra.mxu0 0
      %434 = vmatprep.subr.bf16.mxu0 0
      %435 = vmatpush1.bf16.msra.mxu0 0
      %436 = vmatprep.subr.bf16.mxu0 0
      %437 = vmatpush1.bf16.msra.mxu0 0
      %438 = vmatprep.subr.bf16.mxu0 0
      %439 = vmatpush1.bf16.msra.mxu0 0
      %440 = vmatprep.mubr.bf16.mxu0 0
      %441 = vmatmul.mubr.bf16.gmra.mrb[0].mxu0 %v403
      %v442 = vpop.f32.mrb[0].mxu0
      %v443 = vadd.f32 0.0, %v442
      %v444 = vpop.f32.mrb[0].mxu0
      %v445 = vpop.f32.mrb[0].mxu0
      %v446 = vadd.f32 0.0, %v445
      %v447 = vpop.f32.mrb[0].mxu0
      %448 = vmatprep.mubr.bf16.mxu0 0
      %449 = vmatmul.mubr.bf16.gmra.mrb[0].mxu0 %v406
      %v450 = vpop.f32.mrb[0].mxu0
      %v451 = vadd.f32 0.0, %v450
      %v452 = vpop.f32.mrb[0].mxu0
      %v453 = vpop.f32.mrb[0].mxu0
      %v454 = vpop.f32.mrb[0].mxu0
      %455 = vdwg.mxu0
      %v456 = vpack.c.b16 %v369, %v369
      %v461 = vunpack.c.l.b16 %v353
      %v462 = vunpack.c.l.b16 %v354
      %v463 = vunpack.c.l.b16 %v355
      %v464 = vunpack.c.l.b16 %v356
      %v465 = vpack.c.b16 %v462, %v461
      %v466 = vpack.c.b16 %v464, %v463
      %v469 = vsel %vm401, %v371, 0
      %v472 = vsel %vm401, %v456, 0
      %474 = vmatprep.subr.bf16.mxu0 0
      %475 = vmatpush1.bf16.msra.mxu0 %v465
      %476 = vmatprep.subr.bf16.mxu0 0
      %477 = vmatpush1.bf16.msra.mxu0 %v466
      %478 = vmatprep.subr.bf16.mxu0 0
      %479 = vmatpush1.bf16.msra.mxu0 0
      %480 = vmatprep.subr.bf16.mxu0 0
      %481 = vmatpush1.bf16.msra.mxu0 0
      %482 = vmatprep.subr.bf16.mxu0 0
      %483 = vmatpush1.bf16.msra.mxu0 0
      %484 = vmatprep.subr.bf16.mxu0 0
      %485 = vmatpush1.bf16.msra.mxu0 0
      %486 = vmatprep.subr.bf16.mxu0 0
      %487 = vmatpush1.bf16.msra.mxu0 0
      %488 = vmatprep.subr.bf16.mxu0 0
      %489 = vmatpush1.bf16.msra.mxu0 0
      %490 = vmatprep.subr.bf16.mxu0 0
      %491 = vmatpush1.bf16.msra.mxu0 0
      %492 = vmatprep.subr.bf16.mxu0 0
      %493 = vmatpush1.bf16.msra.mxu0 0
      %494 = vmatprep.subr.bf16.mxu0 0
      %495 = vmatpush1.bf16.msra.mxu0 0
      %496 = vmatprep.subr.bf16.mxu0 0
      %497 = vmatpush1.bf16.msra.mxu0 0
      %498 = vmatprep.subr.bf16.mxu0 0
      %499 = vmatpush1.bf16.msra.mxu0 0
      %500 = vmatprep.subr.bf16.mxu0 0
      %501 = vmatpush1.bf16.msra.mxu0 0
      %502 = vmatprep.subr.bf16.mxu0 0
      %503 = vmatpush1.bf16.msra.mxu0 0
      %504 = vmatprep.subr.bf16.mxu0 0
      %505 = vmatpush1.bf16.msra.mxu0 0
      %506 = vmatprep.mubr.bf16.mxu0 0
      %507 = vmatmul.mubr.bf16.gmra.mrb[0].mxu0 %v469
      %v508 = vpop.f32.mrb[0].mxu0
      %v509 = vadd.f32 %v443, %v508
      %v510 = vpop.f32.mrb[0].mxu0
      %v511 = vpop.f32.mrb[0].mxu0
      %v512 = vadd.f32 %v446, %v511
      %v513 = vpop.f32.mrb[0].mxu0
      %514 = vmatprep.mubr.bf16.mxu0 0
      %515 = vmatmul.mubr.bf16.gmra.mrb[0].mxu0 %v472
      %v516 = vpop.f32.mrb[0].mxu0
      %v517 = vadd.f32 %v451, %v516
      %v518 = vpop.f32.mrb[0].mxu0
      %v519 = vpop.f32.mrb[0].mxu0
      %v520 = vpop.f32.mrb[0].mxu0
      %521 = vdwg.mxu0
      %v522 = vld [vmem:[#allocation2] sm:$0xe]
      %s523 = scalar_lea.vmem %s1, 32
      %v524 = vld [vmem:[%s523] sm:$0xf]
      %v525 = vld [vmem:[%s523 + $0x4] sm:$0xf]
      %v526 = vld [vmem:[%s523 + $0x8] sm:$0xf]
      %v527 = vld [vmem:[%s523 + $0xc] sm:$0xf]
      %v529 = vunpack.c.l.b16 %v522
      %v530 = vpack.c.b16 %v368, %v529
      %vm531 = vcmask 1046528
      %v532 = vrot.slane %v530, 1
      %v533 = vrot.slane %v372, 1
      %v534 = vsel %vm531, %v532, %v533
      %v539 = vunpack.c.l.b16 %v524
      %v540 = vunpack.c.l.b16 %v525
      %v541 = vunpack.c.l.b16 %v526
      %v542 = vunpack.c.l.b16 %v527
      %v543 = vpack.c.b16 %v540, %v539
      %v544 = vpack.c.b16 %v542, %v541
      %v548 = vsel %vm401, %v534, 0
      %v551 = vsel %vm401, %v533, 0
      %553 = vmatprep.subr.bf16.mxu0 0
      %554 = vmatpush1.bf16.msra.mxu0 %v543
      %555 = vmatprep.subr.bf16.mxu0 0
      %556 = vmatpush1.bf16.msra.mxu0 %v544
      %557 = vmatprep.subr.bf16.mxu0 0
      %558 = vmatpush1.bf16.msra.mxu0 0
      %559 = vmatprep.subr.bf16.mxu0 0
      %560 = vmatpush1.bf16.msra.mxu0 0
      %561 = vmatprep.subr.bf16.mxu0 0
      %562 = vmatpush1.bf16.msra.mxu0 0
      %563 = vmatprep.subr.bf16.mxu0 0
      %564 = vmatpush1.bf16.msra.mxu0 0
      %565 = vmatprep.subr.bf16.mxu0 0
      %566 = vmatpush1.bf16.msra.mxu0 0
      %567 = vmatprep.subr.bf16.mxu0 0
      %568 = vmatpush1.bf16.msra.mxu0 0
      %569 = vmatprep.subr.bf16.mxu0 0
      %570 = vmatpush1.bf16.msra.mxu0 0
      %571 = vmatprep.subr.bf16.mxu0 0
      %572 = vmatpush1.bf16.msra.mxu0 0
      %573 = vmatprep.subr.bf16.mxu0 0
      %574 = vmatpush1.bf16.msra.mxu0 0
      %575 = vmatprep.subr.bf16.mxu0 0
      %576 = vmatpush1.bf16.msra.mxu0 0
      %577 = vmatprep.subr.bf16.mxu0 0
      %578 = vmatpush1.bf16.msra.mxu0 0
      %579 = vmatprep.subr.bf16.mxu0 0
      %580 = vmatpush1.bf16.msra.mxu0 0
      %581 = vmatprep.subr.bf16.mxu0 0
      %582 = vmatpush1.bf16.msra.mxu0 0
      %583 = vmatprep.subr.bf16.mxu0 0
      %584 = vmatpush1.bf16.msra.mxu0 0
      %585 = vmatprep.mubr.bf16.mxu0 0
      %586 = vmatmul.mubr.bf16.gmra.mrb[0].mxu0 %v548
      %v587 = vpop.f32.mrb[0].mxu0
      %v588 = vadd.f32 0.0, %v587
      %v589 = vpop.f32.mrb[0].mxu0
      %v590 = vpop.f32.mrb[0].mxu0
      %v591 = vadd.f32 0.0, %v590
      %v592 = vpop.f32.mrb[0].mxu0
      %593 = vmatprep.mubr.bf16.mxu0 0
      %594 = vmatmul.mubr.bf16.gmra.mrb[0].mxu0 %v551
      %v595 = vpop.f32.mrb[0].mxu0
      %v596 = vadd.f32 0.0, %v595
      %v597 = vpop.f32.mrb[0].mxu0
      %v598 = vpop.f32.mrb[0].mxu0
      %v599 = vpop.f32.mrb[0].mxu0
      %600 = vdwg.mxu0
      %v601 = vadd.f32 %v509, %v588
      %v602 = vadd.f32 %v512, %v591
      %v603 = vadd.f32 %v517, %v596
      %v604 = vld [vmem:[#allocation2] sm:$0x8]
      %v605 = vld [vmem:[#allocation2 + $0xc] sm:$0x7]
      %s606 = scalar_lea.vmem %s1, 48
      %v607 = vld [vmem:[%s606] sm:$0xf]
      %v608 = vld [vmem:[%s606 + $0x4] sm:$0xf]
      %v609 = vld [vmem:[%s606 + $0x8] sm:$0xf]
      %v610 = vld [vmem:[%s606 + $0xc] sm:$0xf]
      %v613 = vunpack.c.l.b16 %v604
      %v614 = vunpack.c.l.b16 %v605
      %v615 = vpack.c.b16 %v368, %v613
      %v616 = vpack.c.b16 %v614, %v369
      %vm617 = vcmask 1044480
      %v618 = vrot.slane %v615, 3
      %v619 = vrot.slane %v616, 3
      %v620 = vsel %vm617, %v618, %v619
      %v625 = vunpack.c.l.b16 %v607
      %v626 = vunpack.c.l.b16 %v608
      %v627 = vunpack.c.l.b16 %v609
      %v628 = vunpack.c.l.b16 %v610
      %v629 = vpack.c.b16 %v626, %v625
      %v630 = vpack.c.b16 %v628, %v627
      %v634 = vsel %vm401, %v620, 0
      %v637 = vsel %vm401, %v619, 0
      %639 = vmatprep.subr.bf16.mxu0 0
      %640 = vmatpush1.bf16.msra.mxu0 %v629
      %641 = vmatprep.subr.bf16.mxu0 0
      %642 = vmatpush1.bf16.msra.mxu0 %v630
      %643 = vmatprep.subr.bf16.mxu0 0
      %644 = vmatpush1.bf16.msra.mxu0 0
      %645 = vmatprep.subr.bf16.mxu0 0
      %646 = vmatpush1.bf16.msra.mxu0 0
      %647 = vmatprep.subr.bf16.mxu0 0
      %648 = vmatpush1.bf16.msra.mxu0 0
      %649 = vmatprep.subr.bf16.mxu0 0
      %650 = vmatpush1.bf16.msra.mxu0 0
      %651 = vmatprep.subr.bf16.mxu0 0
      %652 = vmatpush1.bf16.msra.mxu0 0
      %653 = vmatprep.subr.bf16.mxu0 0
      %654 = vmatpush1.bf16.msra.mxu0 0
      %655 = vmatprep.subr.bf16.mxu0 0
      %656 = vmatpush1.bf16.msra.mxu0 0
      %657 = vmatprep.subr.bf16.mxu0 0
      %658 = vmatpush1.bf16.msra.mxu0 0
      %659 = vmatprep.subr.bf16.mxu0 0
      %660 = vmatpush1.bf16.msra.mxu0 0
      %661 = vmatprep.subr.bf16.mxu0 0
      %662 = vmatpush1.bf16.msra.mxu0 0
      %663 = vmatprep.subr.bf16.mxu0 0
      %664 = vmatpush1.bf16.msra.mxu0 0
      %665 = vmatprep.subr.bf16.mxu0 0
      %666 = vmatpush1.bf16.msra.mxu0 0
      %667 = vmatprep.subr.bf16.mxu0 0
      %668 = vmatpush1.bf16.msra.mxu0 0
      %669 = vmatprep.subr.bf16.mxu0 0
      %670 = vmatpush1.bf16.msra.mxu0 0
      %671 = vmatprep.mubr.bf16.mxu0 0
      %672 = vmatmul.mubr.bf16.gmra.mrb[0].mxu0 %v634
      %v673 = vpop.f32.mrb[0].mxu0
      %v674 = vadd.f32 0.0, %v673
      %v675 = vpop.f32.mrb[0].mxu0
      %v676 = vpop.f32.mrb[0].mxu0
      %v677 = vadd.f32 0.0, %v676
      %v678 = vpop.f32.mrb[0].mxu0
      %679 = vmatprep.mubr.bf16.mxu0 0
      %680 = vmatmul.mubr.bf16.gmra.mrb[0].mxu0 %v637
      %v681 = vpop.f32.mrb[0].mxu0
      %v682 = vadd.f32 0.0, %v681
      %v683 = vpop.f32.mrb[0].mxu0
      %v684 = vpop.f32.mrb[0].mxu0
      %v685 = vpop.f32.mrb[0].mxu0
      %686 = vdwg.mxu0
      %v687 = vadd.f32 %v601, %v674
      %v688 = vadd.f32 %v602, %v677
      %v689 = vadd.f32 %v603, %v682
      %v690 = vld [vmem:[#allocation2 + $0xc] sm:$0xf]
      %s691 = scalar_lea.vmem %s1, 64
      %v692 = vld [vmem:[%s691] sm:$0xf]
      %v693 = vld [vmem:[%s691 + $0x4] sm:$0xf]
      %v694 = vld [vmem:[%s691 + $0x8] sm:$0xf]
      %v695 = vld [vmem:[%s691 + $0xc] sm:$0xf]
      %v697 = vunpack.c.l.b16 %v690
      %v698 = vpack.c.b16 %v697, %v369
      %vm699 = vsmask.f32 4352
      %v701 = vshrl.u32 %v615, 16
      %v703 = vrot.slane %v701, 3
      %v704 = vshll.u32 %v615, 16
      %v706 = vrot.slane %v704, 4
      %v707 = vor.u32 %v703, %v706
      %v709 = vshrl.u32 %v698, 16
      %v711 = vrot.slane %v709, 3
      %v712 = vshll.u32 %v698, 16
      %v714 = vrot.slane %v712, 4
      %v715 = vor.u32 %v711, %v714
      %v716 = vsel %vm699, %v707, %v715
      %v721 = vunpack.c.l.b16 %v692
      %v722 = vunpack.c.l.b16 %v693
      %v723 = vunpack.c.l.b16 %v694
      %v724 = vunpack.c.l.b16 %v695
      %v725 = vpack.c.b16 %v722, %v721
      %v726 = vpack.c.b16 %v724, %v723
      %v730 = vsel %vm401, %v716, 0
      %v733 = vsel %vm401, %v715, 0
      %735 = vmatprep.subr.bf16.mxu0 0
      %736 = vmatpush1.bf16.msra.mxu0 %v725
      %737 = vmatprep.subr.bf16.mxu0 0
      %738 = vmatpush1.bf16.msra.mxu0 %v726
      %739 = vmatprep.subr.bf16.mxu0 0
      %740 = vmatpush1.bf16.msra.mxu0 0
      %741 = vmatprep.subr.bf16.mxu0 0
      %742 = vmatpush1.bf16.msra.mxu0 0
      %743 = vmatprep.subr.bf16.mxu0 0
      %744 = vmatpush1.bf16.msra.mxu0 0
      %745 = vmatprep.subr.bf16.mxu0 0
      %746 = vmatpush1.bf16.msra.mxu0 0
      %747 = vmatprep.subr.bf16.mxu0 0
      %748 = vmatpush1.bf16.msra.mxu0 0
      %749 = vmatprep.subr.bf16.mxu0 0
      %750 = vmatpush1.bf16.msra.mxu0 0
      %751 = vmatprep.subr.bf16.mxu0 0
      %752 = vmatpush1.bf16.msra.mxu0 0
      %753 = vmatprep.subr.bf16.mxu0 0
      %754 = vmatpush1.bf16.msra.mxu0 0
      %755 = vmatprep.subr.bf16.mxu0 0
      %756 = vmatpush1.bf16.msra.mxu0 0
      %757 = vmatprep.subr.bf16.mxu0 0
      %758 = vmatpush1.bf16.msra.mxu0 0
      %759 = vmatprep.subr.bf16.mxu0 0
      %760 = vmatpush1.bf16.msra.mxu0 0
      %761 = vmatprep.subr.bf16.mxu0 0
      %762 = vmatpush1.bf16.msra.mxu0 0
      %763 = vmatprep.subr.bf16.mxu0 0
      %764 = vmatpush1.bf16.msra.mxu0 0
      %765 = vmatprep.subr.bf16.mxu0 0
      %766 = vmatpush1.bf16.msra.mxu0 0
      %767 = vmatprep.mubr.bf16.mxu0 0
      %768 = vmatmul.mubr.bf16.gmra.mrb[0].mxu0 %v730
      %v769 = vpop.f32.mrb[0].mxu0
      %v770 = vadd.f32 0.0, %v769
      %v771 = vpop.f32.mrb[0].mxu0
      %v772 = vpop.f32.mrb[0].mxu0
      %v773 = vadd.f32 0.0, %v772
      %v774 = vpop.f32.mrb[0].mxu0
      %775 = vmatprep.mubr.bf16.mxu0 0
      %776 = vmatmul.mubr.bf16.gmra.mrb[0].mxu0 %v733
      %v777 = vpop.f32.mrb[0].mxu0
      %v778 = vadd.f32 0.0, %v777
      %v779 = vpop.f32.mrb[0].mxu0
      %v780 = vpop.f32.mrb[0].mxu0
      %v781 = vpop.f32.mrb[0].mxu0
      %782 = vdwg.mxu0
      %v783 = vadd.f32 %v687, %v770
      %v784 = vadd.f32 %v688, %v773
      %v785 = vadd.f32 %v689, %v778
      %s786 = scalar_lea.vmem %s1, 80
      %v787 = vld [vmem:[%s786] sm:$0xf]
      %v788 = vld [vmem:[%s786 + $0x4] sm:$0xf]
      %v789 = vld [vmem:[%s786 + $0x8] sm:$0xf]
      %v790 = vld [vmem:[%s786 + $0xc] sm:$0xf]
      %v791 = vpack.c.b16 %v369, %v368
      %v792 = vpack.c.b16 %v697, %v697
      %v797 = vunpack.c.l.b16 %v787
      %v798 = vunpack.c.l.b16 %v788
      %v799 = vunpack.c.l.b16 %v789
      %v800 = vunpack.c.l.b16 %v790
      %v801 = vpack.c.b16 %v798, %v797
      %v802 = vpack.c.b16 %v800, %v799
      %v806 = vsel %vm401, %v791, 0
      %v809 = vsel %vm401, %v792, 0
      %811 = vmatprep.subr.bf16.mxu0 0
      %812 = vmatpush1.bf16.msra.mxu0 %v801
      %813 = vmatprep.subr.bf16.mxu0 0
      %814 = vmatpush1.bf16.msra.mxu0 %v802
      %815 = vmatprep.subr.bf16.mxu0 0
      %816 = vmatpush1.bf16.msra.mxu0 0
      %817 = vmatprep.subr.bf16.mxu0 0
      %818 = vmatpush1.bf16.msra.mxu0 0
      %819 = vmatprep.subr.bf16.mxu0 0
      %820 = vmatpush1.bf16.msra.mxu0 0
      %821 = vmatprep.subr.bf16.mxu0 0
      %822 = vmatpush1.bf16.msra.mxu0 0
      %823 = vmatprep.subr.bf16.mxu0 0
      %824 = vmatpush1.bf16.msra.mxu0 0
      %825 = vmatprep.subr.bf16.mxu0 0
      %826 = vmatpush1.bf16.msra.mxu0 0
      %827 = vmatprep.subr.bf16.mxu0 0
      %828 = vmatpush1.bf16.msra.mxu0 0
      %829 = vmatprep.subr.bf16.mxu0 0
      %830 = vmatpush1.bf16.msra.mxu0 0
      %831 = vmatprep.subr.bf16.mxu0 0
      %832 = vmatpush1.bf16.msra.mxu0 0
      %833 = vmatprep.subr.bf16.mxu0 0
      %834 = vmatpush1.bf16.msra.mxu0 0
      %835 = vmatprep.subr.bf16.mxu0 0
      %836 = vmatpush1.bf16.msra.mxu0 0
      %837 = vmatprep.subr.bf16.mxu0 0
      %838 = vmatpush1.bf16.msra.mxu0 0
      %839 = vmatprep.subr.bf16.mxu0 0
      %840 = vmatpush1.bf16.msra.mxu0 0
      %841 = vmatprep.subr.bf16.mxu0 0
      %842 = vmatpush1.bf16.msra.mxu0 0
      %843 = vmatprep.mubr.bf16.mxu0 0
      %844 = vmatmul.mubr.bf16.gmra.mrb[0].mxu0 %v806
      %v845 = vpop.f32.mrb[0].mxu0
      %v846 = vadd.f32 0.0, %v845
      %v847 = vpop.f32.mrb[0].mxu0
      %v848 = vpop.f32.mrb[0].mxu0
      %v849 = vadd.f32 0.0, %v848
      %v850 = vpop.f32.mrb[0].mxu0
      %851 = vmatprep.mubr.bf16.mxu0 0
      %852 = vmatmul.mubr.bf16.gmra.mrb[0].mxu0 %v809
      %v853 = vpop.f32.mrb[0].mxu0
      %v854 = vadd.f32 0.0, %v853
      %v855 = vpop.f32.mrb[0].mxu0
      %v856 = vpop.f32.mrb[0].mxu0
      %v857 = vpop.f32.mrb[0].mxu0
      %858 = vdwg.mxu0
      %v859 = vadd.f32 %v783, %v846
      %v860 = vadd.f32 %v784, %v849
      %v861 = vadd.f32 %v785, %v854
      %v862 = vld [vmem:[#allocation2 + $0x4] sm:$0xc]
      %v863 = vld [vmem:[#allocation2 + $0x8] sm:$0xf]
      %v864 = vld [vmem:[#allocation2 + $0xc] sm:$0xf]
      %v865 = vld [vmem:[#allocation2 + $0x10] sm:$0x3]
      %s866 = scalar_lea.vmem %s1, 96
      %v867 = vld [vmem:[%s866] sm:$0xf]
      %v868 = vld [vmem:[%s866 + $0x4] sm:$0xf]
      %v869 = vld [vmem:[%s866 + $0x8] sm:$0xf]
      %v870 = vld [vmem:[%s866 + $0xc] sm:$0xf]
      %v875 = vunpack.c.l.b16 %v862
      %v876 = vunpack.c.l.b16 %v863
      %v877 = vunpack.c.l.b16 %v864
      %v878 = vunpack.c.l.b16 %v865
      %v879 = vpack.c.b16 %v876, %v875
      %v880 = vpack.c.b16 %v878, %v877
      %vm881 = vcmask 1045504
      %v882 = vrot.slane %v879, 2
      %v883 = vrot.slane %v880, 2
      %v884 = vsel %vm881, %v882, %v883
      %v889 = vunpack.c.l.b16 %v867
      %v890 = vunpack.c.l.b16 %v868
      %v891 = vunpack.c.l.b16 %v869
      %v892 = vunpack.c.l.b16 %v870
      %v893 = vpack.c.b16 %v890, %v889
      %v894 = vpack.c.b16 %v892, %v891
      %v898 = vsel %vm401, %v884, 0
      %v901 = vsel %vm401, %v883, 0
      %903 = vmatprep.subr.bf16.mxu0 0
      %904 = vmatpush1.bf16.msra.mxu0 %v893
      %905 = vmatprep.subr.bf16.mxu0 0
      %906 = vmatpush1.bf16.msra.mxu0 %v894
      %907 = vmatprep.subr.bf16.mxu0 0
      %908 = vmatpush1.bf16.msra.mxu0 0
      %909 = vmatprep.subr.bf16.mxu0 0
      %910 = vmatpush1.bf16.msra.mxu0 0
      %911 = vmatprep.subr.bf16.mxu0 0
      %912 = vmatpush1.bf16.msra.mxu0 0
      %913 = vmatprep.subr.bf16.mxu0 0
      %914 = vmatpush1.bf16.msra.mxu0 0
      %915 = vmatprep.subr.bf16.mxu0 0
      %916 = vmatpush1.bf16.msra.mxu0 0
      %917 = vmatprep.subr.bf16.mxu0 0
      %918 = vmatpush1.bf16.msra.mxu0 0
      %919 = vmatprep.subr.bf16.mxu0 0
      %920 = vmatpush1.bf16.msra.mxu0 0
      %921 = vmatprep.subr.bf16.mxu0 0
      %922 = vmatpush1.bf16.msra.mxu0 0
      %923 = vmatprep.subr.bf16.mxu0 0
      %924 = vmatpush1.bf16.msra.mxu0 0
      %925 = vmatprep.subr.bf16.mxu0 0
      %926 = vmatpush1.bf16.msra.mxu0 0
      %927 = vmatprep.subr.bf16.mxu0 0
      %928 = vmatpush1.bf16.msra.mxu0 0
      %929 = vmatprep.subr.bf16.mxu0 0
      %930 = vmatpush1.bf16.msra.mxu0 0
      %931 = vmatprep.subr.bf16.mxu0 0
      %932 = vmatpush1.bf16.msra.mxu0 0
      %933 = vmatprep.subr.bf16.mxu0 0
      %934 = vmatpush1.bf16.msra.mxu0 0
      %935 = vmatprep.mubr.bf16.mxu0 0
      %936 = vmatmul.mubr.bf16.gmra.mrb[0].mxu0 %v898
      %v937 = vpop.f32.mrb[0].mxu0
      %v938 = vadd.f32 0.0, %v937
      %v939 = vpop.f32.mrb[0].mxu0
      %v940 = vpop.f32.mrb[0].mxu0
      %v941 = vadd.f32 0.0, %v940
      %v942 = vpop.f32.mrb[0].mxu0
      %943 = vmatprep.mubr.bf16.mxu0 0
      %944 = vmatmul.mubr.bf16.gmra.mrb[0].mxu0 %v901
      %v945 = vpop.f32.mrb[0].mxu0
      %v946 = vadd.f32 0.0, %v945
      %v947 = vpop.f32.mrb[0].mxu0
      %v948 = vpop.f32.mrb[0].mxu0
      %v949 = vpop.f32.mrb[0].mxu0
      %950 = vdwg.mxu0
      %v951 = vadd.f32 %v859, %v938
      %v952 = vadd.f32 %v860, %v941
      %v953 = vadd.f32 %v861, %v946
      %v954 = vld [vmem:[#allocation2 + $0x10] sm:$0x7]
      %s955 = scalar_lea.vmem %s1, 112
      %v956 = vld [vmem:[%s955] sm:$0xf]
      %v957 = vld [vmem:[%s955 + $0x4] sm:$0xf]
      %v958 = vld [vmem:[%s955 + $0x8] sm:$0xf]
      %v959 = vld [vmem:[%s955 + $0xc] sm:$0xf]
      %v961 = vunpack.c.l.b16 %v954
      %v962 = vpack.c.b16 %v961, %v877
      %vm963 = vsmask.f32 5376
      %v965 = vshrl.u32 %v879, 16
      %v967 = vrot.slane %v965, 2
      %v968 = vshll.u32 %v879, 16
      %v970 = vrot.slane %v968, 3
      %v971 = vor.u32 %v967, %v970
      %v973 = vshrl.u32 %v962, 16
      %v975 = vrot.slane %v973, 2
      %v976 = vshll.u32 %v962, 16
      %v978 = vrot.slane %v976, 3
      %v979 = vor.u32 %v975, %v978
      %v980 = vsel %vm963, %v971, %v979
      %v985 = vunpack.c.l.b16 %v956
      %v986 = vunpack.c.l.b16 %v957
      %v987 = vunpack.c.l.b16 %v958
      %v988 = vunpack.c.l.b16 %v959
      %v989 = vpack.c.b16 %v986, %v985
      %v990 = vpack.c.b16 %v988, %v987
      %v994 = vsel %vm401, %v980, 0
      %v997 = vsel %vm401, %v979, 0
      %999 = vmatprep.subr.bf16.mxu0 0
      %1000 = vmatpush1.bf16.msra.mxu0 %v989
      %1001 = vmatprep.subr.bf16.mxu0 0
      %1002 = vmatpush1.bf16.msra.mxu0 %v990
      %1003 = vmatprep.subr.bf16.mxu0 0
      %1004 = vmatpush1.bf16.msra.mxu0 0
      %1005 = vmatprep.subr.bf16.mxu0 0
      %1006 = vmatpush1.bf16.msra.mxu0 0
      %1007 = vmatprep.subr.bf16.mxu0 0
      %1008 = vmatpush1.bf16.msra.mxu0 0
      %1009 = vmatprep.subr.bf16.mxu0 0
      %1010 = vmatpush1.bf16.msra.mxu0 0
      %1011 = vmatprep.subr.bf16.mxu0 0
      %1012 = vmatpush1.bf16.msra.mxu0 0
      %1013 = vmatprep.subr.bf16.mxu0 0
      %1014 = vmatpush1.bf16.msra.mxu0 0
      %1015 = vmatprep.subr.bf16.mxu0 0
      %1016 = vmatpush1.bf16.msra.mxu0 0
      %1017 = vmatprep.subr.bf16.mxu0 0
      %1018 = vmatpush1.bf16.msra.mxu0 0
      %1019 = vmatprep.subr.bf16.mxu0 0
      %1020 = vmatpush1.bf16.msra.mxu0 0
      %1021 = vmatprep.subr.bf16.mxu0 0
      %1022 = vmatpush1.bf16.msra.mxu0 0
      %1023 = vmatprep.subr.bf16.mxu0 0
      %1024 = vmatpush1.bf16.msra.mxu0 0
      %1025 = vmatprep.subr.bf16.mxu0 0
      %1026 = vmatpush1.bf16.msra.mxu0 0
      %1027 = vmatprep.subr.bf16.mxu0 0
      %1028 = vmatpush1.bf16.msra.mxu0 0
      %1029 = vmatprep.subr.bf16.mxu0 0
      %1030 = vmatpush1.bf16.msra.mxu0 0
      %1031 = vmatprep.mubr.bf16.mxu0 0
      %1032 = vmatmul.mubr.bf16.gmra.mrb[0].mxu0 %v994
      %v1033 = vpop.f32.mrb[0].mxu0
      %v1034 = vadd.f32 0.0, %v1033
      %v1035 = vpop.f32.mrb[0].mxu0
      %v1036 = vpop.f32.mrb[0].mxu0
      %v1037 = vadd.f32 0.0, %v1036
      %v1038 = vpop.f32.mrb[0].mxu0
      %1039 = vmatprep.mubr.bf16.mxu0 0
      %1040 = vmatmul.mubr.bf16.gmra.mrb[0].mxu0 %v997
      %v1041 = vpop.f32.mrb[0].mxu0
      %v1042 = vadd.f32 0.0, %v1041
      %v1043 = vpop.f32.mrb[0].mxu0
      %v1044 = vpop.f32.mrb[0].mxu0
      %v1045 = vpop.f32.mrb[0].mxu0
      %1046 = vdwg.mxu0
      %v1047 = vadd.f32 %v951, %v1034
      %v1048 = vadd.f32 %v952, %v1037
      %v1049 = vadd.f32 %v953, %v1042
      %v1050 = vld [vmem:[#allocation2 + $0x4] sm:$0x8]
      %s1051 = scalar_lea.vmem %s1, 128
      %v1052 = vld [vmem:[%s1051] sm:$0xf]
      %v1053 = vld [vmem:[%s1051 + $0x4] sm:$0xf]
      %v1054 = vld [vmem:[%s1051 + $0x8] sm:$0xf]
      %v1055 = vld [vmem:[%s1051 + $0xc] sm:$0xf]
      %v1057 = vunpack.c.l.b16 %v1050
      %v1058 = vpack.c.b16 %v876, %v1057
      %v1059 = vrot.slane %v1058, 3
      %v1060 = vrot.slane %v962, 3
      %v1061 = vsel %vm617, %v1059, %v1060
      %v1066 = vunpack.c.l.b16 %v1052
      %v1067 = vunpack.c.l.b16 %v1053
      %v1068 = vunpack.c.l.b16 %v1054
      %v1069 = vunpack.c.l.b16 %v1055
      %v1070 = vpack.c.b16 %v1067, %v1066
      %v1071 = vpack.c.b16 %v1069, %v1068
      %v1075 = vsel %vm401, %v1061, 0
      %v1078 = vsel %vm401, %v1060, 0
      %1080 = vmatprep.subr.bf16.mxu0 0
      %1081 = vmatpush1.bf16.msra.mxu0 %v1070
      %1082 = vmatprep.subr.bf16.mxu0 0
      %1083 = vmatpush1.bf16.msra.mxu0 %v1071
      %1084 = vmatprep.subr.bf16.mxu0 0
      %1085 = vmatpush1.bf16.msra.mxu0 0
      %1086 = vmatprep.subr.bf16.mxu0 0
      %1087 = vmatpush1.bf16.msra.mxu0 0
      %1088 = vmatprep.subr.bf16.mxu0 0
      %1089 = vmatpush1.bf16.msra.mxu0 0
      %1090 = vmatprep.subr.bf16.mxu0 0
      %1091 = vmatpush1.bf16.msra.mxu0 0
      %1092 = vmatprep.subr.bf16.mxu0 0
      %1093 = vmatpush1.bf16.msra.mxu0 0
      %1094 = vmatprep.subr.bf16.mxu0 0
      %1095 = vmatpush1.bf16.msra.mxu0 0
      %1096 = vmatprep.subr.bf16.mxu0 0
      %1097 = vmatpush1.bf16.msra.mxu0 0
      %1098 = vmatprep.subr.bf16.mxu0 0
      %1099 = vmatpush1.bf16.msra.mxu0 0
      %1100 = vmatprep.subr.bf16.mxu0 0
      %1101 = vmatpush1.bf16.msra.mxu0 0
      %1102 = vmatprep.subr.bf16.mxu0 0
      %1103 = vmatpush1.bf16.msra.mxu0 0
      %1104 = vmatprep.subr.bf16.mxu0 0
      %1105 = vmatpush1.bf16.msra.mxu0 0
      %1106 = vmatprep.subr.bf16.mxu0 0
      %1107 = vmatpush1.bf16.msra.mxu0 0
      %1108 = vmatprep.subr.bf16.mxu0 0
      %1109 = vmatpush1.bf16.msra.mxu0 0
      %1110 = vmatprep.subr.bf16.mxu0 0
      %1111 = vmatpush1.bf16.msra.mxu0 0
      %1112 = vmatprep.mubr.bf16.mxu0 0
      %1113 = vmatmul.mubr.bf16.gmra.mrb[0].mxu0 %v1075
      %v1114 = vpop.f32.mrb[0].mxu0
      %v1115 = vadd.f32 0.0, %v1114
      %v1116 = vpop.f32.mrb[0].mxu0
      %v1117 = vpop.f32.mrb[0].mxu0
      %v1118 = vadd.f32 0.0, %v1117
      %v1119 = vpop.f32.mrb[0].mxu0
      %1120 = vmatprep.mubr.bf16.mxu0 0
      %1121 = vmatmul.mubr.bf16.gmra.mrb[0].mxu0 %v1078
      %v1122 = vpop.f32.mrb[0].mxu0
      %v1123 = vadd.f32 0.0, %v1122
      %v1124 = vpop.f32.mrb[0].mxu0
      %v1125 = vpop.f32.mrb[0].mxu0
      %v1126 = vpop.f32.mrb[0].mxu0
      %1127 = vdwg.mxu0
      %v1128 = vadd.f32 %v1047, %v1115
      %v1129 = vadd.f32 %v1048, %v1118
      %v1130 = vadd.f32 %v1049, %v1123
      %v1131 = vld [vmem:[%s2] sm:$0x1]
      %v1133 = vlaneseq
      %v1134 = vshrl.u32 %v1133, 7
      %v1135 = vsub.s32 0, %v1134
      %v1136 = vrot.slane %v1131, %v1135
      %v1138 = vadd.f32 %v1128, %v1136
      %v1139 = vadd.f32 %v1129, %v1136
      %v1140 = vadd.f32 %v1130, %v1136
      %v1141 = vmax.f32 %v1138, 0.0
      %v1142 = vmax.f32 %v1139, 0.0
      %v1143 = vmax.f32 %v1140, 0.0
      %v1144 = vpack.c.bf16 %v1142, %v1141
      %v1145 = vpack.c.bf16 %v1143, %v1143
      %v1146 = vld [vmem:[%s3] sm:$0xf]
      %v1147 = vld [vmem:[%s4] sm:$0x1]
      %v1149 = vlaneseq
      %v1150 = vshrl.u32 %v1149, 7
      %v1151 = vsub.s32 0, %v1150
      %v1152 = vrot.slane %v1147, %v1151
      %vm1154 = vcmask 64512
      %v1156 = vsel %vm1154, %v1144, 0
      %v1159 = vsel %vm1154, %v1145, 0
      %vm1161 = vcmask 1043456
      %v1163 = vsel %vm1161, %v1146, 0
      %1165 = vmatprep.subr.bf16.mxu0 0
      %1166 = vmatpush1.bf16.msra.mxu0 %v1163
      %1167 = vmatprep.subr.bf16.mxu0 0
      %1168 = vmatpush1.bf16.msra.mxu0 0
      %1169 = vmatprep.subr.bf16.mxu0 0
      %1170 = vmatpush1.bf16.msra.mxu0 0
      %1171 = vmatprep.subr.bf16.mxu0 0
      %1172 = vmatpush1.bf16.msra.mxu0 0
      %1173 = vmatprep.subr.bf16.mxu0 0
      %1174 = vmatpush1.bf16.msra.mxu0 0
      %1175 = vmatprep.subr.bf16.mxu0 0
      %1176 = vmatpush1.bf16.msra.mxu0 0
      %1177 = vmatprep.subr.bf16.mxu0 0
      %1178 = vmatpush1.bf16.msra.mxu0 0
      %1179 = vmatprep.subr.bf16.mxu0 0
      %1180 = vmatpush1.bf16.msra.mxu0 0
      %1181 = vmatprep.subr.bf16.mxu0 0
      %1182 = vmatpush1.bf16.msra.mxu0 0
      %1183 = vmatprep.subr.bf16.mxu0 0
      %1184 = vmatpush1.bf16.msra.mxu0 0
      %1185 = vmatprep.subr.bf16.mxu0 0
      %1186 = vmatpush1.bf16.msra.mxu0 0
      %1187 = vmatprep.subr.bf16.mxu0 0
      %1188 = vmatpush1.bf16.msra.mxu0 0
      %1189 = vmatprep.subr.bf16.mxu0 0
      %1190 = vmatpush1.bf16.msra.mxu0 0
      %1191 = vmatprep.subr.bf16.mxu0 0
      %1192 = vmatpush1.bf16.msra.mxu0 0
      %1193 = vmatprep.subr.bf16.mxu0 0
      %1194 = vmatpush1.bf16.msra.mxu0 0
      %1195 = vmatprep.subr.bf16.mxu0 0
      %1196 = vmatpush1.bf16.msra.mxu0 0
      %1197 = vmatprep.mubr.bf16.mxu0 0
      %1198 = vmatmul.mubr.bf16.gmra.mrb[0].mxu0 %v1156
      %v1199 = vpop.f32.mrb[0].mxu0
      %v1200 = vadd.f32 %v1152, %v1199
      %v1201 = vpop.f32.mrb[0].mxu0
      %v1202 = vpop.f32.mrb[0].mxu0
      %v1203 = vadd.f32 %v1152, %v1202
      %v1204 = vpop.f32.mrb[0].mxu0
      %1205 = vmatprep.mubr.bf16.mxu0 0
      %1206 = vmatmul.mubr.bf16.gmra.mrb[0].mxu0 %v1159
      %v1207 = vpop.f32.mrb[0].mxu0
      %v1208 = vadd.f32 %v1152, %v1207
      %v1209 = vpop.f32.mrb[0].mxu0
      %v1210 = vpop.f32.mrb[0].mxu0
      %v1211 = vpop.f32.mrb[0].mxu0
      %1212 = vdwg.mxu0
      %v1216 = vcombine.high %v1200, %v1200
      %v1218 = vunpack.c.l.s4 1983009808
      %v1219 = vunpack.c.0.s8 %v1218
      %v1220 = vlaneseq
      %v1221 = vshrl.u32 %v1220, 7
      %v1222 = vsub.s32 %v1219, %v1221
      %v1223 = vrot.slane %v1200, %v1222
      %v1225 = vunpack.c.l.s4 1983009808
      %v1226 = vunpack.c.0.s8 %v1225
      %v1227 = vlaneseq
      %v1228 = vshrl.u32 %v1227, 7
      %v1229 = vsub.s32 %v1226, %v1228
      %v1230 = vrot.slane %v1216, %v1229
      %v1231 = vcombine.high %v1223, %v1223
      %v1232 = vcombine.high %v1230, %v1230
      %v1233 = vcombine.high %v1203, %v1203
      %v1235 = vunpack.c.l.s4 1983009808
      %v1236 = vunpack.c.0.s8 %v1235
      %v1237 = vlaneseq
      %v1238 = vshrl.u32 %v1237, 7
      %v1239 = vsub.s32 %v1236, %v1238
      %v1240 = vrot.slane %v1203, %v1239
      %v1242 = vunpack.c.l.s4 1983009808
      %v1243 = vunpack.c.0.s8 %v1242
      %v1244 = vlaneseq
      %v1245 = vshrl.u32 %v1244, 7
      %v1246 = vsub.s32 %v1243, %v1245
      %v1247 = vrot.slane %v1233, %v1246
      %v1248 = vcombine.high %v1247, %v1247
      %v1249 = vcombine.high %v1208, %v1208
      %v1251 = vunpack.c.l.s4 1983009808
      %v1252 = vunpack.c.0.s8 %v1251
      %v1253 = vlaneseq
      %v1254 = vshrl.u32 %v1253, 7
      %v1255 = vsub.s32 %v1252, %v1254
      %v1256 = vrot.slane %v1208, %v1255
      %v1258 = vunpack.c.l.s4 1983009808
      %v1259 = vunpack.c.0.s8 %v1258
      %v1260 = vlaneseq
      %v1261 = vshrl.u32 %v1260, 7
      %v1262 = vsub.s32 %v1259, %v1261
      %v1263 = vrot.slane %v1249, %v1262
      %v1264 = vcombine.high %v1256, %v1256
      %v1273 = vld [vmem:[%s219] sm:$0x3]
      %v1274 = vld [vmem:[%s219 + $0x2] sm:$0x3]
      %v1275 = vld [vmem:[%s219 + $0x4] sm:$0x3]
      %v1276 = vld [vmem:[%s219 + $0x6] sm:$0x3]
      %v1277 = vunpack.c.l.bf16 %v1273
      %v1278 = vunpack.c.l.bf16 %v1274
      %v1279 = vunpack.c.l.bf16 %v1275
      %v1280 = vunpack.c.l.bf16 %v1276
      %v1286 = vunpack.c.l.s4 1983009808
      %v1287 = vunpack.c.0.s8 %v1286
      %v1288 = vlaneseq
      %v1289 = vshrl.u32 %v1288, 7
      %v1290 = vsub.s32 %v1287, %v1289
      %v1291 = vrot.slane %v1277, %v1290
      %v1292 = vcombine.high %v1291, %v1291
      %v1294 = vunpack.c.l.s4 1983009808
      %v1295 = vunpack.c.0.s8 %v1294
      %v1296 = vlaneseq
      %v1297 = vshrl.u32 %v1296, 7
      %v1298 = vsub.s32 %v1295, %v1297
      %v1299 = vrot.slane %v1278, %v1298
      %v1300 = vcombine.high %v1299, %v1299
      %v1302 = vunpack.c.l.s4 1983009808
      %v1303 = vunpack.c.0.s8 %v1302
      %v1304 = vlaneseq
      %v1305 = vshrl.u32 %v1304, 7
      %v1306 = vsub.s32 %v1303, %v1305
      %v1307 = vrot.slane %v1279, %v1306
      %v1308 = vcombine.high %v1307, %v1307
      %v1310 = vunpack.c.l.s4 1983009808
      %v1311 = vunpack.c.0.s8 %v1310
      %v1312 = vlaneseq
      %v1313 = vshrl.u32 %v1312, 7
      %v1314 = vsub.s32 %v1311, %v1313
      %v1315 = vrot.slane %v1280, %v1314
      %v1316 = vcombine.high %v1315, %v1315
      %v1325 = vadd.f32 %v1223, %v1291
      %v1326 = vadd.f32 %v1231, %v1292
      %v1327 = vadd.f32 %v1232, %v1299
      %v1328 = vadd.f32 %v1240, %v1300
      %v1329 = vadd.f32 %v1247, %v1307
      %v1330 = vadd.f32 %v1248, %v1308
      %v1331 = vadd.f32 %v1264, %v1315
      %v1332 = vadd.f32 %v1263, %v1316
      %v1341 = vcombine.low %v1325, %v1326
      %v1343 = vunpack.c.l.s4 1983009808
      %v1344 = vunpack.c.0.s8 %v1343
      %v1345 = vlaneseq
      %v1346 = vshrl.u32 %v1345, 7
      %v1347 = vsub.s32 %v1344, %v1346
      %v1348 = vrot.slane %v1341, %v1347
      %v1349 = vcombine.low %v1327, %v1328
      %v1351 = vunpack.c.l.s4 1983009808
      %v1352 = vunpack.c.0.s8 %v1351
      %v1353 = vlaneseq
      %v1354 = vshrl.u32 %v1353, 7
      %v1355 = vsub.s32 %v1352, %v1354
      %v1356 = vrot.slane %v1349, %v1355
      %v1357 = vcombine.low %v1329, %v1330
      %v1359 = vunpack.c.l.s4 1983009808
      %v1360 = vunpack.c.0.s8 %v1359
      %v1361 = vlaneseq
      %v1362 = vshrl.u32 %v1361, 7
      %v1363 = vsub.s32 %v1360, %v1362
      %v1364 = vrot.slane %v1357, %v1363
      %v1365 = vcombine.low %v1331, %v1332
      %v1367 = vunpack.c.l.s4 1983009808
      %v1368 = vunpack.c.0.s8 %v1367
      %v1369 = vlaneseq
      %v1370 = vshrl.u32 %v1369, 7
      %v1371 = vsub.s32 %v1368, %v1370
      %v1372 = vrot.slane %v1365, %v1371
      %v1377 = vpack.c.bf16 %v1348, %v1348
      %v1378 = vpack.c.bf16 %v1356, %v1356
      %v1379 = vpack.c.bf16 %v1364, %v1364
      %v1380 = vpack.c.bf16 %v1372, %v1372
      %vm1381 = vcmask 254976
      %1382 = vst.msk [vmem:[%s224] sm:$0x3] %vm1381, %v1377
      %1383 = vst.msk [vmem:[%s224 + $0x2] sm:$0x3] %vm1381, %v1378
      %1384 = vst.msk [vmem:[%s224 + $0x4] sm:$0x3] %vm1381, %v1379
      %1385 = vst.msk [vmem:[%s224 + $0x6] sm:$0x3] %vm1381, %v1380
      %p1386 = scmp.lt.s32.totalorder %s16, 1
      %s1387 = scalar_select %p1386, %s16, 1
      %s1388 = smul.addr %s1387, 4
      %s1389 = smul.addr %s1388, 2
      %s1390 = scalar_lea.vmem %s5, %s1389
      // Predicated region
      $region41: #{encoder_forward.8} parent=39 // pred_check
        %p1391 = pneg %p144
      $region42: #{encoder_forward.8} parent=39 // pred_check_branch
        %1393 = sbr.rel (%p1391) target = $region44
      $region43: #{encoder_forward.8} parent=39 // pred_region
        _
      $region44: #{encoder_forward.8} parent=39 // pred_fallthru
        _
    $region40: #{encoder_forward.8} parent=5 // pred_fallthru
      _
    %p1394 = scmp.le.s32.totalorder 2, %s11
    // Predicated region
    $region45: #{encoder_forward.8} parent=5 // pred_check
      %p1395 = pneg %p1394
    $region46: #{encoder_forward.8} parent=5 // pred_check_branch
      %1397 = sbr.rel (%p1395) target = $region48
    $region47: #{encoder_forward.8} parent=5 // pred_region
      %s1398 = ssub.s32 %s11, 2
      // Predicated region
      $region49: #{encoder_forward.8} parent=47 // pred_check
        %p1399 = pneg %p150
      $region50: #{encoder_forward.8} parent=47 // pred_check_branch
        %1401 = sbr.rel (%p1399) target = $region52
      $region51: #{encoder_forward.8} parent=47 // pred_region
        %p1402 = scmp.lt.s32.totalorder %s17, 1
        %s1403 = scalar_select %p1402, %s17, 1
        %s1404 = smul.addr %s1403, 4
        %s1405 = smul.addr %s1404, 2
        %s1406 = scalar_lea.vmem %s5, %s1405
      $region52: #{encoder_forward.8} parent=47 // pred_fallthru
        _
    $region48: #{encoder_forward.8} parent=5 // pred_fallthru
      _
  $region6: #{encoder_forward.8} parent=0 // loop_footer
    %s15 = sadd.s32 1, %s11
  $region7: #{encoder_forward.8} parent=0 // loop_footer_branch
    %10 = sbr.rel target = $region3
  $region8: #{encoder_forward.8} parent=0 // loop_exit
    _

// kernel: encoder_forward.9
$region0: #{encoder_forward.9}
  #allocation0 [shape = 'u32[]', space=smem, size = 0x4, offset = 0x4, fixed_abs, tag = 'smem constant byte address 0x4 - core index']
  #allocation1 [shape = 'u32[144,128]{1,0:T(1,128)}', space=vmem, size = 0x12000, scoped, tag = 'internal scratch']
  #allocation2 [shape = 'bf16[40,32]{1,0:T(8,128)(2,1)}', space=vmem, size = 0x2800, scoped, tag = 'scratch operand']
  %s0 = inlined_call_operand.vmem [shape: bf16[2,4,4,32], index: 0, kind: input, shape index: {}]
  %s1 = inlined_call_operand.vmem [shape: bf16[9,32,8], index: 1, kind: input, shape index: {}]
  %s2 = inlined_call_operand.vmem [shape: f32[1,8], index: 2, kind: input, shape index: {}]
  %s3 = inlined_call_operand.vmem [shape: bf16[8,32], index: 3, kind: input, shape index: {}]
  %s4 = inlined_call_operand.vmem [shape: f32[1,32], index: 4, kind: input, shape index: {}]
  %s5 = inlined_call_operand.hbm [shape: f32[2,4,4,32], index: 5, kind: output, shape index: {}]
  %s6 = sld [smem:[#allocation0]]
  $region53: #{encoder_forward.9} parent=0
    _
  %s8 = ssub.s32 1, %s6
  %s9 = scalar_select 0, %s8, %s6
  $region1: #{encoder_forward.9} parent=0
    #allocation3 [shape = 'u8[16384]{0}', space=vmem, size = 0x4000, scoped, tag = 'output window, operand 0']
    #allocation4 [shape = 's32[2]{0}', space=sflag, size = 0x8, scoped, tag = 'scoped memory for encoder_forward.9']
    %10 = vsyncpa [#allocation4], 0
    %s11 = scalar_lea.sflag [#allocation4], 1
    %12 = vsyncpa %s11, 0
    loop: start=0, step=1, limit=4
    $region2: #{encoder_forward.9} parent=1 // loop_pre_header
      _
    $region3: #{encoder_forward.9} parent=1 // loop_header
      %s14 = sphi 0, %s18
      %p15 = scmp.ge.s32.totalorder %s14, 4
      %s24 = sphi 0, %s26
      %s27 = sphi 0, %s24
      %s28 = sphi 0, %s27
      %s44 = sphi 0, %s28
      %s48 = sphi 0, %s48
      %s50 = sphi 0, %s48
      %s51 = sphi 0, %s50
      %s65 = sphi 0, %s51
      %s69 = sphi 0, %s69
      %s71 = sphi 0, %s69
      %s72 = sphi 0, %s71
      %s86 = sphi 0, %s72
      %s90 = sphi 0, %s90
      %s92 = sphi 0, %s90
      %s93 = sphi 0, %s92
      %s107 = sphi 0, %s93
      %s111 = sphi 0, %s111
      %s113 = sphi 0, %s111
      %s114 = sphi 0, %s113
      %s128 = sphi 0, %s114
      %s134 = sphi 0, %s136
      %s137 = sphi 0, %s134
      %s138 = sphi 0, %s137
      %s154 = sphi 0, %s138
    $region4: #{encoder_forward.9} parent=1 // loop_header_branch
      %17 = sbr.rel (%p15) target = $region8
    $region5: #{encoder_forward.9} parent=1 // loop_body
      %s19 = ssub.s32 %s14, 1
      %s20 = ssub.s32 %s14, 2
      %s21 = sadd.s32 %s14, 1
      %s22 = ssub.s32 %s14, %s21
      %p23 = scmp.eq.s32.totalorder %s22, 0
      %s25 = sadd.s32 %s24, 1
      %s26 = scalar_select %p23, %s24, %s25
      %p29 = pneg %p23
      %p30 = scmp.eq.s32.totalorder %s14, 1
      %p31 = por %p29, %p30
      %p32 = scmp.ne.s32.totalorder %s24, %s27
      %p33 = scmp.eq.s32.totalorder %s14, 0
      %p34 = por %p32, %p33
      %p35 = scmp.ne.s32.totalorder %s24, %s27
      %p36 = scmp.eq.s32.totalorder %s19, 1
      %p37 = por %p35, %p36
      %p38 = scmp.ne.s32.totalorder %s27, %s28
      %p39 = scmp.eq.s32.totalorder %s19, 0
      %p40 = por %p38, %p39
      %p41 = scmp.ne.s32.totalorder %s27, %s28
      %p42 = scmp.eq.s32.totalorder %s20, 1
      %p43 = por %p41, %p42
      %p45 = scmp.ne.s32.totalorder %s28, %s44
      %p46 = scmp.eq.s32.totalorder %s20, 0
      %p47 = por %p45, %p46
      %s49 = sadd.s32 %s48, 1
      %p52 = scmp.eq.s32.totalorder %s14, 1
      %p53 = scmp.ne.s32.totalorder %s48, %s50
      %p54 = scmp.eq.s32.totalorder %s14, 0
      %p55 = por %p53, %p54
      %p56 = scmp.ne.s32.totalorder %s48, %s50
      %p57 = scmp.eq.s32.totalorder %s19, 1
      %p58 = por %p56, %p57
      %p59 = scmp.ne.s32.totalorder %s50, %s51
      %p60 = scmp.eq.s32.totalorder %s19, 0
      %p61 = por %p59, %p60
      %p62 = scmp.ne.s32.totalorder %s50, %s51
      %p63 = scmp.eq.s32.totalorder %s20, 1
      %p64 = por %p62, %p63
      %p66 = scmp.ne.s32.totalorder %s51, %s65
      %p67 = scmp.eq.s32.totalorder %s20, 0
      %p68 = por %p66, %p67
      %s70 = sadd.s32 %s69, 1
      %p73 = scmp.eq.s32.totalorder %s14, 1
      %p74 = scmp.ne.s32.totalorder %s69, %s71
      %p75 = scmp.eq.s32.totalorder %s14, 0
      %p76 = por %p74, %p75
      %p77 = scmp.ne.s32.totalorder %s69, %s71
      %p78 = scmp.eq.s32.totalorder %s19, 1
      %p79 = por %p77, %p78
      %p80 = scmp.ne.s32.totalorder %s71, %s72
      %p81 = scmp.eq.s32.totalorder %s19, 0
      %p82 = por %p80, %p81
      %p83 = scmp.ne.s32.totalorder %s71, %s72
      %p84 = scmp.eq.s32.totalorder %s20, 1
      %p85 = por %p83, %p84
      %p87 = scmp.ne.s32.totalorder %s72, %s86
      %p88 = scmp.eq.s32.totalorder %s20, 0
      %p89 = por %p87, %p88
      %s91 = sadd.s32 %s90, 1
      %p94 = scmp.eq.s32.totalorder %s14, 1
      %p95 = scmp.ne.s32.totalorder %s90, %s92
      %p96 = scmp.eq.s32.totalorder %s14, 0
      %p97 = por %p95, %p96
      %p98 = scmp.ne.s32.totalorder %s90, %s92
      %p99 = scmp.eq.s32.totalorder %s19, 1
      %p100 = por %p98, %p99
      %p101 = scmp.ne.s32.totalorder %s92, %s93
      %p102 = scmp.eq.s32.totalorder %s19, 0
      %p103 = por %p101, %p102
      %p104 = scmp.ne.s32.totalorder %s92, %s93
      %p105 = scmp.eq.s32.totalorder %s20, 1
      %p106 = por %p104, %p105
      %p108 = scmp.ne.s32.totalorder %s93, %s107
      %p109 = scmp.eq.s32.totalorder %s20, 0
      %p110 = por %p108, %p109
      %s112 = sadd.s32 %s111, 1
      %p115 = scmp.eq.s32.totalorder %s14, 1
      %p116 = scmp.ne.s32.totalorder %s111, %s113
      %p117 = scmp.eq.s32.totalorder %s14, 0
      %p118 = por %p116, %p117
      %p119 = scmp.ne.s32.totalorder %s111, %s113
      %p120 = scmp.eq.s32.totalorder %s19, 1
      %p121 = por %p119, %p120
      %p122 = scmp.ne.s32.totalorder %s113, %s114
      %p123 = scmp.eq.s32.totalorder %s19, 0
      %p124 = por %p122, %p123
      %p125 = scmp.ne.s32.totalorder %s113, %s114
      %p126 = scmp.eq.s32.totalorder %s20, 1
      %p127 = por %p125, %p126
      %p129 = scmp.ne.s32.totalorder %s114, %s128
      %p130 = scmp.eq.s32.totalorder %s20, 0
      %p131 = por %p129, %p130
      %s132 = ssub.s32 %s14, %s21
      %p133 = scmp.eq.s32.totalorder %s132, 0
      %s135 = sadd.s32 %s134, 1
      %s136 = scalar_select %p133, %s134, %s135
      %p139 = pneg %p133
      %p140 = scmp.eq.s32.totalorder %s14, 1
      %p141 = por %p139, %p140
      %p142 = scmp.ne.s32.totalorder %s134, %s137
      %p143 = scmp.eq.s32.totalorder %s14, 0
      %p144 = por %p142, %p143
      %p145 = scmp.ne.s32.totalorder %s134, %s137
      %p146 = scmp.eq.s32.totalorder %s19, 1
      %p147 = por %p145, %p146
      %p148 = scmp.ne.s32.totalorder %s137, %s138
      %p149 = scmp.eq.s32.totalorder %s19, 0
      %p150 = por %p148, %p149
      %p151 = scmp.ne.s32.totalorder %s137, %s138
      %p152 = scmp.eq.s32.totalorder %s20, 1
      %p153 = por %p151, %p152
      %p155 = scmp.ne.s32.totalorder %s138, %s154
      %p156 = scmp.eq.s32.totalorder %s20, 0
      %p157 = por %p155, %p156
      %p158 = scmp.le.s32.totalorder 1, %s14
      %p159 = scmp.lt.s32.totalorder %s14, 3
      %p160 = pnand %p158, %p159
      %p161 = pneg %p160
      // Predicated region
      $region9: #{encoder_forward.9} parent=5 // pred_check
        _
      $region10: #{encoder_forward.9} parent=5 // pred_check_branch
        %163 = sbr.rel (%p160) target = $region12
      $region11: #{encoder_forward.9} parent=5 // pred_region
        %s164 = ssub.s32 %s14, 1
        // Predicated region
        $region13: #{encoder_forward.9} parent=11 // pred_check
          %p165 = pneg %p61
        $region14: #{encoder_forward.9} parent=11 // pred_check_branch
          %167 = sbr.rel (%p165) target = $region16
        $region15: #{encoder_forward.9} parent=11 // pred_region
          _
        $region16: #{encoder_forward.9} parent=11 // pred_fallthru
          _
        // Predicated region
        $region17: #{encoder_forward.9} parent=11 // pred_check
          %p168 = pneg %p82
        $region18: #{encoder_forward.9} parent=11 // pred_check_branch
          %170 = sbr.rel (%p168) target = $region20
        $region19: #{encoder_forward.9} parent=11 // pred_region
          _
        $region20: #{encoder_forward.9} parent=11 // pred_fallthru
          _
        // Predicated region
        $region21: #{encoder_forward.9} parent=11 // pred_check
          %p171 = pneg %p103
        $region22: #{encoder_forward.9} parent=11 // pred_check_branch
          %173 = sbr.rel (%p171) target = $region24
        $region23: #{encoder_forward.9} parent=11 // pred_region
          _
        $region24: #{encoder_forward.9} parent=11 // pred_fallthru
          _
        // Predicated region
        $region25: #{encoder_forward.9} parent=11 // pred_check
          %p174 = pneg %p124
        $region26: #{encoder_forward.9} parent=11 // pred_check_branch
          %176 = sbr.rel (%p174) target = $region28
        $region27: #{encoder_forward.9} parent=11 // pred_region
          _
        $region28: #{encoder_forward.9} parent=11 // pred_fallthru
          _
      $region12: #{encoder_forward.9} parent=5 // pred_fallthru
        _
      %p177 = scmp.lt.s32.totalorder %s14, 2
      // Predicated region
      $region29: #{encoder_forward.9} parent=5 // pred_check
        %p178 = pneg %p177
      $region30: #{encoder_forward.9} parent=5 // pred_check_branch
        %180 = sbr.rel (%p178) target = $region32
      $region31: #{encoder_forward.9} parent=5 // pred_region
        // Predicated region
        $region33: #{encoder_forward.9} parent=31 // pred_check
          %p181 = pneg %p34
        $region34: #{encoder_forward.9} parent=31 // pred_check_branch
          %183 = sbr.rel (%p181) target = $region36
        $region35: #{encoder_forward.9} parent=31 // pred_region
          %p184 = scmp.lt.s32.totalorder %s14, 1
          %s185 = scalar_select %p184, %s14, 1
          %s186 = smul.addr %s185, 4
          %s187 = smul.addr %s186, 2
          %s188 = scalar_lea.vmem %s0, %s187
        $region36: #{encoder_forward.9} parent=31 // pred_fallthru
          _
      $region32: #{encoder_forward.9} parent=5 // pred_fallthru
        _
      %p189 = scmp.le.s32.totalorder 1, %s14
      %p190 = scmp.lt.s32.totalorder %s14, 3
      %p191 = pnand %p189, %p190
      %p192 = pneg %p191
      // Predicated region
      $region37: #{encoder_forward.9} parent=5 // pred_check
        _
      $region38: #{encoder_forward.9} parent=5 // pred_check_branch
        %194 = sbr.rel (%p191) target = $region40
      $region39: #{encoder_forward.9} parent=5 // pred_region
        %s195 = ssub.s32 %s14, 1
        %p196 = scmp.lt.s32.totalorder %s19, 1
        %s197 = scalar_select %p196, %s19, 1
        %s198 = smul.addr %s197, 4
        %s199 = smul.addr %s198, 2
        %s200 = scalar_lea.vmem %s0, %s199
        %p201 = pneg %p40
        %p202 = pneg %p37
        %p203 = pneg %p61
        %p204 = pneg %p58
        %p205 = pneg %p82
        %p206 = pneg %p79
        %p207 = pneg %p103
        %p208 = pneg %p100
        %p209 = pneg %p124
        %p210 = pneg %p121
        %p211 = pneg %p150
        %p212 = pneg %p147
        %s213 = sand.u32 %s137, 1
        %s214 = scalar_lea.sflag [#allocation4], %s213
        %s215 = sand.u32 %s137, 1
        %s216 = smul.addr %s215, 16
        %s217 = scalar_lea.vmem [#allocation3], %s216
        %p218 = scmp.lt.s32.totalorder %s19, 1
        %s219 = scalar_select %p218, %s19, 1
        %s220 = smul.addr %s219, 4
        %s221 = smul.addr %s220, 2
        %s222 = scalar_lea.vmem %s0, %s221
        %vm224 = vcmask 257024
        %225 = vst.msk [vmem:[#allocation2] sm:$0xf] %vm224, 0
        %226 = vst.msk [vmem:[#allocation2 + $0x4] sm:$0xf] %vm224, 0
        %227 = vst.msk [vmem:[#allocation2 + $0x8] sm:$0xf] %vm224, 0
        %228 = vst.msk [vmem:[#allocation2 + $0xc] sm:$0xf] %vm224, 0
        %229 = vst.msk [vmem:[#allocation2 + $0x10] sm:$0xf] %vm224, 0
        %v230 = vld [vmem:[%s222] sm:$0x3]
        %v231 = vmax.bf16 %v230, 0
        %v234 = vunpack.c.l.s4 1983009808
        %v235 = vunpack.c.0.s8 %v234
        %v236 = vlaneseq
        %v237 = vshrl.u32 %v236, 7
        %v238 = vsub.s32 %v235, %v237
        %v239 = vrot.slane %v231, %v238
        %v241 = vshll.u32 %v239, 16
        %v243 = vrot.slane %v241, 5
        %v244 = vshrl.u32 %v239, 16
        %v246 = vrot.slane %v244, 4
        %v247 = vor.u32 %v246, %v243
        %v248 = vrot.slane %v247, 4
        %vm251 = vcmask 257027
        %vm252 = vsmask.f32 7950
        %vm253 = vmand %vm251, %vm252
        %v254 = vld [vmem:[#allocation2] sm:$0x8]
        %v255 = vsel %vm253, %v243, %v254
        %256 = vst [vmem:[#allocation2] sm:$0x8] %v255
        %vm257 = vcmask 254976
        %vm258 = vsmask.f32 1280
        %vm259 = vmand %vm257, %vm258
        %v260 = vld [vmem:[#allocation2 + $0x4] sm:$0x3]
        %v261 = vsel %vm259, %v248, %v260
        %262 = vst [vmem:[#allocation2 + $0x4] sm:$0x3] %v261
        %s263 = scalar_lea.vmem %s222, 2
        %v264 = vld [vmem:[%s263] sm:$0x3]
        %v265 = vmax.bf16 %v264, 0
        %v268 = vunpack.c.l.s4 1983009808
        %v269 = vunpack.c.0.s8 %v268
        %v270 = vlaneseq
        %v271 = vshrl.u32 %v270, 7
        %v272 = vsub.s32 %v269, %v271
        %v273 = vrot.slane %v265, %v272
        %v275 = vshrl.u32 %v273, 16
        %v277 = vrot.slane %v275, 5
        %v278 = vshll.u32 %v273, 16
        %v280 = vrot.slane %v278, 6
        %v281 = vor.u32 %v277, %v280
        %v282 = vrot.slane %v277, 4
        %vm285 = vcmask 257026
        %vm286 = vsmask.f32 7946
        %vm287 = vmand %vm285, %vm286
        %v288 = vld [vmem:[#allocation2 + $0x4] sm:$0xc]
        %v289 = vsel %vm287, %v281, %v288
        %290 = vst [vmem:[#allocation2 + $0x4] sm:$0xc] %v289
        %vm291 = vcmask 253952
        %vm292 = vsmask.f32 256
        %vm293 = vmand %vm291, %vm292
        %v294 = vld [vmem:[#allocation2 + $0x8] sm:$0x1]
        %v295 = vsel %vm293, %v282, %v294
        %296 = vst [vmem:[#allocation2 + $0x8] sm:$0x1] %v295
        %s297 = scalar_lea.vmem %s222, 4
        %v298 = vld [vmem:[%s297] sm:$0x3]
        %v299 = vmax.bf16 %v298, 0
        %v302 = vunpack.c.l.s4 1983009808
        %v303 = vunpack.c.0.s8 %v302
        %v304 = vlaneseq
        %v305 = vshrl.u32 %v304, 7
        %v306 = vsub.s32 %v303, %v305
        %v307 = vrot.slane %v299, %v306
        %v309 = vshrl.u32 %v307, 16
        %v311 = vrot.slane %v309, 6
        %v312 = vshll.u32 %v307, 16
        %v314 = vrot.slane %v312, 7
        %v315 = vor.u32 %v311, %v314
        %vm317 = vcmask 257025
        %vm318 = vsmask.f32 3334
        %vm319 = vmand %vm317, %vm318
        %v320 = vld [vmem:[#allocation2 + $0x8] sm:$0xe]
        %v321 = vsel %vm319, %v315, %v320
        %322 = vst [vmem:[#allocation2 + $0x8] sm:$0xe] %v321
        %s323 = scalar_lea.vmem %s222, 6
        %v324 = vld [vmem:[%s323] sm:$0x3]
        %v325 = vmax.bf16 %v324, 0
        %v328 = vunpack.c.l.s4 1983009808
        %v329 = vunpack.c.0.s8 %v328
        %v330 = vlaneseq
        %v331 = vshrl.u32 %v330, 7
        %v332 = vsub.s32 %v329, %v331
        %v333 = vrot.slane %v325, %v332
        %v335 = vshrl.u32 %v333, 16
        %v337 = vrot.slane %v335, 7
        %v338 = vshll.u32 %v333, 16
        %v340 = vor.u32 %v337, %v338
        %vm342 = vcmask 256000
        %vm343 = vsmask.f32 2306
        %vm344 = vmand %vm342, %vm343
        %v345 = vld [vmem:[#allocation2 + $0xc] sm:$0x7]
        %v346 = vsel %vm344, %v340, %v345
        %347 = vst [vmem:[#allocation2 + $0xc] sm:$0x7] %v346
        %v348 = vld [vmem:[#allocation2] sm:$0xf]
        %v349 = vld [vmem:[#allocation2 + $0x4] sm:$0xf]
        %v350 = vld [vmem:[#allocation2 + $0x8] sm:$0xf]
        %v351 = vld [vmem:[%s1] sm:$0xf]
        %v352 = vld [vmem:[%s1 + $0x4] sm:$0xf]
        %v353 = vld [vmem:[%s1 + $0x8] sm:$0xf]
        %v354 = vld [vmem:[%s1 + $0xc] sm:$0xf]
        %v355 = vld [vmem:[#allocation2 + $0xc] sm:$0x1]
        %s356 = scalar_lea.vmem %s1, 16
        %v357 = vld [vmem:[%s356] sm:$0xf]
        %v358 = vld [vmem:[%s356 + $0x4] sm:$0xf]
        %v359 = vld [vmem:[%s356 + $0x8] sm:$0xf]
        %v360 = vld [vmem:[%s356 + $0xc] sm:$0xf]
        %v365 = vunpack.c.l.b16 %v348
        %v366 = vunpack.c.l.b16 %v349
        %v367 = vunpack.c.l.b16 %v350
        %v368 = vunpack.c.l.b16 %v355
        %v369 = vpack.c.b16 %v366, %v365
        %v370 = vpack.c.b16 %v368, %v367
        %vm371 = vsmask.f32 7424
        %v373 = vshrl.u32 %v369, 16
        %v375 = vshll.u32 %v369, 16
        %v377 = vrot.slane %v375, 1
        %v378 = vor.u32 %v373, %v377
        %v380 = vshll.u32 %v370, 16
        %v382 = vrot.slane %v380, 1
        %v383 = vsel %vm371, %v378, %v382
        %v384 = vshrl.u32 %v370, 16
        %v386 = vor.u32 %v384, %v382
        %v391 = vunpack.c.l.b16 %v357
        %v392 = vunpack.c.l.b16 %v358
        %v393 = vunpack.c.l.b16 %v359
        %v394 = vunpack.c.l.b16 %v360
        %v395 = vpack.c.b16 %v392, %v391
        %v396 = vpack.c.b16 %v394, %v393
        %vm399 = vcmask 261120
        %v401 = vsel %vm399, %v383, 0
        %v404 = vsel %vm399, %v386, 0
        %406 = vmatprep.subr.bf16.mxu0 0
        %407 = vmatpush1.bf16.msra.mxu0 %v395
        %408 = vmatprep.subr.bf16.mxu0 0
        %409 = vmatpush1.bf16.msra.mxu0 %v396
        %410 = vmatprep.subr.bf16.mxu0 0
        %411 = vmatpush1.bf16.msra.mxu0 0
        %412 = vmatprep.subr.bf16.mxu0 0
        %413 = vmatpush1.bf16.msra.mxu0 0
        %414 = vmatprep.subr.bf16.mxu0 0
        %415 = vmatpush1.bf16.msra.mxu0 0
        %416 = vmatprep.subr.bf16.mxu0 0
        %417 = vmatpush1.bf16.msra.mxu0 0
        %418 = vmatprep.subr.bf16.mxu0 0
        %419 = vmatpush1.bf16.msra.mxu0 0
        %420 = vmatprep.subr.bf16.mxu0 0
        %421 = vmatpush1.bf16.msra.mxu0 0
        %422 = vmatprep.subr.bf16.mxu0 0
        %423 = vmatpush1.bf16.msra.mxu0 0
        %424 = vmatprep.subr.bf16.mxu0 0
        %425 = vmatpush1.bf16.msra.mxu0 0
        %426 = vmatprep.subr.bf16.mxu0 0
        %427 = vmatpush1.bf16.msra.mxu0 0
        %428 = vmatprep.subr.bf16.mxu0 0
        %429 = vmatpush1.bf16.msra.mxu0 0
        %430 = vmatprep.subr.bf16.mxu0 0
        %431 = vmatpush1.bf16.msra.mxu0 0
        %432 = vmatprep.subr.bf16.mxu0 0
        %433 = vmatpush1.bf16.msra.mxu0 0
        %434 = vmatprep.subr.bf16.mxu0 0
        %435 = vmatpush1.bf16.msra.mxu0 0
        %436 = vmatprep.subr.bf16.mxu0 0
        %437 = vmatpush1.bf16.msra.mxu0 0
        %438 = vmatprep.mubr.bf16.mxu0 0
        %439 = vmatmul.mubr.bf16.gmra.mrb[0].mxu0 %v401
        %v440 = vpop.f32.mrb[0].mxu0
        %v441 = vadd.f32 0.0, %v440
        %v442 = vpop.f32.mrb[0].mxu0
        %v443 = vpop.f32.mrb[0].mxu0
        %v444 = vadd.f32 0.0, %v443
        %v445 = vpop.f32.mrb[0].mxu0
        %446 = vmatprep.mubr.bf16.mxu0 0
        %447 = vmatmul.mubr.bf16.gmra.mrb[0].mxu0 %v404
        %v448 = vpop.f32.mrb[0].mxu0
        %v449 = vadd.f32 0.0, %v448
        %v450 = vpop.f32.mrb[0].mxu0
        %v451 = vpop.f32.mrb[0].mxu0
        %v452 = vpop.f32.mrb[0].mxu0
        %453 = vdwg.mxu0
        %v454 = vpack.c.b16 %v367, %v367
        %v459 = vunpack.c.l.b16 %v351
        %v460 = vunpack.c.l.b16 %v352
        %v461 = vunpack.c.l.b16 %v353
        %v462 = vunpack.c.l.b16 %v354
        %v463 = vpack.c.b16 %v460, %v459
        %v464 = vpack.c.b16 %v462, %v461
        %v467 = vsel %vm399, %v369, 0
        %v470 = vsel %vm399, %v454, 0
        %472 = vmatprep.subr.bf16.mxu0 0
        %473 = vmatpush1.bf16.msra.mxu0 %v463
        %474 = vmatprep.subr.bf16.mxu0 0
        %475 = vmatpush1.bf16.msra.mxu0 %v464
        %476 = vmatprep.subr.bf16.mxu0 0
        %477 = vmatpush1.bf16.msra.mxu0 0
        %478 = vmatprep.subr.bf16.mxu0 0
        %479 = vmatpush1.bf16.msra.mxu0 0
        %480 = vmatprep.subr.bf16.mxu0 0
        %481 = vmatpush1.bf16.msra.mxu0 0
        %482 = vmatprep.subr.bf16.mxu0 0
        %483 = vmatpush1.bf16.msra.mxu0 0
        %484 = vmatprep.subr.bf16.mxu0 0
        %485 = vmatpush1.bf16.msra.mxu0 0
        %486 = vmatprep.subr.bf16.mxu0 0
        %487 = vmatpush1.bf16.msra.mxu0 0
        %488 = vmatprep.subr.bf16.mxu0 0
        %489 = vmatpush1.bf16.msra.mxu0 0
        %490 = vmatprep.subr.bf16.mxu0 0
        %491 = vmatpush1.bf16.msra.mxu0 0
        %492 = vmatprep.subr.bf16.mxu0 0
        %493 = vmatpush1.bf16.msra.mxu0 0
        %494 = vmatprep.subr.bf16.mxu0 0
        %495 = vmatpush1.bf16.msra.mxu0 0
        %496 = vmatprep.subr.bf16.mxu0 0
        %497 = vmatpush1.bf16.msra.mxu0 0
        %498 = vmatprep.subr.bf16.mxu0 0
        %499 = vmatpush1.bf16.msra.mxu0 0
        %500 = vmatprep.subr.bf16.mxu0 0
        %501 = vmatpush1.bf16.msra.mxu0 0
        %502 = vmatprep.subr.bf16.mxu0 0
        %503 = vmatpush1.bf16.msra.mxu0 0
        %504 = vmatprep.mubr.bf16.mxu0 0
        %505 = vmatmul.mubr.bf16.gmra.mrb[0].mxu0 %v467
        %v506 = vpop.f32.mrb[0].mxu0
        %v507 = vadd.f32 %v441, %v506
        %v508 = vpop.f32.mrb[0].mxu0
        %v509 = vpop.f32.mrb[0].mxu0
        %v510 = vadd.f32 %v444, %v509
        %v511 = vpop.f32.mrb[0].mxu0
        %512 = vmatprep.mubr.bf16.mxu0 0
        %513 = vmatmul.mubr.bf16.gmra.mrb[0].mxu0 %v470
        %v514 = vpop.f32.mrb[0].mxu0
        %v515 = vadd.f32 %v449, %v514
        %v516 = vpop.f32.mrb[0].mxu0
        %v517 = vpop.f32.mrb[0].mxu0
        %v518 = vpop.f32.mrb[0].mxu0
        %519 = vdwg.mxu0
        %v520 = vld [vmem:[#allocation2] sm:$0xe]
        %s521 = scalar_lea.vmem %s1, 32
        %v522 = vld [vmem:[%s521] sm:$0xf]
        %v523 = vld [vmem:[%s521 + $0x4] sm:$0xf]
        %v524 = vld [vmem:[%s521 + $0x8] sm:$0xf]
        %v525 = vld [vmem:[%s521 + $0xc] sm:$0xf]
        %v527 = vunpack.c.l.b16 %v520
        %v528 = vpack.c.b16 %v366, %v527
        %vm529 = vcmask 1046528
        %v530 = vrot.slane %v528, 1
        %v531 = vrot.slane %v370, 1
        %v532 = vsel %vm529, %v530, %v531
        %v537 = vunpack.c.l.b16 %v522
        %v538 = vunpack.c.l.b16 %v523
        %v539 = vunpack.c.l.b16 %v524
        %v540 = vunpack.c.l.b16 %v525
        %v541 = vpack.c.b16 %v538, %v537
        %v542 = vpack.c.b16 %v540, %v539
        %v546 = vsel %vm399, %v532, 0
        %v549 = vsel %vm399, %v531, 0
        %551 = vmatprep.subr.bf16.mxu0 0
        %552 = vmatpush1.bf16.msra.mxu0 %v541
        %553 = vmatprep.subr.bf16.mxu0 0
        %554 = vmatpush1.bf16.msra.mxu0 %v542
        %555 = vmatprep.subr.bf16.mxu0 0
        %556 = vmatpush1.bf16.msra.mxu0 0
        %557 = vmatprep.subr.bf16.mxu0 0
        %558 = vmatpush1.bf16.msra.mxu0 0
        %559 = vmatprep.subr.bf16.mxu0 0
        %560 = vmatpush1.bf16.msra.mxu0 0
        %561 = vmatprep.subr.bf16.mxu0 0
        %562 = vmatpush1.bf16.msra.mxu0 0
        %563 = vmatprep.subr.bf16.mxu0 0
        %564 = vmatpush1.bf16.msra.mxu0 0
        %565 = vmatprep.subr.bf16.mxu0 0
        %566 = vmatpush1.bf16.msra.mxu0 0
        %567 = vmatprep.subr.bf16.mxu0 0
        %568 = vmatpush1.bf16.msra.mxu0 0
        %569 = vmatprep.subr.bf16.mxu0 0
        %570 = vmatpush1.bf16.msra.mxu0 0
        %571 = vmatprep.subr.bf16.mxu0 0
        %572 = vmatpush1.bf16.msra.mxu0 0
        %573 = vmatprep.subr.bf16.mxu0 0
        %574 = vmatpush1.bf16.msra.mxu0 0
        %575 = vmatprep.subr.bf16.mxu0 0
        %576 = vmatpush1.bf16.msra.mxu0 0
        %577 = vmatprep.subr.bf16.mxu0 0
        %578 = vmatpush1.bf16.msra.mxu0 0
        %579 = vmatprep.subr.bf16.mxu0 0
        %580 = vmatpush1.bf16.msra.mxu0 0
        %581 = vmatprep.subr.bf16.mxu0 0
        %582 = vmatpush1.bf16.msra.mxu0 0
        %583 = vmatprep.mubr.bf16.mxu0 0
        %584 = vmatmul.mubr.bf16.gmra.mrb[0].mxu0 %v546
        %v585 = vpop.f32.mrb[0].mxu0
        %v586 = vadd.f32 0.0, %v585
        %v587 = vpop.f32.mrb[0].mxu0
        %v588 = vpop.f32.mrb[0].mxu0
        %v589 = vadd.f32 0.0, %v588
        %v590 = vpop.f32.mrb[0].mxu0
        %591 = vmatprep.mubr.bf16.mxu0 0
        %592 = vmatmul.mubr.bf16.gmra.mrb[0].mxu0 %v549
        %v593 = vpop.f32.mrb[0].mxu0
        %v594 = vadd.f32 0.0, %v593
        %v595 = vpop.f32.mrb[0].mxu0
        %v596 = vpop.f32.mrb[0].mxu0
        %v597 = vpop.f32.mrb[0].mxu0
        %598 = vdwg.mxu0
        %v599 = vadd.f32 %v507, %v586
        %v600 = vadd.f32 %v510, %v589
        %v601 = vadd.f32 %v515, %v594
        %v602 = vld [vmem:[#allocation2] sm:$0x8]
        %v603 = vld [vmem:[#allocation2 + $0xc] sm:$0x7]
        %s604 = scalar_lea.vmem %s1, 48
        %v605 = vld [vmem:[%s604] sm:$0xf]
        %v606 = vld [vmem:[%s604 + $0x4] sm:$0xf]
        %v607 = vld [vmem:[%s604 + $0x8] sm:$0xf]
        %v608 = vld [vmem:[%s604 + $0xc] sm:$0xf]
        %v611 = vunpack.c.l.b16 %v602
        %v612 = vunpack.c.l.b16 %v603
        %v613 = vpack.c.b16 %v366, %v611
        %v614 = vpack.c.b16 %v612, %v367
        %vm615 = vcmask 1044480
        %v616 = vrot.slane %v613, 3
        %v617 = vrot.slane %v614, 3
        %v618 = vsel %vm615, %v616, %v617
        %v623 = vunpack.c.l.b16 %v605
        %v624 = vunpack.c.l.b16 %v606
        %v625 = vunpack.c.l.b16 %v607
        %v626 = vunpack.c.l.b16 %v608
        %v627 = vpack.c.b16 %v624, %v623
        %v628 = vpack.c.b16 %v626, %v625
        %v632 = vsel %vm399, %v618, 0
        %v635 = vsel %vm399, %v617, 0
        %637 = vmatprep.subr.bf16.mxu0 0
        %638 = vmatpush1.bf16.msra.mxu0 %v627
        %639 = vmatprep.subr.bf16.mxu0 0
        %640 = vmatpush1.bf16.msra.mxu0 %v628
        %641 = vmatprep.subr.bf16.mxu0 0
        %642 = vmatpush1.bf16.msra.mxu0 0
        %643 = vmatprep.subr.bf16.mxu0 0
        %644 = vmatpush1.bf16.msra.mxu0 0
        %645 = vmatprep.subr.bf16.mxu0 0
        %646 = vmatpush1.bf16.msra.mxu0 0
        %647 = vmatprep.subr.bf16.mxu0 0
        %648 = vmatpush1.bf16.msra.mxu0 0
        %649 = vmatprep.subr.bf16.mxu0 0
        %650 = vmatpush1.bf16.msra.mxu0 0
        %651 = vmatprep.subr.bf16.mxu0 0
        %652 = vmatpush1.bf16.msra.mxu0 0
        %653 = vmatprep.subr.bf16.mxu0 0
        %654 = vmatpush1.bf16.msra.mxu0 0
        %655 = vmatprep.subr.bf16.mxu0 0
        %656 = vmatpush1.bf16.msra.mxu0 0
        %657 = vmatprep.subr.bf16.mxu0 0
        %658 = vmatpush1.bf16.msra.mxu0 0
        %659 = vmatprep.subr.bf16.mxu0 0
        %660 = vmatpush1.bf16.msra.mxu0 0
        %661 = vmatprep.subr.bf16.mxu0 0
        %662 = vmatpush1.bf16.msra.mxu0 0
        %663 = vmatprep.subr.bf16.mxu0 0
        %664 = vmatpush1.bf16.msra.mxu0 0
        %665 = vmatprep.subr.bf16.mxu0 0
        %666 = vmatpush1.bf16.msra.mxu0 0
        %667 = vmatprep.subr.bf16.mxu0 0
        %668 = vmatpush1.bf16.msra.mxu0 0
        %669 = vmatprep.mubr.bf16.mxu0 0
        %670 = vmatmul.mubr.bf16.gmra.mrb[0].mxu0 %v632
        %v671 = vpop.f32.mrb[0].mxu0
        %v672 = vadd.f32 0.0, %v671
        %v673 = vpop.f32.mrb[0].mxu0
        %v674 = vpop.f32.mrb[0].mxu0
        %v675 = vadd.f32 0.0, %v674
        %v676 = vpop.f32.mrb[0].mxu0
        %677 = vmatprep.mubr.bf16.mxu0 0
        %678 = vmatmul.mubr.bf16.gmra.mrb[0].mxu0 %v635
        %v679 = vpop.f32.mrb[0].mxu0
        %v680 = vadd.f32 0.0, %v679
        %v681 = vpop.f32.mrb[0].mxu0
        %v682 = vpop.f32.mrb[0].mxu0
        %v683 = vpop.f32.mrb[0].mxu0
        %684 = vdwg.mxu0
        %v685 = vadd.f32 %v599, %v672
        %v686 = vadd.f32 %v600, %v675
        %v687 = vadd.f32 %v601, %v680
        %v688 = vld [vmem:[#allocation2 + $0xc] sm:$0xf]
        %s689 = scalar_lea.vmem %s1, 64
        %v690 = vld [vmem:[%s689] sm:$0xf]
        %v691 = vld [vmem:[%s689 + $0x4] sm:$0xf]
        %v692 = vld [vmem:[%s689 + $0x8] sm:$0xf]
        %v693 = vld [vmem:[%s689 + $0xc] sm:$0xf]
        %v695 = vunpack.c.l.b16 %v688
        %v696 = vpack.c.b16 %v695, %v367
        %vm697 = vsmask.f32 4352
        %v699 = vshrl.u32 %v613, 16
        %v701 = vrot.slane %v699, 3
        %v702 = vshll.u32 %v613, 16
        %v704 = vrot.slane %v702, 4
        %v705 = vor.u32 %v701, %v704
        %v707 = vshrl.u32 %v696, 16
        %v709 = vrot.slane %v707, 3
        %v710 = vshll.u32 %v696, 16
        %v712 = vrot.slane %v710, 4
        %v713 = vor.u32 %v709, %v712
        %v714 = vsel %vm697, %v705, %v713
        %v719 = vunpack.c.l.b16 %v690
        %v720 = vunpack.c.l.b16 %v691
        %v721 = vunpack.c.l.b16 %v692
        %v722 = vunpack.c.l.b16 %v693
        %v723 = vpack.c.b16 %v720, %v719
        %v724 = vpack.c.b16 %v722, %v721
        %v728 = vsel %vm399, %v714, 0
        %v731 = vsel %vm399, %v713, 0
        %733 = vmatprep.subr.bf16.mxu0 0
        %734 = vmatpush1.bf16.msra.mxu0 %v723
        %735 = vmatprep.subr.bf16.mxu0 0
        %736 = vmatpush1.bf16.msra.mxu0 %v724
        %737 = vmatprep.subr.bf16.mxu0 0
        %738 = vmatpush1.bf16.msra.mxu0 0
        %739 = vmatprep.subr.bf16.mxu0 0
        %740 = vmatpush1.bf16.msra.mxu0 0
        %741 = vmatprep.subr.bf16.mxu0 0
        %742 = vmatpush1.bf16.msra.mxu0 0
        %743 = vmatprep.subr.bf16.mxu0 0
        %744 = vmatpush1.bf16.msra.mxu0 0
        %745 = vmatprep.subr.bf16.mxu0 0
        %746 = vmatpush1.bf16.msra.mxu0 0
        %747 = vmatprep.subr.bf16.mxu0 0
        %748 = vmatpush1.bf16.msra.mxu0 0
        %749 = vmatprep.subr.bf16.mxu0 0
        %750 = vmatpush1.bf16.msra.mxu0 0
        %751 = vmatprep.subr.bf16.mxu0 0
        %752 = vmatpush1.bf16.msra.mxu0 0
        %753 = vmatprep.subr.bf16.mxu0 0
        %754 = vmatpush1.bf16.msra.mxu0 0
        %755 = vmatprep.subr.bf16.mxu0 0
        %756 = vmatpush1.bf16.msra.mxu0 0
        %757 = vmatprep.subr.bf16.mxu0 0
        %758 = vmatpush1.bf16.msra.mxu0 0
        %759 = vmatprep.subr.bf16.mxu0 0
        %760 = vmatpush1.bf16.msra.mxu0 0
        %761 = vmatprep.subr.bf16.mxu0 0
        %762 = vmatpush1.bf16.msra.mxu0 0
        %763 = vmatprep.subr.bf16.mxu0 0
        %764 = vmatpush1.bf16.msra.mxu0 0
        %765 = vmatprep.mubr.bf16.mxu0 0
        %766 = vmatmul.mubr.bf16.gmra.mrb[0].mxu0 %v728
        %v767 = vpop.f32.mrb[0].mxu0
        %v768 = vadd.f32 0.0, %v767
        %v769 = vpop.f32.mrb[0].mxu0
        %v770 = vpop.f32.mrb[0].mxu0
        %v771 = vadd.f32 0.0, %v770
        %v772 = vpop.f32.mrb[0].mxu0
        %773 = vmatprep.mubr.bf16.mxu0 0
        %774 = vmatmul.mubr.bf16.gmra.mrb[0].mxu0 %v731
        %v775 = vpop.f32.mrb[0].mxu0
        %v776 = vadd.f32 0.0, %v775
        %v777 = vpop.f32.mrb[0].mxu0
        %v778 = vpop.f32.mrb[0].mxu0
        %v779 = vpop.f32.mrb[0].mxu0
        %780 = vdwg.mxu0
        %v781 = vadd.f32 %v685, %v768
        %v782 = vadd.f32 %v686, %v771
        %v783 = vadd.f32 %v687, %v776
        %s784 = scalar_lea.vmem %s1, 80
        %v785 = vld [vmem:[%s784] sm:$0xf]
        %v786 = vld [vmem:[%s784 + $0x4] sm:$0xf]
        %v787 = vld [vmem:[%s784 + $0x8] sm:$0xf]
        %v788 = vld [vmem:[%s784 + $0xc] sm:$0xf]
        %v789 = vpack.c.b16 %v367, %v366
        %v790 = vpack.c.b16 %v695, %v695
        %v795 = vunpack.c.l.b16 %v785
        %v796 = vunpack.c.l.b16 %v786
        %v797 = vunpack.c.l.b16 %v787
        %v798 = vunpack.c.l.b16 %v788
        %v799 = vpack.c.b16 %v796, %v795
        %v800 = vpack.c.b16 %v798, %v797
        %v804 = vsel %vm399, %v789, 0
        %v807 = vsel %vm399, %v790, 0
        %809 = vmatprep.subr.bf16.mxu0 0
        %810 = vmatpush1.bf16.msra.mxu0 %v799
        %811 = vmatprep.subr.bf16.mxu0 0
        %812 = vmatpush1.bf16.msra.mxu0 %v800
        %813 = vmatprep.subr.bf16.mxu0 0
        %814 = vmatpush1.bf16.msra.mxu0 0
        %815 = vmatprep.subr.bf16.mxu0 0
        %816 = vmatpush1.bf16.msra.mxu0 0
        %817 = vmatprep.subr.bf16.mxu0 0
        %818 = vmatpush1.bf16.msra.mxu0 0
        %819 = vmatprep.subr.bf16.mxu0 0
        %820 = vmatpush1.bf16.msra.mxu0 0
        %821 = vmatprep.subr.bf16.mxu0 0
        %822 = vmatpush1.bf16.msra.mxu0 0
        %823 = vmatprep.subr.bf16.mxu0 0
        %824 = vmatpush1.bf16.msra.mxu0 0
        %825 = vmatprep.subr.bf16.mxu0 0
        %826 = vmatpush1.bf16.msra.mxu0 0
        %827 = vmatprep.subr.bf16.mxu0 0
        %828 = vmatpush1.bf16.msra.mxu0 0
        %829 = vmatprep.subr.bf16.mxu0 0
        %830 = vmatpush1.bf16.msra.mxu0 0
        %831 = vmatprep.subr.bf16.mxu0 0
        %832 = vmatpush1.bf16.msra.mxu0 0
        %833 = vmatprep.subr.bf16.mxu0 0
        %834 = vmatpush1.bf16.msra.mxu0 0
        %835 = vmatprep.subr.bf16.mxu0 0
        %836 = vmatpush1.bf16.msra.mxu0 0
        %837 = vmatprep.subr.bf16.mxu0 0
        %838 = vmatpush1.bf16.msra.mxu0 0
        %839 = vmatprep.subr.bf16.mxu0 0
        %840 = vmatpush1.bf16.msra.mxu0 0
        %841 = vmatprep.mubr.bf16.mxu0 0
        %842 = vmatmul.mubr.bf16.gmra.mrb[0].mxu0 %v804
        %v843 = vpop.f32.mrb[0].mxu0
        %v844 = vadd.f32 0.0, %v843
        %v845 = vpop.f32.mrb[0].mxu0
        %v846 = vpop.f32.mrb[0].mxu0
        %v847 = vadd.f32 0.0, %v846
        %v848 = vpop.f32.mrb[0].mxu0
        %849 = vmatprep.mubr.bf16.mxu0 0
        %850 = vmatmul.mubr.bf16.gmra.mrb[0].mxu0 %v807
        %v851 = vpop.f32.mrb[0].mxu0
        %v852 = vadd.f32 0.0, %v851
        %v853 = vpop.f32.mrb[0].mxu0
        %v854 = vpop.f32.mrb[0].mxu0
        %v855 = vpop.f32.mrb[0].mxu0
        %856 = vdwg.mxu0
        %v857 = vadd.f32 %v781, %v844
        %v858 = vadd.f32 %v782, %v847
        %v859 = vadd.f32 %v783, %v852
        %v860 = vld [vmem:[#allocation2 + $0x4] sm:$0xc]
        %v861 = vld [vmem:[#allocation2 + $0x8] sm:$0xf]
        %v862 = vld [vmem:[#allocation2 + $0xc] sm:$0xf]
        %v863 = vld [vmem:[#allocation2 + $0x10] sm:$0x3]
        %s864 = scalar_lea.vmem %s1, 96
        %v865 = vld [vmem:[%s864] sm:$0xf]
        %v866 = vld [vmem:[%s864 + $0x4] sm:$0xf]
        %v867 = vld [vmem:[%s864 + $0x8] sm:$0xf]
        %v868 = vld [vmem:[%s864 + $0xc] sm:$0xf]
        %v873 = vunpack.c.l.b16 %v860
        %v874 = vunpack.c.l.b16 %v861
        %v875 = vunpack.c.l.b16 %v862
        %v876 = vunpack.c.l.b16 %v863
        %v877 = vpack.c.b16 %v874, %v873
        %v878 = vpack.c.b16 %v876, %v875
        %vm879 = vcmask 1045504
        %v880 = vrot.slane %v877, 2
        %v881 = vrot.slane %v878, 2
        %v882 = vsel %vm879, %v880, %v881
        %v887 = vunpack.c.l.b16 %v865
        %v888 = vunpack.c.l.b16 %v866
        %v889 = vunpack.c.l.b16 %v867
        %v890 = vunpack.c.l.b16 %v868
        %v891 = vpack.c.b16 %v888, %v887
        %v892 = vpack.c.b16 %v890, %v889
        %v896 = vsel %vm399, %v882, 0
        %v899 = vsel %vm399, %v881, 0
        %901 = vmatprep.subr.bf16.mxu0 0
        %902 = vmatpush1.bf16.msra.mxu0 %v891
        %903 = vmatprep.subr.bf16.mxu0 0
        %904 = vmatpush1.bf16.msra.mxu0 %v892
        %905 = vmatprep.subr.bf16.mxu0 0
        %906 = vmatpush1.bf16.msra.mxu0 0
        %907 = vmatprep.subr.bf16.mxu0 0
        %908 = vmatpush1.bf16.msra.mxu0 0
        %909 = vmatprep.subr.bf16.mxu0 0
        %910 = vmatpush1.bf16.msra.mxu0 0
        %911 = vmatprep.subr.bf16.mxu0 0
        %912 = vmatpush1.bf16.msra.mxu0 0
        %913 = vmatprep.subr.bf16.mxu0 0
        %914 = vmatpush1.bf16.msra.mxu0 0
        %915 = vmatprep.subr.bf16.mxu0 0
        %916 = vmatpush1.bf16.msra.mxu0 0
        %917 = vmatprep.subr.bf16.mxu0 0
        %918 = vmatpush1.bf16.msra.mxu0 0
        %919 = vmatprep.subr.bf16.mxu0 0
        %920 = vmatpush1.bf16.msra.mxu0 0
        %921 = vmatprep.subr.bf16.mxu0 0
        %922 = vmatpush1.bf16.msra.mxu0 0
        %923 = vmatprep.subr.bf16.mxu0 0
        %924 = vmatpush1.bf16.msra.mxu0 0
        %925 = vmatprep.subr.bf16.mxu0 0
        %926 = vmatpush1.bf16.msra.mxu0 0
        %927 = vmatprep.subr.bf16.mxu0 0
        %928 = vmatpush1.bf16.msra.mxu0 0
        %929 = vmatprep.subr.bf16.mxu0 0
        %930 = vmatpush1.bf16.msra.mxu0 0
        %931 = vmatprep.subr.bf16.mxu0 0
        %932 = vmatpush1.bf16.msra.mxu0 0
        %933 = vmatprep.mubr.bf16.mxu0 0
        %934 = vmatmul.mubr.bf16.gmra.mrb[0].mxu0 %v896
        %v935 = vpop.f32.mrb[0].mxu0
        %v936 = vadd.f32 0.0, %v935
        %v937 = vpop.f32.mrb[0].mxu0
        %v938 = vpop.f32.mrb[0].mxu0
        %v939 = vadd.f32 0.0, %v938
        %v940 = vpop.f32.mrb[0].mxu0
        %941 = vmatprep.mubr.bf16.mxu0 0
        %942 = vmatmul.mubr.bf16.gmra.mrb[0].mxu0 %v899
        %v943 = vpop.f32.mrb[0].mxu0
        %v944 = vadd.f32 0.0, %v943
        %v945 = vpop.f32.mrb[0].mxu0
        %v946 = vpop.f32.mrb[0].mxu0
        %v947 = vpop.f32.mrb[0].mxu0
        %948 = vdwg.mxu0
        %v949 = vadd.f32 %v857, %v936
        %v950 = vadd.f32 %v858, %v939
        %v951 = vadd.f32 %v859, %v944
        %v952 = vld [vmem:[#allocation2 + $0x10] sm:$0x7]
        %s953 = scalar_lea.vmem %s1, 112
        %v954 = vld [vmem:[%s953] sm:$0xf]
        %v955 = vld [vmem:[%s953 + $0x4] sm:$0xf]
        %v956 = vld [vmem:[%s953 + $0x8] sm:$0xf]
        %v957 = vld [vmem:[%s953 + $0xc] sm:$0xf]
        %v959 = vunpack.c.l.b16 %v952
        %v960 = vpack.c.b16 %v959, %v875
        %vm961 = vsmask.f32 5376
        %v963 = vshrl.u32 %v877, 16
        %v965 = vrot.slane %v963, 2
        %v966 = vshll.u32 %v877, 16
        %v968 = vrot.slane %v966, 3
        %v969 = vor.u32 %v965, %v968
        %v971 = vshrl.u32 %v960, 16
        %v973 = vrot.slane %v971, 2
        %v974 = vshll.u32 %v960, 16
        %v976 = vrot.slane %v974, 3
        %v977 = vor.u32 %v973, %v976
        %v978 = vsel %vm961, %v969, %v977
        %v983 = vunpack.c.l.b16 %v954
        %v984 = vunpack.c.l.b16 %v955
        %v985 = vunpack.c.l.b16 %v956
        %v986 = vunpack.c.l.b16 %v957
        %v987 = vpack.c.b16 %v984, %v983
        %v988 = vpack.c.b16 %v986, %v985
        %v992 = vsel %vm399, %v978, 0
        %v995 = vsel %vm399, %v977, 0
        %997 = vmatprep.subr.bf16.mxu0 0
        %998 = vmatpush1.bf16.msra.mxu0 %v987
        %999 = vmatprep.subr.bf16.mxu0 0
        %1000 = vmatpush1.bf16.msra.mxu0 %v988
        %1001 = vmatprep.subr.bf16.mxu0 0
        %1002 = vmatpush1.bf16.msra.mxu0 0
        %1003 = vmatprep.subr.bf16.mxu0 0
        %1004 = vmatpush1.bf16.msra.mxu0 0
        %1005 = vmatprep.subr.bf16.mxu0 0
        %1006 = vmatpush1.bf16.msra.mxu0 0
        %1007 = vmatprep.subr.bf16.mxu0 0
        %1008 = vmatpush1.bf16.msra.mxu0 0
        %1009 = vmatprep.subr.bf16.mxu0 0
        %1010 = vmatpush1.bf16.msra.mxu0 0
        %1011 = vmatprep.subr.bf16.mxu0 0
        %1012 = vmatpush1.bf16.msra.mxu0 0
        %1013 = vmatprep.subr.bf16.mxu0 0
        %1014 = vmatpush1.bf16.msra.mxu0 0
        %1015 = vmatprep.subr.bf16.mxu0 0
        %1016 = vmatpush1.bf16.msra.mxu0 0
        %1017 = vmatprep.subr.bf16.mxu0 0
        %1018 = vmatpush1.bf16.msra.mxu0 0
        %1019 = vmatprep.subr.bf16.mxu0 0
        %1020 = vmatpush1.bf16.msra.mxu0 0
        %1021 = vmatprep.subr.bf16.mxu0 0
        %1022 = vmatpush1.bf16.msra.mxu0 0
        %1023 = vmatprep.subr.bf16.mxu0 0
        %1024 = vmatpush1.bf16.msra.mxu0 0
        %1025 = vmatprep.subr.bf16.mxu0 0
        %1026 = vmatpush1.bf16.msra.mxu0 0
        %1027 = vmatprep.subr.bf16.mxu0 0
        %1028 = vmatpush1.bf16.msra.mxu0 0
        %1029 = vmatprep.mubr.bf16.mxu0 0
        %1030 = vmatmul.mubr.bf16.gmra.mrb[0].mxu0 %v992
        %v1031 = vpop.f32.mrb[0].mxu0
        %v1032 = vadd.f32 0.0, %v1031
        %v1033 = vpop.f32.mrb[0].mxu0
        %v1034 = vpop.f32.mrb[0].mxu0
        %v1035 = vadd.f32 0.0, %v1034
        %v1036 = vpop.f32.mrb[0].mxu0
        %1037 = vmatprep.mubr.bf16.mxu0 0
        %1038 = vmatmul.mubr.bf16.gmra.mrb[0].mxu0 %v995
        %v1039 = vpop.f32.mrb[0].mxu0
        %v1040 = vadd.f32 0.0, %v1039
        %v1041 = vpop.f32.mrb[0].mxu0
        %v1042 = vpop.f32.mrb[0].mxu0
        %v1043 = vpop.f32.mrb[0].mxu0
        %1044 = vdwg.mxu0
        %v1045 = vadd.f32 %v949, %v1032
        %v1046 = vadd.f32 %v950, %v1035
        %v1047 = vadd.f32 %v951, %v1040
        %v1048 = vld [vmem:[#allocation2 + $0x4] sm:$0x8]
        %s1049 = scalar_lea.vmem %s1, 128
        %v1050 = vld [vmem:[%s1049] sm:$0xf]
        %v1051 = vld [vmem:[%s1049 + $0x4] sm:$0xf]
        %v1052 = vld [vmem:[%s1049 + $0x8] sm:$0xf]
        %v1053 = vld [vmem:[%s1049 + $0xc] sm:$0xf]
        %v1055 = vunpack.c.l.b16 %v1048
        %v1056 = vpack.c.b16 %v874, %v1055
        %v1057 = vrot.slane %v1056, 3
        %v1058 = vrot.slane %v960, 3
        %v1059 = vsel %vm615, %v1057, %v1058
        %v1064 = vunpack.c.l.b16 %v1050
        %v1065 = vunpack.c.l.b16 %v1051
        %v1066 = vunpack.c.l.b16 %v1052
        %v1067 = vunpack.c.l.b16 %v1053
        %v1068 = vpack.c.b16 %v1065, %v1064
        %v1069 = vpack.c.b16 %v1067, %v1066
        %v1073 = vsel %vm399, %v1059, 0
        %v1076 = vsel %vm399, %v1058, 0
        %1078 = vmatprep.subr.bf16.mxu0 0
        %1079 = vmatpush1.bf16.msra.mxu0 %v1068
        %1080 = vmatprep.subr.bf16.mxu0 0
        %1081 = vmatpush1.bf16.msra.mxu0 %v1069
        %1082 = vmatprep.subr.bf16.mxu0 0
        %1083 = vmatpush1.bf16.msra.mxu0 0
        %1084 = vmatprep.subr.bf16.mxu0 0
        %1085 = vmatpush1.bf16.msra.mxu0 0
        %1086 = vmatprep.subr.bf16.mxu0 0
        %1087 = vmatpush1.bf16.msra.mxu0 0
        %1088 = vmatprep.subr.bf16.mxu0 0
        %1089 = vmatpush1.bf16.msra.mxu0 0
        %1090 = vmatprep.subr.bf16.mxu0 0
        %1091 = vmatpush1.bf16.msra.mxu0 0
        %1092 = vmatprep.subr.bf16.mxu0 0
        %1093 = vmatpush1.bf16.msra.mxu0 0
        %1094 = vmatprep.subr.bf16.mxu0 0
        %1095 = vmatpush1.bf16.msra.mxu0 0
        %1096 = vmatprep.subr.bf16.mxu0 0
        %1097 = vmatpush1.bf16.msra.mxu0 0
        %1098 = vmatprep.subr.bf16.mxu0 0
        %1099 = vmatpush1.bf16.msra.mxu0 0
        %1100 = vmatprep.subr.bf16.mxu0 0
        %1101 = vmatpush1.bf16.msra.mxu0 0
        %1102 = vmatprep.subr.bf16.mxu0 0
        %1103 = vmatpush1.bf16.msra.mxu0 0
        %1104 = vmatprep.subr.bf16.mxu0 0
        %1105 = vmatpush1.bf16.msra.mxu0 0
        %1106 = vmatprep.subr.bf16.mxu0 0
        %1107 = vmatpush1.bf16.msra.mxu0 0
        %1108 = vmatprep.subr.bf16.mxu0 0
        %1109 = vmatpush1.bf16.msra.mxu0 0
        %1110 = vmatprep.mubr.bf16.mxu0 0
        %1111 = vmatmul.mubr.bf16.gmra.mrb[0].mxu0 %v1073
        %v1112 = vpop.f32.mrb[0].mxu0
        %v1113 = vadd.f32 0.0, %v1112
        %v1114 = vpop.f32.mrb[0].mxu0
        %v1115 = vpop.f32.mrb[0].mxu0
        %v1116 = vadd.f32 0.0, %v1115
        %v1117 = vpop.f32.mrb[0].mxu0
        %1118 = vmatprep.mubr.bf16.mxu0 0
        %1119 = vmatmul.mubr.bf16.gmra.mrb[0].mxu0 %v1076
        %v1120 = vpop.f32.mrb[0].mxu0
        %v1121 = vadd.f32 0.0, %v1120
        %v1122 = vpop.f32.mrb[0].mxu0
        %v1123 = vpop.f32.mrb[0].mxu0
        %v1124 = vpop.f32.mrb[0].mxu0
        %1125 = vdwg.mxu0
        %v1126 = vadd.f32 %v1045, %v1113
        %v1127 = vadd.f32 %v1046, %v1116
        %v1128 = vadd.f32 %v1047, %v1121
        %v1129 = vld [vmem:[%s2] sm:$0x1]
        %v1131 = vlaneseq
        %v1132 = vshrl.u32 %v1131, 7
        %v1133 = vsub.s32 0, %v1132
        %v1134 = vrot.slane %v1129, %v1133
        %v1136 = vadd.f32 %v1126, %v1134
        %v1137 = vadd.f32 %v1127, %v1134
        %v1138 = vadd.f32 %v1128, %v1134
        %v1139 = vmax.f32 %v1136, 0.0
        %v1140 = vmax.f32 %v1137, 0.0
        %v1141 = vmax.f32 %v1138, 0.0
        %v1142 = vpack.c.bf16 %v1140, %v1139
        %v1143 = vpack.c.bf16 %v1141, %v1141
        %v1144 = vld [vmem:[%s3] sm:$0xf]
        %v1145 = vld [vmem:[%s4] sm:$0x1]
        %v1147 = vlaneseq
        %v1148 = vshrl.u32 %v1147, 7
        %v1149 = vsub.s32 0, %v1148
        %v1150 = vrot.slane %v1145, %v1149
        %vm1152 = vcmask 64512
        %v1154 = vsel %vm1152, %v1142, 0
        %v1157 = vsel %vm1152, %v1143, 0
        %vm1159 = vcmask 1043456
        %v1161 = vsel %vm1159, %v1144, 0
        %1163 = vmatprep.subr.bf16.mxu0 0
        %1164 = vmatpush1.bf16.msra.mxu0 %v1161
        %1165 = vmatprep.subr.bf16.mxu0 0
        %1166 = vmatpush1.bf16.msra.mxu0 0
        %1167 = vmatprep.subr.bf16.mxu0 0
        %1168 = vmatpush1.bf16.msra.mxu0 0
        %1169 = vmatprep.subr.bf16.mxu0 0
        %1170 = vmatpush1.bf16.msra.mxu0 0
        %1171 = vmatprep.subr.bf16.mxu0 0
        %1172 = vmatpush1.bf16.msra.mxu0 0
        %1173 = vmatprep.subr.bf16.mxu0 0
        %1174 = vmatpush1.bf16.msra.mxu0 0
        %1175 = vmatprep.subr.bf16.mxu0 0
        %1176 = vmatpush1.bf16.msra.mxu0 0
        %1177 = vmatprep.subr.bf16.mxu0 0
        %1178 = vmatpush1.bf16.msra.mxu0 0
        %1179 = vmatprep.subr.bf16.mxu0 0
        %1180 = vmatpush1.bf16.msra.mxu0 0
        %1181 = vmatprep.subr.bf16.mxu0 0
        %1182 = vmatpush1.bf16.msra.mxu0 0
        %1183 = vmatprep.subr.bf16.mxu0 0
        %1184 = vmatpush1.bf16.msra.mxu0 0
        %1185 = vmatprep.subr.bf16.mxu0 0
        %1186 = vmatpush1.bf16.msra.mxu0 0
        %1187 = vmatprep.subr.bf16.mxu0 0
        %1188 = vmatpush1.bf16.msra.mxu0 0
        %1189 = vmatprep.subr.bf16.mxu0 0
        %1190 = vmatpush1.bf16.msra.mxu0 0
        %1191 = vmatprep.subr.bf16.mxu0 0
        %1192 = vmatpush1.bf16.msra.mxu0 0
        %1193 = vmatprep.subr.bf16.mxu0 0
        %1194 = vmatpush1.bf16.msra.mxu0 0
        %1195 = vmatprep.mubr.bf16.mxu0 0
        %1196 = vmatmul.mubr.bf16.gmra.mrb[0].mxu0 %v1154
        %v1197 = vpop.f32.mrb[0].mxu0
        %v1198 = vadd.f32 %v1150, %v1197
        %v1199 = vpop.f32.mrb[0].mxu0
        %v1200 = vpop.f32.mrb[0].mxu0
        %v1201 = vadd.f32 %v1150, %v1200
        %v1202 = vpop.f32.mrb[0].mxu0
        %1203 = vmatprep.mubr.bf16.mxu0 0
        %1204 = vmatmul.mubr.bf16.gmra.mrb[0].mxu0 %v1157
        %v1205 = vpop.f32.mrb[0].mxu0
        %v1206 = vadd.f32 %v1150, %v1205
        %v1207 = vpop.f32.mrb[0].mxu0
        %v1208 = vpop.f32.mrb[0].mxu0
        %v1209 = vpop.f32.mrb[0].mxu0
        %1210 = vdwg.mxu0
        %v1214 = vcombine.high %v1198, %v1198
        %v1216 = vunpack.c.l.s4 1983009808
        %v1217 = vunpack.c.0.s8 %v1216
        %v1218 = vlaneseq
        %v1219 = vshrl.u32 %v1218, 7
        %v1220 = vsub.s32 %v1217, %v1219
        %v1221 = vrot.slane %v1198, %v1220
        %v1223 = vunpack.c.l.s4 1983009808
        %v1224 = vunpack.c.0.s8 %v1223
        %v1225 = vlaneseq
        %v1226 = vshrl.u32 %v1225, 7
        %v1227 = vsub.s32 %v1224, %v1226
        %v1228 = vrot.slane %v1214, %v1227
        %v1229 = vcombine.high %v1221, %v1221
        %v1230 = vcombine.high %v1228, %v1228
        %v1231 = vcombine.high %v1201, %v1201
        %v1233 = vunpack.c.l.s4 1983009808
        %v1234 = vunpack.c.0.s8 %v1233
        %v1235 = vlaneseq
        %v1236 = vshrl.u32 %v1235, 7
        %v1237 = vsub.s32 %v1234, %v1236
        %v1238 = vrot.slane %v1201, %v1237
        %v1240 = vunpack.c.l.s4 1983009808
        %v1241 = vunpack.c.0.s8 %v1240
        %v1242 = vlaneseq
        %v1243 = vshrl.u32 %v1242, 7
        %v1244 = vsub.s32 %v1241, %v1243
        %v1245 = vrot.slane %v1231, %v1244
        %v1246 = vcombine.high %v1245, %v1245
        %v1247 = vcombine.high %v1206, %v1206
        %v1249 = vunpack.c.l.s4 1983009808
        %v1250 = vunpack.c.0.s8 %v1249
        %v1251 = vlaneseq
        %v1252 = vshrl.u32 %v1251, 7
        %v1253 = vsub.s32 %v1250, %v1252
        %v1254 = vrot.slane %v1206, %v1253
        %v1256 = vunpack.c.l.s4 1983009808
        %v1257 = vunpack.c.0.s8 %v1256
        %v1258 = vlaneseq
        %v1259 = vshrl.u32 %v1258, 7
        %v1260 = vsub.s32 %v1257, %v1259
        %v1261 = vrot.slane %v1247, %v1260
        %v1262 = vcombine.high %v1254, %v1254
        %v1271 = vld [vmem:[%s222] sm:$0x3]
        %v1272 = vld [vmem:[%s222 + $0x2] sm:$0x3]
        %v1273 = vld [vmem:[%s222 + $0x4] sm:$0x3]
        %v1274 = vld [vmem:[%s222 + $0x6] sm:$0x3]
        %v1275 = vunpack.c.l.bf16 %v1271
        %v1276 = vunpack.c.l.bf16 %v1272
        %v1277 = vunpack.c.l.bf16 %v1273
        %v1278 = vunpack.c.l.bf16 %v1274
        %v1284 = vunpack.c.l.s4 1983009808
        %v1285 = vunpack.c.0.s8 %v1284
        %v1286 = vlaneseq
        %v1287 = vshrl.u32 %v1286, 7
        %v1288 = vsub.s32 %v1285, %v1287
        %v1289 = vrot.slane %v1275, %v1288
        %v1290 = vcombine.high %v1289, %v1289
        %v1292 = vunpack.c.l.s4 1983009808
        %v1293 = vunpack.c.0.s8 %v1292
        %v1294 = vlaneseq
        %v1295 = vshrl.u32 %v1294, 7
        %v1296 = vsub.s32 %v1293, %v1295
        %v1297 = vrot.slane %v1276, %v1296
        %v1298 = vcombine.high %v1297, %v1297
        %v1300 = vunpack.c.l.s4 1983009808
        %v1301 = vunpack.c.0.s8 %v1300
        %v1302 = vlaneseq
        %v1303 = vshrl.u32 %v1302, 7
        %v1304 = vsub.s32 %v1301, %v1303
        %v1305 = vrot.slane %v1277, %v1304
        %v1306 = vcombine.high %v1305, %v1305
        %v1308 = vunpack.c.l.s4 1983009808
        %v1309 = vunpack.c.0.s8 %v1308
        %v1310 = vlaneseq
        %v1311 = vshrl.u32 %v1310, 7
        %v1312 = vsub.s32 %v1309, %v1311
        %v1313 = vrot.slane %v1278, %v1312
        %v1314 = vcombine.high %v1313, %v1313
        %v1323 = vadd.f32 %v1221, %v1289
        %v1324 = vadd.f32 %v1229, %v1290
        %v1325 = vadd.f32 %v1230, %v1297
        %v1326 = vadd.f32 %v1238, %v1298
        %v1327 = vadd.f32 %v1245, %v1305
        %v1328 = vadd.f32 %v1246, %v1306
        %v1329 = vadd.f32 %v1262, %v1313
        %v1330 = vadd.f32 %v1261, %v1314
        %v1331 = vmax.f32 %v1323, 0.0
        %v1332 = vmax.f32 %v1324, 0.0
        %v1333 = vmax.f32 %v1325, 0.0
        %v1334 = vmax.f32 %v1326, 0.0
        %v1335 = vmax.f32 %v1327, 0.0
        %v1336 = vmax.f32 %v1328, 0.0
        %v1337 = vmax.f32 %v1329, 0.0
        %v1338 = vmax.f32 %v1330, 0.0
        %v1347 = vcombine.low %v1331, %v1332
        %v1349 = vunpack.c.l.s4 1983009808
        %v1350 = vunpack.c.0.s8 %v1349
        %v1351 = vlaneseq
        %v1352 = vshrl.u32 %v1351, 7
        %v1353 = vsub.s32 %v1350, %v1352
        %v1354 = vrot.slane %v1347, %v1353
        %v1355 = vcombine.low %v1333, %v1334
        %v1357 = vunpack.c.l.s4 1983009808
        %v1358 = vunpack.c.0.s8 %v1357
        %v1359 = vlaneseq
        %v1360 = vshrl.u32 %v1359, 7
        %v1361 = vsub.s32 %v1358, %v1360
        %v1362 = vrot.slane %v1355, %v1361
        %v1363 = vcombine.low %v1335, %v1336
        %v1365 = vunpack.c.l.s4 1983009808
        %v1366 = vunpack.c.0.s8 %v1365
        %v1367 = vlaneseq
        %v1368 = vshrl.u32 %v1367, 7
        %v1369 = vsub.s32 %v1366, %v1368
        %v1370 = vrot.slane %v1363, %v1369
        %v1371 = vcombine.low %v1337, %v1338
        %v1373 = vunpack.c.l.s4 1983009808
        %v1374 = vunpack.c.0.s8 %v1373
        %v1375 = vlaneseq
        %v1376 = vshrl.u32 %v1375, 7
        %v1377 = vsub.s32 %v1374, %v1376
        %v1378 = vrot.slane %v1371, %v1377
        %1383 = vst.msk [vmem:[%s217] sm:$0xf] %vm224, %v1354
        %1384 = vst.msk [vmem:[%s217 + $0x4] sm:$0xf] %vm224, %v1362
        %1385 = vst.msk [vmem:[%s217 + $0x8] sm:$0xf] %vm224, %v1370
        %1386 = vst.msk [vmem:[%s217 + $0xc] sm:$0xf] %vm224, %v1378
        %s1387 = sand.u32 %s137, 1
        %s1388 = scalar_lea.sflag [#allocation4], %s1387
        %s1389 = sand.u32 %s137, 1
        %s1390 = smul.addr %s1389, 16
        %s1391 = scalar_lea.vmem [#allocation3], %s1390
        // Predicated region
        $region41: #{encoder_forward.9} parent=39 // pred_check
          %p1392 = pneg %p147
        $region42: #{encoder_forward.9} parent=39 // pred_check_branch
          %1394 = sbr.rel (%p1392) target = $region44
        $region43: #{encoder_forward.9} parent=39 // pred_region
          %s1396 = ssub.s32 256, 256
          %1397 = vsyncadd %s1388, %s1396
          %s1398 = smul.addr %s19, 4
          %s1399 = smul.addr %s1398, 64
          %s1400 = scalar_lea.hbm %s5, %s1399
          %s1401 = sshll.u32 %s1391, 4
          %s1402 = int_to_ptr.vmem [resolvable:$true] %s1401
          %1407 = dma.vmem_to_hbm [thread:$0]  %s1402, 256, %s1400, %s1388, 64, 64, 4
        $region44: #{encoder_forward.9} parent=39 // pred_fallthru
          _
      $region40: #{encoder_forward.9} parent=5 // pred_fallthru
        _
      %p1408 = scmp.le.s32.totalorder 2, %s14
      // Predicated region
      $region45: #{encoder_forward.9} parent=5 // pred_check
        %p1409 = pneg %p1408
      $region46: #{encoder_forward.9} parent=5 // pred_check_branch
        %1411 = sbr.rel (%p1409) target = $region48
      $region47: #{encoder_forward.9} parent=5 // pred_region
        %s1412 = ssub.s32 %s14, 2
        // Predicated region
        $region49: #{encoder_forward.9} parent=47 // pred_check
          %p1413 = pneg %p153
        $region50: #{encoder_forward.9} parent=47 // pred_check_branch
          %1415 = sbr.rel (%p1413) target = $region52
        $region51: #{encoder_forward.9} parent=47 // pred_region
          %s1416 = sand.u32 %s138, 1
          %s1417 = scalar_lea.sflag [#allocation4], %s1416
          %s1418 = sand.u32 %s138, 1
          %s1419 = smul.addr %s1418, 16
          %s1420 = scalar_lea.vmem [#allocation3], %s1419
          %1421 = dma.done %s1417, 256
        $region52: #{encoder_forward.9} parent=47 // pred_fallthru
          _
      $region48: #{encoder_forward.9} parent=5 // pred_fallthru
        _
    $region6: #{encoder_forward.9} parent=1 // loop_footer
      %s18 = sadd.s32 1, %s14
    $region7: #{encoder_forward.9} parent=1 // loop_footer_branch
      %13 = sbr.rel target = $region3
    $region8: #{encoder_forward.9} parent=1 // loop_exit
      _
    %1422 = vsyncpa [#allocation4], 1
    %s1423 = scalar_lea.sflag [#allocation4], 1
    %1424 = vsyncpa %s1423, 1

</llo_original>
